<compile_context>
chip_gen: v7x
topology: tpu7x:2x2x1
jax: 0.10.0
libtpu: 0.0.40
codegen_flags: <defaults>
</compile_context>

<pallas_src>
import functools

import jax
import jax.numpy as jnp
from jax.experimental import pallas as pl
from jax.experimental.pallas import tpu as pltpu


def gru_net_kernel(len_ref, x_ref, h0_ref,
                   w0r_ref, w0z_ref, w0n_ref,
                   b0r_ref, b0z_ref, b0n_ref,
                   u0r_ref, u0z_ref, u0n_ref, bh0n_ref,
                   w1r_ref, w1z_ref, b1r_ref, b1z_ref,
                   w1nx_ref, w1nh_ref, b1nx_ref, b1nh_ref,
                   woutT_ref, bout_ref,
                   out_ref, hfin_ref,
                   gi0r_scr, gi0z_scr, gi0n_scr, go_scr):
    T, B, H = go_scr.shape
    f32 = jnp.float32

    # ---- hoisted layer-0 input projection (emb folded in), all timesteps ----
    x2d = x_ref[...]                                                # (T*B, I)
    gi0r = jnp.dot(x2d, w0r_ref[...], preferred_element_type=f32) + b0r_ref[...]
    gi0z = jnp.dot(x2d, w0z_ref[...], preferred_element_type=f32) + b0z_ref[...]
    gi0n = jnp.dot(x2d, w0n_ref[...], preferred_element_type=f32) + b0n_ref[...]
    for t in range(T):              # one-time static scatter into per-t slabs
        gi0r_scr[t] = gi0r[t * B:(t + 1) * B, :]
        gi0z_scr[t] = gi0z[t * B:(t + 1) * B, :]
        gi0n_scr[t] = gi0n[t * B:(t + 1) * B, :]

    # ---- loop-invariant loads / broadcasts (hoisted out of the recurrence) ----
    lengths = len_ref[...]                                          # (B, 1) i32
    bh0n = jnp.broadcast_to(bh0n_ref[...], (B, H))
    b1r = jnp.broadcast_to(b1r_ref[...], (B, H))
    b1z = jnp.broadcast_to(b1z_ref[...], (B, H))
    b1nx = jnp.broadcast_to(b1nx_ref[...], (B, H))
    b1nh = jnp.broadcast_to(b1nh_ref[...], (B, H))

    def step(t, carry):
        h0, h1 = carry
        mask = lengths > t                       # (B, 1): True where t < len[b]

        # layer 0: input gates precomputed; three per-gate hidden dots
        # (no lane-crossing 3H slices).
        r0 = jax.nn.sigmoid(
            gi0r_scr[t] + jnp.dot(h0, u0r_ref[...], preferred_element_type=f32))
        z0 = jax.nn.sigmoid(
            gi0z_scr[t] + jnp.dot(h0, u0z_ref[...], preferred_element_type=f32))
        n0 = jnp.tanh(
            gi0n_scr[t]
            + r0 * (jnp.dot(h0, u0n_ref[...], preferred_element_type=f32) + bh0n))
        h0n = jnp.where(mask, (1.0 - z0) * n0 + z0 * h0, h0)   # freeze past length

        # layer 1: r/z fused over concat([x1, h1]); inter-layer dropout = identity.
        cat = jnp.concatenate([h0n, h1], axis=1)                # (B, 2H)
        r1 = jax.nn.sigmoid(
            jnp.dot(cat, w1r_ref[...], preferred_element_type=f32) + b1r)
        z1 = jax.nn.sigmoid(
            jnp.dot(cat, w1z_ref[...], preferred_element_type=f32) + b1z)
        n1 = jnp.tanh(
            jnp.dot(h0n, w1nx_ref[...], preferred_element_type=f32) + b1nx
            + r1 * (jnp.dot(h1, w1nh_ref[...], preferred_element_type=f32) + b1nh))
        h1n = jnp.where(mask, (1.0 - z1) * n1 + z1 * h1, h1)

        # pad_packed zero padding, staged for the hoisted output projection.
        go_scr[t] = jnp.where(mask, h1n, 0.0)
        return (h0n, h1n)

    h0_fin, h1_fin = jax.lax.fori_loop(
        0, T, step, (h0_ref[0], h0_ref[1]), unroll=True)
    hfin_ref[0] = h0_fin
    hfin_ref[1] = h1_fin

    # ---- hoisted output Linear + sigmoid (dropout = identity in eval) ----
    woutT = woutT_ref[...]
    bout = bout_ref[...]
    for t in range(T):                 # independent dots, pipelined on the MXU
        out_ref[t] = jax.nn.sigmoid(
            jnp.dot(go_scr[t], woutT, preferred_element_type=f32) + bout)


def gru_net_forward(x, lengths, h0, params):
    """x: (T,B,I) f32, lengths: (B,) int (sorted desc, max == T), h0: (2,B,H)."""
    T, B, I = x.shape
    L, _, H = h0.shape
    C = params["W_out"].shape[0]
    assert L == 2, "kernel is specialized for n_layers == 2"

    # ---- host-side weight prep ----
    # Fold the embedding Linear into the layer-0 input projection:
    #   gi0 = x @ (W_ih0 @ W_emb)^T + (W_ih0 @ b_emb + b_ih0)
    W_fold = params["W_ih0"] @ params["W_emb"]                       # (3H, I)
    b_fold = params["W_ih0"] @ params["b_emb"] + params["b_ih0"]     # (3H,)

    def gate(m, k):                        # rows of gate k (PyTorch order r,z,n)
        return m[k * H:(k + 1) * H]

    row = lambda v: v.reshape(1, -1)

    Whh0, bhh0 = params["W_hh0"], params["b_hh0"]
    Wih1, bih1 = params["W_ih1"], params["b_ih1"]
    Whh1, bhh1 = params["W_hh1"], params["b_hh1"]

    operands = (
        lengths.astype(jnp.int32).reshape(B, 1),                     # (B, 1)
        x.reshape(T * B, I),                                         # (T*B, I)
        h0,                                                          # (2, B, H)
        # layer-0 input projection per gate (b_hh0 folded in for r/z)
        gate(W_fold, 0).T, gate(W_fold, 1).T, gate(W_fold, 2).T,     # (I, H)
        row(gate(b_fold, 0) + gate(bhh0, 0)),
        row(gate(b_fold, 1) + gate(bhh0, 1)),
        row(gate(b_fold, 2)),
        # layer-0 hidden projection per gate
        gate(Whh0, 0).T, gate(Whh0, 1).T, gate(Whh0, 2).T,           # (H, H)
        row(gate(bhh0, 2)),
        # layer-1 r/z fused over [x1, h1]
        jnp.concatenate([gate(Wih1, 0), gate(Whh1, 0)], axis=1).T,   # (2H, H)
        jnp.concatenate([gate(Wih1, 1), gate(Whh1, 1)], axis=1).T,   # (2H, H)
        row(gate(bih1, 0) + gate(bhh1, 0)),
        row(gate(bih1, 1) + gate(bhh1, 1)),
        # layer-1 n gate (kept separate because of r * (...) )
        gate(Wih1, 2).T, gate(Whh1, 2).T,                            # (H, H)
        row(gate(bih1, 2)), row(gate(bhh1, 2)),
        # output projection
        params["W_out"].T, row(params["b_out"]),                     # (H,C),(1,C)
    )

    def full_spec(arr):
        nd = arr.ndim
        return pl.BlockSpec(arr.shape, lambda i, nd=nd: (0,) * nd)

    in_specs = [full_spec(op) for op in operands]
    out_specs = [pl.BlockSpec((T, B, C), lambda i: (0, 0, 0)),
                 pl.BlockSpec((L, B, H), lambda i: (0, 0, 0))]

    out, h_fin = pl.pallas_call(
        gru_net_kernel,
        out_shape=(jax.ShapeDtypeStruct((T, B, C), jnp.float32),
                   jax.ShapeDtypeStruct((L, B, H), jnp.float32)),
        grid_spec=pltpu.PrefetchScalarGridSpec(
            num_scalar_prefetch=0,
            grid=(1,),                    # single step: recurrence is in-kernel
            in_specs=in_specs,
            out_specs=out_specs,
            scratch_shapes=[pltpu.VMEM((T, B, H), jnp.float32),   # gi0 r
                            pltpu.VMEM((T, B, H), jnp.float32),   # gi0 z
                            pltpu.VMEM((T, B, H), jnp.float32),   # gi0 n
                            pltpu.VMEM((T, B, H), jnp.float32)],  # masked gru out
        ),
        compiler_params=pltpu.CompilerParams(
            dimension_semantics=("arbitrary",)),
    )(*operands)
    return out, h_fin


# --------------------- pure-JAX reference (for validation) ---------------------
def gru_net_reference(x, lengths, h0, params):
    T, B, I = x.shape
    H = params["W_hh0"].shape[1]

    e = x.reshape(-1, I) @ params["W_emb"].T + params["b_emb"]
    e = e.reshape(T, B, -1)

    def cell(x_in, h_prev, wih, whh, bih, bhh):
        gi = x_in @ wih.T + bih
        gh = h_prev @ whh.T + bhh
        r = jax.nn.sigmoid(gi[:, :H] + gh[:, :H])
        z = jax.nn.sigmoid(gi[:, H:2 * H] + gh[:, H:2 * H])
        n = jnp.tanh(gi[:, 2 * H:] + r * gh[:, 2 * H:])
        return (1.0 - z) * n + z * h_prev

    h = [h0[0], h0[1]]
    outs = []
    for t in range(T):
        mask = (lengths > t).reshape(B, 1)
        h0n = cell(e[t], h[0], params["W_ih0"], params["W_hh0"],
                   params["b_ih0"], params["b_hh0"])
        h[0] = jnp.where(mask, h0n, h[0])
        h1n = cell(h[0], h[1], params["W_ih1"], params["W_hh1"],
                   params["b_ih1"], params["b_hh1"])
        h[1] = jnp.where(mask, h1n, h[1])
        gru_out = jnp.where(mask, h[1], 0.0)
        outs.append(jax.nn.sigmoid(gru_out @ params["W_out"].T + params["b_out"]))
    return jnp.stack(outs, axis=0), jnp.stack(h, axis=0)


# ------------------------------------ main ------------------------------------
if __name__ == "__main__":
    # small shapes: seq=8, batch=4, input=8, embed=16, hidden=32, layers=2, classes=5
    T, B, I, E, H, L, C = 8, 4, 8, 16, 32, 2, 5

    key = jax.random.PRNGKey(0)
    ks = jax.random.split(key, 10)
    u = functools.partial(jax.random.uniform, minval=-0.01, maxval=0.01,
                          dtype=jnp.float32)

    # deterministic params matching GRUNet.init_weight (uniform(-0.01,0.01), zero bias)
    params = {
        "W_emb": u(ks[0], (E, I)), "b_emb": jnp.zeros((E,), jnp.float32),
        "W_ih0": u(ks[1], (3 * H, E)), "W_hh0": u(ks[2], (3 * H, H)),
        "b_ih0": jnp.zeros((3 * H,), jnp.float32),
        "b_hh0": jnp.zeros((3 * H,), jnp.float32),
        "W_ih1": u(ks[3], (3 * H, H)), "W_hh1": u(ks[4], (3 * H, H)),
        "b_ih1": jnp.zeros((3 * H,), jnp.float32),
        "b_hh1": jnp.zeros((3 * H,), jnp.float32),
        "W_out": u(ks[5], (C, H)), "b_out": jnp.zeros((C,), jnp.float32),
    }

    x = jax.random.normal(ks[6], (T, B, I), dtype=jnp.float32)
    lengths = jnp.array([8, 7, 5, 3], dtype=jnp.int32)   # sorted desc, max == T
    h0 = jnp.zeros((L, B, H), dtype=jnp.float32)         # init_hidden

    out, h_fin = gru_net_forward(x, lengths, h0, params)
    out, h_fin = jax.block_until_ready((out, h_fin))

    out_ref, h_ref = gru_net_reference(x, lengths, h0, params)
    assert jnp.allclose(out, out_ref, atol=1e-5), "output mismatch vs reference"
    assert jnp.allclose(h_fin, h_ref, atol=1e-5), "hidden mismatch vs reference"

    print("KERNEL_OK")
</pallas_src>

<mosaic_0001>
module attributes {stable_mosaic.version = 11 : i64} {
  func.func @gru_net_kernel(%arg0: i32, %arg1: memref<4x1xi32, #tpu.memory_space<vmem>>, %arg2: memref<32x8xf32, #tpu.memory_space<vmem>>, %arg3: memref<2x4x32xf32, #tpu.memory_space<vmem>>, %arg4: memref<8x32xf32, #tpu.memory_space<vmem>>, %arg5: memref<8x32xf32, #tpu.memory_space<vmem>>, %arg6: memref<8x32xf32, #tpu.memory_space<vmem>>, %arg7: memref<1x32xf32, #tpu.memory_space<vmem>>, %arg8: memref<1x32xf32, #tpu.memory_space<vmem>>, %arg9: memref<1x32xf32, #tpu.memory_space<vmem>>, %arg10: memref<32x32xf32, #tpu.memory_space<vmem>>, %arg11: memref<32x32xf32, #tpu.memory_space<vmem>>, %arg12: memref<32x32xf32, #tpu.memory_space<vmem>>, %arg13: memref<1x32xf32, #tpu.memory_space<vmem>>, %arg14: memref<64x32xf32, #tpu.memory_space<vmem>>, %arg15: memref<64x32xf32, #tpu.memory_space<vmem>>, %arg16: memref<1x32xf32, #tpu.memory_space<vmem>>, %arg17: memref<1x32xf32, #tpu.memory_space<vmem>>, %arg18: memref<32x32xf32, #tpu.memory_space<vmem>>, %arg19: memref<32x32xf32, #tpu.memory_space<vmem>>, %arg20: memref<1x32xf32, #tpu.memory_space<vmem>>, %arg21: memref<1x32xf32, #tpu.memory_space<vmem>>, %arg22: memref<32x5xf32, #tpu.memory_space<vmem>>, %arg23: memref<1x5xf32, #tpu.memory_space<vmem>>, %arg24: memref<8x4x5xf32, #tpu.memory_space<vmem>>, %arg25: memref<2x4x32xf32, #tpu.memory_space<vmem>>, %arg26: memref<8x4x32xf32, #tpu.memory_space<vmem>>, %arg27: memref<8x4x32xf32, #tpu.memory_space<vmem>>, %arg28: memref<8x4x32xf32, #tpu.memory_space<vmem>>, %arg29: memref<8x4x32xf32, #tpu.memory_space<vmem>>) attributes {dimension_semantics = [#tpu.dimension_semantics<arbitrary>], iteration_bounds = array<i64: 1>, scalar_prefetch = 0 : i64, scratch_operands = 4 : i64, tpu.core_type = #tpu.core_type<tc>, window_params = [{pipeline_mode = #tpu.pipeline_mode<synchronous>, transform_indices = @transform_0, window_bounds = array<i64: 4, 1>}, {pipeline_mode = #tpu.pipeline_mode<synchronous>, transform_indices = @transform_1, window_bounds = array<i64: 32, 8>}, {pipeline_mode = #tpu.pipeline_mode<synchronous>, transform_indices = @transform_2, window_bounds = array<i64: 2, 4, 32>}, {pipeline_mode = #tpu.pipeline_mode<synchronous>, transform_indices = @transform_3, window_bounds = array<i64: 8, 32>}, {pipeline_mode = #tpu.pipeline_mode<synchronous>, transform_indices = @transform_4, window_bounds = array<i64: 8, 32>}, {pipeline_mode = #tpu.pipeline_mode<synchronous>, transform_indices = @transform_5, window_bounds = array<i64: 8, 32>}, {pipeline_mode = #tpu.pipeline_mode<synchronous>, transform_indices = @transform_6, window_bounds = array<i64: 1, 32>}, {pipeline_mode = #tpu.pipeline_mode<synchronous>, transform_indices = @transform_7, window_bounds = array<i64: 1, 32>}, {pipeline_mode = #tpu.pipeline_mode<synchronous>, transform_indices = @transform_8, window_bounds = array<i64: 1, 32>}, {pipeline_mode = #tpu.pipeline_mode<synchronous>, transform_indices = @transform_9, window_bounds = array<i64: 32, 32>}, {pipeline_mode = #tpu.pipeline_mode<synchronous>, transform_indices = @transform_10, window_bounds = array<i64: 32, 32>}, {pipeline_mode = #tpu.pipeline_mode<synchronous>, transform_indices = @transform_11, window_bounds = array<i64: 32, 32>}, {pipeline_mode = #tpu.pipeline_mode<synchronous>, transform_indices = @transform_12, window_bounds = array<i64: 1, 32>}, {pipeline_mode = #tpu.pipeline_mode<synchronous>, transform_indices = @transform_13, window_bounds = array<i64: 64, 32>}, {pipeline_mode = #tpu.pipeline_mode<synchronous>, transform_indices = @transform_14, window_bounds = array<i64: 64, 32>}, {pipeline_mode = #tpu.pipeline_mode<synchronous>, transform_indices = @transform_15, window_bounds = array<i64: 1, 32>}, {pipeline_mode = #tpu.pipeline_mode<synchronous>, transform_indices = @transform_16, window_bounds = array<i64: 1, 32>}, {pipeline_mode = #tpu.pipeline_mode<synchronous>, transform_indices = @transform_17, window_bounds = array<i64: 32, 32>}, {pipeline_mode = #tpu.pipeline_mode<synchronous>, transform_indices = @transform_18, window_bounds = array<i64: 32, 32>}, {pipeline_mode = #tpu.pipeline_mode<synchronous>, transform_indices = @transform_19, window_bounds = array<i64: 1, 32>}, {pipeline_mode = #tpu.pipeline_mode<synchronous>, transform_indices = @transform_20, window_bounds = array<i64: 1, 32>}, {pipeline_mode = #tpu.pipeline_mode<synchronous>, transform_indices = @transform_21, window_bounds = array<i64: 32, 5>}, {pipeline_mode = #tpu.pipeline_mode<synchronous>, transform_indices = @transform_22, window_bounds = array<i64: 1, 5>}, {pipeline_mode = #tpu.pipeline_mode<synchronous>, transform_indices = @transform_23, window_bounds = array<i64: 8, 4, 5>}, {pipeline_mode = #tpu.pipeline_mode<synchronous>, transform_indices = @transform_24, window_bounds = array<i64: 2, 4, 32>}]} {
    %c0 = arith.constant 0 : index
    %c0_0 = arith.constant 0 : index
    %0 = vector.load %arg2[%c0, %c0_0] : memref<32x8xf32, #tpu.memory_space<vmem>>, vector<32x8xf32>
    %c0_1 = arith.constant 0 : index
    %c0_2 = arith.constant 0 : index
    %1 = vector.load %arg4[%c0_1, %c0_2] : memref<8x32xf32, #tpu.memory_space<vmem>>, vector<8x32xf32>
    %cst = arith.constant dense<0.000000e+00> : vector<32x32xf32>
    %2 = tpu.matmul %0, %1, %cst {dimension_numbers = #tpu.dot_dimension_numbers<[1], [0], [0], [1], [0, 0, 1, 1], [], []>} : vector<32x8xf32>, vector<8x32xf32>, vector<32x32xf32> -> vector<32x32xf32>
    %c0_3 = arith.constant 0 : index
    %c0_4 = arith.constant 0 : index
    %3 = vector.load %arg7[%c0_3, %c0_4] : memref<1x32xf32, #tpu.memory_space<vmem>>, vector<1x32xf32>
    %4 = vector.broadcast %3 : vector<1x32xf32> to vector<32x32xf32>
    %5 = arith.addf %2, %4 : vector<32x32xf32>
    %c0_5 = arith.constant 0 : index
    %c0_6 = arith.constant 0 : index
    %6 = vector.load %arg5[%c0_5, %c0_6] : memref<8x32xf32, #tpu.memory_space<vmem>>, vector<8x32xf32>
    %cst_7 = arith.constant dense<0.000000e+00> : vector<32x32xf32>
    %7 = tpu.matmul %0, %6, %cst_7 {dimension_numbers = #tpu.dot_dimension_numbers<[1], [0], [0], [1], [0, 0, 1, 1], [], []>} : vector<32x8xf32>, vector<8x32xf32>, vector<32x32xf32> -> vector<32x32xf32>
    %c0_8 = arith.constant 0 : index
    %c0_9 = arith.constant 0 : index
    %8 = vector.load %arg8[%c0_8, %c0_9] : memref<1x32xf32, #tpu.memory_space<vmem>>, vector<1x32xf32>
    %9 = vector.broadcast %8 : vector<1x32xf32> to vector<32x32xf32>
    %10 = arith.addf %7, %9 : vector<32x32xf32>
    %c0_10 = arith.constant 0 : index
    %c0_11 = arith.constant 0 : index
    %11 = vector.load %arg6[%c0_10, %c0_11] : memref<8x32xf32, #tpu.memory_space<vmem>>, vector<8x32xf32>
    %cst_12 = arith.constant dense<0.000000e+00> : vector<32x32xf32>
    %12 = tpu.matmul %0, %11, %cst_12 {dimension_numbers = #tpu.dot_dimension_numbers<[1], [0], [0], [1], [0, 0, 1, 1], [], []>} : vector<32x8xf32>, vector<8x32xf32>, vector<32x32xf32> -> vector<32x32xf32>
    %c0_13 = arith.constant 0 : index
    %c0_14 = arith.constant 0 : index
    %13 = vector.load %arg9[%c0_13, %c0_14] : memref<1x32xf32, #tpu.memory_space<vmem>>, vector<1x32xf32>
    %14 = vector.broadcast %13 : vector<1x32xf32> to vector<32x32xf32>
    %15 = arith.addf %12, %14 : vector<32x32xf32>
    %16 = vector.extract_strided_slice %5 {offsets = [0, 0], sizes = [4, 32], strides = [1, 1]} : vector<32x32xf32> to vector<4x32xf32>
    %c0_15 = arith.constant 0 : index
    %c0_16 = arith.constant 0 : index
    %c0_17 = arith.constant 0 : index
    %17 = vector.load %arg26[%c0_15, %c0_16, %c0_17] : memref<8x4x32xf32, #tpu.memory_space<vmem>>, vector<1x4x32xf32>
    %18 = vector.shape_cast %17 : vector<1x4x32xf32> to vector<4x32xf32>
    %19 = vector.shape_cast %16 : vector<4x32xf32> to vector<1x4x32xf32>
    tpu.vector_store %arg26[%c0_15, %c0_16, %c0_17], %19 {strides = array<i32>} : memref<8x4x32xf32, #tpu.memory_space<vmem>>, vector<1x4x32xf32>,
    %20 = vector.extract_strided_slice %10 {offsets = [0, 0], sizes = [4, 32], strides = [1, 1]} : vector<32x32xf32> to vector<4x32xf32>
    %c0_18 = arith.constant 0 : index
    %c0_19 = arith.constant 0 : index
    %c0_20 = arith.constant 0 : index
    %21 = vector.load %arg27[%c0_18, %c0_19, %c0_20] : memref<8x4x32xf32, #tpu.memory_space<vmem>>, vector<1x4x32xf32>
    %22 = vector.shape_cast %21 : vector<1x4x32xf32> to vector<4x32xf32>
    %23 = vector.shape_cast %20 : vector<4x32xf32> to vector<1x4x32xf32>
    tpu.vector_store %arg27[%c0_18, %c0_19, %c0_20], %23 {strides = array<i32>} : memref<8x4x32xf32, #tpu.memory_space<vmem>>, vector<1x4x32xf32>,
    %24 = vector.extract_strided_slice %15 {offsets = [0, 0], sizes = [4, 32], strides = [1, 1]} : vector<32x32xf32> to vector<4x32xf32>
    %c0_21 = arith.constant 0 : index
    %c0_22 = arith.constant 0 : index
    %c0_23 = arith.constant 0 : index
    %25 = vector.load %arg28[%c0_21, %c0_22, %c0_23] : memref<8x4x32xf32, #tpu.memory_space<vmem>>, vector<1x4x32xf32>
    %26 = vector.shape_cast %25 : vector<1x4x32xf32> to vector<4x32xf32>
    %27 = vector.shape_cast %24 : vector<4x32xf32> to vector<1x4x32xf32>
    tpu.vector_store %arg28[%c0_21, %c0_22, %c0_23], %27 {strides = array<i32>} : memref<8x4x32xf32, #tpu.memory_space<vmem>>, vector<1x4x32xf32>,
    %28 = vector.extract_strided_slice %5 {offsets = [4, 0], sizes = [4, 32], strides = [1, 1]} : vector<32x32xf32> to vector<4x32xf32>
    %c1 = arith.constant 1 : index
    %c0_24 = arith.constant 0 : index
    %c0_25 = arith.constant 0 : index
    %29 = vector.load %arg26[%c1, %c0_24, %c0_25] : memref<8x4x32xf32, #tpu.memory_space<vmem>>, vector<1x4x32xf32>
    %30 = vector.shape_cast %29 : vector<1x4x32xf32> to vector<4x32xf32>
    %31 = vector.shape_cast %28 : vector<4x32xf32> to vector<1x4x32xf32>
    tpu.vector_store %arg26[%c1, %c0_24, %c0_25], %31 {strides = array<i32>} : memref<8x4x32xf32, #tpu.memory_space<vmem>>, vector<1x4x32xf32>,
    %32 = vector.extract_strided_slice %10 {offsets = [4, 0], sizes = [4, 32], strides = [1, 1]} : vector<32x32xf32> to vector<4x32xf32>
    %c1_26 = arith.constant 1 : index
    %c0_27 = arith.constant 0 : index
    %c0_28 = arith.constant 0 : index
    %33 = vector.load %arg27[%c1_26, %c0_27, %c0_28] : memref<8x4x32xf32, #tpu.memory_space<vmem>>, vector<1x4x32xf32>
    %34 = vector.shape_cast %33 : vector<1x4x32xf32> to vector<4x32xf32>
    %35 = vector.shape_cast %32 : vector<4x32xf32> to vector<1x4x32xf32>
    tpu.vector_store %arg27[%c1_26, %c0_27, %c0_28], %35 {strides = array<i32>} : memref<8x4x32xf32, #tpu.memory_space<vmem>>, vector<1x4x32xf32>,
    %36 = vector.extract_strided_slice %15 {offsets = [4, 0], sizes = [4, 32], strides = [1, 1]} : vector<32x32xf32> to vector<4x32xf32>
    %c1_29 = arith.constant 1 : index
    %c0_30 = arith.constant 0 : index
    %c0_31 = arith.constant 0 : index
    %37 = vector.load %arg28[%c1_29, %c0_30, %c0_31] : memref<8x4x32xf32, #tpu.memory_space<vmem>>, vector<1x4x32xf32>
    %38 = vector.shape_cast %37 : vector<1x4x32xf32> to vector<4x32xf32>
    %39 = vector.shape_cast %36 : vector<4x32xf32> to vector<1x4x32xf32>
    tpu.vector_store %arg28[%c1_29, %c0_30, %c0_31], %39 {strides = array<i32>} : memref<8x4x32xf32, #tpu.memory_space<vmem>>, vector<1x4x32xf32>,
    %40 = vector.extract_strided_slice %5 {offsets = [8, 0], sizes = [4, 32], strides = [1, 1]} : vector<32x32xf32> to vector<4x32xf32>
    %c2 = arith.constant 2 : index
    %c0_32 = arith.constant 0 : index
    %c0_33 = arith.constant 0 : index
    %41 = vector.load %arg26[%c2, %c0_32, %c0_33] : memref<8x4x32xf32, #tpu.memory_space<vmem>>, vector<1x4x32xf32>
    %42 = vector.shape_cast %41 : vector<1x4x32xf32> to vector<4x32xf32>
    %43 = vector.shape_cast %40 : vector<4x32xf32> to vector<1x4x32xf32>
    tpu.vector_store %arg26[%c2, %c0_32, %c0_33], %43 {strides = array<i32>} : memref<8x4x32xf32, #tpu.memory_space<vmem>>, vector<1x4x32xf32>,
    %44 = vector.extract_strided_slice %10 {offsets = [8, 0], sizes = [4, 32], strides = [1, 1]} : vector<32x32xf32> to vector<4x32xf32>
    %c2_34 = arith.constant 2 : index
    %c0_35 = arith.constant 0 : index
    %c0_36 = arith.constant 0 : index
    %45 = vector.load %arg27[%c2_34, %c0_35, %c0_36] : memref<8x4x32xf32, #tpu.memory_space<vmem>>, vector<1x4x32xf32>
    %46 = vector.shape_cast %45 : vector<1x4x32xf32> to vector<4x32xf32>
    %47 = vector.shape_cast %44 : vector<4x32xf32> to vector<1x4x32xf32>
    tpu.vector_store %arg27[%c2_34, %c0_35, %c0_36], %47 {strides = array<i32>} : memref<8x4x32xf32, #tpu.memory_space<vmem>>, vector<1x4x32xf32>,
    %48 = vector.extract_strided_slice %15 {offsets = [8, 0], sizes = [4, 32], strides = [1, 1]} : vector<32x32xf32> to vector<4x32xf32>
    %c2_37 = arith.constant 2 : index
    %c0_38 = arith.constant 0 : index
    %c0_39 = arith.constant 0 : index
    %49 = vector.load %arg28[%c2_37, %c0_38, %c0_39] : memref<8x4x32xf32, #tpu.memory_space<vmem>>, vector<1x4x32xf32>
    %50 = vector.shape_cast %49 : vector<1x4x32xf32> to vector<4x32xf32>
    %51 = vector.shape_cast %48 : vector<4x32xf32> to vector<1x4x32xf32>
    tpu.vector_store %arg28[%c2_37, %c0_38, %c0_39], %51 {strides = array<i32>} : memref<8x4x32xf32, #tpu.memory_space<vmem>>, vector<1x4x32xf32>,
    %52 = vector.extract_strided_slice %5 {offsets = [12, 0], sizes = [4, 32], strides = [1, 1]} : vector<32x32xf32> to vector<4x32xf32>
    %c3 = arith.constant 3 : index
    %c0_40 = arith.constant 0 : index
    %c0_41 = arith.constant 0 : index
    %53 = vector.load %arg26[%c3, %c0_40, %c0_41] : memref<8x4x32xf32, #tpu.memory_space<vmem>>, vector<1x4x32xf32>
    %54 = vector.shape_cast %53 : vector<1x4x32xf32> to vector<4x32xf32>
    %55 = vector.shape_cast %52 : vector<4x32xf32> to vector<1x4x32xf32>
    tpu.vector_store %arg26[%c3, %c0_40, %c0_41], %55 {strides = array<i32>} : memref<8x4x32xf32, #tpu.memory_space<vmem>>, vector<1x4x32xf32>,
    %56 = vector.extract_strided_slice %10 {offsets = [12, 0], sizes = [4, 32], strides = [1, 1]} : vector<32x32xf32> to vector<4x32xf32>
    %c3_42 = arith.constant 3 : index
    %c0_43 = arith.constant 0 : index
    %c0_44 = arith.constant 0 : index
    %57 = vector.load %arg27[%c3_42, %c0_43, %c0_44] : memref<8x4x32xf32, #tpu.memory_space<vmem>>, vector<1x4x32xf32>
    %58 = vector.shape_cast %57 : vector<1x4x32xf32> to vector<4x32xf32>
    %59 = vector.shape_cast %56 : vector<4x32xf32> to vector<1x4x32xf32>
    tpu.vector_store %arg27[%c3_42, %c0_43, %c0_44], %59 {strides = array<i32>} : memref<8x4x32xf32, #tpu.memory_space<vmem>>, vector<1x4x32xf32>,
    %60 = vector.extract_strided_slice %15 {offsets = [12, 0], sizes = [4, 32], strides = [1, 1]} : vector<32x32xf32> to vector<4x32xf32>
    %c3_45 = arith.constant 3 : index
    %c0_46 = arith.constant 0 : index
    %c0_47 = arith.constant 0 : index
    %61 = vector.load %arg28[%c3_45, %c0_46, %c0_47] : memref<8x4x32xf32, #tpu.memory_space<vmem>>, vector<1x4x32xf32>
    %62 = vector.shape_cast %61 : vector<1x4x32xf32> to vector<4x32xf32>
    %63 = vector.shape_cast %60 : vector<4x32xf32> to vector<1x4x32xf32>
    tpu.vector_store %arg28[%c3_45, %c0_46, %c0_47], %63 {strides = array<i32>} : memref<8x4x32xf32, #tpu.memory_space<vmem>>, vector<1x4x32xf32>,
    %64 = vector.extract_strided_slice %5 {offsets = [16, 0], sizes = [4, 32], strides = [1, 1]} : vector<32x32xf32> to vector<4x32xf32>
    %c4 = arith.constant 4 : index
    %c0_48 = arith.constant 0 : index
    %c0_49 = arith.constant 0 : index
    %65 = vector.load %arg26[%c4, %c0_48, %c0_49] : memref<8x4x32xf32, #tpu.memory_space<vmem>>, vector<1x4x32xf32>
    %66 = vector.shape_cast %65 : vector<1x4x32xf32> to vector<4x32xf32>
    %67 = vector.shape_cast %64 : vector<4x32xf32> to vector<1x4x32xf32>
    tpu.vector_store %arg26[%c4, %c0_48, %c0_49], %67 {strides = array<i32>} : memref<8x4x32xf32, #tpu.memory_space<vmem>>, vector<1x4x32xf32>,
    %68 = vector.extract_strided_slice %10 {offsets = [16, 0], sizes = [4, 32], strides = [1, 1]} : vector<32x32xf32> to vector<4x32xf32>
    %c4_50 = arith.constant 4 : index
    %c0_51 = arith.constant 0 : index
    %c0_52 = arith.constant 0 : index
    %69 = vector.load %arg27[%c4_50, %c0_51, %c0_52] : memref<8x4x32xf32, #tpu.memory_space<vmem>>, vector<1x4x32xf32>
    %70 = vector.shape_cast %69 : vector<1x4x32xf32> to vector<4x32xf32>
    %71 = vector.shape_cast %68 : vector<4x32xf32> to vector<1x4x32xf32>
    tpu.vector_store %arg27[%c4_50, %c0_51, %c0_52], %71 {strides = array<i32>} : memref<8x4x32xf32, #tpu.memory_space<vmem>>, vector<1x4x32xf32>,
    %72 = vector.extract_strided_slice %15 {offsets = [16, 0], sizes = [4, 32], strides = [1, 1]} : vector<32x32xf32> to vector<4x32xf32>
    %c4_53 = arith.constant 4 : index
    %c0_54 = arith.constant 0 : index
    %c0_55 = arith.constant 0 : index
    %73 = vector.load %arg28[%c4_53, %c0_54, %c0_55] : memref<8x4x32xf32, #tpu.memory_space<vmem>>, vector<1x4x32xf32>
    %74 = vector.shape_cast %73 : vector<1x4x32xf32> to vector<4x32xf32>
    %75 = vector.shape_cast %72 : vector<4x32xf32> to vector<1x4x32xf32>
    tpu.vector_store %arg28[%c4_53, %c0_54, %c0_55], %75 {strides = array<i32>} : memref<8x4x32xf32, #tpu.memory_space<vmem>>, vector<1x4x32xf32>,
    %76 = vector.extract_strided_slice %5 {offsets = [20, 0], sizes = [4, 32], strides = [1, 1]} : vector<32x32xf32> to vector<4x32xf32>
    %c5 = arith.constant 5 : index
    %c0_56 = arith.constant 0 : index
    %c0_57 = arith.constant 0 : index
    %77 = vector.load %arg26[%c5, %c0_56, %c0_57] : memref<8x4x32xf32, #tpu.memory_space<vmem>>, vector<1x4x32xf32>
    %78 = vector.shape_cast %77 : vector<1x4x32xf32> to vector<4x32xf32>
    %79 = vector.shape_cast %76 : vector<4x32xf32> to vector<1x4x32xf32>
    tpu.vector_store %arg26[%c5, %c0_56, %c0_57], %79 {strides = array<i32>} : memref<8x4x32xf32, #tpu.memory_space<vmem>>, vector<1x4x32xf32>,
    %80 = vector.extract_strided_slice %10 {offsets = [20, 0], sizes = [4, 32], strides = [1, 1]} : vector<32x32xf32> to vector<4x32xf32>
    %c5_58 = arith.constant 5 : index
    %c0_59 = arith.constant 0 : index
    %c0_60 = arith.constant 0 : index
    %81 = vector.load %arg27[%c5_58, %c0_59, %c0_60] : memref<8x4x32xf32, #tpu.memory_space<vmem>>, vector<1x4x32xf32>
    %82 = vector.shape_cast %81 : vector<1x4x32xf32> to vector<4x32xf32>
    %83 = vector.shape_cast %80 : vector<4x32xf32> to vector<1x4x32xf32>
    tpu.vector_store %arg27[%c5_58, %c0_59, %c0_60], %83 {strides = array<i32>} : memref<8x4x32xf32, #tpu.memory_space<vmem>>, vector<1x4x32xf32>,
    %84 = vector.extract_strided_slice %15 {offsets = [20, 0], sizes = [4, 32], strides = [1, 1]} : vector<32x32xf32> to vector<4x32xf32>
    %c5_61 = arith.constant 5 : index
    %c0_62 = arith.constant 0 : index
    %c0_63 = arith.constant 0 : index
    %85 = vector.load %arg28[%c5_61, %c0_62, %c0_63] : memref<8x4x32xf32, #tpu.memory_space<vmem>>, vector<1x4x32xf32>
    %86 = vector.shape_cast %85 : vector<1x4x32xf32> to vector<4x32xf32>
    %87 = vector.shape_cast %84 : vector<4x32xf32> to vector<1x4x32xf32>
    tpu.vector_store %arg28[%c5_61, %c0_62, %c0_63], %87 {strides = array<i32>} : memref<8x4x32xf32, #tpu.memory_space<vmem>>, vector<1x4x32xf32>,
    %88 = vector.extract_strided_slice %5 {offsets = [24, 0], sizes = [4, 32], strides = [1, 1]} : vector<32x32xf32> to vector<4x32xf32>
    %c6 = arith.constant 6 : index
    %c0_64 = arith.constant 0 : index
    %c0_65 = arith.constant 0 : index
    %89 = vector.load %arg26[%c6, %c0_64, %c0_65] : memref<8x4x32xf32, #tpu.memory_space<vmem>>, vector<1x4x32xf32>
    %90 = vector.shape_cast %89 : vector<1x4x32xf32> to vector<4x32xf32>
    %91 = vector.shape_cast %88 : vector<4x32xf32> to vector<1x4x32xf32>
    tpu.vector_store %arg26[%c6, %c0_64, %c0_65], %91 {strides = array<i32>} : memref<8x4x32xf32, #tpu.memory_space<vmem>>, vector<1x4x32xf32>,
    %92 = vector.extract_strided_slice %10 {offsets = [24, 0], sizes = [4, 32], strides = [1, 1]} : vector<32x32xf32> to vector<4x32xf32>
    %c6_66 = arith.constant 6 : index
    %c0_67 = arith.constant 0 : index
    %c0_68 = arith.constant 0 : index
    %93 = vector.load %arg27[%c6_66, %c0_67, %c0_68] : memref<8x4x32xf32, #tpu.memory_space<vmem>>, vector<1x4x32xf32>
    %94 = vector.shape_cast %93 : vector<1x4x32xf32> to vector<4x32xf32>
    %95 = vector.shape_cast %92 : vector<4x32xf32> to vector<1x4x32xf32>
    tpu.vector_store %arg27[%c6_66, %c0_67, %c0_68], %95 {strides = array<i32>} : memref<8x4x32xf32, #tpu.memory_space<vmem>>, vector<1x4x32xf32>,
    %96 = vector.extract_strided_slice %15 {offsets = [24, 0], sizes = [4, 32], strides = [1, 1]} : vector<32x32xf32> to vector<4x32xf32>
    %c6_69 = arith.constant 6 : index
    %c0_70 = arith.constant 0 : index
    %c0_71 = arith.constant 0 : index
    %97 = vector.load %arg28[%c6_69, %c0_70, %c0_71] : memref<8x4x32xf32, #tpu.memory_space<vmem>>, vector<1x4x32xf32>
    %98 = vector.shape_cast %97 : vector<1x4x32xf32> to vector<4x32xf32>
    %99 = vector.shape_cast %96 : vector<4x32xf32> to vector<1x4x32xf32>
    tpu.vector_store %arg28[%c6_69, %c0_70, %c0_71], %99 {strides = array<i32>} : memref<8x4x32xf32, #tpu.memory_space<vmem>>, vector<1x4x32xf32>,
    %100 = vector.extract_strided_slice %5 {offsets = [28, 0], sizes = [4, 32], strides = [1, 1]} : vector<32x32xf32> to vector<4x32xf32>
    %c7 = arith.constant 7 : index
    %c0_72 = arith.constant 0 : index
    %c0_73 = arith.constant 0 : index
    %101 = vector.load %arg26[%c7, %c0_72, %c0_73] : memref<8x4x32xf32, #tpu.memory_space<vmem>>, vector<1x4x32xf32>
    %102 = vector.shape_cast %101 : vector<1x4x32xf32> to vector<4x32xf32>
    %103 = vector.shape_cast %100 : vector<4x32xf32> to vector<1x4x32xf32>
    tpu.vector_store %arg26[%c7, %c0_72, %c0_73], %103 {strides = array<i32>} : memref<8x4x32xf32, #tpu.memory_space<vmem>>, vector<1x4x32xf32>,
    %104 = vector.extract_strided_slice %10 {offsets = [28, 0], sizes = [4, 32], strides = [1, 1]} : vector<32x32xf32> to vector<4x32xf32>
    %c7_74 = arith.constant 7 : index
    %c0_75 = arith.constant 0 : index
    %c0_76 = arith.constant 0 : index
    %105 = vector.load %arg27[%c7_74, %c0_75, %c0_76] : memref<8x4x32xf32, #tpu.memory_space<vmem>>, vector<1x4x32xf32>
    %106 = vector.shape_cast %105 : vector<1x4x32xf32> to vector<4x32xf32>
    %107 = vector.shape_cast %104 : vector<4x32xf32> to vector<1x4x32xf32>
    tpu.vector_store %arg27[%c7_74, %c0_75, %c0_76], %107 {strides = array<i32>} : memref<8x4x32xf32, #tpu.memory_space<vmem>>, vector<1x4x32xf32>,
    %108 = vector.extract_strided_slice %15 {offsets = [28, 0], sizes = [4, 32], strides = [1, 1]} : vector<32x32xf32> to vector<4x32xf32>
    %c7_77 = arith.constant 7 : index
    %c0_78 = arith.constant 0 : index
    %c0_79 = arith.constant 0 : index
    %109 = vector.load %arg28[%c7_77, %c0_78, %c0_79] : memref<8x4x32xf32, #tpu.memory_space<vmem>>, vector<1x4x32xf32>
    %110 = vector.shape_cast %109 : vector<1x4x32xf32> to vector<4x32xf32>
    %111 = vector.shape_cast %108 : vector<4x32xf32> to vector<1x4x32xf32>
    tpu.vector_store %arg28[%c7_77, %c0_78, %c0_79], %111 {strides = array<i32>} : memref<8x4x32xf32, #tpu.memory_space<vmem>>, vector<1x4x32xf32>,
    %c0_80 = arith.constant 0 : index
    %c0_81 = arith.constant 0 : index
    %112 = vector.load %arg1[%c0_80, %c0_81] : memref<4x1xi32, #tpu.memory_space<vmem>>, vector<4x1xi32>
    %c0_82 = arith.constant 0 : index
    %c0_83 = arith.constant 0 : index
    %113 = vector.load %arg13[%c0_82, %c0_83] : memref<1x32xf32, #tpu.memory_space<vmem>>, vector<1x32xf32>
    %114 = vector.shape_cast %113 : vector<1x32xf32> to vector<1x32xf32>
    %115 = vector.broadcast %114 : vector<1x32xf32> to vector<4x32xf32>
    %c0_84 = arith.constant 0 : index
    %c0_85 = arith.constant 0 : index
    %116 = vector.load %arg16[%c0_84, %c0_85] : memref<1x32xf32, #tpu.memory_space<vmem>>, vector<1x32xf32>
    %117 = vector.shape_cast %116 : vector<1x32xf32> to vector<1x32xf32>
    %118 = vector.broadcast %117 : vector<1x32xf32> to vector<4x32xf32>
    %c0_86 = arith.constant 0 : index
    %c0_87 = arith.constant 0 : index
    %119 = vector.load %arg17[%c0_86, %c0_87] : memref<1x32xf32, #tpu.memory_space<vmem>>, vector<1x32xf32>
    %120 = vector.shape_cast %119 : vector<1x32xf32> to vector<1x32xf32>
    %121 = vector.broadcast %120 : vector<1x32xf32> to vector<4x32xf32>
    %c0_88 = arith.constant 0 : index
    %c0_89 = arith.constant 0 : index
    %122 = vector.load %arg20[%c0_88, %c0_89] : memref<1x32xf32, #tpu.memory_space<vmem>>, vector<1x32xf32>
    %123 = vector.shape_cast %122 : vector<1x32xf32> to vector<1x32xf32>
    %124 = vector.broadcast %123 : vector<1x32xf32> to vector<4x32xf32>
    %c0_90 = arith.constant 0 : index
    %c0_91 = arith.constant 0 : index
    %125 = vector.load %arg21[%c0_90, %c0_91] : memref<1x32xf32, #tpu.memory_space<vmem>>, vector<1x32xf32>
    %126 = vector.shape_cast %125 : vector<1x32xf32> to vector<1x32xf32>
    %127 = vector.broadcast %126 : vector<1x32xf32> to vector<4x32xf32>
    %c0_92 = arith.constant 0 : index
    %c0_93 = arith.constant 0 : index
    %c0_94 = arith.constant 0 : index
    %128 = vector.load %arg3[%c0_92, %c0_93, %c0_94] : memref<2x4x32xf32, #tpu.memory_space<vmem>>, vector<1x4x32xf32>
    %129 = vector.shape_cast %128 : vector<1x4x32xf32> to vector<4x32xf32>
    %c1_95 = arith.constant 1 : index
    %c0_96 = arith.constant 0 : index
    %c0_97 = arith.constant 0 : index
    %130 = vector.load %arg3[%c1_95, %c0_96, %c0_97] : memref<2x4x32xf32, #tpu.memory_space<vmem>>, vector<1x4x32xf32>
    %131 = vector.shape_cast %130 : vector<1x4x32xf32> to vector<4x32xf32>
    %c0_i32 = arith.constant 0 : i32
    %132 = vector.broadcast %c0_i32 : i32 to vector<4x1xi32>
    %133 = arith.cmpi sgt, %112, %132 : vector<4x1xi32>
    %134 = arith.index_cast %c0_i32 : i32 to index
    %c0_98 = arith.constant 0 : index
    %c0_99 = arith.constant 0 : index
    %135 = vector.load %arg26[%134, %c0_98, %c0_99] : memref<8x4x32xf32, #tpu.memory_space<vmem>>, vector<1x4x32xf32>
    %136 = vector.shape_cast %135 : vector<1x4x32xf32> to vector<4x32xf32>
    %c0_100 = arith.constant 0 : index
    %c0_101 = arith.constant 0 : index
    %137 = vector.load %arg10[%c0_100, %c0_101] : memref<32x32xf32, #tpu.memory_space<vmem>>, vector<32x32xf32>
    %cst_102 = arith.constant dense<0.000000e+00> : vector<4x32xf32>
    %138 = tpu.matmul %129, %137, %cst_102 {dimension_numbers = #tpu.dot_dimension_numbers<[1], [0], [0], [1], [0, 0, 1, 1], [], []>} : vector<4x32xf32>, vector<32x32xf32>, vector<4x32xf32> -> vector<4x32xf32>
    %139 = arith.addf %136, %138 : vector<4x32xf32>
    %140 = arith.negf %139 : vector<4x32xf32>
    %141 = math.exp %140 : vector<4x32xf32>
    %cst_103 = arith.constant 1.000000e+00 : f32
    %142 = vector.broadcast %cst_103 : f32 to vector<4x32xf32>
    %143 = arith.addf %142, %141 : vector<4x32xf32>
    %144 = arith.divf %142, %143 : vector<4x32xf32>
    %145 = arith.index_cast %c0_i32 : i32 to index
    %c0_104 = arith.constant 0 : index
    %c0_105 = arith.constant 0 : index
    %146 = vector.load %arg27[%145, %c0_104, %c0_105] : memref<8x4x32xf32, #tpu.memory_space<vmem>>, vector<1x4x32xf32>
    %147 = vector.shape_cast %146 : vector<1x4x32xf32> to vector<4x32xf32>
    %c0_106 = arith.constant 0 : index
    %c0_107 = arith.constant 0 : index
    %148 = vector.load %arg11[%c0_106, %c0_107] : memref<32x32xf32, #tpu.memory_space<vmem>>, vector<32x32xf32>
    %cst_108 = arith.constant dense<0.000000e+00> : vector<4x32xf32>
    %149 = tpu.matmul %129, %148, %cst_108 {dimension_numbers = #tpu.dot_dimension_numbers<[1], [0], [0], [1], [0, 0, 1, 1], [], []>} : vector<4x32xf32>, vector<32x32xf32>, vector<4x32xf32> -> vector<4x32xf32>
    %150 = arith.addf %147, %149 : vector<4x32xf32>
    %151 = arith.negf %150 : vector<4x32xf32>
    %152 = math.exp %151 : vector<4x32xf32>
    %cst_109 = arith.constant 1.000000e+00 : f32
    %153 = vector.broadcast %cst_109 : f32 to vector<4x32xf32>
    %154 = arith.addf %153, %152 : vector<4x32xf32>
    %155 = arith.divf %153, %154 : vector<4x32xf32>
    %156 = arith.index_cast %c0_i32 : i32 to index
    %c0_110 = arith.constant 0 : index
    %c0_111 = arith.constant 0 : index
    %157 = vector.load %arg28[%156, %c0_110, %c0_111] : memref<8x4x32xf32, #tpu.memory_space<vmem>>, vector<1x4x32xf32>
    %158 = vector.shape_cast %157 : vector<1x4x32xf32> to vector<4x32xf32>
    %c0_112 = arith.constant 0 : index
    %c0_113 = arith.constant 0 : index
    %159 = vector.load %arg12[%c0_112, %c0_113] : memref<32x32xf32, #tpu.memory_space<vmem>>, vector<32x32xf32>
    %cst_114 = arith.constant dense<0.000000e+00> : vector<4x32xf32>
    %160 = tpu.matmul %129, %159, %cst_114 {dimension_numbers = #tpu.dot_dimension_numbers<[1], [0], [0], [1], [0, 0, 1, 1], [], []>} : vector<4x32xf32>, vector<32x32xf32>, vector<4x32xf32> -> vector<4x32xf32>
    %161 = arith.addf %160, %115 : vector<4x32xf32>
    %162 = arith.mulf %144, %161 : vector<4x32xf32>
    %163 = arith.addf %158, %162 : vector<4x32xf32>
    %164 = math.tanh %163 : vector<4x32xf32>
    %cst_115 = arith.constant 1.000000e+00 : f32
    %165 = vector.broadcast %cst_115 : f32 to vector<4x32xf32>
    %166 = arith.subf %165, %155 : vector<4x32xf32>
    %167 = arith.mulf %166, %164 : vector<4x32xf32>
    %168 = arith.mulf %155, %129 : vector<4x32xf32>
    %169 = arith.addf %167, %168 : vector<4x32xf32>
    %170 = vector.shape_cast %133 : vector<4x1xi1> to vector<4x1xi1>
    %171 = vector.broadcast %170 : vector<4x1xi1> to vector<4x32xi1>
    %172 = arith.select %171, %169, %129 : vector<4x32xi1>, vector<4x32xf32>
    %173 = tpu.concatenate %172, %131 in 1 : vector<4x32xf32>, vector<4x32xf32> -> vector<4x64xf32>
    %c0_116 = arith.constant 0 : index
    %c0_117 = arith.constant 0 : index
    %174 = vector.load %arg14[%c0_116, %c0_117] : memref<64x32xf32, #tpu.memory_space<vmem>>, vector<64x32xf32>
    %cst_118 = arith.constant dense<0.000000e+00> : vector<4x32xf32>
    %175 = tpu.matmul %173, %174, %cst_118 {dimension_numbers = #tpu.dot_dimension_numbers<[1], [0], [0], [1], [0, 0, 1, 1], [], []>} : vector<4x64xf32>, vector<64x32xf32>, vector<4x32xf32> -> vector<4x32xf32>
    %176 = arith.addf %175, %118 : vector<4x32xf32>
    %177 = arith.negf %176 : vector<4x32xf32>
    %178 = math.exp %177 : vector<4x32xf32>
    %cst_119 = arith.constant 1.000000e+00 : f32
    %179 = vector.broadcast %cst_119 : f32 to vector<4x32xf32>
    %180 = arith.addf %179, %178 : vector<4x32xf32>
    %181 = arith.divf %179, %180 : vector<4x32xf32>
    %c0_120 = arith.constant 0 : index
    %c0_121 = arith.constant 0 : index
    %182 = vector.load %arg15[%c0_120, %c0_121] : memref<64x32xf32, #tpu.memory_space<vmem>>, vector<64x32xf32>
    %cst_122 = arith.constant dense<0.000000e+00> : vector<4x32xf32>
    %183 = tpu.matmul %173, %182, %cst_122 {dimension_numbers = #tpu.dot_dimension_numbers<[1], [0], [0], [1], [0, 0, 1, 1], [], []>} : vector<4x64xf32>, vector<64x32xf32>, vector<4x32xf32> -> vector<4x32xf32>
    %184 = arith.addf %183, %121 : vector<4x32xf32>
    %185 = arith.negf %184 : vector<4x32xf32>
    %186 = math.exp %185 : vector<4x32xf32>
    %cst_123 = arith.constant 1.000000e+00 : f32
    %187 = vector.broadcast %cst_123 : f32 to vector<4x32xf32>
    %188 = arith.addf %187, %186 : vector<4x32xf32>
    %189 = arith.divf %187, %188 : vector<4x32xf32>
    %c0_124 = arith.constant 0 : index
    %c0_125 = arith.constant 0 : index
    %190 = vector.load %arg18[%c0_124, %c0_125] : memref<32x32xf32, #tpu.memory_space<vmem>>, vector<32x32xf32>
    %cst_126 = arith.constant dense<0.000000e+00> : vector<4x32xf32>
    %191 = tpu.matmul %172, %190, %cst_126 {dimension_numbers = #tpu.dot_dimension_numbers<[1], [0], [0], [1], [0, 0, 1, 1], [], []>} : vector<4x32xf32>, vector<32x32xf32>, vector<4x32xf32> -> vector<4x32xf32>
    %192 = arith.addf %191, %124 : vector<4x32xf32>
    %c0_127 = arith.constant 0 : index
    %c0_128 = arith.constant 0 : index
    %193 = vector.load %arg19[%c0_127, %c0_128] : memref<32x32xf32, #tpu.memory_space<vmem>>, vector<32x32xf32>
    %cst_129 = arith.constant dense<0.000000e+00> : vector<4x32xf32>
    %194 = tpu.matmul %131, %193, %cst_129 {dimension_numbers = #tpu.dot_dimension_numbers<[1], [0], [0], [1], [0, 0, 1, 1], [], []>} : vector<4x32xf32>, vector<32x32xf32>, vector<4x32xf32> -> vector<4x32xf32>
    %195 = arith.addf %194, %127 : vector<4x32xf32>
    %196 = arith.mulf %181, %195 : vector<4x32xf32>
    %197 = arith.addf %192, %196 : vector<4x32xf32>
    %198 = math.tanh %197 : vector<4x32xf32>
    %cst_130 = arith.constant 1.000000e+00 : f32
    %199 = vector.broadcast %cst_130 : f32 to vector<4x32xf32>
    %200 = arith.subf %199, %189 : vector<4x32xf32>
    %201 = arith.mulf %200, %198 : vector<4x32xf32>
    %202 = arith.mulf %189, %131 : vector<4x32xf32>
    %203 = arith.addf %201, %202 : vector<4x32xf32>
    %204 = vector.shape_cast %133 : vector<4x1xi1> to vector<4x1xi1>
    %205 = vector.broadcast %204 : vector<4x1xi1> to vector<4x32xi1>
    %206 = arith.select %205, %203, %131 : vector<4x32xi1>, vector<4x32xf32>
    %cst_131 = arith.constant 0.000000e+00 : f32
    %207 = vector.shape_cast %133 : vector<4x1xi1> to vector<4x1xi1>
    %208 = vector.broadcast %207 : vector<4x1xi1> to vector<4x32xi1>
    %209 = vector.broadcast %cst_131 : f32 to vector<4x32xf32>
    %210 = arith.select %208, %206, %209 : vector<4x32xi1>, vector<4x32xf32>
    %211 = arith.index_cast %c0_i32 : i32 to index
    %c0_132 = arith.constant 0 : index
    %c0_133 = arith.constant 0 : index
    %212 = vector.load %arg29[%211, %c0_132, %c0_133] : memref<8x4x32xf32, #tpu.memory_space<vmem>>, vector<1x4x32xf32>
    %213 = vector.shape_cast %212 : vector<1x4x32xf32> to vector<4x32xf32>
    %214 = vector.shape_cast %210 : vector<4x32xf32> to vector<1x4x32xf32>
    tpu.vector_store %arg29[%211, %c0_132, %c0_133], %214 {strides = array<i32>} : memref<8x4x32xf32, #tpu.memory_space<vmem>>, vector<1x4x32xf32>,
    %c1_i32 = arith.constant 1 : i32
    %215 = vector.broadcast %c1_i32 : i32 to vector<4x1xi32>
    %216 = arith.cmpi sgt, %112, %215 : vector<4x1xi32>
    %217 = arith.index_cast %c1_i32 : i32 to index
    %c0_134 = arith.constant 0 : index
    %c0_135 = arith.constant 0 : index
    %218 = vector.load %arg26[%217, %c0_134, %c0_135] : memref<8x4x32xf32, #tpu.memory_space<vmem>>, vector<1x4x32xf32>
    %219 = vector.shape_cast %218 : vector<1x4x32xf32> to vector<4x32xf32>
    %c0_136 = arith.constant 0 : index
    %c0_137 = arith.constant 0 : index
    %220 = vector.load %arg10[%c0_136, %c0_137] : memref<32x32xf32, #tpu.memory_space<vmem>>, vector<32x32xf32>
    %cst_138 = arith.constant dense<0.000000e+00> : vector<4x32xf32>
    %221 = tpu.matmul %172, %220, %cst_138 {dimension_numbers = #tpu.dot_dimension_numbers<[1], [0], [0], [1], [0, 0, 1, 1], [], []>} : vector<4x32xf32>, vector<32x32xf32>, vector<4x32xf32> -> vector<4x32xf32>
    %222 = arith.addf %219, %221 : vector<4x32xf32>
    %223 = arith.negf %222 : vector<4x32xf32>
    %224 = math.exp %223 : vector<4x32xf32>
    %cst_139 = arith.constant 1.000000e+00 : f32
    %225 = vector.broadcast %cst_139 : f32 to vector<4x32xf32>
    %226 = arith.addf %225, %224 : vector<4x32xf32>
    %227 = arith.divf %225, %226 : vector<4x32xf32>
    %228 = arith.index_cast %c1_i32 : i32 to index
    %c0_140 = arith.constant 0 : index
    %c0_141 = arith.constant 0 : index
    %229 = vector.load %arg27[%228, %c0_140, %c0_141] : memref<8x4x32xf32, #tpu.memory_space<vmem>>, vector<1x4x32xf32>
    %230 = vector.shape_cast %229 : vector<1x4x32xf32> to vector<4x32xf32>
    %c0_142 = arith.constant 0 : index
    %c0_143 = arith.constant 0 : index
    %231 = vector.load %arg11[%c0_142, %c0_143] : memref<32x32xf32, #tpu.memory_space<vmem>>, vector<32x32xf32>
    %cst_144 = arith.constant dense<0.000000e+00> : vector<4x32xf32>
    %232 = tpu.matmul %172, %231, %cst_144 {dimension_numbers = #tpu.dot_dimension_numbers<[1], [0], [0], [1], [0, 0, 1, 1], [], []>} : vector<4x32xf32>, vector<32x32xf32>, vector<4x32xf32> -> vector<4x32xf32>
    %233 = arith.addf %230, %232 : vector<4x32xf32>
    %234 = arith.negf %233 : vector<4x32xf32>
    %235 = math.exp %234 : vector<4x32xf32>
    %cst_145 = arith.constant 1.000000e+00 : f32
    %236 = vector.broadcast %cst_145 : f32 to vector<4x32xf32>
    %237 = arith.addf %236, %235 : vector<4x32xf32>
    %238 = arith.divf %236, %237 : vector<4x32xf32>
    %239 = arith.index_cast %c1_i32 : i32 to index
    %c0_146 = arith.constant 0 : index
    %c0_147 = arith.constant 0 : index
    %240 = vector.load %arg28[%239, %c0_146, %c0_147] : memref<8x4x32xf32, #tpu.memory_space<vmem>>, vector<1x4x32xf32>
    %241 = vector.shape_cast %240 : vector<1x4x32xf32> to vector<4x32xf32>
    %c0_148 = arith.constant 0 : index
    %c0_149 = arith.constant 0 : index
    %242 = vector.load %arg12[%c0_148, %c0_149] : memref<32x32xf32, #tpu.memory_space<vmem>>, vector<32x32xf32>
    %cst_150 = arith.constant dense<0.000000e+00> : vector<4x32xf32>
    %243 = tpu.matmul %172, %242, %cst_150 {dimension_numbers = #tpu.dot_dimension_numbers<[1], [0], [0], [1], [0, 0, 1, 1], [], []>} : vector<4x32xf32>, vector<32x32xf32>, vector<4x32xf32> -> vector<4x32xf32>
    %244 = arith.addf %243, %115 : vector<4x32xf32>
    %245 = arith.mulf %227, %244 : vector<4x32xf32>
    %246 = arith.addf %241, %245 : vector<4x32xf32>
    %247 = math.tanh %246 : vector<4x32xf32>
    %cst_151 = arith.constant 1.000000e+00 : f32
    %248 = vector.broadcast %cst_151 : f32 to vector<4x32xf32>
    %249 = arith.subf %248, %238 : vector<4x32xf32>
    %250 = arith.mulf %249, %247 : vector<4x32xf32>
    %251 = arith.mulf %238, %172 : vector<4x32xf32>
    %252 = arith.addf %250, %251 : vector<4x32xf32>
    %253 = vector.shape_cast %216 : vector<4x1xi1> to vector<4x1xi1>
    %254 = vector.broadcast %253 : vector<4x1xi1> to vector<4x32xi1>
    %255 = arith.select %254, %252, %172 : vector<4x32xi1>, vector<4x32xf32>
    %256 = tpu.concatenate %255, %206 in 1 : vector<4x32xf32>, vector<4x32xf32> -> vector<4x64xf32>
    %c0_152 = arith.constant 0 : index
    %c0_153 = arith.constant 0 : index
    %257 = vector.load %arg14[%c0_152, %c0_153] : memref<64x32xf32, #tpu.memory_space<vmem>>, vector<64x32xf32>
    %cst_154 = arith.constant dense<0.000000e+00> : vector<4x32xf32>
    %258 = tpu.matmul %256, %257, %cst_154 {dimension_numbers = #tpu.dot_dimension_numbers<[1], [0], [0], [1], [0, 0, 1, 1], [], []>} : vector<4x64xf32>, vector<64x32xf32>, vector<4x32xf32> -> vector<4x32xf32>
    %259 = arith.addf %258, %118 : vector<4x32xf32>
    %260 = arith.negf %259 : vector<4x32xf32>
    %261 = math.exp %260 : vector<4x32xf32>
    %cst_155 = arith.constant 1.000000e+00 : f32
    %262 = vector.broadcast %cst_155 : f32 to vector<4x32xf32>
    %263 = arith.addf %262, %261 : vector<4x32xf32>
    %264 = arith.divf %262, %263 : vector<4x32xf32>
    %c0_156 = arith.constant 0 : index
    %c0_157 = arith.constant 0 : index
    %265 = vector.load %arg15[%c0_156, %c0_157] : memref<64x32xf32, #tpu.memory_space<vmem>>, vector<64x32xf32>
    %cst_158 = arith.constant dense<0.000000e+00> : vector<4x32xf32>
    %266 = tpu.matmul %256, %265, %cst_158 {dimension_numbers = #tpu.dot_dimension_numbers<[1], [0], [0], [1], [0, 0, 1, 1], [], []>} : vector<4x64xf32>, vector<64x32xf32>, vector<4x32xf32> -> vector<4x32xf32>
    %267 = arith.addf %266, %121 : vector<4x32xf32>
    %268 = arith.negf %267 : vector<4x32xf32>
    %269 = math.exp %268 : vector<4x32xf32>
    %cst_159 = arith.constant 1.000000e+00 : f32
    %270 = vector.broadcast %cst_159 : f32 to vector<4x32xf32>
    %271 = arith.addf %270, %269 : vector<4x32xf32>
    %272 = arith.divf %270, %271 : vector<4x32xf32>
    %c0_160 = arith.constant 0 : index
    %c0_161 = arith.constant 0 : index
    %273 = vector.load %arg18[%c0_160, %c0_161] : memref<32x32xf32, #tpu.memory_space<vmem>>, vector<32x32xf32>
    %cst_162 = arith.constant dense<0.000000e+00> : vector<4x32xf32>
    %274 = tpu.matmul %255, %273, %cst_162 {dimension_numbers = #tpu.dot_dimension_numbers<[1], [0], [0], [1], [0, 0, 1, 1], [], []>} : vector<4x32xf32>, vector<32x32xf32>, vector<4x32xf32> -> vector<4x32xf32>
    %275 = arith.addf %274, %124 : vector<4x32xf32>
    %c0_163 = arith.constant 0 : index
    %c0_164 = arith.constant 0 : index
    %276 = vector.load %arg19[%c0_163, %c0_164] : memref<32x32xf32, #tpu.memory_space<vmem>>, vector<32x32xf32>
    %cst_165 = arith.constant dense<0.000000e+00> : vector<4x32xf32>
    %277 = tpu.matmul %206, %276, %cst_165 {dimension_numbers = #tpu.dot_dimension_numbers<[1], [0], [0], [1], [0, 0, 1, 1], [], []>} : vector<4x32xf32>, vector<32x32xf32>, vector<4x32xf32> -> vector<4x32xf32>
    %278 = arith.addf %277, %127 : vector<4x32xf32>
    %279 = arith.mulf %264, %278 : vector<4x32xf32>
    %280 = arith.addf %275, %279 : vector<4x32xf32>
    %281 = math.tanh %280 : vector<4x32xf32>
    %cst_166 = arith.constant 1.000000e+00 : f32
    %282 = vector.broadcast %cst_166 : f32 to vector<4x32xf32>
    %283 = arith.subf %282, %272 : vector<4x32xf32>
    %284 = arith.mulf %283, %281 : vector<4x32xf32>
    %285 = arith.mulf %272, %206 : vector<4x32xf32>
    %286 = arith.addf %284, %285 : vector<4x32xf32>
    %287 = vector.shape_cast %216 : vector<4x1xi1> to vector<4x1xi1>
    %288 = vector.broadcast %287 : vector<4x1xi1> to vector<4x32xi1>
    %289 = arith.select %288, %286, %206 : vector<4x32xi1>, vector<4x32xf32>
    %cst_167 = arith.constant 0.000000e+00 : f32
    %290 = vector.shape_cast %216 : vector<4x1xi1> to vector<4x1xi1>
    %291 = vector.broadcast %290 : vector<4x1xi1> to vector<4x32xi1>
    %292 = vector.broadcast %cst_167 : f32 to vector<4x32xf32>
    %293 = arith.select %291, %289, %292 : vector<4x32xi1>, vector<4x32xf32>
    %294 = arith.index_cast %c1_i32 : i32 to index
    %c0_168 = arith.constant 0 : index
    %c0_169 = arith.constant 0 : index
    %295 = vector.load %arg29[%294, %c0_168, %c0_169] : memref<8x4x32xf32, #tpu.memory_space<vmem>>, vector<1x4x32xf32>
    %296 = vector.shape_cast %295 : vector<1x4x32xf32> to vector<4x32xf32>
    %297 = vector.shape_cast %293 : vector<4x32xf32> to vector<1x4x32xf32>
    tpu.vector_store %arg29[%294, %c0_168, %c0_169], %297 {strides = array<i32>} : memref<8x4x32xf32, #tpu.memory_space<vmem>>, vector<1x4x32xf32>,
    %c2_i32 = arith.constant 2 : i32
    %298 = vector.broadcast %c2_i32 : i32 to vector<4x1xi32>
    %299 = arith.cmpi sgt, %112, %298 : vector<4x1xi32>
    %300 = arith.index_cast %c2_i32 : i32 to index
    %c0_170 = arith.constant 0 : index
    %c0_171 = arith.constant 0 : index
    %301 = vector.load %arg26[%300, %c0_170, %c0_171] : memref<8x4x32xf32, #tpu.memory_space<vmem>>, vector<1x4x32xf32>
    %302 = vector.shape_cast %301 : vector<1x4x32xf32> to vector<4x32xf32>
    %c0_172 = arith.constant 0 : index
    %c0_173 = arith.constant 0 : index
    %303 = vector.load %arg10[%c0_172, %c0_173] : memref<32x32xf32, #tpu.memory_space<vmem>>, vector<32x32xf32>
    %cst_174 = arith.constant dense<0.000000e+00> : vector<4x32xf32>
    %304 = tpu.matmul %255, %303, %cst_174 {dimension_numbers = #tpu.dot_dimension_numbers<[1], [0], [0], [1], [0, 0, 1, 1], [], []>} : vector<4x32xf32>, vector<32x32xf32>, vector<4x32xf32> -> vector<4x32xf32>
    %305 = arith.addf %302, %304 : vector<4x32xf32>
    %306 = arith.negf %305 : vector<4x32xf32>
    %307 = math.exp %306 : vector<4x32xf32>
    %cst_175 = arith.constant 1.000000e+00 : f32
    %308 = vector.broadcast %cst_175 : f32 to vector<4x32xf32>
    %309 = arith.addf %308, %307 : vector<4x32xf32>
    %310 = arith.divf %308, %309 : vector<4x32xf32>
    %311 = arith.index_cast %c2_i32 : i32 to index
    %c0_176 = arith.constant 0 : index
    %c0_177 = arith.constant 0 : index
    %312 = vector.load %arg27[%311, %c0_176, %c0_177] : memref<8x4x32xf32, #tpu.memory_space<vmem>>, vector<1x4x32xf32>
    %313 = vector.shape_cast %312 : vector<1x4x32xf32> to vector<4x32xf32>
    %c0_178 = arith.constant 0 : index
    %c0_179 = arith.constant 0 : index
    %314 = vector.load %arg11[%c0_178, %c0_179] : memref<32x32xf32, #tpu.memory_space<vmem>>, vector<32x32xf32>
    %cst_180 = arith.constant dense<0.000000e+00> : vector<4x32xf32>
    %315 = tpu.matmul %255, %314, %cst_180 {dimension_numbers = #tpu.dot_dimension_numbers<[1], [0], [0], [1], [0, 0, 1, 1], [], []>} : vector<4x32xf32>, vector<32x32xf32>, vector<4x32xf32> -> vector<4x32xf32>
    %316 = arith.addf %313, %315 : vector<4x32xf32>
    %317 = arith.negf %316 : vector<4x32xf32>
    %318 = math.exp %317 : vector<4x32xf32>
    %cst_181 = arith.constant 1.000000e+00 : f32
    %319 = vector.broadcast %cst_181 : f32 to vector<4x32xf32>
    %320 = arith.addf %319, %318 : vector<4x32xf32>
    %321 = arith.divf %319, %320 : vector<4x32xf32>
    %322 = arith.index_cast %c2_i32 : i32 to index
    %c0_182 = arith.constant 0 : index
    %c0_183 = arith.constant 0 : index
    %323 = vector.load %arg28[%322, %c0_182, %c0_183] : memref<8x4x32xf32, #tpu.memory_space<vmem>>, vector<1x4x32xf32>
    %324 = vector.shape_cast %323 : vector<1x4x32xf32> to vector<4x32xf32>
    %c0_184 = arith.constant 0 : index
    %c0_185 = arith.constant 0 : index
    %325 = vector.load %arg12[%c0_184, %c0_185] : memref<32x32xf32, #tpu.memory_space<vmem>>, vector<32x32xf32>
    %cst_186 = arith.constant dense<0.000000e+00> : vector<4x32xf32>
    %326 = tpu.matmul %255, %325, %cst_186 {dimension_numbers = #tpu.dot_dimension_numbers<[1], [0], [0], [1], [0, 0, 1, 1], [], []>} : vector<4x32xf32>, vector<32x32xf32>, vector<4x32xf32> -> vector<4x32xf32>
    %327 = arith.addf %326, %115 : vector<4x32xf32>
    %328 = arith.mulf %310, %327 : vector<4x32xf32>
    %329 = arith.addf %324, %328 : vector<4x32xf32>
    %330 = math.tanh %329 : vector<4x32xf32>
    %cst_187 = arith.constant 1.000000e+00 : f32
    %331 = vector.broadcast %cst_187 : f32 to vector<4x32xf32>
    %332 = arith.subf %331, %321 : vector<4x32xf32>
    %333 = arith.mulf %332, %330 : vector<4x32xf32>
    %334 = arith.mulf %321, %255 : vector<4x32xf32>
    %335 = arith.addf %333, %334 : vector<4x32xf32>
    %336 = vector.shape_cast %299 : vector<4x1xi1> to vector<4x1xi1>
    %337 = vector.broadcast %336 : vector<4x1xi1> to vector<4x32xi1>
    %338 = arith.select %337, %335, %255 : vector<4x32xi1>, vector<4x32xf32>
    %339 = tpu.concatenate %338, %289 in 1 : vector<4x32xf32>, vector<4x32xf32> -> vector<4x64xf32>
    %c0_188 = arith.constant 0 : index
    %c0_189 = arith.constant 0 : index
    %340 = vector.load %arg14[%c0_188, %c0_189] : memref<64x32xf32, #tpu.memory_space<vmem>>, vector<64x32xf32>
    %cst_190 = arith.constant dense<0.000000e+00> : vector<4x32xf32>
    %341 = tpu.matmul %339, %340, %cst_190 {dimension_numbers = #tpu.dot_dimension_numbers<[1], [0], [0], [1], [0, 0, 1, 1], [], []>} : vector<4x64xf32>, vector<64x32xf32>, vector<4x32xf32> -> vector<4x32xf32>
    %342 = arith.addf %341, %118 : vector<4x32xf32>
    %343 = arith.negf %342 : vector<4x32xf32>
    %344 = math.exp %343 : vector<4x32xf32>
    %cst_191 = arith.constant 1.000000e+00 : f32
    %345 = vector.broadcast %cst_191 : f32 to vector<4x32xf32>
    %346 = arith.addf %345, %344 : vector<4x32xf32>
    %347 = arith.divf %345, %346 : vector<4x32xf32>
    %c0_192 = arith.constant 0 : index
    %c0_193 = arith.constant 0 : index
    %348 = vector.load %arg15[%c0_192, %c0_193] : memref<64x32xf32, #tpu.memory_space<vmem>>, vector<64x32xf32>
    %cst_194 = arith.constant dense<0.000000e+00> : vector<4x32xf32>
    %349 = tpu.matmul %339, %348, %cst_194 {dimension_numbers = #tpu.dot_dimension_numbers<[1], [0], [0], [1], [0, 0, 1, 1], [], []>} : vector<4x64xf32>, vector<64x32xf32>, vector<4x32xf32> -> vector<4x32xf32>
    %350 = arith.addf %349, %121 : vector<4x32xf32>
    %351 = arith.negf %350 : vector<4x32xf32>
    %352 = math.exp %351 : vector<4x32xf32>
    %cst_195 = arith.constant 1.000000e+00 : f32
    %353 = vector.broadcast %cst_195 : f32 to vector<4x32xf32>
    %354 = arith.addf %353, %352 : vector<4x32xf32>
    %355 = arith.divf %353, %354 : vector<4x32xf32>
    %c0_196 = arith.constant 0 : index
    %c0_197 = arith.constant 0 : index
    %356 = vector.load %arg18[%c0_196, %c0_197] : memref<32x32xf32, #tpu.memory_space<vmem>>, vector<32x32xf32>
    %cst_198 = arith.constant dense<0.000000e+00> : vector<4x32xf32>
    %357 = tpu.matmul %338, %356, %cst_198 {dimension_numbers = #tpu.dot_dimension_numbers<[1], [0], [0], [1], [0, 0, 1, 1], [], []>} : vector<4x32xf32>, vector<32x32xf32>, vector<4x32xf32> -> vector<4x32xf32>
    %358 = arith.addf %357, %124 : vector<4x32xf32>
    %c0_199 = arith.constant 0 : index
    %c0_200 = arith.constant 0 : index
    %359 = vector.load %arg19[%c0_199, %c0_200] : memref<32x32xf32, #tpu.memory_space<vmem>>, vector<32x32xf32>
    %cst_201 = arith.constant dense<0.000000e+00> : vector<4x32xf32>
    %360 = tpu.matmul %289, %359, %cst_201 {dimension_numbers = #tpu.dot_dimension_numbers<[1], [0], [0], [1], [0, 0, 1, 1], [], []>} : vector<4x32xf32>, vector<32x32xf32>, vector<4x32xf32> -> vector<4x32xf32>
    %361 = arith.addf %360, %127 : vector<4x32xf32>
    %362 = arith.mulf %347, %361 : vector<4x32xf32>
    %363 = arith.addf %358, %362 : vector<4x32xf32>
    %364 = math.tanh %363 : vector<4x32xf32>
    %cst_202 = arith.constant 1.000000e+00 : f32
    %365 = vector.broadcast %cst_202 : f32 to vector<4x32xf32>
    %366 = arith.subf %365, %355 : vector<4x32xf32>
    %367 = arith.mulf %366, %364 : vector<4x32xf32>
    %368 = arith.mulf %355, %289 : vector<4x32xf32>
    %369 = arith.addf %367, %368 : vector<4x32xf32>
    %370 = vector.shape_cast %299 : vector<4x1xi1> to vector<4x1xi1>
    %371 = vector.broadcast %370 : vector<4x1xi1> to vector<4x32xi1>
    %372 = arith.select %371, %369, %289 : vector<4x32xi1>, vector<4x32xf32>
    %cst_203 = arith.constant 0.000000e+00 : f32
    %373 = vector.shape_cast %299 : vector<4x1xi1> to vector<4x1xi1>
    %374 = vector.broadcast %373 : vector<4x1xi1> to vector<4x32xi1>
    %375 = vector.broadcast %cst_203 : f32 to vector<4x32xf32>
    %376 = arith.select %374, %372, %375 : vector<4x32xi1>, vector<4x32xf32>
    %377 = arith.index_cast %c2_i32 : i32 to index
    %c0_204 = arith.constant 0 : index
    %c0_205 = arith.constant 0 : index
    %378 = vector.load %arg29[%377, %c0_204, %c0_205] : memref<8x4x32xf32, #tpu.memory_space<vmem>>, vector<1x4x32xf32>
    %379 = vector.shape_cast %378 : vector<1x4x32xf32> to vector<4x32xf32>
    %380 = vector.shape_cast %376 : vector<4x32xf32> to vector<1x4x32xf32>
    tpu.vector_store %arg29[%377, %c0_204, %c0_205], %380 {strides = array<i32>} : memref<8x4x32xf32, #tpu.memory_space<vmem>>, vector<1x4x32xf32>,
    %c3_i32 = arith.constant 3 : i32
    %381 = vector.broadcast %c3_i32 : i32 to vector<4x1xi32>
    %382 = arith.cmpi sgt, %112, %381 : vector<4x1xi32>
    %383 = arith.index_cast %c3_i32 : i32 to index
    %c0_206 = arith.constant 0 : index
    %c0_207 = arith.constant 0 : index
    %384 = vector.load %arg26[%383, %c0_206, %c0_207] : memref<8x4x32xf32, #tpu.memory_space<vmem>>, vector<1x4x32xf32>
    %385 = vector.shape_cast %384 : vector<1x4x32xf32> to vector<4x32xf32>
    %c0_208 = arith.constant 0 : index
    %c0_209 = arith.constant 0 : index
    %386 = vector.load %arg10[%c0_208, %c0_209] : memref<32x32xf32, #tpu.memory_space<vmem>>, vector<32x32xf32>
    %cst_210 = arith.constant dense<0.000000e+00> : vector<4x32xf32>
    %387 = tpu.matmul %338, %386, %cst_210 {dimension_numbers = #tpu.dot_dimension_numbers<[1], [0], [0], [1], [0, 0, 1, 1], [], []>} : vector<4x32xf32>, vector<32x32xf32>, vector<4x32xf32> -> vector<4x32xf32>
    %388 = arith.addf %385, %387 : vector<4x32xf32>
    %389 = arith.negf %388 : vector<4x32xf32>
    %390 = math.exp %389 : vector<4x32xf32>
    %cst_211 = arith.constant 1.000000e+00 : f32
    %391 = vector.broadcast %cst_211 : f32 to vector<4x32xf32>
    %392 = arith.addf %391, %390 : vector<4x32xf32>
    %393 = arith.divf %391, %392 : vector<4x32xf32>
    %394 = arith.index_cast %c3_i32 : i32 to index
    %c0_212 = arith.constant 0 : index
    %c0_213 = arith.constant 0 : index
    %395 = vector.load %arg27[%394, %c0_212, %c0_213] : memref<8x4x32xf32, #tpu.memory_space<vmem>>, vector<1x4x32xf32>
    %396 = vector.shape_cast %395 : vector<1x4x32xf32> to vector<4x32xf32>
    %c0_214 = arith.constant 0 : index
    %c0_215 = arith.constant 0 : index
    %397 = vector.load %arg11[%c0_214, %c0_215] : memref<32x32xf32, #tpu.memory_space<vmem>>, vector<32x32xf32>
    %cst_216 = arith.constant dense<0.000000e+00> : vector<4x32xf32>
    %398 = tpu.matmul %338, %397, %cst_216 {dimension_numbers = #tpu.dot_dimension_numbers<[1], [0], [0], [1], [0, 0, 1, 1], [], []>} : vector<4x32xf32>, vector<32x32xf32>, vector<4x32xf32> -> vector<4x32xf32>
    %399 = arith.addf %396, %398 : vector<4x32xf32>
    %400 = arith.negf %399 : vector<4x32xf32>
    %401 = math.exp %400 : vector<4x32xf32>
    %cst_217 = arith.constant 1.000000e+00 : f32
    %402 = vector.broadcast %cst_217 : f32 to vector<4x32xf32>
    %403 = arith.addf %402, %401 : vector<4x32xf32>
    %404 = arith.divf %402, %403 : vector<4x32xf32>
    %405 = arith.index_cast %c3_i32 : i32 to index
    %c0_218 = arith.constant 0 : index
    %c0_219 = arith.constant 0 : index
    %406 = vector.load %arg28[%405, %c0_218, %c0_219] : memref<8x4x32xf32, #tpu.memory_space<vmem>>, vector<1x4x32xf32>
    %407 = vector.shape_cast %406 : vector<1x4x32xf32> to vector<4x32xf32>
    %c0_220 = arith.constant 0 : index
    %c0_221 = arith.constant 0 : index
    %408 = vector.load %arg12[%c0_220, %c0_221] : memref<32x32xf32, #tpu.memory_space<vmem>>, vector<32x32xf32>
    %cst_222 = arith.constant dense<0.000000e+00> : vector<4x32xf32>
    %409 = tpu.matmul %338, %408, %cst_222 {dimension_numbers = #tpu.dot_dimension_numbers<[1], [0], [0], [1], [0, 0, 1, 1], [], []>} : vector<4x32xf32>, vector<32x32xf32>, vector<4x32xf32> -> vector<4x32xf32>
    %410 = arith.addf %409, %115 : vector<4x32xf32>
    %411 = arith.mulf %393, %410 : vector<4x32xf32>
    %412 = arith.addf %407, %411 : vector<4x32xf32>
    %413 = math.tanh %412 : vector<4x32xf32>
    %cst_223 = arith.constant 1.000000e+00 : f32
    %414 = vector.broadcast %cst_223 : f32 to vector<4x32xf32>
    %415 = arith.subf %414, %404 : vector<4x32xf32>
    %416 = arith.mulf %415, %413 : vector<4x32xf32>
    %417 = arith.mulf %404, %338 : vector<4x32xf32>
    %418 = arith.addf %416, %417 : vector<4x32xf32>
    %419 = vector.shape_cast %382 : vector<4x1xi1> to vector<4x1xi1>
    %420 = vector.broadcast %419 : vector<4x1xi1> to vector<4x32xi1>
    %421 = arith.select %420, %418, %338 : vector<4x32xi1>, vector<4x32xf32>
    %422 = tpu.concatenate %421, %372 in 1 : vector<4x32xf32>, vector<4x32xf32> -> vector<4x64xf32>
    %c0_224 = arith.constant 0 : index
    %c0_225 = arith.constant 0 : index
    %423 = vector.load %arg14[%c0_224, %c0_225] : memref<64x32xf32, #tpu.memory_space<vmem>>, vector<64x32xf32>
    %cst_226 = arith.constant dense<0.000000e+00> : vector<4x32xf32>
    %424 = tpu.matmul %422, %423, %cst_226 {dimension_numbers = #tpu.dot_dimension_numbers<[1], [0], [0], [1], [0, 0, 1, 1], [], []>} : vector<4x64xf32>, vector<64x32xf32>, vector<4x32xf32> -> vector<4x32xf32>
    %425 = arith.addf %424, %118 : vector<4x32xf32>
    %426 = arith.negf %425 : vector<4x32xf32>
    %427 = math.exp %426 : vector<4x32xf32>
    %cst_227 = arith.constant 1.000000e+00 : f32
    %428 = vector.broadcast %cst_227 : f32 to vector<4x32xf32>
    %429 = arith.addf %428, %427 : vector<4x32xf32>
    %430 = arith.divf %428, %429 : vector<4x32xf32>
    %c0_228 = arith.constant 0 : index
    %c0_229 = arith.constant 0 : index
    %431 = vector.load %arg15[%c0_228, %c0_229] : memref<64x32xf32, #tpu.memory_space<vmem>>, vector<64x32xf32>
    %cst_230 = arith.constant dense<0.000000e+00> : vector<4x32xf32>
    %432 = tpu.matmul %422, %431, %cst_230 {dimension_numbers = #tpu.dot_dimension_numbers<[1], [0], [0], [1], [0, 0, 1, 1], [], []>} : vector<4x64xf32>, vector<64x32xf32>, vector<4x32xf32> -> vector<4x32xf32>
    %433 = arith.addf %432, %121 : vector<4x32xf32>
    %434 = arith.negf %433 : vector<4x32xf32>
    %435 = math.exp %434 : vector<4x32xf32>
    %cst_231 = arith.constant 1.000000e+00 : f32
    %436 = vector.broadcast %cst_231 : f32 to vector<4x32xf32>
    %437 = arith.addf %436, %435 : vector<4x32xf32>
    %438 = arith.divf %436, %437 : vector<4x32xf32>
    %c0_232 = arith.constant 0 : index
    %c0_233 = arith.constant 0 : index
    %439 = vector.load %arg18[%c0_232, %c0_233] : memref<32x32xf32, #tpu.memory_space<vmem>>, vector<32x32xf32>
    %cst_234 = arith.constant dense<0.000000e+00> : vector<4x32xf32>
    %440 = tpu.matmul %421, %439, %cst_234 {dimension_numbers = #tpu.dot_dimension_numbers<[1], [0], [0], [1], [0, 0, 1, 1], [], []>} : vector<4x32xf32>, vector<32x32xf32>, vector<4x32xf32> -> vector<4x32xf32>
    %441 = arith.addf %440, %124 : vector<4x32xf32>
    %c0_235 = arith.constant 0 : index
    %c0_236 = arith.constant 0 : index
    %442 = vector.load %arg19[%c0_235, %c0_236] : memref<32x32xf32, #tpu.memory_space<vmem>>, vector<32x32xf32>
    %cst_237 = arith.constant dense<0.000000e+00> : vector<4x32xf32>
    %443 = tpu.matmul %372, %442, %cst_237 {dimension_numbers = #tpu.dot_dimension_numbers<[1], [0], [0], [1], [0, 0, 1, 1], [], []>} : vector<4x32xf32>, vector<32x32xf32>, vector<4x32xf32> -> vector<4x32xf32>
    %444 = arith.addf %443, %127 : vector<4x32xf32>
    %445 = arith.mulf %430, %444 : vector<4x32xf32>
    %446 = arith.addf %441, %445 : vector<4x32xf32>
    %447 = math.tanh %446 : vector<4x32xf32>
    %cst_238 = arith.constant 1.000000e+00 : f32
    %448 = vector.broadcast %cst_238 : f32 to vector<4x32xf32>
    %449 = arith.subf %448, %438 : vector<4x32xf32>
    %450 = arith.mulf %449, %447 : vector<4x32xf32>
    %451 = arith.mulf %438, %372 : vector<4x32xf32>
    %452 = arith.addf %450, %451 : vector<4x32xf32>
    %453 = vector.shape_cast %382 : vector<4x1xi1> to vector<4x1xi1>
    %454 = vector.broadcast %453 : vector<4x1xi1> to vector<4x32xi1>
    %455 = arith.select %454, %452, %372 : vector<4x32xi1>, vector<4x32xf32>
    %cst_239 = arith.constant 0.000000e+00 : f32
    %456 = vector.shape_cast %382 : vector<4x1xi1> to vector<4x1xi1>
    %457 = vector.broadcast %456 : vector<4x1xi1> to vector<4x32xi1>
    %458 = vector.broadcast %cst_239 : f32 to vector<4x32xf32>
    %459 = arith.select %457, %455, %458 : vector<4x32xi1>, vector<4x32xf32>
    %460 = arith.index_cast %c3_i32 : i32 to index
    %c0_240 = arith.constant 0 : index
    %c0_241 = arith.constant 0 : index
    %461 = vector.load %arg29[%460, %c0_240, %c0_241] : memref<8x4x32xf32, #tpu.memory_space<vmem>>, vector<1x4x32xf32>
    %462 = vector.shape_cast %461 : vector<1x4x32xf32> to vector<4x32xf32>
    %463 = vector.shape_cast %459 : vector<4x32xf32> to vector<1x4x32xf32>
    tpu.vector_store %arg29[%460, %c0_240, %c0_241], %463 {strides = array<i32>} : memref<8x4x32xf32, #tpu.memory_space<vmem>>, vector<1x4x32xf32>,
    %c4_i32 = arith.constant 4 : i32
    %464 = vector.broadcast %c4_i32 : i32 to vector<4x1xi32>
    %465 = arith.cmpi sgt, %112, %464 : vector<4x1xi32>
    %466 = arith.index_cast %c4_i32 : i32 to index
    %c0_242 = arith.constant 0 : index
    %c0_243 = arith.constant 0 : index
    %467 = vector.load %arg26[%466, %c0_242, %c0_243] : memref<8x4x32xf32, #tpu.memory_space<vmem>>, vector<1x4x32xf32>
    %468 = vector.shape_cast %467 : vector<1x4x32xf32> to vector<4x32xf32>
    %c0_244 = arith.constant 0 : index
    %c0_245 = arith.constant 0 : index
    %469 = vector.load %arg10[%c0_244, %c0_245] : memref<32x32xf32, #tpu.memory_space<vmem>>, vector<32x32xf32>
    %cst_246 = arith.constant dense<0.000000e+00> : vector<4x32xf32>
    %470 = tpu.matmul %421, %469, %cst_246 {dimension_numbers = #tpu.dot_dimension_numbers<[1], [0], [0], [1], [0, 0, 1, 1], [], []>} : vector<4x32xf32>, vector<32x32xf32>, vector<4x32xf32> -> vector<4x32xf32>
    %471 = arith.addf %468, %470 : vector<4x32xf32>
    %472 = arith.negf %471 : vector<4x32xf32>
    %473 = math.exp %472 : vector<4x32xf32>
    %cst_247 = arith.constant 1.000000e+00 : f32
    %474 = vector.broadcast %cst_247 : f32 to vector<4x32xf32>
    %475 = arith.addf %474, %473 : vector<4x32xf32>
    %476 = arith.divf %474, %475 : vector<4x32xf32>
    %477 = arith.index_cast %c4_i32 : i32 to index
    %c0_248 = arith.constant 0 : index
    %c0_249 = arith.constant 0 : index
    %478 = vector.load %arg27[%477, %c0_248, %c0_249] : memref<8x4x32xf32, #tpu.memory_space<vmem>>, vector<1x4x32xf32>
    %479 = vector.shape_cast %478 : vector<1x4x32xf32> to vector<4x32xf32>
    %c0_250 = arith.constant 0 : index
    %c0_251 = arith.constant 0 : index
    %480 = vector.load %arg11[%c0_250, %c0_251] : memref<32x32xf32, #tpu.memory_space<vmem>>, vector<32x32xf32>
    %cst_252 = arith.constant dense<0.000000e+00> : vector<4x32xf32>
    %481 = tpu.matmul %421, %480, %cst_252 {dimension_numbers = #tpu.dot_dimension_numbers<[1], [0], [0], [1], [0, 0, 1, 1], [], []>} : vector<4x32xf32>, vector<32x32xf32>, vector<4x32xf32> -> vector<4x32xf32>
    %482 = arith.addf %479, %481 : vector<4x32xf32>
    %483 = arith.negf %482 : vector<4x32xf32>
    %484 = math.exp %483 : vector<4x32xf32>
    %cst_253 = arith.constant 1.000000e+00 : f32
    %485 = vector.broadcast %cst_253 : f32 to vector<4x32xf32>
    %486 = arith.addf %485, %484 : vector<4x32xf32>
    %487 = arith.divf %485, %486 : vector<4x32xf32>
    %488 = arith.index_cast %c4_i32 : i32 to index
    %c0_254 = arith.constant 0 : index
    %c0_255 = arith.constant 0 : index
    %489 = vector.load %arg28[%488, %c0_254, %c0_255] : memref<8x4x32xf32, #tpu.memory_space<vmem>>, vector<1x4x32xf32>
    %490 = vector.shape_cast %489 : vector<1x4x32xf32> to vector<4x32xf32>
    %c0_256 = arith.constant 0 : index
    %c0_257 = arith.constant 0 : index
    %491 = vector.load %arg12[%c0_256, %c0_257] : memref<32x32xf32, #tpu.memory_space<vmem>>, vector<32x32xf32>
    %cst_258 = arith.constant dense<0.000000e+00> : vector<4x32xf32>
    %492 = tpu.matmul %421, %491, %cst_258 {dimension_numbers = #tpu.dot_dimension_numbers<[1], [0], [0], [1], [0, 0, 1, 1], [], []>} : vector<4x32xf32>, vector<32x32xf32>, vector<4x32xf32> -> vector<4x32xf32>
    %493 = arith.addf %492, %115 : vector<4x32xf32>
    %494 = arith.mulf %476, %493 : vector<4x32xf32>
    %495 = arith.addf %490, %494 : vector<4x32xf32>
    %496 = math.tanh %495 : vector<4x32xf32>
    %cst_259 = arith.constant 1.000000e+00 : f32
    %497 = vector.broadcast %cst_259 : f32 to vector<4x32xf32>
    %498 = arith.subf %497, %487 : vector<4x32xf32>
    %499 = arith.mulf %498, %496 : vector<4x32xf32>
    %500 = arith.mulf %487, %421 : vector<4x32xf32>
    %501 = arith.addf %499, %500 : vector<4x32xf32>
    %502 = vector.shape_cast %465 : vector<4x1xi1> to vector<4x1xi1>
    %503 = vector.broadcast %502 : vector<4x1xi1> to vector<4x32xi1>
    %504 = arith.select %503, %501, %421 : vector<4x32xi1>, vector<4x32xf32>
    %505 = tpu.concatenate %504, %455 in 1 : vector<4x32xf32>, vector<4x32xf32> -> vector<4x64xf32>
    %c0_260 = arith.constant 0 : index
    %c0_261 = arith.constant 0 : index
    %506 = vector.load %arg14[%c0_260, %c0_261] : memref<64x32xf32, #tpu.memory_space<vmem>>, vector<64x32xf32>
    %cst_262 = arith.constant dense<0.000000e+00> : vector<4x32xf32>
    %507 = tpu.matmul %505, %506, %cst_262 {dimension_numbers = #tpu.dot_dimension_numbers<[1], [0], [0], [1], [0, 0, 1, 1], [], []>} : vector<4x64xf32>, vector<64x32xf32>, vector<4x32xf32> -> vector<4x32xf32>
    %508 = arith.addf %507, %118 : vector<4x32xf32>
    %509 = arith.negf %508 : vector<4x32xf32>
    %510 = math.exp %509 : vector<4x32xf32>
    %cst_263 = arith.constant 1.000000e+00 : f32
    %511 = vector.broadcast %cst_263 : f32 to vector<4x32xf32>
    %512 = arith.addf %511, %510 : vector<4x32xf32>
    %513 = arith.divf %511, %512 : vector<4x32xf32>
    %c0_264 = arith.constant 0 : index
    %c0_265 = arith.constant 0 : index
    %514 = vector.load %arg15[%c0_264, %c0_265] : memref<64x32xf32, #tpu.memory_space<vmem>>, vector<64x32xf32>
    %cst_266 = arith.constant dense<0.000000e+00> : vector<4x32xf32>
    %515 = tpu.matmul %505, %514, %cst_266 {dimension_numbers = #tpu.dot_dimension_numbers<[1], [0], [0], [1], [0, 0, 1, 1], [], []>} : vector<4x64xf32>, vector<64x32xf32>, vector<4x32xf32> -> vector<4x32xf32>
    %516 = arith.addf %515, %121 : vector<4x32xf32>
    %517 = arith.negf %516 : vector<4x32xf32>
    %518 = math.exp %517 : vector<4x32xf32>
    %cst_267 = arith.constant 1.000000e+00 : f32
    %519 = vector.broadcast %cst_267 : f32 to vector<4x32xf32>
    %520 = arith.addf %519, %518 : vector<4x32xf32>
    %521 = arith.divf %519, %520 : vector<4x32xf32>
    %c0_268 = arith.constant 0 : index
    %c0_269 = arith.constant 0 : index
    %522 = vector.load %arg18[%c0_268, %c0_269] : memref<32x32xf32, #tpu.memory_space<vmem>>, vector<32x32xf32>
    %cst_270 = arith.constant dense<0.000000e+00> : vector<4x32xf32>
    %523 = tpu.matmul %504, %522, %cst_270 {dimension_numbers = #tpu.dot_dimension_numbers<[1], [0], [0], [1], [0, 0, 1, 1], [], []>} : vector<4x32xf32>, vector<32x32xf32>, vector<4x32xf32> -> vector<4x32xf32>
    %524 = arith.addf %523, %124 : vector<4x32xf32>
    %c0_271 = arith.constant 0 : index
    %c0_272 = arith.constant 0 : index
    %525 = vector.load %arg19[%c0_271, %c0_272] : memref<32x32xf32, #tpu.memory_space<vmem>>, vector<32x32xf32>
    %cst_273 = arith.constant dense<0.000000e+00> : vector<4x32xf32>
    %526 = tpu.matmul %455, %525, %cst_273 {dimension_numbers = #tpu.dot_dimension_numbers<[1], [0], [0], [1], [0, 0, 1, 1], [], []>} : vector<4x32xf32>, vector<32x32xf32>, vector<4x32xf32> -> vector<4x32xf32>
    %527 = arith.addf %526, %127 : vector<4x32xf32>
    %528 = arith.mulf %513, %527 : vector<4x32xf32>
    %529 = arith.addf %524, %528 : vector<4x32xf32>
    %530 = math.tanh %529 : vector<4x32xf32>
    %cst_274 = arith.constant 1.000000e+00 : f32
    %531 = vector.broadcast %cst_274 : f32 to vector<4x32xf32>
    %532 = arith.subf %531, %521 : vector<4x32xf32>
    %533 = arith.mulf %532, %530 : vector<4x32xf32>
    %534 = arith.mulf %521, %455 : vector<4x32xf32>
    %535 = arith.addf %533, %534 : vector<4x32xf32>
    %536 = vector.shape_cast %465 : vector<4x1xi1> to vector<4x1xi1>
    %537 = vector.broadcast %536 : vector<4x1xi1> to vector<4x32xi1>
    %538 = arith.select %537, %535, %455 : vector<4x32xi1>, vector<4x32xf32>
    %cst_275 = arith.constant 0.000000e+00 : f32
    %539 = vector.shape_cast %465 : vector<4x1xi1> to vector<4x1xi1>
    %540 = vector.broadcast %539 : vector<4x1xi1> to vector<4x32xi1>
    %541 = vector.broadcast %cst_275 : f32 to vector<4x32xf32>
    %542 = arith.select %540, %538, %541 : vector<4x32xi1>, vector<4x32xf32>
    %543 = arith.index_cast %c4_i32 : i32 to index
    %c0_276 = arith.constant 0 : index
    %c0_277 = arith.constant 0 : index
    %544 = vector.load %arg29[%543, %c0_276, %c0_277] : memref<8x4x32xf32, #tpu.memory_space<vmem>>, vector<1x4x32xf32>
    %545 = vector.shape_cast %544 : vector<1x4x32xf32> to vector<4x32xf32>
    %546 = vector.shape_cast %542 : vector<4x32xf32> to vector<1x4x32xf32>
    tpu.vector_store %arg29[%543, %c0_276, %c0_277], %546 {strides = array<i32>} : memref<8x4x32xf32, #tpu.memory_space<vmem>>, vector<1x4x32xf32>,
    %c5_i32 = arith.constant 5 : i32
    %547 = vector.broadcast %c5_i32 : i32 to vector<4x1xi32>
    %548 = arith.cmpi sgt, %112, %547 : vector<4x1xi32>
    %549 = arith.index_cast %c5_i32 : i32 to index
    %c0_278 = arith.constant 0 : index
    %c0_279 = arith.constant 0 : index
    %550 = vector.load %arg26[%549, %c0_278, %c0_279] : memref<8x4x32xf32, #tpu.memory_space<vmem>>, vector<1x4x32xf32>
    %551 = vector.shape_cast %550 : vector<1x4x32xf32> to vector<4x32xf32>
    %c0_280 = arith.constant 0 : index
    %c0_281 = arith.constant 0 : index
    %552 = vector.load %arg10[%c0_280, %c0_281] : memref<32x32xf32, #tpu.memory_space<vmem>>, vector<32x32xf32>
    %cst_282 = arith.constant dense<0.000000e+00> : vector<4x32xf32>
    %553 = tpu.matmul %504, %552, %cst_282 {dimension_numbers = #tpu.dot_dimension_numbers<[1], [0], [0], [1], [0, 0, 1, 1], [], []>} : vector<4x32xf32>, vector<32x32xf32>, vector<4x32xf32> -> vector<4x32xf32>
    %554 = arith.addf %551, %553 : vector<4x32xf32>
    %555 = arith.negf %554 : vector<4x32xf32>
    %556 = math.exp %555 : vector<4x32xf32>
    %cst_283 = arith.constant 1.000000e+00 : f32
    %557 = vector.broadcast %cst_283 : f32 to vector<4x32xf32>
    %558 = arith.addf %557, %556 : vector<4x32xf32>
    %559 = arith.divf %557, %558 : vector<4x32xf32>
    %560 = arith.index_cast %c5_i32 : i32 to index
    %c0_284 = arith.constant 0 : index
    %c0_285 = arith.constant 0 : index
    %561 = vector.load %arg27[%560, %c0_284, %c0_285] : memref<8x4x32xf32, #tpu.memory_space<vmem>>, vector<1x4x32xf32>
    %562 = vector.shape_cast %561 : vector<1x4x32xf32> to vector<4x32xf32>
    %c0_286 = arith.constant 0 : index
    %c0_287 = arith.constant 0 : index
    %563 = vector.load %arg11[%c0_286, %c0_287] : memref<32x32xf32, #tpu.memory_space<vmem>>, vector<32x32xf32>
    %cst_288 = arith.constant dense<0.000000e+00> : vector<4x32xf32>
    %564 = tpu.matmul %504, %563, %cst_288 {dimension_numbers = #tpu.dot_dimension_numbers<[1], [0], [0], [1], [0, 0, 1, 1], [], []>} : vector<4x32xf32>, vector<32x32xf32>, vector<4x32xf32> -> vector<4x32xf32>
    %565 = arith.addf %562, %564 : vector<4x32xf32>
    %566 = arith.negf %565 : vector<4x32xf32>
    %567 = math.exp %566 : vector<4x32xf32>
    %cst_289 = arith.constant 1.000000e+00 : f32
    %568 = vector.broadcast %cst_289 : f32 to vector<4x32xf32>
    %569 = arith.addf %568, %567 : vector<4x32xf32>
    %570 = arith.divf %568, %569 : vector<4x32xf32>
    %571 = arith.index_cast %c5_i32 : i32 to index
    %c0_290 = arith.constant 0 : index
    %c0_291 = arith.constant 0 : index
    %572 = vector.load %arg28[%571, %c0_290, %c0_291] : memref<8x4x32xf32, #tpu.memory_space<vmem>>, vector<1x4x32xf32>
    %573 = vector.shape_cast %572 : vector<1x4x32xf32> to vector<4x32xf32>
    %c0_292 = arith.constant 0 : index
    %c0_293 = arith.constant 0 : index
    %574 = vector.load %arg12[%c0_292, %c0_293] : memref<32x32xf32, #tpu.memory_space<vmem>>, vector<32x32xf32>
    %cst_294 = arith.constant dense<0.000000e+00> : vector<4x32xf32>
    %575 = tpu.matmul %504, %574, %cst_294 {dimension_numbers = #tpu.dot_dimension_numbers<[1], [0], [0], [1], [0, 0, 1, 1], [], []>} : vector<4x32xf32>, vector<32x32xf32>, vector<4x32xf32> -> vector<4x32xf32>
    %576 = arith.addf %575, %115 : vector<4x32xf32>
    %577 = arith.mulf %559, %576 : vector<4x32xf32>
    %578 = arith.addf %573, %577 : vector<4x32xf32>
    %579 = math.tanh %578 : vector<4x32xf32>
    %cst_295 = arith.constant 1.000000e+00 : f32
    %580 = vector.broadcast %cst_295 : f32 to vector<4x32xf32>
    %581 = arith.subf %580, %570 : vector<4x32xf32>
    %582 = arith.mulf %581, %579 : vector<4x32xf32>
    %583 = arith.mulf %570, %504 : vector<4x32xf32>
    %584 = arith.addf %582, %583 : vector<4x32xf32>
    %585 = vector.shape_cast %548 : vector<4x1xi1> to vector<4x1xi1>
    %586 = vector.broadcast %585 : vector<4x1xi1> to vector<4x32xi1>
    %587 = arith.select %586, %584, %504 : vector<4x32xi1>, vector<4x32xf32>
    %588 = tpu.concatenate %587, %538 in 1 : vector<4x32xf32>, vector<4x32xf32> -> vector<4x64xf32>
    %c0_296 = arith.constant 0 : index
    %c0_297 = arith.constant 0 : index
    %589 = vector.load %arg14[%c0_296, %c0_297] : memref<64x32xf32, #tpu.memory_space<vmem>>, vector<64x32xf32>
    %cst_298 = arith.constant dense<0.000000e+00> : vector<4x32xf32>
    %590 = tpu.matmul %588, %589, %cst_298 {dimension_numbers = #tpu.dot_dimension_numbers<[1], [0], [0], [1], [0, 0, 1, 1], [], []>} : vector<4x64xf32>, vector<64x32xf32>, vector<4x32xf32> -> vector<4x32xf32>
    %591 = arith.addf %590, %118 : vector<4x32xf32>
    %592 = arith.negf %591 : vector<4x32xf32>
    %593 = math.exp %592 : vector<4x32xf32>
    %cst_299 = arith.constant 1.000000e+00 : f32
    %594 = vector.broadcast %cst_299 : f32 to vector<4x32xf32>
    %595 = arith.addf %594, %593 : vector<4x32xf32>
    %596 = arith.divf %594, %595 : vector<4x32xf32>
    %c0_300 = arith.constant 0 : index
    %c0_301 = arith.constant 0 : index
    %597 = vector.load %arg15[%c0_300, %c0_301] : memref<64x32xf32, #tpu.memory_space<vmem>>, vector<64x32xf32>
    %cst_302 = arith.constant dense<0.000000e+00> : vector<4x32xf32>
    %598 = tpu.matmul %588, %597, %cst_302 {dimension_numbers = #tpu.dot_dimension_numbers<[1], [0], [0], [1], [0, 0, 1, 1], [], []>} : vector<4x64xf32>, vector<64x32xf32>, vector<4x32xf32> -> vector<4x32xf32>
    %599 = arith.addf %598, %121 : vector<4x32xf32>
    %600 = arith.negf %599 : vector<4x32xf32>
    %601 = math.exp %600 : vector<4x32xf32>
    %cst_303 = arith.constant 1.000000e+00 : f32
    %602 = vector.broadcast %cst_303 : f32 to vector<4x32xf32>
    %603 = arith.addf %602, %601 : vector<4x32xf32>
    %604 = arith.divf %602, %603 : vector<4x32xf32>
    %c0_304 = arith.constant 0 : index
    %c0_305 = arith.constant 0 : index
    %605 = vector.load %arg18[%c0_304, %c0_305] : memref<32x32xf32, #tpu.memory_space<vmem>>, vector<32x32xf32>
    %cst_306 = arith.constant dense<0.000000e+00> : vector<4x32xf32>
    %606 = tpu.matmul %587, %605, %cst_306 {dimension_numbers = #tpu.dot_dimension_numbers<[1], [0], [0], [1], [0, 0, 1, 1], [], []>} : vector<4x32xf32>, vector<32x32xf32>, vector<4x32xf32> -> vector<4x32xf32>
    %607 = arith.addf %606, %124 : vector<4x32xf32>
    %c0_307 = arith.constant 0 : index
    %c0_308 = arith.constant 0 : index
    %608 = vector.load %arg19[%c0_307, %c0_308] : memref<32x32xf32, #tpu.memory_space<vmem>>, vector<32x32xf32>
    %cst_309 = arith.constant dense<0.000000e+00> : vector<4x32xf32>
    %609 = tpu.matmul %538, %608, %cst_309 {dimension_numbers = #tpu.dot_dimension_numbers<[1], [0], [0], [1], [0, 0, 1, 1], [], []>} : vector<4x32xf32>, vector<32x32xf32>, vector<4x32xf32> -> vector<4x32xf32>
    %610 = arith.addf %609, %127 : vector<4x32xf32>
    %611 = arith.mulf %596, %610 : vector<4x32xf32>
    %612 = arith.addf %607, %611 : vector<4x32xf32>
    %613 = math.tanh %612 : vector<4x32xf32>
    %cst_310 = arith.constant 1.000000e+00 : f32
    %614 = vector.broadcast %cst_310 : f32 to vector<4x32xf32>
    %615 = arith.subf %614, %604 : vector<4x32xf32>
    %616 = arith.mulf %615, %613 : vector<4x32xf32>
    %617 = arith.mulf %604, %538 : vector<4x32xf32>
    %618 = arith.addf %616, %617 : vector<4x32xf32>
    %619 = vector.shape_cast %548 : vector<4x1xi1> to vector<4x1xi1>
    %620 = vector.broadcast %619 : vector<4x1xi1> to vector<4x32xi1>
    %621 = arith.select %620, %618, %538 : vector<4x32xi1>, vector<4x32xf32>
    %cst_311 = arith.constant 0.000000e+00 : f32
    %622 = vector.shape_cast %548 : vector<4x1xi1> to vector<4x1xi1>
    %623 = vector.broadcast %622 : vector<4x1xi1> to vector<4x32xi1>
    %624 = vector.broadcast %cst_311 : f32 to vector<4x32xf32>
    %625 = arith.select %623, %621, %624 : vector<4x32xi1>, vector<4x32xf32>
    %626 = arith.index_cast %c5_i32 : i32 to index
    %c0_312 = arith.constant 0 : index
    %c0_313 = arith.constant 0 : index
    %627 = vector.load %arg29[%626, %c0_312, %c0_313] : memref<8x4x32xf32, #tpu.memory_space<vmem>>, vector<1x4x32xf32>
    %628 = vector.shape_cast %627 : vector<1x4x32xf32> to vector<4x32xf32>
    %629 = vector.shape_cast %625 : vector<4x32xf32> to vector<1x4x32xf32>
    tpu.vector_store %arg29[%626, %c0_312, %c0_313], %629 {strides = array<i32>} : memref<8x4x32xf32, #tpu.memory_space<vmem>>, vector<1x4x32xf32>,
    %c6_i32 = arith.constant 6 : i32
    %630 = vector.broadcast %c6_i32 : i32 to vector<4x1xi32>
    %631 = arith.cmpi sgt, %112, %630 : vector<4x1xi32>
    %632 = arith.index_cast %c6_i32 : i32 to index
    %c0_314 = arith.constant 0 : index
    %c0_315 = arith.constant 0 : index
    %633 = vector.load %arg26[%632, %c0_314, %c0_315] : memref<8x4x32xf32, #tpu.memory_space<vmem>>, vector<1x4x32xf32>
    %634 = vector.shape_cast %633 : vector<1x4x32xf32> to vector<4x32xf32>
    %c0_316 = arith.constant 0 : index
    %c0_317 = arith.constant 0 : index
    %635 = vector.load %arg10[%c0_316, %c0_317] : memref<32x32xf32, #tpu.memory_space<vmem>>, vector<32x32xf32>
    %cst_318 = arith.constant dense<0.000000e+00> : vector<4x32xf32>
    %636 = tpu.matmul %587, %635, %cst_318 {dimension_numbers = #tpu.dot_dimension_numbers<[1], [0], [0], [1], [0, 0, 1, 1], [], []>} : vector<4x32xf32>, vector<32x32xf32>, vector<4x32xf32> -> vector<4x32xf32>
    %637 = arith.addf %634, %636 : vector<4x32xf32>
    %638 = arith.negf %637 : vector<4x32xf32>
    %639 = math.exp %638 : vector<4x32xf32>
    %cst_319 = arith.constant 1.000000e+00 : f32
    %640 = vector.broadcast %cst_319 : f32 to vector<4x32xf32>
    %641 = arith.addf %640, %639 : vector<4x32xf32>
    %642 = arith.divf %640, %641 : vector<4x32xf32>
    %643 = arith.index_cast %c6_i32 : i32 to index
    %c0_320 = arith.constant 0 : index
    %c0_321 = arith.constant 0 : index
    %644 = vector.load %arg27[%643, %c0_320, %c0_321] : memref<8x4x32xf32, #tpu.memory_space<vmem>>, vector<1x4x32xf32>
    %645 = vector.shape_cast %644 : vector<1x4x32xf32> to vector<4x32xf32>
    %c0_322 = arith.constant 0 : index
    %c0_323 = arith.constant 0 : index
    %646 = vector.load %arg11[%c0_322, %c0_323] : memref<32x32xf32, #tpu.memory_space<vmem>>, vector<32x32xf32>
    %cst_324 = arith.constant dense<0.000000e+00> : vector<4x32xf32>
    %647 = tpu.matmul %587, %646, %cst_324 {dimension_numbers = #tpu.dot_dimension_numbers<[1], [0], [0], [1], [0, 0, 1, 1], [], []>} : vector<4x32xf32>, vector<32x32xf32>, vector<4x32xf32> -> vector<4x32xf32>
    %648 = arith.addf %645, %647 : vector<4x32xf32>
    %649 = arith.negf %648 : vector<4x32xf32>
    %650 = math.exp %649 : vector<4x32xf32>
    %cst_325 = arith.constant 1.000000e+00 : f32
    %651 = vector.broadcast %cst_325 : f32 to vector<4x32xf32>
    %652 = arith.addf %651, %650 : vector<4x32xf32>
    %653 = arith.divf %651, %652 : vector<4x32xf32>
    %654 = arith.index_cast %c6_i32 : i32 to index
    %c0_326 = arith.constant 0 : index
    %c0_327 = arith.constant 0 : index
    %655 = vector.load %arg28[%654, %c0_326, %c0_327] : memref<8x4x32xf32, #tpu.memory_space<vmem>>, vector<1x4x32xf32>
    %656 = vector.shape_cast %655 : vector<1x4x32xf32> to vector<4x32xf32>
    %c0_328 = arith.constant 0 : index
    %c0_329 = arith.constant 0 : index
    %657 = vector.load %arg12[%c0_328, %c0_329] : memref<32x32xf32, #tpu.memory_space<vmem>>, vector<32x32xf32>
    %cst_330 = arith.constant dense<0.000000e+00> : vector<4x32xf32>
    %658 = tpu.matmul %587, %657, %cst_330 {dimension_numbers = #tpu.dot_dimension_numbers<[1], [0], [0], [1], [0, 0, 1, 1], [], []>} : vector<4x32xf32>, vector<32x32xf32>, vector<4x32xf32> -> vector<4x32xf32>
    %659 = arith.addf %658, %115 : vector<4x32xf32>
    %660 = arith.mulf %642, %659 : vector<4x32xf32>
    %661 = arith.addf %656, %660 : vector<4x32xf32>
    %662 = math.tanh %661 : vector<4x32xf32>
    %cst_331 = arith.constant 1.000000e+00 : f32
    %663 = vector.broadcast %cst_331 : f32 to vector<4x32xf32>
    %664 = arith.subf %663, %653 : vector<4x32xf32>
    %665 = arith.mulf %664, %662 : vector<4x32xf32>
    %666 = arith.mulf %653, %587 : vector<4x32xf32>
    %667 = arith.addf %665, %666 : vector<4x32xf32>
    %668 = vector.shape_cast %631 : vector<4x1xi1> to vector<4x1xi1>
    %669 = vector.broadcast %668 : vector<4x1xi1> to vector<4x32xi1>
    %670 = arith.select %669, %667, %587 : vector<4x32xi1>, vector<4x32xf32>
    %671 = tpu.concatenate %670, %621 in 1 : vector<4x32xf32>, vector<4x32xf32> -> vector<4x64xf32>
    %c0_332 = arith.constant 0 : index
    %c0_333 = arith.constant 0 : index
    %672 = vector.load %arg14[%c0_332, %c0_333] : memref<64x32xf32, #tpu.memory_space<vmem>>, vector<64x32xf32>
    %cst_334 = arith.constant dense<0.000000e+00> : vector<4x32xf32>
    %673 = tpu.matmul %671, %672, %cst_334 {dimension_numbers = #tpu.dot_dimension_numbers<[1], [0], [0], [1], [0, 0, 1, 1], [], []>} : vector<4x64xf32>, vector<64x32xf32>, vector<4x32xf32> -> vector<4x32xf32>
    %674 = arith.addf %673, %118 : vector<4x32xf32>
    %675 = arith.negf %674 : vector<4x32xf32>
    %676 = math.exp %675 : vector<4x32xf32>
    %cst_335 = arith.constant 1.000000e+00 : f32
    %677 = vector.broadcast %cst_335 : f32 to vector<4x32xf32>
    %678 = arith.addf %677, %676 : vector<4x32xf32>
    %679 = arith.divf %677, %678 : vector<4x32xf32>
    %c0_336 = arith.constant 0 : index
    %c0_337 = arith.constant 0 : index
    %680 = vector.load %arg15[%c0_336, %c0_337] : memref<64x32xf32, #tpu.memory_space<vmem>>, vector<64x32xf32>
    %cst_338 = arith.constant dense<0.000000e+00> : vector<4x32xf32>
    %681 = tpu.matmul %671, %680, %cst_338 {dimension_numbers = #tpu.dot_dimension_numbers<[1], [0], [0], [1], [0, 0, 1, 1], [], []>} : vector<4x64xf32>, vector<64x32xf32>, vector<4x32xf32> -> vector<4x32xf32>
    %682 = arith.addf %681, %121 : vector<4x32xf32>
    %683 = arith.negf %682 : vector<4x32xf32>
    %684 = math.exp %683 : vector<4x32xf32>
    %cst_339 = arith.constant 1.000000e+00 : f32
    %685 = vector.broadcast %cst_339 : f32 to vector<4x32xf32>
    %686 = arith.addf %685, %684 : vector<4x32xf32>
    %687 = arith.divf %685, %686 : vector<4x32xf32>
    %c0_340 = arith.constant 0 : index
    %c0_341 = arith.constant 0 : index
    %688 = vector.load %arg18[%c0_340, %c0_341] : memref<32x32xf32, #tpu.memory_space<vmem>>, vector<32x32xf32>
    %cst_342 = arith.constant dense<0.000000e+00> : vector<4x32xf32>
    %689 = tpu.matmul %670, %688, %cst_342 {dimension_numbers = #tpu.dot_dimension_numbers<[1], [0], [0], [1], [0, 0, 1, 1], [], []>} : vector<4x32xf32>, vector<32x32xf32>, vector<4x32xf32> -> vector<4x32xf32>
    %690 = arith.addf %689, %124 : vector<4x32xf32>
    %c0_343 = arith.constant 0 : index
    %c0_344 = arith.constant 0 : index
    %691 = vector.load %arg19[%c0_343, %c0_344] : memref<32x32xf32, #tpu.memory_space<vmem>>, vector<32x32xf32>
    %cst_345 = arith.constant dense<0.000000e+00> : vector<4x32xf32>
    %692 = tpu.matmul %621, %691, %cst_345 {dimension_numbers = #tpu.dot_dimension_numbers<[1], [0], [0], [1], [0, 0, 1, 1], [], []>} : vector<4x32xf32>, vector<32x32xf32>, vector<4x32xf32> -> vector<4x32xf32>
    %693 = arith.addf %692, %127 : vector<4x32xf32>
    %694 = arith.mulf %679, %693 : vector<4x32xf32>
    %695 = arith.addf %690, %694 : vector<4x32xf32>
    %696 = math.tanh %695 : vector<4x32xf32>
    %cst_346 = arith.constant 1.000000e+00 : f32
    %697 = vector.broadcast %cst_346 : f32 to vector<4x32xf32>
    %698 = arith.subf %697, %687 : vector<4x32xf32>
    %699 = arith.mulf %698, %696 : vector<4x32xf32>
    %700 = arith.mulf %687, %621 : vector<4x32xf32>
    %701 = arith.addf %699, %700 : vector<4x32xf32>
    %702 = vector.shape_cast %631 : vector<4x1xi1> to vector<4x1xi1>
    %703 = vector.broadcast %702 : vector<4x1xi1> to vector<4x32xi1>
    %704 = arith.select %703, %701, %621 : vector<4x32xi1>, vector<4x32xf32>
    %cst_347 = arith.constant 0.000000e+00 : f32
    %705 = vector.shape_cast %631 : vector<4x1xi1> to vector<4x1xi1>
    %706 = vector.broadcast %705 : vector<4x1xi1> to vector<4x32xi1>
    %707 = vector.broadcast %cst_347 : f32 to vector<4x32xf32>
    %708 = arith.select %706, %704, %707 : vector<4x32xi1>, vector<4x32xf32>
    %709 = arith.index_cast %c6_i32 : i32 to index
    %c0_348 = arith.constant 0 : index
    %c0_349 = arith.constant 0 : index
    %710 = vector.load %arg29[%709, %c0_348, %c0_349] : memref<8x4x32xf32, #tpu.memory_space<vmem>>, vector<1x4x32xf32>
    %711 = vector.shape_cast %710 : vector<1x4x32xf32> to vector<4x32xf32>
    %712 = vector.shape_cast %708 : vector<4x32xf32> to vector<1x4x32xf32>
    tpu.vector_store %arg29[%709, %c0_348, %c0_349], %712 {strides = array<i32>} : memref<8x4x32xf32, #tpu.memory_space<vmem>>, vector<1x4x32xf32>,
    %c7_i32 = arith.constant 7 : i32
    %713 = vector.broadcast %c7_i32 : i32 to vector<4x1xi32>
    %714 = arith.cmpi sgt, %112, %713 : vector<4x1xi32>
    %715 = arith.index_cast %c7_i32 : i32 to index
    %c0_350 = arith.constant 0 : index
    %c0_351 = arith.constant 0 : index
    %716 = vector.load %arg26[%715, %c0_350, %c0_351] : memref<8x4x32xf32, #tpu.memory_space<vmem>>, vector<1x4x32xf32>
    %717 = vector.shape_cast %716 : vector<1x4x32xf32> to vector<4x32xf32>
    %c0_352 = arith.constant 0 : index
    %c0_353 = arith.constant 0 : index
    %718 = vector.load %arg10[%c0_352, %c0_353] : memref<32x32xf32, #tpu.memory_space<vmem>>, vector<32x32xf32>
    %cst_354 = arith.constant dense<0.000000e+00> : vector<4x32xf32>
    %719 = tpu.matmul %670, %718, %cst_354 {dimension_numbers = #tpu.dot_dimension_numbers<[1], [0], [0], [1], [0, 0, 1, 1], [], []>} : vector<4x32xf32>, vector<32x32xf32>, vector<4x32xf32> -> vector<4x32xf32>
    %720 = arith.addf %717, %719 : vector<4x32xf32>
    %721 = arith.negf %720 : vector<4x32xf32>
    %722 = math.exp %721 : vector<4x32xf32>
    %cst_355 = arith.constant 1.000000e+00 : f32
    %723 = vector.broadcast %cst_355 : f32 to vector<4x32xf32>
    %724 = arith.addf %723, %722 : vector<4x32xf32>
    %725 = arith.divf %723, %724 : vector<4x32xf32>
    %726 = arith.index_cast %c7_i32 : i32 to index
    %c0_356 = arith.constant 0 : index
    %c0_357 = arith.constant 0 : index
    %727 = vector.load %arg27[%726, %c0_356, %c0_357] : memref<8x4x32xf32, #tpu.memory_space<vmem>>, vector<1x4x32xf32>
    %728 = vector.shape_cast %727 : vector<1x4x32xf32> to vector<4x32xf32>
    %c0_358 = arith.constant 0 : index
    %c0_359 = arith.constant 0 : index
    %729 = vector.load %arg11[%c0_358, %c0_359] : memref<32x32xf32, #tpu.memory_space<vmem>>, vector<32x32xf32>
    %cst_360 = arith.constant dense<0.000000e+00> : vector<4x32xf32>
    %730 = tpu.matmul %670, %729, %cst_360 {dimension_numbers = #tpu.dot_dimension_numbers<[1], [0], [0], [1], [0, 0, 1, 1], [], []>} : vector<4x32xf32>, vector<32x32xf32>, vector<4x32xf32> -> vector<4x32xf32>
    %731 = arith.addf %728, %730 : vector<4x32xf32>
    %732 = arith.negf %731 : vector<4x32xf32>
    %733 = math.exp %732 : vector<4x32xf32>
    %cst_361 = arith.constant 1.000000e+00 : f32
    %734 = vector.broadcast %cst_361 : f32 to vector<4x32xf32>
    %735 = arith.addf %734, %733 : vector<4x32xf32>
    %736 = arith.divf %734, %735 : vector<4x32xf32>
    %737 = arith.index_cast %c7_i32 : i32 to index
    %c0_362 = arith.constant 0 : index
    %c0_363 = arith.constant 0 : index
    %738 = vector.load %arg28[%737, %c0_362, %c0_363] : memref<8x4x32xf32, #tpu.memory_space<vmem>>, vector<1x4x32xf32>
    %739 = vector.shape_cast %738 : vector<1x4x32xf32> to vector<4x32xf32>
    %c0_364 = arith.constant 0 : index
    %c0_365 = arith.constant 0 : index
    %740 = vector.load %arg12[%c0_364, %c0_365] : memref<32x32xf32, #tpu.memory_space<vmem>>, vector<32x32xf32>
    %cst_366 = arith.constant dense<0.000000e+00> : vector<4x32xf32>
    %741 = tpu.matmul %670, %740, %cst_366 {dimension_numbers = #tpu.dot_dimension_numbers<[1], [0], [0], [1], [0, 0, 1, 1], [], []>} : vector<4x32xf32>, vector<32x32xf32>, vector<4x32xf32> -> vector<4x32xf32>
    %742 = arith.addf %741, %115 : vector<4x32xf32>
    %743 = arith.mulf %725, %742 : vector<4x32xf32>
    %744 = arith.addf %739, %743 : vector<4x32xf32>
    %745 = math.tanh %744 : vector<4x32xf32>
    %cst_367 = arith.constant 1.000000e+00 : f32
    %746 = vector.broadcast %cst_367 : f32 to vector<4x32xf32>
    %747 = arith.subf %746, %736 : vector<4x32xf32>
    %748 = arith.mulf %747, %745 : vector<4x32xf32>
    %749 = arith.mulf %736, %670 : vector<4x32xf32>
    %750 = arith.addf %748, %749 : vector<4x32xf32>
    %751 = vector.shape_cast %714 : vector<4x1xi1> to vector<4x1xi1>
    %752 = vector.broadcast %751 : vector<4x1xi1> to vector<4x32xi1>
    %753 = arith.select %752, %750, %670 : vector<4x32xi1>, vector<4x32xf32>
    %754 = tpu.concatenate %753, %704 in 1 : vector<4x32xf32>, vector<4x32xf32> -> vector<4x64xf32>
    %c0_368 = arith.constant 0 : index
    %c0_369 = arith.constant 0 : index
    %755 = vector.load %arg14[%c0_368, %c0_369] : memref<64x32xf32, #tpu.memory_space<vmem>>, vector<64x32xf32>
    %cst_370 = arith.constant dense<0.000000e+00> : vector<4x32xf32>
    %756 = tpu.matmul %754, %755, %cst_370 {dimension_numbers = #tpu.dot_dimension_numbers<[1], [0], [0], [1], [0, 0, 1, 1], [], []>} : vector<4x64xf32>, vector<64x32xf32>, vector<4x32xf32> -> vector<4x32xf32>
    %757 = arith.addf %756, %118 : vector<4x32xf32>
    %758 = arith.negf %757 : vector<4x32xf32>
    %759 = math.exp %758 : vector<4x32xf32>
    %cst_371 = arith.constant 1.000000e+00 : f32
    %760 = vector.broadcast %cst_371 : f32 to vector<4x32xf32>
    %761 = arith.addf %760, %759 : vector<4x32xf32>
    %762 = arith.divf %760, %761 : vector<4x32xf32>
    %c0_372 = arith.constant 0 : index
    %c0_373 = arith.constant 0 : index
    %763 = vector.load %arg15[%c0_372, %c0_373] : memref<64x32xf32, #tpu.memory_space<vmem>>, vector<64x32xf32>
    %cst_374 = arith.constant dense<0.000000e+00> : vector<4x32xf32>
    %764 = tpu.matmul %754, %763, %cst_374 {dimension_numbers = #tpu.dot_dimension_numbers<[1], [0], [0], [1], [0, 0, 1, 1], [], []>} : vector<4x64xf32>, vector<64x32xf32>, vector<4x32xf32> -> vector<4x32xf32>
    %765 = arith.addf %764, %121 : vector<4x32xf32>
    %766 = arith.negf %765 : vector<4x32xf32>
    %767 = math.exp %766 : vector<4x32xf32>
    %cst_375 = arith.constant 1.000000e+00 : f32
    %768 = vector.broadcast %cst_375 : f32 to vector<4x32xf32>
    %769 = arith.addf %768, %767 : vector<4x32xf32>
    %770 = arith.divf %768, %769 : vector<4x32xf32>
    %c0_376 = arith.constant 0 : index
    %c0_377 = arith.constant 0 : index
    %771 = vector.load %arg18[%c0_376, %c0_377] : memref<32x32xf32, #tpu.memory_space<vmem>>, vector<32x32xf32>
    %cst_378 = arith.constant dense<0.000000e+00> : vector<4x32xf32>
    %772 = tpu.matmul %753, %771, %cst_378 {dimension_numbers = #tpu.dot_dimension_numbers<[1], [0], [0], [1], [0, 0, 1, 1], [], []>} : vector<4x32xf32>, vector<32x32xf32>, vector<4x32xf32> -> vector<4x32xf32>
    %773 = arith.addf %772, %124 : vector<4x32xf32>
    %c0_379 = arith.constant 0 : index
    %c0_380 = arith.constant 0 : index
    %774 = vector.load %arg19[%c0_379, %c0_380] : memref<32x32xf32, #tpu.memory_space<vmem>>, vector<32x32xf32>
    %cst_381 = arith.constant dense<0.000000e+00> : vector<4x32xf32>
    %775 = tpu.matmul %704, %774, %cst_381 {dimension_numbers = #tpu.dot_dimension_numbers<[1], [0], [0], [1], [0, 0, 1, 1], [], []>} : vector<4x32xf32>, vector<32x32xf32>, vector<4x32xf32> -> vector<4x32xf32>
    %776 = arith.addf %775, %127 : vector<4x32xf32>
    %777 = arith.mulf %762, %776 : vector<4x32xf32>
    %778 = arith.addf %773, %777 : vector<4x32xf32>
    %779 = math.tanh %778 : vector<4x32xf32>
    %cst_382 = arith.constant 1.000000e+00 : f32
    %780 = vector.broadcast %cst_382 : f32 to vector<4x32xf32>
    %781 = arith.subf %780, %770 : vector<4x32xf32>
    %782 = arith.mulf %781, %779 : vector<4x32xf32>
    %783 = arith.mulf %770, %704 : vector<4x32xf32>
    %784 = arith.addf %782, %783 : vector<4x32xf32>
    %785 = vector.shape_cast %714 : vector<4x1xi1> to vector<4x1xi1>
    %786 = vector.broadcast %785 : vector<4x1xi1> to vector<4x32xi1>
    %787 = arith.select %786, %784, %704 : vector<4x32xi1>, vector<4x32xf32>
    %cst_383 = arith.constant 0.000000e+00 : f32
    %788 = vector.shape_cast %714 : vector<4x1xi1> to vector<4x1xi1>
    %789 = vector.broadcast %788 : vector<4x1xi1> to vector<4x32xi1>
    %790 = vector.broadcast %cst_383 : f32 to vector<4x32xf32>
    %791 = arith.select %789, %787, %790 : vector<4x32xi1>, vector<4x32xf32>
    %792 = arith.index_cast %c7_i32 : i32 to index
    %c0_384 = arith.constant 0 : index
    %c0_385 = arith.constant 0 : index
    %793 = vector.load %arg29[%792, %c0_384, %c0_385] : memref<8x4x32xf32, #tpu.memory_space<vmem>>, vector<1x4x32xf32>
    %794 = vector.shape_cast %793 : vector<1x4x32xf32> to vector<4x32xf32>
    %795 = vector.shape_cast %791 : vector<4x32xf32> to vector<1x4x32xf32>
    tpu.vector_store %arg29[%792, %c0_384, %c0_385], %795 {strides = array<i32>} : memref<8x4x32xf32, #tpu.memory_space<vmem>>, vector<1x4x32xf32>,
    %c8_i32 = arith.constant 8 : i32
    %c0_386 = arith.constant 0 : index
    %c0_387 = arith.constant 0 : index
    %c0_388 = arith.constant 0 : index
    %796 = vector.load %arg25[%c0_386, %c0_387, %c0_388] : memref<2x4x32xf32, #tpu.memory_space<vmem>>, vector<1x4x32xf32>
    %797 = vector.shape_cast %796 : vector<1x4x32xf32> to vector<4x32xf32>
    %798 = vector.shape_cast %753 : vector<4x32xf32> to vector<1x4x32xf32>
    tpu.vector_store %arg25[%c0_386, %c0_387, %c0_388], %798 {strides = array<i32>} : memref<2x4x32xf32, #tpu.memory_space<vmem>>, vector<1x4x32xf32>,
    %c1_389 = arith.constant 1 : index
    %c0_390 = arith.constant 0 : index
    %c0_391 = arith.constant 0 : index
    %799 = vector.load %arg25[%c1_389, %c0_390, %c0_391] : memref<2x4x32xf32, #tpu.memory_space<vmem>>, vector<1x4x32xf32>
    %800 = vector.shape_cast %799 : vector<1x4x32xf32> to vector<4x32xf32>
    %801 = vector.shape_cast %787 : vector<4x32xf32> to vector<1x4x32xf32>
    tpu.vector_store %arg25[%c1_389, %c0_390, %c0_391], %801 {strides = array<i32>} : memref<2x4x32xf32, #tpu.memory_space<vmem>>, vector<1x4x32xf32>,
    %c0_392 = arith.constant 0 : index
    %c0_393 = arith.constant 0 : index
    %802 = vector.load %arg22[%c0_392, %c0_393] : memref<32x5xf32, #tpu.memory_space<vmem>>, vector<32x5xf32>
    %c0_394 = arith.constant 0 : index
    %c0_395 = arith.constant 0 : index
    %803 = vector.load %arg23[%c0_394, %c0_395] : memref<1x5xf32, #tpu.memory_space<vmem>>, vector<1x5xf32>
    %c0_396 = arith.constant 0 : index
    %c0_397 = arith.constant 0 : index
    %c0_398 = arith.constant 0 : index
    %804 = vector.load %arg29[%c0_396, %c0_397, %c0_398] : memref<8x4x32xf32, #tpu.memory_space<vmem>>, vector<1x4x32xf32>
    %805 = vector.shape_cast %804 : vector<1x4x32xf32> to vector<4x32xf32>
    %cst_399 = arith.constant dense<0.000000e+00> : vector<4x5xf32>
    %806 = tpu.matmul %805, %802, %cst_399 {dimension_numbers = #tpu.dot_dimension_numbers<[1], [0], [0], [1], [0, 0, 1, 1], [], []>} : vector<4x32xf32>, vector<32x5xf32>, vector<4x5xf32> -> vector<4x5xf32>
    %807 = vector.broadcast %803 : vector<1x5xf32> to vector<4x5xf32>
    %808 = arith.addf %806, %807 : vector<4x5xf32>
    %809 = arith.negf %808 : vector<4x5xf32>
    %810 = math.exp %809 : vector<4x5xf32>
    %cst_400 = arith.constant 1.000000e+00 : f32
    %811 = vector.broadcast %cst_400 : f32 to vector<4x5xf32>
    %812 = arith.addf %811, %810 : vector<4x5xf32>
    %813 = arith.divf %811, %812 : vector<4x5xf32>
    %c0_401 = arith.constant 0 : index
    %c0_402 = arith.constant 0 : index
    %c0_403 = arith.constant 0 : index
    %814 = vector.load %arg24[%c0_401, %c0_402, %c0_403] : memref<8x4x5xf32, #tpu.memory_space<vmem>>, vector<1x4x5xf32>
    %815 = vector.shape_cast %814 : vector<1x4x5xf32> to vector<4x5xf32>
    %816 = vector.shape_cast %813 : vector<4x5xf32> to vector<1x4x5xf32>
    tpu.vector_store %arg24[%c0_401, %c0_402, %c0_403], %816 {strides = array<i32>} : memref<8x4x5xf32, #tpu.memory_space<vmem>>, vector<1x4x5xf32>,
    %c1_404 = arith.constant 1 : index
    %c0_405 = arith.constant 0 : index
    %c0_406 = arith.constant 0 : index
    %817 = vector.load %arg29[%c1_404, %c0_405, %c0_406] : memref<8x4x32xf32, #tpu.memory_space<vmem>>, vector<1x4x32xf32>
    %818 = vector.shape_cast %817 : vector<1x4x32xf32> to vector<4x32xf32>
    %cst_407 = arith.constant dense<0.000000e+00> : vector<4x5xf32>
    %819 = tpu.matmul %818, %802, %cst_407 {dimension_numbers = #tpu.dot_dimension_numbers<[1], [0], [0], [1], [0, 0, 1, 1], [], []>} : vector<4x32xf32>, vector<32x5xf32>, vector<4x5xf32> -> vector<4x5xf32>
    %820 = vector.broadcast %803 : vector<1x5xf32> to vector<4x5xf32>
    %821 = arith.addf %819, %820 : vector<4x5xf32>
    %822 = arith.negf %821 : vector<4x5xf32>
    %823 = math.exp %822 : vector<4x5xf32>
    %cst_408 = arith.constant 1.000000e+00 : f32
    %824 = vector.broadcast %cst_408 : f32 to vector<4x5xf32>
    %825 = arith.addf %824, %823 : vector<4x5xf32>
    %826 = arith.divf %824, %825 : vector<4x5xf32>
    %c1_409 = arith.constant 1 : index
    %c0_410 = arith.constant 0 : index
    %c0_411 = arith.constant 0 : index
    %827 = vector.load %arg24[%c1_409, %c0_410, %c0_411] : memref<8x4x5xf32, #tpu.memory_space<vmem>>, vector<1x4x5xf32>
    %828 = vector.shape_cast %827 : vector<1x4x5xf32> to vector<4x5xf32>
    %829 = vector.shape_cast %826 : vector<4x5xf32> to vector<1x4x5xf32>
    tpu.vector_store %arg24[%c1_409, %c0_410, %c0_411], %829 {strides = array<i32>} : memref<8x4x5xf32, #tpu.memory_space<vmem>>, vector<1x4x5xf32>,
    %c2_412 = arith.constant 2 : index
    %c0_413 = arith.constant 0 : index
    %c0_414 = arith.constant 0 : index
    %830 = vector.load %arg29[%c2_412, %c0_413, %c0_414] : memref<8x4x32xf32, #tpu.memory_space<vmem>>, vector<1x4x32xf32>
    %831 = vector.shape_cast %830 : vector<1x4x32xf32> to vector<4x32xf32>
    %cst_415 = arith.constant dense<0.000000e+00> : vector<4x5xf32>
    %832 = tpu.matmul %831, %802, %cst_415 {dimension_numbers = #tpu.dot_dimension_numbers<[1], [0], [0], [1], [0, 0, 1, 1], [], []>} : vector<4x32xf32>, vector<32x5xf32>, vector<4x5xf32> -> vector<4x5xf32>
    %833 = vector.broadcast %803 : vector<1x5xf32> to vector<4x5xf32>
    %834 = arith.addf %832, %833 : vector<4x5xf32>
    %835 = arith.negf %834 : vector<4x5xf32>
    %836 = math.exp %835 : vector<4x5xf32>
    %cst_416 = arith.constant 1.000000e+00 : f32
    %837 = vector.broadcast %cst_416 : f32 to vector<4x5xf32>
    %838 = arith.addf %837, %836 : vector<4x5xf32>
    %839 = arith.divf %837, %838 : vector<4x5xf32>
    %c2_417 = arith.constant 2 : index
    %c0_418 = arith.constant 0 : index
    %c0_419 = arith.constant 0 : index
    %840 = vector.load %arg24[%c2_417, %c0_418, %c0_419] : memref<8x4x5xf32, #tpu.memory_space<vmem>>, vector<1x4x5xf32>
    %841 = vector.shape_cast %840 : vector<1x4x5xf32> to vector<4x5xf32>
    %842 = vector.shape_cast %839 : vector<4x5xf32> to vector<1x4x5xf32>
    tpu.vector_store %arg24[%c2_417, %c0_418, %c0_419], %842 {strides = array<i32>} : memref<8x4x5xf32, #tpu.memory_space<vmem>>, vector<1x4x5xf32>,
    %c3_420 = arith.constant 3 : index
    %c0_421 = arith.constant 0 : index
    %c0_422 = arith.constant 0 : index
    %843 = vector.load %arg29[%c3_420, %c0_421, %c0_422] : memref<8x4x32xf32, #tpu.memory_space<vmem>>, vector<1x4x32xf32>
    %844 = vector.shape_cast %843 : vector<1x4x32xf32> to vector<4x32xf32>
    %cst_423 = arith.constant dense<0.000000e+00> : vector<4x5xf32>
    %845 = tpu.matmul %844, %802, %cst_423 {dimension_numbers = #tpu.dot_dimension_numbers<[1], [0], [0], [1], [0, 0, 1, 1], [], []>} : vector<4x32xf32>, vector<32x5xf32>, vector<4x5xf32> -> vector<4x5xf32>
    %846 = vector.broadcast %803 : vector<1x5xf32> to vector<4x5xf32>
    %847 = arith.addf %845, %846 : vector<4x5xf32>
    %848 = arith.negf %847 : vector<4x5xf32>
    %849 = math.exp %848 : vector<4x5xf32>
    %cst_424 = arith.constant 1.000000e+00 : f32
    %850 = vector.broadcast %cst_424 : f32 to vector<4x5xf32>
    %851 = arith.addf %850, %849 : vector<4x5xf32>
    %852 = arith.divf %850, %851 : vector<4x5xf32>
    %c3_425 = arith.constant 3 : index
    %c0_426 = arith.constant 0 : index
    %c0_427 = arith.constant 0 : index
    %853 = vector.load %arg24[%c3_425, %c0_426, %c0_427] : memref<8x4x5xf32, #tpu.memory_space<vmem>>, vector<1x4x5xf32>
    %854 = vector.shape_cast %853 : vector<1x4x5xf32> to vector<4x5xf32>
    %855 = vector.shape_cast %852 : vector<4x5xf32> to vector<1x4x5xf32>
    tpu.vector_store %arg24[%c3_425, %c0_426, %c0_427], %855 {strides = array<i32>} : memref<8x4x5xf32, #tpu.memory_space<vmem>>, vector<1x4x5xf32>,
    %c4_428 = arith.constant 4 : index
    %c0_429 = arith.constant 0 : index
    %c0_430 = arith.constant 0 : index
    %856 = vector.load %arg29[%c4_428, %c0_429, %c0_430] : memref<8x4x32xf32, #tpu.memory_space<vmem>>, vector<1x4x32xf32>
    %857 = vector.shape_cast %856 : vector<1x4x32xf32> to vector<4x32xf32>
    %cst_431 = arith.constant dense<0.000000e+00> : vector<4x5xf32>
    %858 = tpu.matmul %857, %802, %cst_431 {dimension_numbers = #tpu.dot_dimension_numbers<[1], [0], [0], [1], [0, 0, 1, 1], [], []>} : vector<4x32xf32>, vector<32x5xf32>, vector<4x5xf32> -> vector<4x5xf32>
    %859 = vector.broadcast %803 : vector<1x5xf32> to vector<4x5xf32>
    %860 = arith.addf %858, %859 : vector<4x5xf32>
    %861 = arith.negf %860 : vector<4x5xf32>
    %862 = math.exp %861 : vector<4x5xf32>
    %cst_432 = arith.constant 1.000000e+00 : f32
    %863 = vector.broadcast %cst_432 : f32 to vector<4x5xf32>
    %864 = arith.addf %863, %862 : vector<4x5xf32>
    %865 = arith.divf %863, %864 : vector<4x5xf32>
    %c4_433 = arith.constant 4 : index
    %c0_434 = arith.constant 0 : index
    %c0_435 = arith.constant 0 : index
    %866 = vector.load %arg24[%c4_433, %c0_434, %c0_435] : memref<8x4x5xf32, #tpu.memory_space<vmem>>, vector<1x4x5xf32>
    %867 = vector.shape_cast %866 : vector<1x4x5xf32> to vector<4x5xf32>
    %868 = vector.shape_cast %865 : vector<4x5xf32> to vector<1x4x5xf32>
    tpu.vector_store %arg24[%c4_433, %c0_434, %c0_435], %868 {strides = array<i32>} : memref<8x4x5xf32, #tpu.memory_space<vmem>>, vector<1x4x5xf32>,
    %c5_436 = arith.constant 5 : index
    %c0_437 = arith.constant 0 : index
    %c0_438 = arith.constant 0 : index
    %869 = vector.load %arg29[%c5_436, %c0_437, %c0_438] : memref<8x4x32xf32, #tpu.memory_space<vmem>>, vector<1x4x32xf32>
    %870 = vector.shape_cast %869 : vector<1x4x32xf32> to vector<4x32xf32>
    %cst_439 = arith.constant dense<0.000000e+00> : vector<4x5xf32>
    %871 = tpu.matmul %870, %802, %cst_439 {dimension_numbers = #tpu.dot_dimension_numbers<[1], [0], [0], [1], [0, 0, 1, 1], [], []>} : vector<4x32xf32>, vector<32x5xf32>, vector<4x5xf32> -> vector<4x5xf32>
    %872 = vector.broadcast %803 : vector<1x5xf32> to vector<4x5xf32>
    %873 = arith.addf %871, %872 : vector<4x5xf32>
    %874 = arith.negf %873 : vector<4x5xf32>
    %875 = math.exp %874 : vector<4x5xf32>
    %cst_440 = arith.constant 1.000000e+00 : f32
    %876 = vector.broadcast %cst_440 : f32 to vector<4x5xf32>
    %877 = arith.addf %876, %875 : vector<4x5xf32>
    %878 = arith.divf %876, %877 : vector<4x5xf32>
    %c5_441 = arith.constant 5 : index
    %c0_442 = arith.constant 0 : index
    %c0_443 = arith.constant 0 : index
    %879 = vector.load %arg24[%c5_441, %c0_442, %c0_443] : memref<8x4x5xf32, #tpu.memory_space<vmem>>, vector<1x4x5xf32>
    %880 = vector.shape_cast %879 : vector<1x4x5xf32> to vector<4x5xf32>
    %881 = vector.shape_cast %878 : vector<4x5xf32> to vector<1x4x5xf32>
    tpu.vector_store %arg24[%c5_441, %c0_442, %c0_443], %881 {strides = array<i32>} : memref<8x4x5xf32, #tpu.memory_space<vmem>>, vector<1x4x5xf32>,
    %c6_444 = arith.constant 6 : index
    %c0_445 = arith.constant 0 : index
    %c0_446 = arith.constant 0 : index
    %882 = vector.load %arg29[%c6_444, %c0_445, %c0_446] : memref<8x4x32xf32, #tpu.memory_space<vmem>>, vector<1x4x32xf32>
    %883 = vector.shape_cast %882 : vector<1x4x32xf32> to vector<4x32xf32>
    %cst_447 = arith.constant dense<0.000000e+00> : vector<4x5xf32>
    %884 = tpu.matmul %883, %802, %cst_447 {dimension_numbers = #tpu.dot_dimension_numbers<[1], [0], [0], [1], [0, 0, 1, 1], [], []>} : vector<4x32xf32>, vector<32x5xf32>, vector<4x5xf32> -> vector<4x5xf32>
    %885 = vector.broadcast %803 : vector<1x5xf32> to vector<4x5xf32>
    %886 = arith.addf %884, %885 : vector<4x5xf32>
    %887 = arith.negf %886 : vector<4x5xf32>
    %888 = math.exp %887 : vector<4x5xf32>
    %cst_448 = arith.constant 1.000000e+00 : f32
    %889 = vector.broadcast %cst_448 : f32 to vector<4x5xf32>
    %890 = arith.addf %889, %888 : vector<4x5xf32>
    %891 = arith.divf %889, %890 : vector<4x5xf32>
    %c6_449 = arith.constant 6 : index
    %c0_450 = arith.constant 0 : index
    %c0_451 = arith.constant 0 : index
    %892 = vector.load %arg24[%c6_449, %c0_450, %c0_451] : memref<8x4x5xf32, #tpu.memory_space<vmem>>, vector<1x4x5xf32>
    %893 = vector.shape_cast %892 : vector<1x4x5xf32> to vector<4x5xf32>
    %894 = vector.shape_cast %891 : vector<4x5xf32> to vector<1x4x5xf32>
    tpu.vector_store %arg24[%c6_449, %c0_450, %c0_451], %894 {strides = array<i32>} : memref<8x4x5xf32, #tpu.memory_space<vmem>>, vector<1x4x5xf32>,
    %c7_452 = arith.constant 7 : index
    %c0_453 = arith.constant 0 : index
    %c0_454 = arith.constant 0 : index
    %895 = vector.load %arg29[%c7_452, %c0_453, %c0_454] : memref<8x4x32xf32, #tpu.memory_space<vmem>>, vector<1x4x32xf32>
    %896 = vector.shape_cast %895 : vector<1x4x32xf32> to vector<4x32xf32>
    %cst_455 = arith.constant dense<0.000000e+00> : vector<4x5xf32>
    %897 = tpu.matmul %896, %802, %cst_455 {dimension_numbers = #tpu.dot_dimension_numbers<[1], [0], [0], [1], [0, 0, 1, 1], [], []>} : vector<4x32xf32>, vector<32x5xf32>, vector<4x5xf32> -> vector<4x5xf32>
    %898 = vector.broadcast %803 : vector<1x5xf32> to vector<4x5xf32>
    %899 = arith.addf %897, %898 : vector<4x5xf32>
    %900 = arith.negf %899 : vector<4x5xf32>
    %901 = math.exp %900 : vector<4x5xf32>
    %cst_456 = arith.constant 1.000000e+00 : f32
    %902 = vector.broadcast %cst_456 : f32 to vector<4x5xf32>
    %903 = arith.addf %902, %901 : vector<4x5xf32>
    %904 = arith.divf %902, %903 : vector<4x5xf32>
    %c7_457 = arith.constant 7 : index
    %c0_458 = arith.constant 0 : index
    %c0_459 = arith.constant 0 : index
    %905 = vector.load %arg24[%c7_457, %c0_458, %c0_459] : memref<8x4x5xf32, #tpu.memory_space<vmem>>, vector<1x4x5xf32>
    %906 = vector.shape_cast %905 : vector<1x4x5xf32> to vector<4x5xf32>
    %907 = vector.shape_cast %904 : vector<4x5xf32> to vector<1x4x5xf32>
    tpu.vector_store %arg24[%c7_457, %c0_458, %c0_459], %907 {strides = array<i32>} : memref<8x4x5xf32, #tpu.memory_space<vmem>>, vector<1x4x5xf32>,
    return
  }
  func.func @transform_0(%arg0: i32) -> (i32, i32) {
    %c0_i32 = arith.constant 0 : i32
    %c0_i32_0 = arith.constant 0 : i32
    %c0_i32_1 = arith.constant 0 : i32
    return %c0_i32, %c0_i32_0 : i32, i32
  }
  func.func @transform_1(%arg0: i32) -> (i32, i32) {
    %c0_i32 = arith.constant 0 : i32
    %c0_i32_0 = arith.constant 0 : i32
    %c0_i32_1 = arith.constant 0 : i32
    return %c0_i32, %c0_i32_0 : i32, i32
  }
  func.func @transform_2(%arg0: i32) -> (i32, i32, i32) {
    %c0_i32 = arith.constant 0 : i32
    %c0_i32_0 = arith.constant 0 : i32
    %c0_i32_1 = arith.constant 0 : i32
    %c0_i32_2 = arith.constant 0 : i32
    return %c0_i32, %c0_i32_0, %c0_i32_1 : i32, i32, i32
  }
  func.func @transform_3(%arg0: i32) -> (i32, i32) {
    %c0_i32 = arith.constant 0 : i32
    %c0_i32_0 = arith.constant 0 : i32
    %c0_i32_1 = arith.constant 0 : i32
    return %c0_i32, %c0_i32_0 : i32, i32
  }
  func.func @transform_4(%arg0: i32) -> (i32, i32) {
    %c0_i32 = arith.constant 0 : i32
    %c0_i32_0 = arith.constant 0 : i32
    %c0_i32_1 = arith.constant 0 : i32
    return %c0_i32, %c0_i32_0 : i32, i32
  }
  func.func @transform_5(%arg0: i32) -> (i32, i32) {
    %c0_i32 = arith.constant 0 : i32
    %c0_i32_0 = arith.constant 0 : i32
    %c0_i32_1 = arith.constant 0 : i32
    return %c0_i32, %c0_i32_0 : i32, i32
  }
  func.func @transform_6(%arg0: i32) -> (i32, i32) {
    %c0_i32 = arith.constant 0 : i32
    %c0_i32_0 = arith.constant 0 : i32
    %c0_i32_1 = arith.constant 0 : i32
    return %c0_i32, %c0_i32_0 : i32, i32
  }
  func.func @transform_7(%arg0: i32) -> (i32, i32) {
    %c0_i32 = arith.constant 0 : i32
    %c0_i32_0 = arith.constant 0 : i32
    %c0_i32_1 = arith.constant 0 : i32
    return %c0_i32, %c0_i32_0 : i32, i32
  }
  func.func @transform_8(%arg0: i32) -> (i32, i32) {
    %c0_i32 = arith.constant 0 : i32
    %c0_i32_0 = arith.constant 0 : i32
    %c0_i32_1 = arith.constant 0 : i32
    return %c0_i32, %c0_i32_0 : i32, i32
  }
  func.func @transform_9(%arg0: i32) -> (i32, i32) {
    %c0_i32 = arith.constant 0 : i32
    %c0_i32_0 = arith.constant 0 : i32
    %c0_i32_1 = arith.constant 0 : i32
    return %c0_i32, %c0_i32_0 : i32, i32
  }
  func.func @transform_10(%arg0: i32) -> (i32, i32) {
    %c0_i32 = arith.constant 0 : i32
    %c0_i32_0 = arith.constant 0 : i32
    %c0_i32_1 = arith.constant 0 : i32
    return %c0_i32, %c0_i32_0 : i32, i32
  }
  func.func @transform_11(%arg0: i32) -> (i32, i32) {
    %c0_i32 = arith.constant 0 : i32
    %c0_i32_0 = arith.constant 0 : i32
    %c0_i32_1 = arith.constant 0 : i32
    return %c0_i32, %c0_i32_0 : i32, i32
  }
  func.func @transform_12(%arg0: i32) -> (i32, i32) {
    %c0_i32 = arith.constant 0 : i32
    %c0_i32_0 = arith.constant 0 : i32
    %c0_i32_1 = arith.constant 0 : i32
    return %c0_i32, %c0_i32_0 : i32, i32
  }
  func.func @transform_13(%arg0: i32) -> (i32, i32) {
    %c0_i32 = arith.constant 0 : i32
    %c0_i32_0 = arith.constant 0 : i32
    %c0_i32_1 = arith.constant 0 : i32
    return %c0_i32, %c0_i32_0 : i32, i32
  }
  func.func @transform_14(%arg0: i32) -> (i32, i32) {
    %c0_i32 = arith.constant 0 : i32
    %c0_i32_0 = arith.constant 0 : i32
    %c0_i32_1 = arith.constant 0 : i32
    return %c0_i32, %c0_i32_0 : i32, i32
  }
  func.func @transform_15(%arg0: i32) -> (i32, i32) {
    %c0_i32 = arith.constant 0 : i32
    %c0_i32_0 = arith.constant 0 : i32
    %c0_i32_1 = arith.constant 0 : i32
    return %c0_i32, %c0_i32_0 : i32, i32
  }
  func.func @transform_16(%arg0: i32) -> (i32, i32) {
    %c0_i32 = arith.constant 0 : i32
    %c0_i32_0 = arith.constant 0 : i32
    %c0_i32_1 = arith.constant 0 : i32
    return %c0_i32, %c0_i32_0 : i32, i32
  }
  func.func @transform_17(%arg0: i32) -> (i32, i32) {
    %c0_i32 = arith.constant 0 : i32
    %c0_i32_0 = arith.constant 0 : i32
    %c0_i32_1 = arith.constant 0 : i32
    return %c0_i32, %c0_i32_0 : i32, i32
  }
  func.func @transform_18(%arg0: i32) -> (i32, i32) {
    %c0_i32 = arith.constant 0 : i32
    %c0_i32_0 = arith.constant 0 : i32
    %c0_i32_1 = arith.constant 0 : i32
    return %c0_i32, %c0_i32_0 : i32, i32
  }
  func.func @transform_19(%arg0: i32) -> (i32, i32) {
    %c0_i32 = arith.constant 0 : i32
    %c0_i32_0 = arith.constant 0 : i32
    %c0_i32_1 = arith.constant 0 : i32
    return %c0_i32, %c0_i32_0 : i32, i32
  }
  func.func @transform_20(%arg0: i32) -> (i32, i32) {
    %c0_i32 = arith.constant 0 : i32
    %c0_i32_0 = arith.constant 0 : i32
    %c0_i32_1 = arith.constant 0 : i32
    return %c0_i32, %c0_i32_0 : i32, i32
  }
  func.func @transform_21(%arg0: i32) -> (i32, i32) {
    %c0_i32 = arith.constant 0 : i32
    %c0_i32_0 = arith.constant 0 : i32
    %c0_i32_1 = arith.constant 0 : i32
    return %c0_i32, %c0_i32_0 : i32, i32
  }
  func.func @transform_22(%arg0: i32) -> (i32, i32) {
    %c0_i32 = arith.constant 0 : i32
    %c0_i32_0 = arith.constant 0 : i32
    %c0_i32_1 = arith.constant 0 : i32
    return %c0_i32, %c0_i32_0 : i32, i32
  }
  func.func @transform_23(%arg0: i32) -> (i32, i32, i32) {
    %c0_i32 = arith.constant 0 : i32
    %c0_i32_0 = arith.constant 0 : i32
    %c0_i32_1 = arith.constant 0 : i32
    %c0_i32_2 = arith.constant 0 : i32
    return %c0_i32, %c0_i32_0, %c0_i32_1 : i32, i32, i32
  }
  func.func @transform_24(%arg0: i32) -> (i32, i32, i32) {
    %c0_i32 = arith.constant 0 : i32
    %c0_i32_0 = arith.constant 0 : i32
    %c0_i32_1 = arith.constant 0 : i32
    %c0_i32_2 = arith.constant 0 : i32
    return %c0_i32, %c0_i32_0, %c0_i32_1 : i32, i32, i32
  }
}

</mosaic_0001>

<llo_original>
// kernel: tpu_custom_call.1
$region0: #{tpu_custom_call.1}
  #allocation0 [shape = 'u32[]', space=smem, size = 0x4, offset = 0x4, fixed_abs, tag = 'smem constant byte address 0x4 - core index']
  #allocation1 [shape = 'u32[144,128]{1,0:T(1,128)}', space=vmem, size = 0x12000, scoped, tag = 'internal scratch']
  #allocation2 [shape = 'f32[8,4,32]{2,1,0:T(4,128)}', space=vmem, size = 0x4000, scoped, tag = 'scratch operand']
  #allocation3 [shape = 'f32[8,4,32]{2,1,0:T(4,128)}', space=vmem, size = 0x4000, scoped, tag = 'scratch operand']
  #allocation4 [shape = 'f32[8,4,32]{2,1,0:T(4,128)}', space=vmem, size = 0x4000, scoped, tag = 'scratch operand']
  #allocation5 [shape = 'f32[8,4,32]{2,1,0:T(4,128)}', space=vmem, size = 0x4000, scoped, tag = 'scratch operand']
  %s0 = inlined_call_operand.vmem [shape: s32[4,1], index: 0, kind: input, shape index: {}]
  %s1 = inlined_call_operand.vmem [shape: f32[32,8], index: 1, kind: input, shape index: {}]
  %s2 = inlined_call_operand.vmem [shape: f32[2,4,32], index: 2, kind: input, shape index: {}]
  %s3 = inlined_call_operand.vmem [shape: f32[8,32], index: 3, kind: input, shape index: {}]
  %s4 = inlined_call_operand.vmem [shape: f32[8,32], index: 4, kind: input, shape index: {}]
  %s5 = inlined_call_operand.vmem [shape: f32[8,32], index: 5, kind: input, shape index: {}]
  %s6 = inlined_call_operand.vmem [shape: f32[1,32], index: 6, kind: input, shape index: {}]
  %s7 = inlined_call_operand.vmem [shape: f32[1,32], index: 7, kind: input, shape index: {}]
  %s8 = inlined_call_operand.vmem [shape: f32[1,32], index: 8, kind: input, shape index: {}]
  %s9 = inlined_call_operand.vmem [shape: f32[32,32], index: 9, kind: input, shape index: {}]
  %s10 = inlined_call_operand.vmem [shape: f32[32,32], index: 10, kind: input, shape index: {}]
  %s11 = inlined_call_operand.vmem [shape: f32[32,32], index: 11, kind: input, shape index: {}]
  %s12 = inlined_call_operand.vmem [shape: f32[1,32], index: 12, kind: input, shape index: {}]
  %s13 = inlined_call_operand.vmem [shape: f32[64,32], index: 13, kind: input, shape index: {}]
  %s14 = inlined_call_operand.vmem [shape: f32[64,32], index: 14, kind: input, shape index: {}]
  %s15 = inlined_call_operand.vmem [shape: f32[1,32], index: 15, kind: input, shape index: {}]
  %s16 = inlined_call_operand.vmem [shape: f32[1,32], index: 16, kind: input, shape index: {}]
  %s17 = inlined_call_operand.vmem [shape: f32[32,32], index: 17, kind: input, shape index: {}]
  %s18 = inlined_call_operand.vmem [shape: f32[32,32], index: 18, kind: input, shape index: {}]
  %s19 = inlined_call_operand.vmem [shape: f32[1,32], index: 19, kind: input, shape index: {}]
  %s20 = inlined_call_operand.vmem [shape: f32[1,32], index: 20, kind: input, shape index: {}]
  %s21 = inlined_call_operand.vmem [shape: f32[32,5], index: 21, kind: input, shape index: {}]
  %s22 = inlined_call_operand.vmem [shape: f32[1,5], index: 22, kind: input, shape index: {}]
  %s23 = inlined_call_operand.vmem [shape: f32[8,4,5], index: 23, kind: output, shape index: {0}]
  %s24 = inlined_call_operand.hbm [shape: f32[2,4,32], index: 24, kind: output, shape index: {1}]
  %25 = xla_tuple %s23, %s24
  %s26 = sld [smem:[#allocation0]]
  $region110: #{tpu_custom_call.1} parent=0
    _
  %s28 = ssub.s32 1, %s26
  %s29 = scalar_select 0, %s28, %s26
  $region1: #{tpu_custom_call.1} parent=0
    #allocation6 [shape = 'u8[4096]{0}', space=vmem, size = 0x1000, scoped, tag = 'output window, operand 1, single buffered']
    #allocation7 [shape = 's32[1]{0}', space=sflag, size = 0x4, scoped, tag = 'scoped memory for tpu_custom_call.1']
    %30 = vsyncpa [#allocation7], 0
    // Predicated region
    $region2: #{tpu_custom_call.1} parent=1 // pred_check
      _
    $region3: #{tpu_custom_call.1} parent=1 // pred_check_branch
      %32 = sbr.rel (0) target = $region5
    $region4: #{tpu_custom_call.1} parent=1 // pred_region
      _
    $region5: #{tpu_custom_call.1} parent=1 // pred_fallthru
      _
    // Predicated region
    $region6: #{tpu_custom_call.1} parent=1 // pred_check
      _
    $region7: #{tpu_custom_call.1} parent=1 // pred_check_branch
      %34 = sbr.rel (0) target = $region9
    $region8: #{tpu_custom_call.1} parent=1 // pred_region
      _
    $region9: #{tpu_custom_call.1} parent=1 // pred_fallthru
      _
    // Predicated region
    $region10: #{tpu_custom_call.1} parent=1 // pred_check
      _
    $region11: #{tpu_custom_call.1} parent=1 // pred_check_branch
      %36 = sbr.rel (0) target = $region13
    $region12: #{tpu_custom_call.1} parent=1 // pred_region
      _
    $region13: #{tpu_custom_call.1} parent=1 // pred_fallthru
      _
    // Predicated region
    $region14: #{tpu_custom_call.1} parent=1 // pred_check
      _
    $region15: #{tpu_custom_call.1} parent=1 // pred_check_branch
      %38 = sbr.rel (0) target = $region17
    $region16: #{tpu_custom_call.1} parent=1 // pred_region
      _
    $region17: #{tpu_custom_call.1} parent=1 // pred_fallthru
      _
    // Predicated region
    $region18: #{tpu_custom_call.1} parent=1 // pred_check
      _
    $region19: #{tpu_custom_call.1} parent=1 // pred_check_branch
      %40 = sbr.rel (0) target = $region21
    $region20: #{tpu_custom_call.1} parent=1 // pred_region
      _
    $region21: #{tpu_custom_call.1} parent=1 // pred_fallthru
      _
    // Predicated region
    $region22: #{tpu_custom_call.1} parent=1 // pred_check
      _
    $region23: #{tpu_custom_call.1} parent=1 // pred_check_branch
      %42 = sbr.rel (0) target = $region25
    $region24: #{tpu_custom_call.1} parent=1 // pred_region
      _
    $region25: #{tpu_custom_call.1} parent=1 // pred_fallthru
      _
    // Predicated region
    $region26: #{tpu_custom_call.1} parent=1 // pred_check
      _
    $region27: #{tpu_custom_call.1} parent=1 // pred_check_branch
      %44 = sbr.rel (0) target = $region29
    $region28: #{tpu_custom_call.1} parent=1 // pred_region
      _
    $region29: #{tpu_custom_call.1} parent=1 // pred_fallthru
      _
    // Predicated region
    $region30: #{tpu_custom_call.1} parent=1 // pred_check
      _
    $region31: #{tpu_custom_call.1} parent=1 // pred_check_branch
      %46 = sbr.rel (0) target = $region33
    $region32: #{tpu_custom_call.1} parent=1 // pred_region
      _
    $region33: #{tpu_custom_call.1} parent=1 // pred_fallthru
      _
    // Predicated region
    $region34: #{tpu_custom_call.1} parent=1 // pred_check
      _
    $region35: #{tpu_custom_call.1} parent=1 // pred_check_branch
      %48 = sbr.rel (0) target = $region37
    $region36: #{tpu_custom_call.1} parent=1 // pred_region
      _
    $region37: #{tpu_custom_call.1} parent=1 // pred_fallthru
      _
    // Predicated region
    $region38: #{tpu_custom_call.1} parent=1 // pred_check
      _
    $region39: #{tpu_custom_call.1} parent=1 // pred_check_branch
      %50 = sbr.rel (0) target = $region41
    $region40: #{tpu_custom_call.1} parent=1 // pred_region
      _
    $region41: #{tpu_custom_call.1} parent=1 // pred_fallthru
      _
    // Predicated region
    $region42: #{tpu_custom_call.1} parent=1 // pred_check
      _
    $region43: #{tpu_custom_call.1} parent=1 // pred_check_branch
      %52 = sbr.rel (0) target = $region45
    $region44: #{tpu_custom_call.1} parent=1 // pred_region
      _
    $region45: #{tpu_custom_call.1} parent=1 // pred_fallthru
      _
    // Predicated region
    $region46: #{tpu_custom_call.1} parent=1 // pred_check
      _
    $region47: #{tpu_custom_call.1} parent=1 // pred_check_branch
      %54 = sbr.rel (0) target = $region49
    $region48: #{tpu_custom_call.1} parent=1 // pred_region
      _
    $region49: #{tpu_custom_call.1} parent=1 // pred_fallthru
      _
    // Predicated region
    $region50: #{tpu_custom_call.1} parent=1 // pred_check
      _
    $region51: #{tpu_custom_call.1} parent=1 // pred_check_branch
      %56 = sbr.rel (0) target = $region53
    $region52: #{tpu_custom_call.1} parent=1 // pred_region
      _
    $region53: #{tpu_custom_call.1} parent=1 // pred_fallthru
      _
    // Predicated region
    $region54: #{tpu_custom_call.1} parent=1 // pred_check
      _
    $region55: #{tpu_custom_call.1} parent=1 // pred_check_branch
      %58 = sbr.rel (0) target = $region57
    $region56: #{tpu_custom_call.1} parent=1 // pred_region
      _
    $region57: #{tpu_custom_call.1} parent=1 // pred_fallthru
      _
    // Predicated region
    $region58: #{tpu_custom_call.1} parent=1 // pred_check
      _
    $region59: #{tpu_custom_call.1} parent=1 // pred_check_branch
      %60 = sbr.rel (0) target = $region61
    $region60: #{tpu_custom_call.1} parent=1 // pred_region
      _
    $region61: #{tpu_custom_call.1} parent=1 // pred_fallthru
      _
    // Predicated region
    $region62: #{tpu_custom_call.1} parent=1 // pred_check
      _
    $region63: #{tpu_custom_call.1} parent=1 // pred_check_branch
      %62 = sbr.rel (0) target = $region65
    $region64: #{tpu_custom_call.1} parent=1 // pred_region
      _
    $region65: #{tpu_custom_call.1} parent=1 // pred_fallthru
      _
    // Predicated region
    $region66: #{tpu_custom_call.1} parent=1 // pred_check
      _
    $region67: #{tpu_custom_call.1} parent=1 // pred_check_branch
      %64 = sbr.rel (0) target = $region69
    $region68: #{tpu_custom_call.1} parent=1 // pred_region
      _
    $region69: #{tpu_custom_call.1} parent=1 // pred_fallthru
      _
    // Predicated region
    $region70: #{tpu_custom_call.1} parent=1 // pred_check
      _
    $region71: #{tpu_custom_call.1} parent=1 // pred_check_branch
      %66 = sbr.rel (0) target = $region73
    $region72: #{tpu_custom_call.1} parent=1 // pred_region
      _
    $region73: #{tpu_custom_call.1} parent=1 // pred_fallthru
      _
    // Predicated region
    $region74: #{tpu_custom_call.1} parent=1 // pred_check
      _
    $region75: #{tpu_custom_call.1} parent=1 // pred_check_branch
      %68 = sbr.rel (0) target = $region77
    $region76: #{tpu_custom_call.1} parent=1 // pred_region
      _
    $region77: #{tpu_custom_call.1} parent=1 // pred_fallthru
      _
    // Predicated region
    $region78: #{tpu_custom_call.1} parent=1 // pred_check
      _
    $region79: #{tpu_custom_call.1} parent=1 // pred_check_branch
      %70 = sbr.rel (0) target = $region81
    $region80: #{tpu_custom_call.1} parent=1 // pred_region
      _
    $region81: #{tpu_custom_call.1} parent=1 // pred_fallthru
      _
    // Predicated region
    $region82: #{tpu_custom_call.1} parent=1 // pred_check
      _
    $region83: #{tpu_custom_call.1} parent=1 // pred_check_branch
      %72 = sbr.rel (0) target = $region85
    $region84: #{tpu_custom_call.1} parent=1 // pred_region
      _
    $region85: #{tpu_custom_call.1} parent=1 // pred_fallthru
      _
    // Predicated region
    $region86: #{tpu_custom_call.1} parent=1 // pred_check
      _
    $region87: #{tpu_custom_call.1} parent=1 // pred_check_branch
      %74 = sbr.rel (0) target = $region89
    $region88: #{tpu_custom_call.1} parent=1 // pred_region
      _
    $region89: #{tpu_custom_call.1} parent=1 // pred_fallthru
      _
    // Predicated region
    $region90: #{tpu_custom_call.1} parent=1 // pred_check
      _
    $region91: #{tpu_custom_call.1} parent=1 // pred_check_branch
      %76 = sbr.rel (0) target = $region93
    $region92: #{tpu_custom_call.1} parent=1 // pred_region
      _
    $region93: #{tpu_custom_call.1} parent=1 // pred_fallthru
      _
    %v77 = vld [vmem:[%s1] sm:$0xff]
    %v78 = vld [vmem:[%s1 + $0x8] sm:$0xff]
    %v79 = vld [vmem:[%s1 + $0x10] sm:$0xff]
    %v80 = vld [vmem:[%s1 + $0x18] sm:$0xff]
    %v81 = vld [vmem:[%s3] sm:$0xff]
    %v82 = vld [vmem:[%s6] sm:$0x1]
    %v84 = vlaneseq
    %v85 = vshrl.u32 %v84, 7
    %v86 = vsub.s32 0, %v85
    %v87 = vrot.slane %v82, %v86
    %vm89 = vcmask 64512
    %v91 = vsel %vm89, %v77, 0
    %v94 = vsel %vm89, %v78, 0
    %v97 = vsel %vm89, %v79, 0
    %v100 = vsel %vm89, %v80, 0
    %102 = vmatprep.subr.mxu0 0.0
    %103 = vmatpush1.msra.mxu0 %v81
    %104 = vmatprep.subr.mxu0 0.0
    %105 = vmatpush1.msra.mxu0 0.0
    %106 = vmatprep.subr.mxu0 0.0
    %107 = vmatpush1.msra.mxu0 0.0
    %108 = vmatprep.subr.mxu0 0.0
    %109 = vmatpush1.msra.mxu0 0.0
    %110 = vmatprep.subr.mxu0 0.0
    %111 = vmatpush1.msra.mxu0 0.0
    %112 = vmatprep.subr.mxu0 0.0
    %113 = vmatpush1.msra.mxu0 0.0
    %114 = vmatprep.subr.mxu0 0.0
    %115 = vmatpush1.msra.mxu0 0.0
    %116 = vmatprep.subr.mxu0 0.0
    %117 = vmatpush1.msra.mxu0 0.0
    %118 = vmatprep.subr.mxu0 0.0
    %119 = vmatpush1.msra.mxu0 0.0
    %120 = vmatprep.subr.mxu0 0.0
    %121 = vmatpush1.msra.mxu0 0.0
    %122 = vmatprep.subr.mxu0 0.0
    %123 = vmatpush1.msra.mxu0 0.0
    %124 = vmatprep.subr.mxu0 0.0
    %125 = vmatpush1.msra.mxu0 0.0
    %126 = vmatprep.subr.mxu0 0.0
    %127 = vmatpush1.msra.mxu0 0.0
    %128 = vmatprep.subr.mxu0 0.0
    %129 = vmatpush1.msra.mxu0 0.0
    %130 = vmatprep.subr.mxu0 0.0
    %131 = vmatpush1.msra.mxu0 0.0
    %132 = vmatprep.subr.mxu0 0.0
    %133 = vmatpush1.msra.mxu0 0.0
    %134 = vmatprep.subr.mxu0 0.0
    %135 = vmatpush1.msra.mxu0 0.0
    %136 = vmatprep.subr.mxu0 0.0
    %137 = vmatpush1.msra.mxu0 0.0
    %138 = vmatprep.subr.mxu0 0.0
    %139 = vmatpush1.msra.mxu0 0.0
    %140 = vmatprep.subr.mxu0 0.0
    %141 = vmatpush1.msra.mxu0 0.0
    %142 = vmatprep.subr.mxu0 0.0
    %143 = vmatpush1.msra.mxu0 0.0
    %144 = vmatprep.subr.mxu0 0.0
    %145 = vmatpush1.msra.mxu0 0.0
    %146 = vmatprep.subr.mxu0 0.0
    %147 = vmatpush1.msra.mxu0 0.0
    %148 = vmatprep.subr.mxu0 0.0
    %149 = vmatpush1.msra.mxu0 0.0
    %150 = vmatprep.subr.mxu0 0.0
    %151 = vmatpush1.msra.mxu0 0.0
    %152 = vmatprep.subr.mxu0 0.0
    %153 = vmatpush1.msra.mxu0 0.0
    %154 = vmatprep.subr.mxu0 0.0
    %155 = vmatpush1.msra.mxu0 0.0
    %156 = vmatprep.subr.mxu0 0.0
    %157 = vmatpush1.msra.mxu0 0.0
    %158 = vmatprep.subr.mxu0 0.0
    %159 = vmatpush1.msra.mxu0 0.0
    %160 = vmatprep.subr.mxu0 0.0
    %161 = vmatpush1.msra.mxu0 0.0
    %162 = vmatprep.subr.mxu0 0.0
    %163 = vmatpush1.msra.mxu0 0.0
    %164 = vmatprep.subr.mxu0 0.0
    %165 = vmatpush1.msra.mxu0 0.0
    %166 = vmatprep.mubr.f32.mxu0 0.0
    %167 = vmatmul.mubr.f32.gmra.mrb[0].mxu0 %v91
    %v168 = vpop.f32.mrb[0].mxu0
    %v169 = vadd.f32 %v87, %v168
    %v170 = vpop.f32.mrb[0].mxu0
    %171 = vmatprep.mubr.f32.mxu0 0.0
    %172 = vmatmul.mubr.f32.gmra.mrb[0].mxu0 %v94
    %v173 = vpop.f32.mrb[0].mxu0
    %v174 = vadd.f32 %v87, %v173
    %v175 = vpop.f32.mrb[0].mxu0
    %176 = vmatprep.mubr.f32.mxu0 0.0
    %177 = vmatmul.mubr.f32.gmra.mrb[0].mxu0 %v97
    %v178 = vpop.f32.mrb[0].mxu0
    %v179 = vadd.f32 %v87, %v178
    %v180 = vpop.f32.mrb[0].mxu0
    %181 = vmatprep.mubr.f32.mxu0 0.0
    %182 = vmatmul.mubr.f32.gmra.mrb[0].mxu0 %v100
    %v183 = vpop.f32.mrb[0].mxu0
    %v184 = vadd.f32 %v87, %v183
    %v185 = vpop.f32.mrb[0].mxu0
    %186 = vdwg.mxu0
    %v187 = vld [vmem:[%s4] sm:$0xff]
    %v188 = vld [vmem:[%s7] sm:$0x1]
    %v190 = vlaneseq
    %v191 = vshrl.u32 %v190, 7
    %v192 = vsub.s32 0, %v191
    %v193 = vrot.slane %v188, %v192
    %195 = vmatprep.subr.mxu0 0.0
    %196 = vmatpush1.msra.mxu0 %v187
    %197 = vmatprep.subr.mxu0 0.0
    %198 = vmatpush1.msra.mxu0 0.0
    %199 = vmatprep.subr.mxu0 0.0
    %200 = vmatpush1.msra.mxu0 0.0
    %201 = vmatprep.subr.mxu0 0.0
    %202 = vmatpush1.msra.mxu0 0.0
    %203 = vmatprep.subr.mxu0 0.0
    %204 = vmatpush1.msra.mxu0 0.0
    %205 = vmatprep.subr.mxu0 0.0
    %206 = vmatpush1.msra.mxu0 0.0
    %207 = vmatprep.subr.mxu0 0.0
    %208 = vmatpush1.msra.mxu0 0.0
    %209 = vmatprep.subr.mxu0 0.0
    %210 = vmatpush1.msra.mxu0 0.0
    %211 = vmatprep.subr.mxu0 0.0
    %212 = vmatpush1.msra.mxu0 0.0
    %213 = vmatprep.subr.mxu0 0.0
    %214 = vmatpush1.msra.mxu0 0.0
    %215 = vmatprep.subr.mxu0 0.0
    %216 = vmatpush1.msra.mxu0 0.0
    %217 = vmatprep.subr.mxu0 0.0
    %218 = vmatpush1.msra.mxu0 0.0
    %219 = vmatprep.subr.mxu0 0.0
    %220 = vmatpush1.msra.mxu0 0.0
    %221 = vmatprep.subr.mxu0 0.0
    %222 = vmatpush1.msra.mxu0 0.0
    %223 = vmatprep.subr.mxu0 0.0
    %224 = vmatpush1.msra.mxu0 0.0
    %225 = vmatprep.subr.mxu0 0.0
    %226 = vmatpush1.msra.mxu0 0.0
    %227 = vmatprep.subr.mxu0 0.0
    %228 = vmatpush1.msra.mxu0 0.0
    %229 = vmatprep.subr.mxu0 0.0
    %230 = vmatpush1.msra.mxu0 0.0
    %231 = vmatprep.subr.mxu0 0.0
    %232 = vmatpush1.msra.mxu0 0.0
    %233 = vmatprep.subr.mxu0 0.0
    %234 = vmatpush1.msra.mxu0 0.0
    %235 = vmatprep.subr.mxu0 0.0
    %236 = vmatpush1.msra.mxu0 0.0
    %237 = vmatprep.subr.mxu0 0.0
    %238 = vmatpush1.msra.mxu0 0.0
    %239 = vmatprep.subr.mxu0 0.0
    %240 = vmatpush1.msra.mxu0 0.0
    %241 = vmatprep.subr.mxu0 0.0
    %242 = vmatpush1.msra.mxu0 0.0
    %243 = vmatprep.subr.mxu0 0.0
    %244 = vmatpush1.msra.mxu0 0.0
    %245 = vmatprep.subr.mxu0 0.0
    %246 = vmatpush1.msra.mxu0 0.0
    %247 = vmatprep.subr.mxu0 0.0
    %248 = vmatpush1.msra.mxu0 0.0
    %249 = vmatprep.subr.mxu0 0.0
    %250 = vmatpush1.msra.mxu0 0.0
    %251 = vmatprep.subr.mxu0 0.0
    %252 = vmatpush1.msra.mxu0 0.0
    %253 = vmatprep.subr.mxu0 0.0
    %254 = vmatpush1.msra.mxu0 0.0
    %255 = vmatprep.subr.mxu0 0.0
    %256 = vmatpush1.msra.mxu0 0.0
    %257 = vmatprep.subr.mxu0 0.0
    %258 = vmatpush1.msra.mxu0 0.0
    %259 = vmatprep.mubr.f32.mxu0 0.0
    %260 = vmatmul.mubr.f32.gmra.mrb[0].mxu0 %v91
    %v261 = vpop.f32.mrb[0].mxu0
    %v262 = vadd.f32 %v193, %v261
    %v263 = vpop.f32.mrb[0].mxu0
    %264 = vmatprep.mubr.f32.mxu0 0.0
    %265 = vmatmul.mubr.f32.gmra.mrb[0].mxu0 %v94
    %v266 = vpop.f32.mrb[0].mxu0
    %v267 = vadd.f32 %v193, %v266
    %v268 = vpop.f32.mrb[0].mxu0
    %269 = vmatprep.mubr.f32.mxu0 0.0
    %270 = vmatmul.mubr.f32.gmra.mrb[0].mxu0 %v97
    %v271 = vpop.f32.mrb[0].mxu0
    %v272 = vadd.f32 %v193, %v271
    %v273 = vpop.f32.mrb[0].mxu0
    %274 = vmatprep.mubr.f32.mxu0 0.0
    %275 = vmatmul.mubr.f32.gmra.mrb[0].mxu0 %v100
    %v276 = vpop.f32.mrb[0].mxu0
    %v277 = vadd.f32 %v193, %v276
    %v278 = vpop.f32.mrb[0].mxu0
    %279 = vdwg.mxu0
    %v280 = vld [vmem:[%s5] sm:$0xff]
    %v281 = vld [vmem:[%s8] sm:$0x1]
    %v283 = vlaneseq
    %v284 = vshrl.u32 %v283, 7
    %v285 = vsub.s32 0, %v284
    %v286 = vrot.slane %v281, %v285
    %288 = vmatprep.subr.mxu0 0.0
    %289 = vmatpush1.msra.mxu0 %v280
    %290 = vmatprep.subr.mxu0 0.0
    %291 = vmatpush1.msra.mxu0 0.0
    %292 = vmatprep.subr.mxu0 0.0
    %293 = vmatpush1.msra.mxu0 0.0
    %294 = vmatprep.subr.mxu0 0.0
    %295 = vmatpush1.msra.mxu0 0.0
    %296 = vmatprep.subr.mxu0 0.0
    %297 = vmatpush1.msra.mxu0 0.0
    %298 = vmatprep.subr.mxu0 0.0
    %299 = vmatpush1.msra.mxu0 0.0
    %300 = vmatprep.subr.mxu0 0.0
    %301 = vmatpush1.msra.mxu0 0.0
    %302 = vmatprep.subr.mxu0 0.0
    %303 = vmatpush1.msra.mxu0 0.0
    %304 = vmatprep.subr.mxu0 0.0
    %305 = vmatpush1.msra.mxu0 0.0
    %306 = vmatprep.subr.mxu0 0.0
    %307 = vmatpush1.msra.mxu0 0.0
    %308 = vmatprep.subr.mxu0 0.0
    %309 = vmatpush1.msra.mxu0 0.0
    %310 = vmatprep.subr.mxu0 0.0
    %311 = vmatpush1.msra.mxu0 0.0
    %312 = vmatprep.subr.mxu0 0.0
    %313 = vmatpush1.msra.mxu0 0.0
    %314 = vmatprep.subr.mxu0 0.0
    %315 = vmatpush1.msra.mxu0 0.0
    %316 = vmatprep.subr.mxu0 0.0
    %317 = vmatpush1.msra.mxu0 0.0
    %318 = vmatprep.subr.mxu0 0.0
    %319 = vmatpush1.msra.mxu0 0.0
    %320 = vmatprep.subr.mxu0 0.0
    %321 = vmatpush1.msra.mxu0 0.0
    %322 = vmatprep.subr.mxu0 0.0
    %323 = vmatpush1.msra.mxu0 0.0
    %324 = vmatprep.subr.mxu0 0.0
    %325 = vmatpush1.msra.mxu0 0.0
    %326 = vmatprep.subr.mxu0 0.0
    %327 = vmatpush1.msra.mxu0 0.0
    %328 = vmatprep.subr.mxu0 0.0
    %329 = vmatpush1.msra.mxu0 0.0
    %330 = vmatprep.subr.mxu0 0.0
    %331 = vmatpush1.msra.mxu0 0.0
    %332 = vmatprep.subr.mxu0 0.0
    %333 = vmatpush1.msra.mxu0 0.0
    %334 = vmatprep.subr.mxu0 0.0
    %335 = vmatpush1.msra.mxu0 0.0
    %336 = vmatprep.subr.mxu0 0.0
    %337 = vmatpush1.msra.mxu0 0.0
    %338 = vmatprep.subr.mxu0 0.0
    %339 = vmatpush1.msra.mxu0 0.0
    %340 = vmatprep.subr.mxu0 0.0
    %341 = vmatpush1.msra.mxu0 0.0
    %342 = vmatprep.subr.mxu0 0.0
    %343 = vmatpush1.msra.mxu0 0.0
    %344 = vmatprep.subr.mxu0 0.0
    %345 = vmatpush1.msra.mxu0 0.0
    %346 = vmatprep.subr.mxu0 0.0
    %347 = vmatpush1.msra.mxu0 0.0
    %348 = vmatprep.subr.mxu0 0.0
    %349 = vmatpush1.msra.mxu0 0.0
    %350 = vmatprep.subr.mxu0 0.0
    %351 = vmatpush1.msra.mxu0 0.0
    %352 = vmatprep.mubr.f32.mxu0 0.0
    %353 = vmatmul.mubr.f32.gmra.mrb[0].mxu0 %v91
    %v354 = vpop.f32.mrb[0].mxu0
    %v355 = vadd.f32 %v286, %v354
    %v356 = vpop.f32.mrb[0].mxu0
    %357 = vmatprep.mubr.f32.mxu0 0.0
    %358 = vmatmul.mubr.f32.gmra.mrb[0].mxu0 %v94
    %v359 = vpop.f32.mrb[0].mxu0
    %v360 = vadd.f32 %v286, %v359
    %v361 = vpop.f32.mrb[0].mxu0
    %362 = vmatprep.mubr.f32.mxu0 0.0
    %363 = vmatmul.mubr.f32.gmra.mrb[0].mxu0 %v97
    %v364 = vpop.f32.mrb[0].mxu0
    %v365 = vadd.f32 %v286, %v364
    %v366 = vpop.f32.mrb[0].mxu0
    %367 = vmatprep.mubr.f32.mxu0 0.0
    %368 = vmatmul.mubr.f32.gmra.mrb[0].mxu0 %v100
    %v369 = vpop.f32.mrb[0].mxu0
    %v370 = vadd.f32 %v286, %v369
    %v371 = vpop.f32.mrb[0].mxu0
    %372 = vdwg.mxu0
    %vm373 = vcmask 257024
    %374 = vst.msk [vmem:[#allocation2] sm:$0xf] %vm373, %v169
    %375 = vst.msk [vmem:[#allocation3] sm:$0xf] %vm373, %v262
    %376 = vst.msk [vmem:[#allocation4] sm:$0xf] %vm373, %v355
    %s377 = scalar_lea.vmem [#allocation2], 4
    %vm378 = vcmask 261124
    %379 = vst.msk [vmem:[%s377 - $0x4] sm:$0xf0] %vm378, %v169
    %s380 = scalar_lea.vmem [#allocation3], 4
    %381 = vst.msk [vmem:[%s380 - $0x4] sm:$0xf0] %vm378, %v262
    %s382 = scalar_lea.vmem [#allocation4], 4
    %383 = vst.msk [vmem:[%s382 - $0x4] sm:$0xf0] %vm378, %v355
    %s384 = scalar_lea.vmem [#allocation2], 8
    %385 = vst.msk [vmem:[%s384] sm:$0xf] %vm373, %v174
    %s386 = scalar_lea.vmem [#allocation3], 8
    %387 = vst.msk [vmem:[%s386] sm:$0xf] %vm373, %v267
    %s388 = scalar_lea.vmem [#allocation4], 8
    %389 = vst.msk [vmem:[%s388] sm:$0xf] %vm373, %v360
    %s390 = scalar_lea.vmem [#allocation2], 12
    %391 = vst.msk [vmem:[%s390 - $0x4] sm:$0xf0] %vm378, %v174
    %s392 = scalar_lea.vmem [#allocation3], 12
    %393 = vst.msk [vmem:[%s392 - $0x4] sm:$0xf0] %vm378, %v267
    %s394 = scalar_lea.vmem [#allocation4], 12
    %395 = vst.msk [vmem:[%s394 - $0x4] sm:$0xf0] %vm378, %v360
    %s396 = scalar_lea.vmem [#allocation2], 16
    %397 = vst.msk [vmem:[%s396] sm:$0xf] %vm373, %v179
    %s398 = scalar_lea.vmem [#allocation3], 16
    %399 = vst.msk [vmem:[%s398] sm:$0xf] %vm373, %v272
    %s400 = scalar_lea.vmem [#allocation4], 16
    %401 = vst.msk [vmem:[%s400] sm:$0xf] %vm373, %v365
    %s402 = scalar_lea.vmem [#allocation2], 20
    %403 = vst.msk [vmem:[%s402 - $0x4] sm:$0xf0] %vm378, %v179
    %s404 = scalar_lea.vmem [#allocation3], 20
    %405 = vst.msk [vmem:[%s404 - $0x4] sm:$0xf0] %vm378, %v272
    %s406 = scalar_lea.vmem [#allocation4], 20
    %407 = vst.msk [vmem:[%s406 - $0x4] sm:$0xf0] %vm378, %v365
    %s408 = scalar_lea.vmem [#allocation2], 24
    %409 = vst.msk [vmem:[%s408] sm:$0xf] %vm373, %v184
    %s410 = scalar_lea.vmem [#allocation3], 24
    %411 = vst.msk [vmem:[%s410] sm:$0xf] %vm373, %v277
    %s412 = scalar_lea.vmem [#allocation4], 24
    %413 = vst.msk [vmem:[%s412] sm:$0xf] %vm373, %v370
    %s414 = scalar_lea.vmem [#allocation2], 28
    %415 = vst.msk [vmem:[%s414 - $0x4] sm:$0xf0] %vm378, %v184
    %s416 = scalar_lea.vmem [#allocation3], 28
    %417 = vst.msk [vmem:[%s416 - $0x4] sm:$0xf0] %vm378, %v277
    %s418 = scalar_lea.vmem [#allocation4], 28
    %419 = vst.msk [vmem:[%s418 - $0x4] sm:$0xf0] %vm378, %v370
    %v420 = vld [vmem:[%s0] sm:$0xf]
    %v421 = vld [vmem:[%s12] sm:$0x1]
    %v423 = vlaneseq
    %v424 = vshrl.u32 %v423, 7
    %v425 = vsub.s32 0, %v424
    %v426 = vrot.slane %v421, %v425
    %v428 = vld [vmem:[%s15] sm:$0x1]
    %v430 = vlaneseq
    %v431 = vshrl.u32 %v430, 7
    %v432 = vsub.s32 0, %v431
    %v433 = vrot.slane %v428, %v432
    %v435 = vld [vmem:[%s16] sm:$0x1]
    %v437 = vlaneseq
    %v438 = vshrl.u32 %v437, 7
    %v439 = vsub.s32 0, %v438
    %v440 = vrot.slane %v435, %v439
    %v442 = vld [vmem:[%s19] sm:$0x1]
    %v444 = vlaneseq
    %v445 = vshrl.u32 %v444, 7
    %v446 = vsub.s32 0, %v445
    %v447 = vrot.slane %v442, %v446
    %v449 = vld [vmem:[%s20] sm:$0x1]
    %v451 = vlaneseq
    %v452 = vshrl.u32 %v451, 7
    %v453 = vsub.s32 0, %v452
    %v454 = vrot.slane %v449, %v453
    %v456 = vld [vmem:[%s2] sm:$0xf]
    %s457 = scalar_lea.vmem %s2, 4
    %v458 = vld [vmem:[%s457] sm:$0xf]
    %vm459 = vcmp.gt.s32.totalorder %v420, 0
    %v460 = vld [vmem:[#allocation2] sm:$0xf]
    %v461 = vld [vmem:[%s9] sm:$0xff]
    %v462 = vld [vmem:[%s9 + $0x8] sm:$0xff]
    %v463 = vld [vmem:[%s9 + $0x10] sm:$0xff]
    %v464 = vld [vmem:[%s9 + $0x18] sm:$0xff]
    %vm465 = vcmask 261120
    %v467 = vsel %vm465, %v456, 0
    %469 = vmatprep.subr.mxu0 0.0
    %470 = vmatpush1.msra.mxu0 %v461
    %471 = vmatprep.subr.mxu0 0.0
    %472 = vmatpush1.msra.mxu0 %v462
    %473 = vmatprep.subr.mxu0 0.0
    %474 = vmatpush1.msra.mxu0 %v463
    %475 = vmatprep.subr.mxu0 0.0
    %476 = vmatpush1.msra.mxu0 %v464
    %477 = vmatprep.subr.mxu0 0.0
    %478 = vmatpush1.msra.mxu0 0.0
    %479 = vmatprep.subr.mxu0 0.0
    %480 = vmatpush1.msra.mxu0 0.0
    %481 = vmatprep.subr.mxu0 0.0
    %482 = vmatpush1.msra.mxu0 0.0
    %483 = vmatprep.subr.mxu0 0.0
    %484 = vmatpush1.msra.mxu0 0.0
    %485 = vmatprep.subr.mxu0 0.0
    %486 = vmatpush1.msra.mxu0 0.0
    %487 = vmatprep.subr.mxu0 0.0
    %488 = vmatpush1.msra.mxu0 0.0
    %489 = vmatprep.subr.mxu0 0.0
    %490 = vmatpush1.msra.mxu0 0.0
    %491 = vmatprep.subr.mxu0 0.0
    %492 = vmatpush1.msra.mxu0 0.0
    %493 = vmatprep.subr.mxu0 0.0
    %494 = vmatpush1.msra.mxu0 0.0
    %495 = vmatprep.subr.mxu0 0.0
    %496 = vmatpush1.msra.mxu0 0.0
    %497 = vmatprep.subr.mxu0 0.0
    %498 = vmatpush1.msra.mxu0 0.0
    %499 = vmatprep.subr.mxu0 0.0
    %500 = vmatpush1.msra.mxu0 0.0
    %501 = vmatprep.subr.mxu0 0.0
    %502 = vmatpush1.msra.mxu0 0.0
    %503 = vmatprep.subr.mxu0 0.0
    %504 = vmatpush1.msra.mxu0 0.0
    %505 = vmatprep.subr.mxu0 0.0
    %506 = vmatpush1.msra.mxu0 0.0
    %507 = vmatprep.subr.mxu0 0.0
    %508 = vmatpush1.msra.mxu0 0.0
    %509 = vmatprep.subr.mxu0 0.0
    %510 = vmatpush1.msra.mxu0 0.0
    %511 = vmatprep.subr.mxu0 0.0
    %512 = vmatpush1.msra.mxu0 0.0
    %513 = vmatprep.subr.mxu0 0.0
    %514 = vmatpush1.msra.mxu0 0.0
    %515 = vmatprep.subr.mxu0 0.0
    %516 = vmatpush1.msra.mxu0 0.0
    %517 = vmatprep.subr.mxu0 0.0
    %518 = vmatpush1.msra.mxu0 0.0
    %519 = vmatprep.subr.mxu0 0.0
    %520 = vmatpush1.msra.mxu0 0.0
    %521 = vmatprep.subr.mxu0 0.0
    %522 = vmatpush1.msra.mxu0 0.0
    %523 = vmatprep.subr.mxu0 0.0
    %524 = vmatpush1.msra.mxu0 0.0
    %525 = vmatprep.subr.mxu0 0.0
    %526 = vmatpush1.msra.mxu0 0.0
    %527 = vmatprep.subr.mxu0 0.0
    %528 = vmatpush1.msra.mxu0 0.0
    %529 = vmatprep.subr.mxu0 0.0
    %530 = vmatpush1.msra.mxu0 0.0
    %531 = vmatprep.subr.mxu0 0.0
    %532 = vmatpush1.msra.mxu0 0.0
    %533 = vmatprep.mubr.f32.mxu0 0.0
    %534 = vmatmul.mubr.f32.gmra.mrb[0].mxu0 %v467
    %v535 = vpop.f32.mrb[0].mxu0
    %v536 = vadd.f32 0.0, %v535
    %v537 = vpop.f32.mrb[0].mxu0
    %538 = vdwg.mxu0
    %v539 = vadd.f32 %v460, %v536
    %v540 = vxor.u32 %v539, 2147483648
    %v541 = vmul.f32 %v540, 1.442695
    %v542 = vpow.pop %v541
    %v543 = vadd.f32 %v542, 1.0
    %v544 = vrcp.pop %v543
    %v545 = vmul.f32 1.0, %v544
    %v546 = vld [vmem:[#allocation3] sm:$0xf]
    %v547 = vld [vmem:[%s10] sm:$0xff]
    %v548 = vld [vmem:[%s10 + $0x8] sm:$0xff]
    %v549 = vld [vmem:[%s10 + $0x10] sm:$0xff]
    %v550 = vld [vmem:[%s10 + $0x18] sm:$0xff]
    %551 = vmatprep.subr.mxu0 0.0
    %552 = vmatpush1.msra.mxu0 %v547
    %553 = vmatprep.subr.mxu0 0.0
    %554 = vmatpush1.msra.mxu0 %v548
    %555 = vmatprep.subr.mxu0 0.0
    %556 = vmatpush1.msra.mxu0 %v549
    %557 = vmatprep.subr.mxu0 0.0
    %558 = vmatpush1.msra.mxu0 %v550
    %559 = vmatprep.subr.mxu0 0.0
    %560 = vmatpush1.msra.mxu0 0.0
    %561 = vmatprep.subr.mxu0 0.0
    %562 = vmatpush1.msra.mxu0 0.0
    %563 = vmatprep.subr.mxu0 0.0
    %564 = vmatpush1.msra.mxu0 0.0
    %565 = vmatprep.subr.mxu0 0.0
    %566 = vmatpush1.msra.mxu0 0.0
    %567 = vmatprep.subr.mxu0 0.0
    %568 = vmatpush1.msra.mxu0 0.0
    %569 = vmatprep.subr.mxu0 0.0
    %570 = vmatpush1.msra.mxu0 0.0
    %571 = vmatprep.subr.mxu0 0.0
    %572 = vmatpush1.msra.mxu0 0.0
    %573 = vmatprep.subr.mxu0 0.0
    %574 = vmatpush1.msra.mxu0 0.0
    %575 = vmatprep.subr.mxu0 0.0
    %576 = vmatpush1.msra.mxu0 0.0
    %577 = vmatprep.subr.mxu0 0.0
    %578 = vmatpush1.msra.mxu0 0.0
    %579 = vmatprep.subr.mxu0 0.0
    %580 = vmatpush1.msra.mxu0 0.0
    %581 = vmatprep.subr.mxu0 0.0
    %582 = vmatpush1.msra.mxu0 0.0
    %583 = vmatprep.subr.mxu0 0.0
    %584 = vmatpush1.msra.mxu0 0.0
    %585 = vmatprep.subr.mxu0 0.0
    %586 = vmatpush1.msra.mxu0 0.0
    %587 = vmatprep.subr.mxu0 0.0
    %588 = vmatpush1.msra.mxu0 0.0
    %589 = vmatprep.subr.mxu0 0.0
    %590 = vmatpush1.msra.mxu0 0.0
    %591 = vmatprep.subr.mxu0 0.0
    %592 = vmatpush1.msra.mxu0 0.0
    %593 = vmatprep.subr.mxu0 0.0
    %594 = vmatpush1.msra.mxu0 0.0
    %595 = vmatprep.subr.mxu0 0.0
    %596 = vmatpush1.msra.mxu0 0.0
    %597 = vmatprep.subr.mxu0 0.0
    %598 = vmatpush1.msra.mxu0 0.0
    %599 = vmatprep.subr.mxu0 0.0
    %600 = vmatpush1.msra.mxu0 0.0
    %601 = vmatprep.subr.mxu0 0.0
    %602 = vmatpush1.msra.mxu0 0.0
    %603 = vmatprep.subr.mxu0 0.0
    %604 = vmatpush1.msra.mxu0 0.0
    %605 = vmatprep.subr.mxu0 0.0
    %606 = vmatpush1.msra.mxu0 0.0
    %607 = vmatprep.subr.mxu0 0.0
    %608 = vmatpush1.msra.mxu0 0.0
    %609 = vmatprep.subr.mxu0 0.0
    %610 = vmatpush1.msra.mxu0 0.0
    %611 = vmatprep.subr.mxu0 0.0
    %612 = vmatpush1.msra.mxu0 0.0
    %613 = vmatprep.subr.mxu0 0.0
    %614 = vmatpush1.msra.mxu0 0.0
    %615 = vmatprep.mubr.f32.mxu0 0.0
    %616 = vmatmul.mubr.f32.gmra.mrb[0].mxu0 %v467
    %v617 = vpop.f32.mrb[0].mxu0
    %v618 = vadd.f32 0.0, %v617
    %v619 = vpop.f32.mrb[0].mxu0
    %620 = vdwg.mxu0
    %v621 = vadd.f32 %v546, %v618
    %v622 = vxor.u32 %v621, 2147483648
    %v623 = vmul.f32 %v622, 1.442695
    %v624 = vpow.pop %v623
    %v625 = vadd.f32 %v624, 1.0
    %v626 = vrcp.pop %v625
    %v627 = vmul.f32 1.0, %v626
    %v628 = vld [vmem:[#allocation4] sm:$0xf]
    %v629 = vld [vmem:[%s11] sm:$0xff]
    %v630 = vld [vmem:[%s11 + $0x8] sm:$0xff]
    %v631 = vld [vmem:[%s11 + $0x10] sm:$0xff]
    %v632 = vld [vmem:[%s11 + $0x18] sm:$0xff]
    %633 = vmatprep.subr.mxu0 0.0
    %634 = vmatpush1.msra.mxu0 %v629
    %635 = vmatprep.subr.mxu0 0.0
    %636 = vmatpush1.msra.mxu0 %v630
    %637 = vmatprep.subr.mxu0 0.0
    %638 = vmatpush1.msra.mxu0 %v631
    %639 = vmatprep.subr.mxu0 0.0
    %640 = vmatpush1.msra.mxu0 %v632
    %641 = vmatprep.subr.mxu0 0.0
    %642 = vmatpush1.msra.mxu0 0.0
    %643 = vmatprep.subr.mxu0 0.0
    %644 = vmatpush1.msra.mxu0 0.0
    %645 = vmatprep.subr.mxu0 0.0
    %646 = vmatpush1.msra.mxu0 0.0
    %647 = vmatprep.subr.mxu0 0.0
    %648 = vmatpush1.msra.mxu0 0.0
    %649 = vmatprep.subr.mxu0 0.0
    %650 = vmatpush1.msra.mxu0 0.0
    %651 = vmatprep.subr.mxu0 0.0
    %652 = vmatpush1.msra.mxu0 0.0
    %653 = vmatprep.subr.mxu0 0.0
    %654 = vmatpush1.msra.mxu0 0.0
    %655 = vmatprep.subr.mxu0 0.0
    %656 = vmatpush1.msra.mxu0 0.0
    %657 = vmatprep.subr.mxu0 0.0
    %658 = vmatpush1.msra.mxu0 0.0
    %659 = vmatprep.subr.mxu0 0.0
    %660 = vmatpush1.msra.mxu0 0.0
    %661 = vmatprep.subr.mxu0 0.0
    %662 = vmatpush1.msra.mxu0 0.0
    %663 = vmatprep.subr.mxu0 0.0
    %664 = vmatpush1.msra.mxu0 0.0
    %665 = vmatprep.subr.mxu0 0.0
    %666 = vmatpush1.msra.mxu0 0.0
    %667 = vmatprep.subr.mxu0 0.0
    %668 = vmatpush1.msra.mxu0 0.0
    %669 = vmatprep.subr.mxu0 0.0
    %670 = vmatpush1.msra.mxu0 0.0
    %671 = vmatprep.subr.mxu0 0.0
    %672 = vmatpush1.msra.mxu0 0.0
    %673 = vmatprep.subr.mxu0 0.0
    %674 = vmatpush1.msra.mxu0 0.0
    %675 = vmatprep.subr.mxu0 0.0
    %676 = vmatpush1.msra.mxu0 0.0
    %677 = vmatprep.subr.mxu0 0.0
    %678 = vmatpush1.msra.mxu0 0.0
    %679 = vmatprep.subr.mxu0 0.0
    %680 = vmatpush1.msra.mxu0 0.0
    %681 = vmatprep.subr.mxu0 0.0
    %682 = vmatpush1.msra.mxu0 0.0
    %683 = vmatprep.subr.mxu0 0.0
    %684 = vmatpush1.msra.mxu0 0.0
    %685 = vmatprep.subr.mxu0 0.0
    %686 = vmatpush1.msra.mxu0 0.0
    %687 = vmatprep.subr.mxu0 0.0
    %688 = vmatpush1.msra.mxu0 0.0
    %689 = vmatprep.subr.mxu0 0.0
    %690 = vmatpush1.msra.mxu0 0.0
    %691 = vmatprep.subr.mxu0 0.0
    %692 = vmatpush1.msra.mxu0 0.0
    %693 = vmatprep.subr.mxu0 0.0
    %694 = vmatpush1.msra.mxu0 0.0
    %695 = vmatprep.subr.mxu0 0.0
    %696 = vmatpush1.msra.mxu0 0.0
    %697 = vmatprep.mubr.f32.mxu0 0.0
    %698 = vmatmul.mubr.f32.gmra.mrb[0].mxu0 %v467
    %v699 = vpop.f32.mrb[0].mxu0
    %v700 = vadd.f32 %v426, %v699
    %v701 = vpop.f32.mrb[0].mxu0
    %702 = vdwg.mxu0
    %v703 = vmul.f32 %v545, %v700
    %v704 = vadd.f32 %v628, %v703
    %v705 = vtanh.pop %v704
    %v706 = vsub.f32 1.0, %v627
    %v707 = vmul.f32 %v706, %v705
    %v708 = vmul.f32 %v627, %v456
    %v709 = vadd.f32 %v707, %v708
    %v710 = vsel %vm459, 1, 0
    %711 = vset.pattern.permute.xlu0 0
    %712 = vperm.xlu0 %711, %v710
    %v713 = vpop.permute.xlu0 %712
    %vm714 = vcmp.eq.s32.totalorder %v713, 1
    %v715 = vsel %vm714, %v709, %v456
    %717 = vrot.lane.b32.xlu0 %v458, 32
    %v718 = vpop.permute.xlu0 %717
    %v720 = vsel %vm465, %v715, %v718
    %v721 = vld [vmem:[%s13] sm:$0xff]
    %v722 = vld [vmem:[%s13 + $0x8] sm:$0xff]
    %v723 = vld [vmem:[%s13 + $0x10] sm:$0xff]
    %v724 = vld [vmem:[%s13 + $0x18] sm:$0xff]
    %v725 = vld [vmem:[%s13 + $0x20] sm:$0xff]
    %v726 = vld [vmem:[%s13 + $0x28] sm:$0xff]
    %v727 = vld [vmem:[%s13 + $0x30] sm:$0xff]
    %v728 = vld [vmem:[%s13 + $0x38] sm:$0xff]
    %vm729 = vcmask 523264
    %v731 = vsel %vm729, %v720, 0
    %733 = vmatprep.subr.mxu0 0.0
    %734 = vmatpush1.msra.mxu0 %v721
    %735 = vmatprep.subr.mxu0 0.0
    %736 = vmatpush1.msra.mxu0 %v722
    %737 = vmatprep.subr.mxu0 0.0
    %738 = vmatpush1.msra.mxu0 %v723
    %739 = vmatprep.subr.mxu0 0.0
    %740 = vmatpush1.msra.mxu0 %v724
    %741 = vmatprep.subr.mxu0 0.0
    %742 = vmatpush1.msra.mxu0 %v725
    %743 = vmatprep.subr.mxu0 0.0
    %744 = vmatpush1.msra.mxu0 %v726
    %745 = vmatprep.subr.mxu0 0.0
    %746 = vmatpush1.msra.mxu0 %v727
    %747 = vmatprep.subr.mxu0 0.0
    %748 = vmatpush1.msra.mxu0 %v728
    %749 = vmatprep.subr.mxu0 0.0
    %750 = vmatpush1.msra.mxu0 0.0
    %751 = vmatprep.subr.mxu0 0.0
    %752 = vmatpush1.msra.mxu0 0.0
    %753 = vmatprep.subr.mxu0 0.0
    %754 = vmatpush1.msra.mxu0 0.0
    %755 = vmatprep.subr.mxu0 0.0
    %756 = vmatpush1.msra.mxu0 0.0
    %757 = vmatprep.subr.mxu0 0.0
    %758 = vmatpush1.msra.mxu0 0.0
    %759 = vmatprep.subr.mxu0 0.0
    %760 = vmatpush1.msra.mxu0 0.0
    %761 = vmatprep.subr.mxu0 0.0
    %762 = vmatpush1.msra.mxu0 0.0
    %763 = vmatprep.subr.mxu0 0.0
    %764 = vmatpush1.msra.mxu0 0.0
    %765 = vmatprep.subr.mxu0 0.0
    %766 = vmatpush1.msra.mxu0 0.0
    %767 = vmatprep.subr.mxu0 0.0
    %768 = vmatpush1.msra.mxu0 0.0
    %769 = vmatprep.subr.mxu0 0.0
    %770 = vmatpush1.msra.mxu0 0.0
    %771 = vmatprep.subr.mxu0 0.0
    %772 = vmatpush1.msra.mxu0 0.0
    %773 = vmatprep.subr.mxu0 0.0
    %774 = vmatpush1.msra.mxu0 0.0
    %775 = vmatprep.subr.mxu0 0.0
    %776 = vmatpush1.msra.mxu0 0.0
    %777 = vmatprep.subr.mxu0 0.0
    %778 = vmatpush1.msra.mxu0 0.0
    %779 = vmatprep.subr.mxu0 0.0
    %780 = vmatpush1.msra.mxu0 0.0
    %781 = vmatprep.subr.mxu0 0.0
    %782 = vmatpush1.msra.mxu0 0.0
    %783 = vmatprep.subr.mxu0 0.0
    %784 = vmatpush1.msra.mxu0 0.0
    %785 = vmatprep.subr.mxu0 0.0
    %786 = vmatpush1.msra.mxu0 0.0
    %787 = vmatprep.subr.mxu0 0.0
    %788 = vmatpush1.msra.mxu0 0.0
    %789 = vmatprep.subr.mxu0 0.0
    %790 = vmatpush1.msra.mxu0 0.0
    %791 = vmatprep.subr.mxu0 0.0
    %792 = vmatpush1.msra.mxu0 0.0
    %793 = vmatprep.subr.mxu0 0.0
    %794 = vmatpush1.msra.mxu0 0.0
    %795 = vmatprep.subr.mxu0 0.0
    %796 = vmatpush1.msra.mxu0 0.0
    %797 = vmatprep.mubr.f32.mxu0 0.0
    %798 = vmatmul.mubr.f32.gmra.mrb[0].mxu0 %v731
    %v799 = vpop.f32.mrb[0].mxu0
    %v800 = vadd.f32 %v433, %v799
    %v801 = vpop.f32.mrb[0].mxu0
    %802 = vdwg.mxu0
    %v803 = vxor.u32 %v800, 2147483648
    %v804 = vmul.f32 %v803, 1.442695
    %v805 = vpow.pop %v804
    %v806 = vadd.f32 %v805, 1.0
    %v807 = vrcp.pop %v806
    %v808 = vmul.f32 1.0, %v807
    %v809 = vld [vmem:[%s14] sm:$0xff]
    %v810 = vld [vmem:[%s14 + $0x8] sm:$0xff]
    %v811 = vld [vmem:[%s14 + $0x10] sm:$0xff]
    %v812 = vld [vmem:[%s14 + $0x18] sm:$0xff]
    %v813 = vld [vmem:[%s14 + $0x20] sm:$0xff]
    %v814 = vld [vmem:[%s14 + $0x28] sm:$0xff]
    %v815 = vld [vmem:[%s14 + $0x30] sm:$0xff]
    %v816 = vld [vmem:[%s14 + $0x38] sm:$0xff]
    %817 = vmatprep.subr.mxu0 0.0
    %818 = vmatpush1.msra.mxu0 %v809
    %819 = vmatprep.subr.mxu0 0.0
    %820 = vmatpush1.msra.mxu0 %v810
    %821 = vmatprep.subr.mxu0 0.0
    %822 = vmatpush1.msra.mxu0 %v811
    %823 = vmatprep.subr.mxu0 0.0
    %824 = vmatpush1.msra.mxu0 %v812
    %825 = vmatprep.subr.mxu0 0.0
    %826 = vmatpush1.msra.mxu0 %v813
    %827 = vmatprep.subr.mxu0 0.0
    %828 = vmatpush1.msra.mxu0 %v814
    %829 = vmatprep.subr.mxu0 0.0
    %830 = vmatpush1.msra.mxu0 %v815
    %831 = vmatprep.subr.mxu0 0.0
    %832 = vmatpush1.msra.mxu0 %v816
    %833 = vmatprep.subr.mxu0 0.0
    %834 = vmatpush1.msra.mxu0 0.0
    %835 = vmatprep.subr.mxu0 0.0
    %836 = vmatpush1.msra.mxu0 0.0
    %837 = vmatprep.subr.mxu0 0.0
    %838 = vmatpush1.msra.mxu0 0.0
    %839 = vmatprep.subr.mxu0 0.0
    %840 = vmatpush1.msra.mxu0 0.0
    %841 = vmatprep.subr.mxu0 0.0
    %842 = vmatpush1.msra.mxu0 0.0
    %843 = vmatprep.subr.mxu0 0.0
    %844 = vmatpush1.msra.mxu0 0.0
    %845 = vmatprep.subr.mxu0 0.0
    %846 = vmatpush1.msra.mxu0 0.0
    %847 = vmatprep.subr.mxu0 0.0
    %848 = vmatpush1.msra.mxu0 0.0
    %849 = vmatprep.subr.mxu0 0.0
    %850 = vmatpush1.msra.mxu0 0.0
    %851 = vmatprep.subr.mxu0 0.0
    %852 = vmatpush1.msra.mxu0 0.0
    %853 = vmatprep.subr.mxu0 0.0
    %854 = vmatpush1.msra.mxu0 0.0
    %855 = vmatprep.subr.mxu0 0.0
    %856 = vmatpush1.msra.mxu0 0.0
    %857 = vmatprep.subr.mxu0 0.0
    %858 = vmatpush1.msra.mxu0 0.0
    %859 = vmatprep.subr.mxu0 0.0
    %860 = vmatpush1.msra.mxu0 0.0
    %861 = vmatprep.subr.mxu0 0.0
    %862 = vmatpush1.msra.mxu0 0.0
    %863 = vmatprep.subr.mxu0 0.0
    %864 = vmatpush1.msra.mxu0 0.0
    %865 = vmatprep.subr.mxu0 0.0
    %866 = vmatpush1.msra.mxu0 0.0
    %867 = vmatprep.subr.mxu0 0.0
    %868 = vmatpush1.msra.mxu0 0.0
    %869 = vmatprep.subr.mxu0 0.0
    %870 = vmatpush1.msra.mxu0 0.0
    %871 = vmatprep.subr.mxu0 0.0
    %872 = vmatpush1.msra.mxu0 0.0
    %873 = vmatprep.subr.mxu0 0.0
    %874 = vmatpush1.msra.mxu0 0.0
    %875 = vmatprep.subr.mxu0 0.0
    %876 = vmatpush1.msra.mxu0 0.0
    %877 = vmatprep.subr.mxu0 0.0
    %878 = vmatpush1.msra.mxu0 0.0
    %879 = vmatprep.subr.mxu0 0.0
    %880 = vmatpush1.msra.mxu0 0.0
    %881 = vmatprep.mubr.f32.mxu0 0.0
    %882 = vmatmul.mubr.f32.gmra.mrb[0].mxu0 %v731
    %v883 = vpop.f32.mrb[0].mxu0
    %v884 = vadd.f32 %v440, %v883
    %v885 = vpop.f32.mrb[0].mxu0
    %886 = vdwg.mxu0
    %v887 = vxor.u32 %v884, 2147483648
    %v888 = vmul.f32 %v887, 1.442695
    %v889 = vpow.pop %v888
    %v890 = vadd.f32 %v889, 1.0
    %v891 = vrcp.pop %v890
    %v892 = vmul.f32 1.0, %v891
    %v893 = vld [vmem:[%s17] sm:$0xff]
    %v894 = vld [vmem:[%s17 + $0x8] sm:$0xff]
    %v895 = vld [vmem:[%s17 + $0x10] sm:$0xff]
    %v896 = vld [vmem:[%s17 + $0x18] sm:$0xff]
    %v898 = vsel %vm465, %v715, 0
    %900 = vmatprep.subr.mxu0 0.0
    %901 = vmatpush1.msra.mxu0 %v893
    %902 = vmatprep.subr.mxu0 0.0
    %903 = vmatpush1.msra.mxu0 %v894
    %904 = vmatprep.subr.mxu0 0.0
    %905 = vmatpush1.msra.mxu0 %v895
    %906 = vmatprep.subr.mxu0 0.0
    %907 = vmatpush1.msra.mxu0 %v896
    %908 = vmatprep.subr.mxu0 0.0
    %909 = vmatpush1.msra.mxu0 0.0
    %910 = vmatprep.subr.mxu0 0.0
    %911 = vmatpush1.msra.mxu0 0.0
    %912 = vmatprep.subr.mxu0 0.0
    %913 = vmatpush1.msra.mxu0 0.0
    %914 = vmatprep.subr.mxu0 0.0
    %915 = vmatpush1.msra.mxu0 0.0
    %916 = vmatprep.subr.mxu0 0.0
    %917 = vmatpush1.msra.mxu0 0.0
    %918 = vmatprep.subr.mxu0 0.0
    %919 = vmatpush1.msra.mxu0 0.0
    %920 = vmatprep.subr.mxu0 0.0
    %921 = vmatpush1.msra.mxu0 0.0
    %922 = vmatprep.subr.mxu0 0.0
    %923 = vmatpush1.msra.mxu0 0.0
    %924 = vmatprep.subr.mxu0 0.0
    %925 = vmatpush1.msra.mxu0 0.0
    %926 = vmatprep.subr.mxu0 0.0
    %927 = vmatpush1.msra.mxu0 0.0
    %928 = vmatprep.subr.mxu0 0.0
    %929 = vmatpush1.msra.mxu0 0.0
    %930 = vmatprep.subr.mxu0 0.0
    %931 = vmatpush1.msra.mxu0 0.0
    %932 = vmatprep.subr.mxu0 0.0
    %933 = vmatpush1.msra.mxu0 0.0
    %934 = vmatprep.subr.mxu0 0.0
    %935 = vmatpush1.msra.mxu0 0.0
    %936 = vmatprep.subr.mxu0 0.0
    %937 = vmatpush1.msra.mxu0 0.0
    %938 = vmatprep.subr.mxu0 0.0
    %939 = vmatpush1.msra.mxu0 0.0
    %940 = vmatprep.subr.mxu0 0.0
    %941 = vmatpush1.msra.mxu0 0.0
    %942 = vmatprep.subr.mxu0 0.0
    %943 = vmatpush1.msra.mxu0 0.0
    %944 = vmatprep.subr.mxu0 0.0
    %945 = vmatpush1.msra.mxu0 0.0
    %946 = vmatprep.subr.mxu0 0.0
    %947 = vmatpush1.msra.mxu0 0.0
    %948 = vmatprep.subr.mxu0 0.0
    %949 = vmatpush1.msra.mxu0 0.0
    %950 = vmatprep.subr.mxu0 0.0
    %951 = vmatpush1.msra.mxu0 0.0
    %952 = vmatprep.subr.mxu0 0.0
    %953 = vmatpush1.msra.mxu0 0.0
    %954 = vmatprep.subr.mxu0 0.0
    %955 = vmatpush1.msra.mxu0 0.0
    %956 = vmatprep.subr.mxu0 0.0
    %957 = vmatpush1.msra.mxu0 0.0
    %958 = vmatprep.subr.mxu0 0.0
    %959 = vmatpush1.msra.mxu0 0.0
    %960 = vmatprep.subr.mxu0 0.0
    %961 = vmatpush1.msra.mxu0 0.0
    %962 = vmatprep.subr.mxu0 0.0
    %963 = vmatpush1.msra.mxu0 0.0
    %964 = vmatprep.mubr.f32.mxu0 0.0
    %965 = vmatmul.mubr.f32.gmra.mrb[0].mxu0 %v898
    %v966 = vpop.f32.mrb[0].mxu0
    %v967 = vadd.f32 %v447, %v966
    %v968 = vpop.f32.mrb[0].mxu0
    %969 = vdwg.mxu0
    %v970 = vld [vmem:[%s18] sm:$0xff]
    %v971 = vld [vmem:[%s18 + $0x8] sm:$0xff]
    %v972 = vld [vmem:[%s18 + $0x10] sm:$0xff]
    %v973 = vld [vmem:[%s18 + $0x18] sm:$0xff]
    %v974 = vsel %vm465, %v458, 0
    %976 = vmatprep.subr.mxu0 0.0
    %977 = vmatpush1.msra.mxu0 %v970
    %978 = vmatprep.subr.mxu0 0.0
    %979 = vmatpush1.msra.mxu0 %v971
    %980 = vmatprep.subr.mxu0 0.0
    %981 = vmatpush1.msra.mxu0 %v972
    %982 = vmatprep.subr.mxu0 0.0
    %983 = vmatpush1.msra.mxu0 %v973
    %984 = vmatprep.subr.mxu0 0.0
    %985 = vmatpush1.msra.mxu0 0.0
    %986 = vmatprep.subr.mxu0 0.0
    %987 = vmatpush1.msra.mxu0 0.0
    %988 = vmatprep.subr.mxu0 0.0
    %989 = vmatpush1.msra.mxu0 0.0
    %990 = vmatprep.subr.mxu0 0.0
    %991 = vmatpush1.msra.mxu0 0.0
    %992 = vmatprep.subr.mxu0 0.0
    %993 = vmatpush1.msra.mxu0 0.0
    %994 = vmatprep.subr.mxu0 0.0
    %995 = vmatpush1.msra.mxu0 0.0
    %996 = vmatprep.subr.mxu0 0.0
    %997 = vmatpush1.msra.mxu0 0.0
    %998 = vmatprep.subr.mxu0 0.0
    %999 = vmatpush1.msra.mxu0 0.0
    %1000 = vmatprep.subr.mxu0 0.0
    %1001 = vmatpush1.msra.mxu0 0.0
    %1002 = vmatprep.subr.mxu0 0.0
    %1003 = vmatpush1.msra.mxu0 0.0
    %1004 = vmatprep.subr.mxu0 0.0
    %1005 = vmatpush1.msra.mxu0 0.0
    %1006 = vmatprep.subr.mxu0 0.0
    %1007 = vmatpush1.msra.mxu0 0.0
    %1008 = vmatprep.subr.mxu0 0.0
    %1009 = vmatpush1.msra.mxu0 0.0
    %1010 = vmatprep.subr.mxu0 0.0
    %1011 = vmatpush1.msra.mxu0 0.0
    %1012 = vmatprep.subr.mxu0 0.0
    %1013 = vmatpush1.msra.mxu0 0.0
    %1014 = vmatprep.subr.mxu0 0.0
    %1015 = vmatpush1.msra.mxu0 0.0
    %1016 = vmatprep.subr.mxu0 0.0
    %1017 = vmatpush1.msra.mxu0 0.0
    %1018 = vmatprep.subr.mxu0 0.0
    %1019 = vmatpush1.msra.mxu0 0.0
    %1020 = vmatprep.subr.mxu0 0.0
    %1021 = vmatpush1.msra.mxu0 0.0
    %1022 = vmatprep.subr.mxu0 0.0
    %1023 = vmatpush1.msra.mxu0 0.0
    %1024 = vmatprep.subr.mxu0 0.0
    %1025 = vmatpush1.msra.mxu0 0.0
    %1026 = vmatprep.subr.mxu0 0.0
    %1027 = vmatpush1.msra.mxu0 0.0
    %1028 = vmatprep.subr.mxu0 0.0
    %1029 = vmatpush1.msra.mxu0 0.0
    %1030 = vmatprep.subr.mxu0 0.0
    %1031 = vmatpush1.msra.mxu0 0.0
    %1032 = vmatprep.subr.mxu0 0.0
    %1033 = vmatpush1.msra.mxu0 0.0
    %1034 = vmatprep.subr.mxu0 0.0
    %1035 = vmatpush1.msra.mxu0 0.0
    %1036 = vmatprep.subr.mxu0 0.0
    %1037 = vmatpush1.msra.mxu0 0.0
    %1038 = vmatprep.subr.mxu0 0.0
    %1039 = vmatpush1.msra.mxu0 0.0
    %1040 = vmatprep.mubr.f32.mxu0 0.0
    %1041 = vmatmul.mubr.f32.gmra.mrb[0].mxu0 %v974
    %v1042 = vpop.f32.mrb[0].mxu0
    %v1043 = vadd.f32 %v454, %v1042
    %v1044 = vpop.f32.mrb[0].mxu0
    %1045 = vdwg.mxu0
    %v1046 = vmul.f32 %v808, %v1043
    %v1047 = vadd.f32 %v967, %v1046
    %v1048 = vtanh.pop %v1047
    %v1049 = vsub.f32 1.0, %v892
    %v1050 = vmul.f32 %v1049, %v1048
    %v1051 = vmul.f32 %v892, %v458
    %v1052 = vadd.f32 %v1050, %v1051
    %v1053 = vsel %vm714, %v1052, %v458
    %v1054 = vsel %vm714, %v1052, 0.0
    %1055 = vst.msk [vmem:[#allocation5] sm:$0xf] %vm373, %v1054
    %vm1056 = vcmp.gt.s32.totalorder %v420, 1
    %v1057 = vld [vmem:[%s377] sm:$0xf]
    %v1058 = vld [vmem:[%s9] sm:$0xff]
    %v1059 = vld [vmem:[%s9 + $0x8] sm:$0xff]
    %v1060 = vld [vmem:[%s9 + $0x10] sm:$0xff]
    %v1061 = vld [vmem:[%s9 + $0x18] sm:$0xff]
    %1062 = vmatprep.subr.mxu0 0.0
    %1063 = vmatpush1.msra.mxu0 %v1058
    %1064 = vmatprep.subr.mxu0 0.0
    %1065 = vmatpush1.msra.mxu0 %v1059
    %1066 = vmatprep.subr.mxu0 0.0
    %1067 = vmatpush1.msra.mxu0 %v1060
    %1068 = vmatprep.subr.mxu0 0.0
    %1069 = vmatpush1.msra.mxu0 %v1061
    %1070 = vmatprep.subr.mxu0 0.0
    %1071 = vmatpush1.msra.mxu0 0.0
    %1072 = vmatprep.subr.mxu0 0.0
    %1073 = vmatpush1.msra.mxu0 0.0
    %1074 = vmatprep.subr.mxu0 0.0
    %1075 = vmatpush1.msra.mxu0 0.0
    %1076 = vmatprep.subr.mxu0 0.0
    %1077 = vmatpush1.msra.mxu0 0.0
    %1078 = vmatprep.subr.mxu0 0.0
    %1079 = vmatpush1.msra.mxu0 0.0
    %1080 = vmatprep.subr.mxu0 0.0
    %1081 = vmatpush1.msra.mxu0 0.0
    %1082 = vmatprep.subr.mxu0 0.0
    %1083 = vmatpush1.msra.mxu0 0.0
    %1084 = vmatprep.subr.mxu0 0.0
    %1085 = vmatpush1.msra.mxu0 0.0
    %1086 = vmatprep.subr.mxu0 0.0
    %1087 = vmatpush1.msra.mxu0 0.0
    %1088 = vmatprep.subr.mxu0 0.0
    %1089 = vmatpush1.msra.mxu0 0.0
    %1090 = vmatprep.subr.mxu0 0.0
    %1091 = vmatpush1.msra.mxu0 0.0
    %1092 = vmatprep.subr.mxu0 0.0
    %1093 = vmatpush1.msra.mxu0 0.0
    %1094 = vmatprep.subr.mxu0 0.0
    %1095 = vmatpush1.msra.mxu0 0.0
    %1096 = vmatprep.subr.mxu0 0.0
    %1097 = vmatpush1.msra.mxu0 0.0
    %1098 = vmatprep.subr.mxu0 0.0
    %1099 = vmatpush1.msra.mxu0 0.0
    %1100 = vmatprep.subr.mxu0 0.0
    %1101 = vmatpush1.msra.mxu0 0.0
    %1102 = vmatprep.subr.mxu0 0.0
    %1103 = vmatpush1.msra.mxu0 0.0
    %1104 = vmatprep.subr.mxu0 0.0
    %1105 = vmatpush1.msra.mxu0 0.0
    %1106 = vmatprep.subr.mxu0 0.0
    %1107 = vmatpush1.msra.mxu0 0.0
    %1108 = vmatprep.subr.mxu0 0.0
    %1109 = vmatpush1.msra.mxu0 0.0
    %1110 = vmatprep.subr.mxu0 0.0
    %1111 = vmatpush1.msra.mxu0 0.0
    %1112 = vmatprep.subr.mxu0 0.0
    %1113 = vmatpush1.msra.mxu0 0.0
    %1114 = vmatprep.subr.mxu0 0.0
    %1115 = vmatpush1.msra.mxu0 0.0
    %1116 = vmatprep.subr.mxu0 0.0
    %1117 = vmatpush1.msra.mxu0 0.0
    %1118 = vmatprep.subr.mxu0 0.0
    %1119 = vmatpush1.msra.mxu0 0.0
    %1120 = vmatprep.subr.mxu0 0.0
    %1121 = vmatpush1.msra.mxu0 0.0
    %1122 = vmatprep.subr.mxu0 0.0
    %1123 = vmatpush1.msra.mxu0 0.0
    %1124 = vmatprep.subr.mxu0 0.0
    %1125 = vmatpush1.msra.mxu0 0.0
    %1126 = vmatprep.mubr.f32.mxu0 0.0
    %1127 = vmatmul.mubr.f32.gmra.mrb[0].mxu0 %v898
    %v1128 = vpop.f32.mrb[0].mxu0
    %v1129 = vadd.f32 0.0, %v1128
    %v1130 = vpop.f32.mrb[0].mxu0
    %1131 = vdwg.mxu0
    %v1132 = vadd.f32 %v1057, %v1129
    %v1133 = vxor.u32 %v1132, 2147483648
    %v1134 = vmul.f32 %v1133, 1.442695
    %v1135 = vpow.pop %v1134
    %v1136 = vadd.f32 %v1135, 1.0
    %v1137 = vrcp.pop %v1136
    %v1138 = vmul.f32 1.0, %v1137
    %v1139 = vld [vmem:[%s380] sm:$0xf]
    %v1140 = vld [vmem:[%s10] sm:$0xff]
    %v1141 = vld [vmem:[%s10 + $0x8] sm:$0xff]
    %v1142 = vld [vmem:[%s10 + $0x10] sm:$0xff]
    %v1143 = vld [vmem:[%s10 + $0x18] sm:$0xff]
    %1144 = vmatprep.subr.mxu0 0.0
    %1145 = vmatpush1.msra.mxu0 %v1140
    %1146 = vmatprep.subr.mxu0 0.0
    %1147 = vmatpush1.msra.mxu0 %v1141
    %1148 = vmatprep.subr.mxu0 0.0
    %1149 = vmatpush1.msra.mxu0 %v1142
    %1150 = vmatprep.subr.mxu0 0.0
    %1151 = vmatpush1.msra.mxu0 %v1143
    %1152 = vmatprep.subr.mxu0 0.0
    %1153 = vmatpush1.msra.mxu0 0.0
    %1154 = vmatprep.subr.mxu0 0.0
    %1155 = vmatpush1.msra.mxu0 0.0
    %1156 = vmatprep.subr.mxu0 0.0
    %1157 = vmatpush1.msra.mxu0 0.0
    %1158 = vmatprep.subr.mxu0 0.0
    %1159 = vmatpush1.msra.mxu0 0.0
    %1160 = vmatprep.subr.mxu0 0.0
    %1161 = vmatpush1.msra.mxu0 0.0
    %1162 = vmatprep.subr.mxu0 0.0
    %1163 = vmatpush1.msra.mxu0 0.0
    %1164 = vmatprep.subr.mxu0 0.0
    %1165 = vmatpush1.msra.mxu0 0.0
    %1166 = vmatprep.subr.mxu0 0.0
    %1167 = vmatpush1.msra.mxu0 0.0
    %1168 = vmatprep.subr.mxu0 0.0
    %1169 = vmatpush1.msra.mxu0 0.0
    %1170 = vmatprep.subr.mxu0 0.0
    %1171 = vmatpush1.msra.mxu0 0.0
    %1172 = vmatprep.subr.mxu0 0.0
    %1173 = vmatpush1.msra.mxu0 0.0
    %1174 = vmatprep.subr.mxu0 0.0
    %1175 = vmatpush1.msra.mxu0 0.0
    %1176 = vmatprep.subr.mxu0 0.0
    %1177 = vmatpush1.msra.mxu0 0.0
    %1178 = vmatprep.subr.mxu0 0.0
    %1179 = vmatpush1.msra.mxu0 0.0
    %1180 = vmatprep.subr.mxu0 0.0
    %1181 = vmatpush1.msra.mxu0 0.0
    %1182 = vmatprep.subr.mxu0 0.0
    %1183 = vmatpush1.msra.mxu0 0.0
    %1184 = vmatprep.subr.mxu0 0.0
    %1185 = vmatpush1.msra.mxu0 0.0
    %1186 = vmatprep.subr.mxu0 0.0
    %1187 = vmatpush1.msra.mxu0 0.0
    %1188 = vmatprep.subr.mxu0 0.0
    %1189 = vmatpush1.msra.mxu0 0.0
    %1190 = vmatprep.subr.mxu0 0.0
    %1191 = vmatpush1.msra.mxu0 0.0
    %1192 = vmatprep.subr.mxu0 0.0
    %1193 = vmatpush1.msra.mxu0 0.0
    %1194 = vmatprep.subr.mxu0 0.0
    %1195 = vmatpush1.msra.mxu0 0.0
    %1196 = vmatprep.subr.mxu0 0.0
    %1197 = vmatpush1.msra.mxu0 0.0
    %1198 = vmatprep.subr.mxu0 0.0
    %1199 = vmatpush1.msra.mxu0 0.0
    %1200 = vmatprep.subr.mxu0 0.0
    %1201 = vmatpush1.msra.mxu0 0.0
    %1202 = vmatprep.subr.mxu0 0.0
    %1203 = vmatpush1.msra.mxu0 0.0
    %1204 = vmatprep.subr.mxu0 0.0
    %1205 = vmatpush1.msra.mxu0 0.0
    %1206 = vmatprep.subr.mxu0 0.0
    %1207 = vmatpush1.msra.mxu0 0.0
    %1208 = vmatprep.mubr.f32.mxu0 0.0
    %1209 = vmatmul.mubr.f32.gmra.mrb[0].mxu0 %v898
    %v1210 = vpop.f32.mrb[0].mxu0
    %v1211 = vadd.f32 0.0, %v1210
    %v1212 = vpop.f32.mrb[0].mxu0
    %1213 = vdwg.mxu0
    %v1214 = vadd.f32 %v1139, %v1211
    %v1215 = vxor.u32 %v1214, 2147483648
    %v1216 = vmul.f32 %v1215, 1.442695
    %v1217 = vpow.pop %v1216
    %v1218 = vadd.f32 %v1217, 1.0
    %v1219 = vrcp.pop %v1218
    %v1220 = vmul.f32 1.0, %v1219
    %v1221 = vld [vmem:[%s382] sm:$0xf]
    %v1222 = vld [vmem:[%s11] sm:$0xff]
    %v1223 = vld [vmem:[%s11 + $0x8] sm:$0xff]
    %v1224 = vld [vmem:[%s11 + $0x10] sm:$0xff]
    %v1225 = vld [vmem:[%s11 + $0x18] sm:$0xff]
    %1226 = vmatprep.subr.mxu0 0.0
    %1227 = vmatpush1.msra.mxu0 %v1222
    %1228 = vmatprep.subr.mxu0 0.0
    %1229 = vmatpush1.msra.mxu0 %v1223
    %1230 = vmatprep.subr.mxu0 0.0
    %1231 = vmatpush1.msra.mxu0 %v1224
    %1232 = vmatprep.subr.mxu0 0.0
    %1233 = vmatpush1.msra.mxu0 %v1225
    %1234 = vmatprep.subr.mxu0 0.0
    %1235 = vmatpush1.msra.mxu0 0.0
    %1236 = vmatprep.subr.mxu0 0.0
    %1237 = vmatpush1.msra.mxu0 0.0
    %1238 = vmatprep.subr.mxu0 0.0
    %1239 = vmatpush1.msra.mxu0 0.0
    %1240 = vmatprep.subr.mxu0 0.0
    %1241 = vmatpush1.msra.mxu0 0.0
    %1242 = vmatprep.subr.mxu0 0.0
    %1243 = vmatpush1.msra.mxu0 0.0
    %1244 = vmatprep.subr.mxu0 0.0
    %1245 = vmatpush1.msra.mxu0 0.0
    %1246 = vmatprep.subr.mxu0 0.0
    %1247 = vmatpush1.msra.mxu0 0.0
    %1248 = vmatprep.subr.mxu0 0.0
    %1249 = vmatpush1.msra.mxu0 0.0
    %1250 = vmatprep.subr.mxu0 0.0
    %1251 = vmatpush1.msra.mxu0 0.0
    %1252 = vmatprep.subr.mxu0 0.0
    %1253 = vmatpush1.msra.mxu0 0.0
    %1254 = vmatprep.subr.mxu0 0.0
    %1255 = vmatpush1.msra.mxu0 0.0
    %1256 = vmatprep.subr.mxu0 0.0
    %1257 = vmatpush1.msra.mxu0 0.0
    %1258 = vmatprep.subr.mxu0 0.0
    %1259 = vmatpush1.msra.mxu0 0.0
    %1260 = vmatprep.subr.mxu0 0.0
    %1261 = vmatpush1.msra.mxu0 0.0
    %1262 = vmatprep.subr.mxu0 0.0
    %1263 = vmatpush1.msra.mxu0 0.0
    %1264 = vmatprep.subr.mxu0 0.0
    %1265 = vmatpush1.msra.mxu0 0.0
    %1266 = vmatprep.subr.mxu0 0.0
    %1267 = vmatpush1.msra.mxu0 0.0
    %1268 = vmatprep.subr.mxu0 0.0
    %1269 = vmatpush1.msra.mxu0 0.0
    %1270 = vmatprep.subr.mxu0 0.0
    %1271 = vmatpush1.msra.mxu0 0.0
    %1272 = vmatprep.subr.mxu0 0.0
    %1273 = vmatpush1.msra.mxu0 0.0
    %1274 = vmatprep.subr.mxu0 0.0
    %1275 = vmatpush1.msra.mxu0 0.0
    %1276 = vmatprep.subr.mxu0 0.0
    %1277 = vmatpush1.msra.mxu0 0.0
    %1278 = vmatprep.subr.mxu0 0.0
    %1279 = vmatpush1.msra.mxu0 0.0
    %1280 = vmatprep.subr.mxu0 0.0
    %1281 = vmatpush1.msra.mxu0 0.0
    %1282 = vmatprep.subr.mxu0 0.0
    %1283 = vmatpush1.msra.mxu0 0.0
    %1284 = vmatprep.subr.mxu0 0.0
    %1285 = vmatpush1.msra.mxu0 0.0
    %1286 = vmatprep.subr.mxu0 0.0
    %1287 = vmatpush1.msra.mxu0 0.0
    %1288 = vmatprep.subr.mxu0 0.0
    %1289 = vmatpush1.msra.mxu0 0.0
    %1290 = vmatprep.mubr.f32.mxu0 0.0
    %1291 = vmatmul.mubr.f32.gmra.mrb[0].mxu0 %v898
    %v1292 = vpop.f32.mrb[0].mxu0
    %v1293 = vadd.f32 %v426, %v1292
    %v1294 = vpop.f32.mrb[0].mxu0
    %1295 = vdwg.mxu0
    %v1296 = vmul.f32 %v1138, %v1293
    %v1297 = vadd.f32 %v1221, %v1296
    %v1298 = vtanh.pop %v1297
    %v1299 = vsub.f32 1.0, %v1220
    %v1300 = vmul.f32 %v1299, %v1298
    %v1301 = vmul.f32 %v1220, %v715
    %v1302 = vadd.f32 %v1300, %v1301
    %v1303 = vsel %vm1056, 1, 0
    %1304 = vset.pattern.permute.xlu0 0
    %1305 = vperm.xlu0 %1304, %v1303
    %v1306 = vpop.permute.xlu0 %1305
    %vm1307 = vcmp.eq.s32.totalorder %v1306, 1
    %v1308 = vsel %vm1307, %v1302, %v715
    %1310 = vrot.lane.b32.xlu0 %v1053, 32
    %v1311 = vpop.permute.xlu0 %1310
    %v1313 = vsel %vm465, %v1308, %v1311
    %v1314 = vld [vmem:[%s13] sm:$0xff]
    %v1315 = vld [vmem:[%s13 + $0x8] sm:$0xff]
    %v1316 = vld [vmem:[%s13 + $0x10] sm:$0xff]
    %v1317 = vld [vmem:[%s13 + $0x18] sm:$0xff]
    %v1318 = vld [vmem:[%s13 + $0x20] sm:$0xff]
    %v1319 = vld [vmem:[%s13 + $0x28] sm:$0xff]
    %v1320 = vld [vmem:[%s13 + $0x30] sm:$0xff]
    %v1321 = vld [vmem:[%s13 + $0x38] sm:$0xff]
    %v1323 = vsel %vm729, %v1313, 0
    %1325 = vmatprep.subr.mxu0 0.0
    %1326 = vmatpush1.msra.mxu0 %v1314
    %1327 = vmatprep.subr.mxu0 0.0
    %1328 = vmatpush1.msra.mxu0 %v1315
    %1329 = vmatprep.subr.mxu0 0.0
    %1330 = vmatpush1.msra.mxu0 %v1316
    %1331 = vmatprep.subr.mxu0 0.0
    %1332 = vmatpush1.msra.mxu0 %v1317
    %1333 = vmatprep.subr.mxu0 0.0
    %1334 = vmatpush1.msra.mxu0 %v1318
    %1335 = vmatprep.subr.mxu0 0.0
    %1336 = vmatpush1.msra.mxu0 %v1319
    %1337 = vmatprep.subr.mxu0 0.0
    %1338 = vmatpush1.msra.mxu0 %v1320
    %1339 = vmatprep.subr.mxu0 0.0
    %1340 = vmatpush1.msra.mxu0 %v1321
    %1341 = vmatprep.subr.mxu0 0.0
    %1342 = vmatpush1.msra.mxu0 0.0
    %1343 = vmatprep.subr.mxu0 0.0
    %1344 = vmatpush1.msra.mxu0 0.0
    %1345 = vmatprep.subr.mxu0 0.0
    %1346 = vmatpush1.msra.mxu0 0.0
    %1347 = vmatprep.subr.mxu0 0.0
    %1348 = vmatpush1.msra.mxu0 0.0
    %1349 = vmatprep.subr.mxu0 0.0
    %1350 = vmatpush1.msra.mxu0 0.0
    %1351 = vmatprep.subr.mxu0 0.0
    %1352 = vmatpush1.msra.mxu0 0.0
    %1353 = vmatprep.subr.mxu0 0.0
    %1354 = vmatpush1.msra.mxu0 0.0
    %1355 = vmatprep.subr.mxu0 0.0
    %1356 = vmatpush1.msra.mxu0 0.0
    %1357 = vmatprep.subr.mxu0 0.0
    %1358 = vmatpush1.msra.mxu0 0.0
    %1359 = vmatprep.subr.mxu0 0.0
    %1360 = vmatpush1.msra.mxu0 0.0
    %1361 = vmatprep.subr.mxu0 0.0
    %1362 = vmatpush1.msra.mxu0 0.0
    %1363 = vmatprep.subr.mxu0 0.0
    %1364 = vmatpush1.msra.mxu0 0.0
    %1365 = vmatprep.subr.mxu0 0.0
    %1366 = vmatpush1.msra.mxu0 0.0
    %1367 = vmatprep.subr.mxu0 0.0
    %1368 = vmatpush1.msra.mxu0 0.0
    %1369 = vmatprep.subr.mxu0 0.0
    %1370 = vmatpush1.msra.mxu0 0.0
    %1371 = vmatprep.subr.mxu0 0.0
    %1372 = vmatpush1.msra.mxu0 0.0
    %1373 = vmatprep.subr.mxu0 0.0
    %1374 = vmatpush1.msra.mxu0 0.0
    %1375 = vmatprep.subr.mxu0 0.0
    %1376 = vmatpush1.msra.mxu0 0.0
    %1377 = vmatprep.subr.mxu0 0.0
    %1378 = vmatpush1.msra.mxu0 0.0
    %1379 = vmatprep.subr.mxu0 0.0
    %1380 = vmatpush1.msra.mxu0 0.0
    %1381 = vmatprep.subr.mxu0 0.0
    %1382 = vmatpush1.msra.mxu0 0.0
    %1383 = vmatprep.subr.mxu0 0.0
    %1384 = vmatpush1.msra.mxu0 0.0
    %1385 = vmatprep.subr.mxu0 0.0
    %1386 = vmatpush1.msra.mxu0 0.0
    %1387 = vmatprep.subr.mxu0 0.0
    %1388 = vmatpush1.msra.mxu0 0.0
    %1389 = vmatprep.mubr.f32.mxu0 0.0
    %1390 = vmatmul.mubr.f32.gmra.mrb[0].mxu0 %v1323
    %v1391 = vpop.f32.mrb[0].mxu0
    %v1392 = vadd.f32 %v433, %v1391
    %v1393 = vpop.f32.mrb[0].mxu0
    %1394 = vdwg.mxu0
    %v1395 = vxor.u32 %v1392, 2147483648
    %v1396 = vmul.f32 %v1395, 1.442695
    %v1397 = vpow.pop %v1396
    %v1398 = vadd.f32 %v1397, 1.0
    %v1399 = vrcp.pop %v1398
    %v1400 = vmul.f32 1.0, %v1399
    %v1401 = vld [vmem:[%s14] sm:$0xff]
    %v1402 = vld [vmem:[%s14 + $0x8] sm:$0xff]
    %v1403 = vld [vmem:[%s14 + $0x10] sm:$0xff]
    %v1404 = vld [vmem:[%s14 + $0x18] sm:$0xff]
    %v1405 = vld [vmem:[%s14 + $0x20] sm:$0xff]
    %v1406 = vld [vmem:[%s14 + $0x28] sm:$0xff]
    %v1407 = vld [vmem:[%s14 + $0x30] sm:$0xff]
    %v1408 = vld [vmem:[%s14 + $0x38] sm:$0xff]
    %1409 = vmatprep.subr.mxu0 0.0
    %1410 = vmatpush1.msra.mxu0 %v1401
    %1411 = vmatprep.subr.mxu0 0.0
    %1412 = vmatpush1.msra.mxu0 %v1402
    %1413 = vmatprep.subr.mxu0 0.0
    %1414 = vmatpush1.msra.mxu0 %v1403
    %1415 = vmatprep.subr.mxu0 0.0
    %1416 = vmatpush1.msra.mxu0 %v1404
    %1417 = vmatprep.subr.mxu0 0.0
    %1418 = vmatpush1.msra.mxu0 %v1405
    %1419 = vmatprep.subr.mxu0 0.0
    %1420 = vmatpush1.msra.mxu0 %v1406
    %1421 = vmatprep.subr.mxu0 0.0
    %1422 = vmatpush1.msra.mxu0 %v1407
    %1423 = vmatprep.subr.mxu0 0.0
    %1424 = vmatpush1.msra.mxu0 %v1408
    %1425 = vmatprep.subr.mxu0 0.0
    %1426 = vmatpush1.msra.mxu0 0.0
    %1427 = vmatprep.subr.mxu0 0.0
    %1428 = vmatpush1.msra.mxu0 0.0
    %1429 = vmatprep.subr.mxu0 0.0
    %1430 = vmatpush1.msra.mxu0 0.0
    %1431 = vmatprep.subr.mxu0 0.0
    %1432 = vmatpush1.msra.mxu0 0.0
    %1433 = vmatprep.subr.mxu0 0.0
    %1434 = vmatpush1.msra.mxu0 0.0
    %1435 = vmatprep.subr.mxu0 0.0
    %1436 = vmatpush1.msra.mxu0 0.0
    %1437 = vmatprep.subr.mxu0 0.0
    %1438 = vmatpush1.msra.mxu0 0.0
    %1439 = vmatprep.subr.mxu0 0.0
    %1440 = vmatpush1.msra.mxu0 0.0
    %1441 = vmatprep.subr.mxu0 0.0
    %1442 = vmatpush1.msra.mxu0 0.0
    %1443 = vmatprep.subr.mxu0 0.0
    %1444 = vmatpush1.msra.mxu0 0.0
    %1445 = vmatprep.subr.mxu0 0.0
    %1446 = vmatpush1.msra.mxu0 0.0
    %1447 = vmatprep.subr.mxu0 0.0
    %1448 = vmatpush1.msra.mxu0 0.0
    %1449 = vmatprep.subr.mxu0 0.0
    %1450 = vmatpush1.msra.mxu0 0.0
    %1451 = vmatprep.subr.mxu0 0.0
    %1452 = vmatpush1.msra.mxu0 0.0
    %1453 = vmatprep.subr.mxu0 0.0
    %1454 = vmatpush1.msra.mxu0 0.0
    %1455 = vmatprep.subr.mxu0 0.0
    %1456 = vmatpush1.msra.mxu0 0.0
    %1457 = vmatprep.subr.mxu0 0.0
    %1458 = vmatpush1.msra.mxu0 0.0
    %1459 = vmatprep.subr.mxu0 0.0
    %1460 = vmatpush1.msra.mxu0 0.0
    %1461 = vmatprep.subr.mxu0 0.0
    %1462 = vmatpush1.msra.mxu0 0.0
    %1463 = vmatprep.subr.mxu0 0.0
    %1464 = vmatpush1.msra.mxu0 0.0
    %1465 = vmatprep.subr.mxu0 0.0
    %1466 = vmatpush1.msra.mxu0 0.0
    %1467 = vmatprep.subr.mxu0 0.0
    %1468 = vmatpush1.msra.mxu0 0.0
    %1469 = vmatprep.subr.mxu0 0.0
    %1470 = vmatpush1.msra.mxu0 0.0
    %1471 = vmatprep.subr.mxu0 0.0
    %1472 = vmatpush1.msra.mxu0 0.0
    %1473 = vmatprep.mubr.f32.mxu0 0.0
    %1474 = vmatmul.mubr.f32.gmra.mrb[0].mxu0 %v1323
    %v1475 = vpop.f32.mrb[0].mxu0
    %v1476 = vadd.f32 %v440, %v1475
    %v1477 = vpop.f32.mrb[0].mxu0
    %1478 = vdwg.mxu0
    %v1479 = vxor.u32 %v1476, 2147483648
    %v1480 = vmul.f32 %v1479, 1.442695
    %v1481 = vpow.pop %v1480
    %v1482 = vadd.f32 %v1481, 1.0
    %v1483 = vrcp.pop %v1482
    %v1484 = vmul.f32 1.0, %v1483
    %v1485 = vld [vmem:[%s17] sm:$0xff]
    %v1486 = vld [vmem:[%s17 + $0x8] sm:$0xff]
    %v1487 = vld [vmem:[%s17 + $0x10] sm:$0xff]
    %v1488 = vld [vmem:[%s17 + $0x18] sm:$0xff]
    %v1490 = vsel %vm465, %v1308, 0
    %1492 = vmatprep.subr.mxu0 0.0
    %1493 = vmatpush1.msra.mxu0 %v1485
    %1494 = vmatprep.subr.mxu0 0.0
    %1495 = vmatpush1.msra.mxu0 %v1486
    %1496 = vmatprep.subr.mxu0 0.0
    %1497 = vmatpush1.msra.mxu0 %v1487
    %1498 = vmatprep.subr.mxu0 0.0
    %1499 = vmatpush1.msra.mxu0 %v1488
    %1500 = vmatprep.subr.mxu0 0.0
    %1501 = vmatpush1.msra.mxu0 0.0
    %1502 = vmatprep.subr.mxu0 0.0
    %1503 = vmatpush1.msra.mxu0 0.0
    %1504 = vmatprep.subr.mxu0 0.0
    %1505 = vmatpush1.msra.mxu0 0.0
    %1506 = vmatprep.subr.mxu0 0.0
    %1507 = vmatpush1.msra.mxu0 0.0
    %1508 = vmatprep.subr.mxu0 0.0
    %1509 = vmatpush1.msra.mxu0 0.0
    %1510 = vmatprep.subr.mxu0 0.0
    %1511 = vmatpush1.msra.mxu0 0.0
    %1512 = vmatprep.subr.mxu0 0.0
    %1513 = vmatpush1.msra.mxu0 0.0
    %1514 = vmatprep.subr.mxu0 0.0
    %1515 = vmatpush1.msra.mxu0 0.0
    %1516 = vmatprep.subr.mxu0 0.0
    %1517 = vmatpush1.msra.mxu0 0.0
    %1518 = vmatprep.subr.mxu0 0.0
    %1519 = vmatpush1.msra.mxu0 0.0
    %1520 = vmatprep.subr.mxu0 0.0
    %1521 = vmatpush1.msra.mxu0 0.0
    %1522 = vmatprep.subr.mxu0 0.0
    %1523 = vmatpush1.msra.mxu0 0.0
    %1524 = vmatprep.subr.mxu0 0.0
    %1525 = vmatpush1.msra.mxu0 0.0
    %1526 = vmatprep.subr.mxu0 0.0
    %1527 = vmatpush1.msra.mxu0 0.0
    %1528 = vmatprep.subr.mxu0 0.0
    %1529 = vmatpush1.msra.mxu0 0.0
    %1530 = vmatprep.subr.mxu0 0.0
    %1531 = vmatpush1.msra.mxu0 0.0
    %1532 = vmatprep.subr.mxu0 0.0
    %1533 = vmatpush1.msra.mxu0 0.0
    %1534 = vmatprep.subr.mxu0 0.0
    %1535 = vmatpush1.msra.mxu0 0.0
    %1536 = vmatprep.subr.mxu0 0.0
    %1537 = vmatpush1.msra.mxu0 0.0
    %1538 = vmatprep.subr.mxu0 0.0
    %1539 = vmatpush1.msra.mxu0 0.0
    %1540 = vmatprep.subr.mxu0 0.0
    %1541 = vmatpush1.msra.mxu0 0.0
    %1542 = vmatprep.subr.mxu0 0.0
    %1543 = vmatpush1.msra.mxu0 0.0
    %1544 = vmatprep.subr.mxu0 0.0
    %1545 = vmatpush1.msra.mxu0 0.0
    %1546 = vmatprep.subr.mxu0 0.0
    %1547 = vmatpush1.msra.mxu0 0.0
    %1548 = vmatprep.subr.mxu0 0.0
    %1549 = vmatpush1.msra.mxu0 0.0
    %1550 = vmatprep.subr.mxu0 0.0
    %1551 = vmatpush1.msra.mxu0 0.0
    %1552 = vmatprep.subr.mxu0 0.0
    %1553 = vmatpush1.msra.mxu0 0.0
    %1554 = vmatprep.subr.mxu0 0.0
    %1555 = vmatpush1.msra.mxu0 0.0
    %1556 = vmatprep.mubr.f32.mxu0 0.0
    %1557 = vmatmul.mubr.f32.gmra.mrb[0].mxu0 %v1490
    %v1558 = vpop.f32.mrb[0].mxu0
    %v1559 = vadd.f32 %v447, %v1558
    %v1560 = vpop.f32.mrb[0].mxu0
    %1561 = vdwg.mxu0
    %v1562 = vld [vmem:[%s18] sm:$0xff]
    %v1563 = vld [vmem:[%s18 + $0x8] sm:$0xff]
    %v1564 = vld [vmem:[%s18 + $0x10] sm:$0xff]
    %v1565 = vld [vmem:[%s18 + $0x18] sm:$0xff]
    %v1566 = vsel %vm465, %v1053, 0
    %1568 = vmatprep.subr.mxu0 0.0
    %1569 = vmatpush1.msra.mxu0 %v1562
    %1570 = vmatprep.subr.mxu0 0.0
    %1571 = vmatpush1.msra.mxu0 %v1563
    %1572 = vmatprep.subr.mxu0 0.0
    %1573 = vmatpush1.msra.mxu0 %v1564
    %1574 = vmatprep.subr.mxu0 0.0
    %1575 = vmatpush1.msra.mxu0 %v1565
    %1576 = vmatprep.subr.mxu0 0.0
    %1577 = vmatpush1.msra.mxu0 0.0
    %1578 = vmatprep.subr.mxu0 0.0
    %1579 = vmatpush1.msra.mxu0 0.0
    %1580 = vmatprep.subr.mxu0 0.0
    %1581 = vmatpush1.msra.mxu0 0.0
    %1582 = vmatprep.subr.mxu0 0.0
    %1583 = vmatpush1.msra.mxu0 0.0
    %1584 = vmatprep.subr.mxu0 0.0
    %1585 = vmatpush1.msra.mxu0 0.0
    %1586 = vmatprep.subr.mxu0 0.0
    %1587 = vmatpush1.msra.mxu0 0.0
    %1588 = vmatprep.subr.mxu0 0.0
    %1589 = vmatpush1.msra.mxu0 0.0
    %1590 = vmatprep.subr.mxu0 0.0
    %1591 = vmatpush1.msra.mxu0 0.0
    %1592 = vmatprep.subr.mxu0 0.0
    %1593 = vmatpush1.msra.mxu0 0.0
    %1594 = vmatprep.subr.mxu0 0.0
    %1595 = vmatpush1.msra.mxu0 0.0
    %1596 = vmatprep.subr.mxu0 0.0
    %1597 = vmatpush1.msra.mxu0 0.0
    %1598 = vmatprep.subr.mxu0 0.0
    %1599 = vmatpush1.msra.mxu0 0.0
    %1600 = vmatprep.subr.mxu0 0.0
    %1601 = vmatpush1.msra.mxu0 0.0
    %1602 = vmatprep.subr.mxu0 0.0
    %1603 = vmatpush1.msra.mxu0 0.0
    %1604 = vmatprep.subr.mxu0 0.0
    %1605 = vmatpush1.msra.mxu0 0.0
    %1606 = vmatprep.subr.mxu0 0.0
    %1607 = vmatpush1.msra.mxu0 0.0
    %1608 = vmatprep.subr.mxu0 0.0
    %1609 = vmatpush1.msra.mxu0 0.0
    %1610 = vmatprep.subr.mxu0 0.0
    %1611 = vmatpush1.msra.mxu0 0.0
    %1612 = vmatprep.subr.mxu0 0.0
    %1613 = vmatpush1.msra.mxu0 0.0
    %1614 = vmatprep.subr.mxu0 0.0
    %1615 = vmatpush1.msra.mxu0 0.0
    %1616 = vmatprep.subr.mxu0 0.0
    %1617 = vmatpush1.msra.mxu0 0.0
    %1618 = vmatprep.subr.mxu0 0.0
    %1619 = vmatpush1.msra.mxu0 0.0
    %1620 = vmatprep.subr.mxu0 0.0
    %1621 = vmatpush1.msra.mxu0 0.0
    %1622 = vmatprep.subr.mxu0 0.0
    %1623 = vmatpush1.msra.mxu0 0.0
    %1624 = vmatprep.subr.mxu0 0.0
    %1625 = vmatpush1.msra.mxu0 0.0
    %1626 = vmatprep.subr.mxu0 0.0
    %1627 = vmatpush1.msra.mxu0 0.0
    %1628 = vmatprep.subr.mxu0 0.0
    %1629 = vmatpush1.msra.mxu0 0.0
    %1630 = vmatprep.subr.mxu0 0.0
    %1631 = vmatpush1.msra.mxu0 0.0
    %1632 = vmatprep.mubr.f32.mxu0 0.0
    %1633 = vmatmul.mubr.f32.gmra.mrb[0].mxu0 %v1566
    %v1634 = vpop.f32.mrb[0].mxu0
    %v1635 = vadd.f32 %v454, %v1634
    %v1636 = vpop.f32.mrb[0].mxu0
    %1637 = vdwg.mxu0
    %v1638 = vmul.f32 %v1400, %v1635
    %v1639 = vadd.f32 %v1559, %v1638
    %v1640 = vtanh.pop %v1639
    %v1641 = vsub.f32 1.0, %v1484
    %v1642 = vmul.f32 %v1641, %v1640
    %v1643 = vmul.f32 %v1484, %v1053
    %v1644 = vadd.f32 %v1642, %v1643
    %v1645 = vsel %vm1307, %v1644, %v1053
    %v1646 = vsel %vm1307, %v1644, 0.0
    %s1647 = scalar_lea.vmem [#allocation5], 4
    %1648 = vst.msk [vmem:[%s1647] sm:$0xf] %vm373, %v1646
    %vm1649 = vcmp.gt.s32.totalorder %v420, 2
    %v1650 = vld [vmem:[%s384] sm:$0xf]
    %v1651 = vld [vmem:[%s9] sm:$0xff]
    %v1652 = vld [vmem:[%s9 + $0x8] sm:$0xff]
    %v1653 = vld [vmem:[%s9 + $0x10] sm:$0xff]
    %v1654 = vld [vmem:[%s9 + $0x18] sm:$0xff]
    %1655 = vmatprep.subr.mxu0 0.0
    %1656 = vmatpush1.msra.mxu0 %v1651
    %1657 = vmatprep.subr.mxu0 0.0
    %1658 = vmatpush1.msra.mxu0 %v1652
    %1659 = vmatprep.subr.mxu0 0.0
    %1660 = vmatpush1.msra.mxu0 %v1653
    %1661 = vmatprep.subr.mxu0 0.0
    %1662 = vmatpush1.msra.mxu0 %v1654
    %1663 = vmatprep.subr.mxu0 0.0
    %1664 = vmatpush1.msra.mxu0 0.0
    %1665 = vmatprep.subr.mxu0 0.0
    %1666 = vmatpush1.msra.mxu0 0.0
    %1667 = vmatprep.subr.mxu0 0.0
    %1668 = vmatpush1.msra.mxu0 0.0
    %1669 = vmatprep.subr.mxu0 0.0
    %1670 = vmatpush1.msra.mxu0 0.0
    %1671 = vmatprep.subr.mxu0 0.0
    %1672 = vmatpush1.msra.mxu0 0.0
    %1673 = vmatprep.subr.mxu0 0.0
    %1674 = vmatpush1.msra.mxu0 0.0
    %1675 = vmatprep.subr.mxu0 0.0
    %1676 = vmatpush1.msra.mxu0 0.0
    %1677 = vmatprep.subr.mxu0 0.0
    %1678 = vmatpush1.msra.mxu0 0.0
    %1679 = vmatprep.subr.mxu0 0.0
    %1680 = vmatpush1.msra.mxu0 0.0
    %1681 = vmatprep.subr.mxu0 0.0
    %1682 = vmatpush1.msra.mxu0 0.0
    %1683 = vmatprep.subr.mxu0 0.0
    %1684 = vmatpush1.msra.mxu0 0.0
    %1685 = vmatprep.subr.mxu0 0.0
    %1686 = vmatpush1.msra.mxu0 0.0
    %1687 = vmatprep.subr.mxu0 0.0
    %1688 = vmatpush1.msra.mxu0 0.0
    %1689 = vmatprep.subr.mxu0 0.0
    %1690 = vmatpush1.msra.mxu0 0.0
    %1691 = vmatprep.subr.mxu0 0.0
    %1692 = vmatpush1.msra.mxu0 0.0
    %1693 = vmatprep.subr.mxu0 0.0
    %1694 = vmatpush1.msra.mxu0 0.0
    %1695 = vmatprep.subr.mxu0 0.0
    %1696 = vmatpush1.msra.mxu0 0.0
    %1697 = vmatprep.subr.mxu0 0.0
    %1698 = vmatpush1.msra.mxu0 0.0
    %1699 = vmatprep.subr.mxu0 0.0
    %1700 = vmatpush1.msra.mxu0 0.0
    %1701 = vmatprep.subr.mxu0 0.0
    %1702 = vmatpush1.msra.mxu0 0.0
    %1703 = vmatprep.subr.mxu0 0.0
    %1704 = vmatpush1.msra.mxu0 0.0
    %1705 = vmatprep.subr.mxu0 0.0
    %1706 = vmatpush1.msra.mxu0 0.0
    %1707 = vmatprep.subr.mxu0 0.0
    %1708 = vmatpush1.msra.mxu0 0.0
    %1709 = vmatprep.subr.mxu0 0.0
    %1710 = vmatpush1.msra.mxu0 0.0
    %1711 = vmatprep.subr.mxu0 0.0
    %1712 = vmatpush1.msra.mxu0 0.0
    %1713 = vmatprep.subr.mxu0 0.0
    %1714 = vmatpush1.msra.mxu0 0.0
    %1715 = vmatprep.subr.mxu0 0.0
    %1716 = vmatpush1.msra.mxu0 0.0
    %1717 = vmatprep.subr.mxu0 0.0
    %1718 = vmatpush1.msra.mxu0 0.0
    %1719 = vmatprep.mubr.f32.mxu0 0.0
    %1720 = vmatmul.mubr.f32.gmra.mrb[0].mxu0 %v1490
    %v1721 = vpop.f32.mrb[0].mxu0
    %v1722 = vadd.f32 0.0, %v1721
    %v1723 = vpop.f32.mrb[0].mxu0
    %1724 = vdwg.mxu0
    %v1725 = vadd.f32 %v1650, %v1722
    %v1726 = vxor.u32 %v1725, 2147483648
    %v1727 = vmul.f32 %v1726, 1.442695
    %v1728 = vpow.pop %v1727
    %v1729 = vadd.f32 %v1728, 1.0
    %v1730 = vrcp.pop %v1729
    %v1731 = vmul.f32 1.0, %v1730
    %v1732 = vld [vmem:[%s386] sm:$0xf]
    %v1733 = vld [vmem:[%s10] sm:$0xff]
    %v1734 = vld [vmem:[%s10 + $0x8] sm:$0xff]
    %v1735 = vld [vmem:[%s10 + $0x10] sm:$0xff]
    %v1736 = vld [vmem:[%s10 + $0x18] sm:$0xff]
    %1737 = vmatprep.subr.mxu0 0.0
    %1738 = vmatpush1.msra.mxu0 %v1733
    %1739 = vmatprep.subr.mxu0 0.0
    %1740 = vmatpush1.msra.mxu0 %v1734
    %1741 = vmatprep.subr.mxu0 0.0
    %1742 = vmatpush1.msra.mxu0 %v1735
    %1743 = vmatprep.subr.mxu0 0.0
    %1744 = vmatpush1.msra.mxu0 %v1736
    %1745 = vmatprep.subr.mxu0 0.0
    %1746 = vmatpush1.msra.mxu0 0.0
    %1747 = vmatprep.subr.mxu0 0.0
    %1748 = vmatpush1.msra.mxu0 0.0
    %1749 = vmatprep.subr.mxu0 0.0
    %1750 = vmatpush1.msra.mxu0 0.0
    %1751 = vmatprep.subr.mxu0 0.0
    %1752 = vmatpush1.msra.mxu0 0.0
    %1753 = vmatprep.subr.mxu0 0.0
    %1754 = vmatpush1.msra.mxu0 0.0
    %1755 = vmatprep.subr.mxu0 0.0
    %1756 = vmatpush1.msra.mxu0 0.0
    %1757 = vmatprep.subr.mxu0 0.0
    %1758 = vmatpush1.msra.mxu0 0.0
    %1759 = vmatprep.subr.mxu0 0.0
    %1760 = vmatpush1.msra.mxu0 0.0
    %1761 = vmatprep.subr.mxu0 0.0
    %1762 = vmatpush1.msra.mxu0 0.0
    %1763 = vmatprep.subr.mxu0 0.0
    %1764 = vmatpush1.msra.mxu0 0.0
    %1765 = vmatprep.subr.mxu0 0.0
    %1766 = vmatpush1.msra.mxu0 0.0
    %1767 = vmatprep.subr.mxu0 0.0
    %1768 = vmatpush1.msra.mxu0 0.0
    %1769 = vmatprep.subr.mxu0 0.0
    %1770 = vmatpush1.msra.mxu0 0.0
    %1771 = vmatprep.subr.mxu0 0.0
    %1772 = vmatpush1.msra.mxu0 0.0
    %1773 = vmatprep.subr.mxu0 0.0
    %1774 = vmatpush1.msra.mxu0 0.0
    %1775 = vmatprep.subr.mxu0 0.0
    %1776 = vmatpush1.msra.mxu0 0.0
    %1777 = vmatprep.subr.mxu0 0.0
    %1778 = vmatpush1.msra.mxu0 0.0
    %1779 = vmatprep.subr.mxu0 0.0
    %1780 = vmatpush1.msra.mxu0 0.0
    %1781 = vmatprep.subr.mxu0 0.0
    %1782 = vmatpush1.msra.mxu0 0.0
    %1783 = vmatprep.subr.mxu0 0.0
    %1784 = vmatpush1.msra.mxu0 0.0
    %1785 = vmatprep.subr.mxu0 0.0
    %1786 = vmatpush1.msra.mxu0 0.0
    %1787 = vmatprep.subr.mxu0 0.0
    %1788 = vmatpush1.msra.mxu0 0.0
    %1789 = vmatprep.subr.mxu0 0.0
    %1790 = vmatpush1.msra.mxu0 0.0
    %1791 = vmatprep.subr.mxu0 0.0
    %1792 = vmatpush1.msra.mxu0 0.0
    %1793 = vmatprep.subr.mxu0 0.0
    %1794 = vmatpush1.msra.mxu0 0.0
    %1795 = vmatprep.subr.mxu0 0.0
    %1796 = vmatpush1.msra.mxu0 0.0
    %1797 = vmatprep.subr.mxu0 0.0
    %1798 = vmatpush1.msra.mxu0 0.0
    %1799 = vmatprep.subr.mxu0 0.0
    %1800 = vmatpush1.msra.mxu0 0.0
    %1801 = vmatprep.mubr.f32.mxu0 0.0
    %1802 = vmatmul.mubr.f32.gmra.mrb[0].mxu0 %v1490
    %v1803 = vpop.f32.mrb[0].mxu0
    %v1804 = vadd.f32 0.0, %v1803
    %v1805 = vpop.f32.mrb[0].mxu0
    %1806 = vdwg.mxu0
    %v1807 = vadd.f32 %v1732, %v1804
    %v1808 = vxor.u32 %v1807, 2147483648
    %v1809 = vmul.f32 %v1808, 1.442695
    %v1810 = vpow.pop %v1809
    %v1811 = vadd.f32 %v1810, 1.0
    %v1812 = vrcp.pop %v1811
    %v1813 = vmul.f32 1.0, %v1812
    %v1814 = vld [vmem:[%s388] sm:$0xf]
    %v1815 = vld [vmem:[%s11] sm:$0xff]
    %v1816 = vld [vmem:[%s11 + $0x8] sm:$0xff]
    %v1817 = vld [vmem:[%s11 + $0x10] sm:$0xff]
    %v1818 = vld [vmem:[%s11 + $0x18] sm:$0xff]
    %1819 = vmatprep.subr.mxu0 0.0
    %1820 = vmatpush1.msra.mxu0 %v1815
    %1821 = vmatprep.subr.mxu0 0.0
    %1822 = vmatpush1.msra.mxu0 %v1816
    %1823 = vmatprep.subr.mxu0 0.0
    %1824 = vmatpush1.msra.mxu0 %v1817
    %1825 = vmatprep.subr.mxu0 0.0
    %1826 = vmatpush1.msra.mxu0 %v1818
    %1827 = vmatprep.subr.mxu0 0.0
    %1828 = vmatpush1.msra.mxu0 0.0
    %1829 = vmatprep.subr.mxu0 0.0
    %1830 = vmatpush1.msra.mxu0 0.0
    %1831 = vmatprep.subr.mxu0 0.0
    %1832 = vmatpush1.msra.mxu0 0.0
    %1833 = vmatprep.subr.mxu0 0.0
    %1834 = vmatpush1.msra.mxu0 0.0
    %1835 = vmatprep.subr.mxu0 0.0
    %1836 = vmatpush1.msra.mxu0 0.0
    %1837 = vmatprep.subr.mxu0 0.0
    %1838 = vmatpush1.msra.mxu0 0.0
    %1839 = vmatprep.subr.mxu0 0.0
    %1840 = vmatpush1.msra.mxu0 0.0
    %1841 = vmatprep.subr.mxu0 0.0
    %1842 = vmatpush1.msra.mxu0 0.0
    %1843 = vmatprep.subr.mxu0 0.0
    %1844 = vmatpush1.msra.mxu0 0.0
    %1845 = vmatprep.subr.mxu0 0.0
    %1846 = vmatpush1.msra.mxu0 0.0
    %1847 = vmatprep.subr.mxu0 0.0
    %1848 = vmatpush1.msra.mxu0 0.0
    %1849 = vmatprep.subr.mxu0 0.0
    %1850 = vmatpush1.msra.mxu0 0.0
    %1851 = vmatprep.subr.mxu0 0.0
    %1852 = vmatpush1.msra.mxu0 0.0
    %1853 = vmatprep.subr.mxu0 0.0
    %1854 = vmatpush1.msra.mxu0 0.0
    %1855 = vmatprep.subr.mxu0 0.0
    %1856 = vmatpush1.msra.mxu0 0.0
    %1857 = vmatprep.subr.mxu0 0.0
    %1858 = vmatpush1.msra.mxu0 0.0
    %1859 = vmatprep.subr.mxu0 0.0
    %1860 = vmatpush1.msra.mxu0 0.0
    %1861 = vmatprep.subr.mxu0 0.0
    %1862 = vmatpush1.msra.mxu0 0.0
    %1863 = vmatprep.subr.mxu0 0.0
    %1864 = vmatpush1.msra.mxu0 0.0
    %1865 = vmatprep.subr.mxu0 0.0
    %1866 = vmatpush1.msra.mxu0 0.0
    %1867 = vmatprep.subr.mxu0 0.0
    %1868 = vmatpush1.msra.mxu0 0.0
    %1869 = vmatprep.subr.mxu0 0.0
    %1870 = vmatpush1.msra.mxu0 0.0
    %1871 = vmatprep.subr.mxu0 0.0
    %1872 = vmatpush1.msra.mxu0 0.0
    %1873 = vmatprep.subr.mxu0 0.0
    %1874 = vmatpush1.msra.mxu0 0.0
    %1875 = vmatprep.subr.mxu0 0.0
    %1876 = vmatpush1.msra.mxu0 0.0
    %1877 = vmatprep.subr.mxu0 0.0
    %1878 = vmatpush1.msra.mxu0 0.0
    %1879 = vmatprep.subr.mxu0 0.0
    %1880 = vmatpush1.msra.mxu0 0.0
    %1881 = vmatprep.subr.mxu0 0.0
    %1882 = vmatpush1.msra.mxu0 0.0
    %1883 = vmatprep.mubr.f32.mxu0 0.0
    %1884 = vmatmul.mubr.f32.gmra.mrb[0].mxu0 %v1490
    %v1885 = vpop.f32.mrb[0].mxu0
    %v1886 = vadd.f32 %v426, %v1885
    %v1887 = vpop.f32.mrb[0].mxu0
    %1888 = vdwg.mxu0
    %v1889 = vmul.f32 %v1731, %v1886
    %v1890 = vadd.f32 %v1814, %v1889
    %v1891 = vtanh.pop %v1890
    %v1892 = vsub.f32 1.0, %v1813
    %v1893 = vmul.f32 %v1892, %v1891
    %v1894 = vmul.f32 %v1813, %v1308
    %v1895 = vadd.f32 %v1893, %v1894
    %v1896 = vsel %vm1649, 1, 0
    %1897 = vset.pattern.permute.xlu0 0
    %1898 = vperm.xlu0 %1897, %v1896
    %v1899 = vpop.permute.xlu0 %1898
    %vm1900 = vcmp.eq.s32.totalorder %v1899, 1
    %v1901 = vsel %vm1900, %v1895, %v1308
    %1903 = vrot.lane.b32.xlu0 %v1645, 32
    %v1904 = vpop.permute.xlu0 %1903
    %v1906 = vsel %vm465, %v1901, %v1904
    %v1907 = vld [vmem:[%s13] sm:$0xff]
    %v1908 = vld [vmem:[%s13 + $0x8] sm:$0xff]
    %v1909 = vld [vmem:[%s13 + $0x10] sm:$0xff]
    %v1910 = vld [vmem:[%s13 + $0x18] sm:$0xff]
    %v1911 = vld [vmem:[%s13 + $0x20] sm:$0xff]
    %v1912 = vld [vmem:[%s13 + $0x28] sm:$0xff]
    %v1913 = vld [vmem:[%s13 + $0x30] sm:$0xff]
    %v1914 = vld [vmem:[%s13 + $0x38] sm:$0xff]
    %v1916 = vsel %vm729, %v1906, 0
    %1918 = vmatprep.subr.mxu0 0.0
    %1919 = vmatpush1.msra.mxu0 %v1907
    %1920 = vmatprep.subr.mxu0 0.0
    %1921 = vmatpush1.msra.mxu0 %v1908
    %1922 = vmatprep.subr.mxu0 0.0
    %1923 = vmatpush1.msra.mxu0 %v1909
    %1924 = vmatprep.subr.mxu0 0.0
    %1925 = vmatpush1.msra.mxu0 %v1910
    %1926 = vmatprep.subr.mxu0 0.0
    %1927 = vmatpush1.msra.mxu0 %v1911
    %1928 = vmatprep.subr.mxu0 0.0
    %1929 = vmatpush1.msra.mxu0 %v1912
    %1930 = vmatprep.subr.mxu0 0.0
    %1931 = vmatpush1.msra.mxu0 %v1913
    %1932 = vmatprep.subr.mxu0 0.0
    %1933 = vmatpush1.msra.mxu0 %v1914
    %1934 = vmatprep.subr.mxu0 0.0
    %1935 = vmatpush1.msra.mxu0 0.0
    %1936 = vmatprep.subr.mxu0 0.0
    %1937 = vmatpush1.msra.mxu0 0.0
    %1938 = vmatprep.subr.mxu0 0.0
    %1939 = vmatpush1.msra.mxu0 0.0
    %1940 = vmatprep.subr.mxu0 0.0
    %1941 = vmatpush1.msra.mxu0 0.0
    %1942 = vmatprep.subr.mxu0 0.0
    %1943 = vmatpush1.msra.mxu0 0.0
    %1944 = vmatprep.subr.mxu0 0.0
    %1945 = vmatpush1.msra.mxu0 0.0
    %1946 = vmatprep.subr.mxu0 0.0
    %1947 = vmatpush1.msra.mxu0 0.0
    %1948 = vmatprep.subr.mxu0 0.0
    %1949 = vmatpush1.msra.mxu0 0.0
    %1950 = vmatprep.subr.mxu0 0.0
    %1951 = vmatpush1.msra.mxu0 0.0
    %1952 = vmatprep.subr.mxu0 0.0
    %1953 = vmatpush1.msra.mxu0 0.0
    %1954 = vmatprep.subr.mxu0 0.0
    %1955 = vmatpush1.msra.mxu0 0.0
    %1956 = vmatprep.subr.mxu0 0.0
    %1957 = vmatpush1.msra.mxu0 0.0
    %1958 = vmatprep.subr.mxu0 0.0
    %1959 = vmatpush1.msra.mxu0 0.0
    %1960 = vmatprep.subr.mxu0 0.0
    %1961 = vmatpush1.msra.mxu0 0.0
    %1962 = vmatprep.subr.mxu0 0.0
    %1963 = vmatpush1.msra.mxu0 0.0
    %1964 = vmatprep.subr.mxu0 0.0
    %1965 = vmatpush1.msra.mxu0 0.0
    %1966 = vmatprep.subr.mxu0 0.0
    %1967 = vmatpush1.msra.mxu0 0.0
    %1968 = vmatprep.subr.mxu0 0.0
    %1969 = vmatpush1.msra.mxu0 0.0
    %1970 = vmatprep.subr.mxu0 0.0
    %1971 = vmatpush1.msra.mxu0 0.0
    %1972 = vmatprep.subr.mxu0 0.0
    %1973 = vmatpush1.msra.mxu0 0.0
    %1974 = vmatprep.subr.mxu0 0.0
    %1975 = vmatpush1.msra.mxu0 0.0
    %1976 = vmatprep.subr.mxu0 0.0
    %1977 = vmatpush1.msra.mxu0 0.0
    %1978 = vmatprep.subr.mxu0 0.0
    %1979 = vmatpush1.msra.mxu0 0.0
    %1980 = vmatprep.subr.mxu0 0.0
    %1981 = vmatpush1.msra.mxu0 0.0
    %1982 = vmatprep.mubr.f32.mxu0 0.0
    %1983 = vmatmul.mubr.f32.gmra.mrb[0].mxu0 %v1916
    %v1984 = vpop.f32.mrb[0].mxu0
    %v1985 = vadd.f32 %v433, %v1984
    %v1986 = vpop.f32.mrb[0].mxu0
    %1987 = vdwg.mxu0
    %v1988 = vxor.u32 %v1985, 2147483648
    %v1989 = vmul.f32 %v1988, 1.442695
    %v1990 = vpow.pop %v1989
    %v1991 = vadd.f32 %v1990, 1.0
    %v1992 = vrcp.pop %v1991
    %v1993 = vmul.f32 1.0, %v1992
    %v1994 = vld [vmem:[%s14] sm:$0xff]
    %v1995 = vld [vmem:[%s14 + $0x8] sm:$0xff]
    %v1996 = vld [vmem:[%s14 + $0x10] sm:$0xff]
    %v1997 = vld [vmem:[%s14 + $0x18] sm:$0xff]
    %v1998 = vld [vmem:[%s14 + $0x20] sm:$0xff]
    %v1999 = vld [vmem:[%s14 + $0x28] sm:$0xff]
    %v2000 = vld [vmem:[%s14 + $0x30] sm:$0xff]
    %v2001 = vld [vmem:[%s14 + $0x38] sm:$0xff]
    %2002 = vmatprep.subr.mxu0 0.0
    %2003 = vmatpush1.msra.mxu0 %v1994
    %2004 = vmatprep.subr.mxu0 0.0
    %2005 = vmatpush1.msra.mxu0 %v1995
    %2006 = vmatprep.subr.mxu0 0.0
    %2007 = vmatpush1.msra.mxu0 %v1996
    %2008 = vmatprep.subr.mxu0 0.0
    %2009 = vmatpush1.msra.mxu0 %v1997
    %2010 = vmatprep.subr.mxu0 0.0
    %2011 = vmatpush1.msra.mxu0 %v1998
    %2012 = vmatprep.subr.mxu0 0.0
    %2013 = vmatpush1.msra.mxu0 %v1999
    %2014 = vmatprep.subr.mxu0 0.0
    %2015 = vmatpush1.msra.mxu0 %v2000
    %2016 = vmatprep.subr.mxu0 0.0
    %2017 = vmatpush1.msra.mxu0 %v2001
    %2018 = vmatprep.subr.mxu0 0.0
    %2019 = vmatpush1.msra.mxu0 0.0
    %2020 = vmatprep.subr.mxu0 0.0
    %2021 = vmatpush1.msra.mxu0 0.0
    %2022 = vmatprep.subr.mxu0 0.0
    %2023 = vmatpush1.msra.mxu0 0.0
    %2024 = vmatprep.subr.mxu0 0.0
    %2025 = vmatpush1.msra.mxu0 0.0
    %2026 = vmatprep.subr.mxu0 0.0
    %2027 = vmatpush1.msra.mxu0 0.0
    %2028 = vmatprep.subr.mxu0 0.0
    %2029 = vmatpush1.msra.mxu0 0.0
    %2030 = vmatprep.subr.mxu0 0.0
    %2031 = vmatpush1.msra.mxu0 0.0
    %2032 = vmatprep.subr.mxu0 0.0
    %2033 = vmatpush1.msra.mxu0 0.0
    %2034 = vmatprep.subr.mxu0 0.0
    %2035 = vmatpush1.msra.mxu0 0.0
    %2036 = vmatprep.subr.mxu0 0.0
    %2037 = vmatpush1.msra.mxu0 0.0
    %2038 = vmatprep.subr.mxu0 0.0
    %2039 = vmatpush1.msra.mxu0 0.0
    %2040 = vmatprep.subr.mxu0 0.0
    %2041 = vmatpush1.msra.mxu0 0.0
    %2042 = vmatprep.subr.mxu0 0.0
    %2043 = vmatpush1.msra.mxu0 0.0
    %2044 = vmatprep.subr.mxu0 0.0
    %2045 = vmatpush1.msra.mxu0 0.0
    %2046 = vmatprep.subr.mxu0 0.0
    %2047 = vmatpush1.msra.mxu0 0.0
    %2048 = vmatprep.subr.mxu0 0.0
    %2049 = vmatpush1.msra.mxu0 0.0
    %2050 = vmatprep.subr.mxu0 0.0
    %2051 = vmatpush1.msra.mxu0 0.0
    %2052 = vmatprep.subr.mxu0 0.0
    %2053 = vmatpush1.msra.mxu0 0.0
    %2054 = vmatprep.subr.mxu0 0.0
    %2055 = vmatpush1.msra.mxu0 0.0
    %2056 = vmatprep.subr.mxu0 0.0
    %2057 = vmatpush1.msra.mxu0 0.0
    %2058 = vmatprep.subr.mxu0 0.0
    %2059 = vmatpush1.msra.mxu0 0.0
    %2060 = vmatprep.subr.mxu0 0.0
    %2061 = vmatpush1.msra.mxu0 0.0
    %2062 = vmatprep.subr.mxu0 0.0
    %2063 = vmatpush1.msra.mxu0 0.0
    %2064 = vmatprep.subr.mxu0 0.0
    %2065 = vmatpush1.msra.mxu0 0.0
    %2066 = vmatprep.mubr.f32.mxu0 0.0
    %2067 = vmatmul.mubr.f32.gmra.mrb[0].mxu0 %v1916
    %v2068 = vpop.f32.mrb[0].mxu0
    %v2069 = vadd.f32 %v440, %v2068
    %v2070 = vpop.f32.mrb[0].mxu0
    %2071 = vdwg.mxu0
    %v2072 = vxor.u32 %v2069, 2147483648
    %v2073 = vmul.f32 %v2072, 1.442695
    %v2074 = vpow.pop %v2073
    %v2075 = vadd.f32 %v2074, 1.0
    %v2076 = vrcp.pop %v2075
    %v2077 = vmul.f32 1.0, %v2076
    %v2078 = vld [vmem:[%s17] sm:$0xff]
    %v2079 = vld [vmem:[%s17 + $0x8] sm:$0xff]
    %v2080 = vld [vmem:[%s17 + $0x10] sm:$0xff]
    %v2081 = vld [vmem:[%s17 + $0x18] sm:$0xff]
    %v2083 = vsel %vm465, %v1901, 0
    %2085 = vmatprep.subr.mxu0 0.0
    %2086 = vmatpush1.msra.mxu0 %v2078
    %2087 = vmatprep.subr.mxu0 0.0
    %2088 = vmatpush1.msra.mxu0 %v2079
    %2089 = vmatprep.subr.mxu0 0.0
    %2090 = vmatpush1.msra.mxu0 %v2080
    %2091 = vmatprep.subr.mxu0 0.0
    %2092 = vmatpush1.msra.mxu0 %v2081
    %2093 = vmatprep.subr.mxu0 0.0
    %2094 = vmatpush1.msra.mxu0 0.0
    %2095 = vmatprep.subr.mxu0 0.0
    %2096 = vmatpush1.msra.mxu0 0.0
    %2097 = vmatprep.subr.mxu0 0.0
    %2098 = vmatpush1.msra.mxu0 0.0
    %2099 = vmatprep.subr.mxu0 0.0
    %2100 = vmatpush1.msra.mxu0 0.0
    %2101 = vmatprep.subr.mxu0 0.0
    %2102 = vmatpush1.msra.mxu0 0.0
    %2103 = vmatprep.subr.mxu0 0.0
    %2104 = vmatpush1.msra.mxu0 0.0
    %2105 = vmatprep.subr.mxu0 0.0
    %2106 = vmatpush1.msra.mxu0 0.0
    %2107 = vmatprep.subr.mxu0 0.0
    %2108 = vmatpush1.msra.mxu0 0.0
    %2109 = vmatprep.subr.mxu0 0.0
    %2110 = vmatpush1.msra.mxu0 0.0
    %2111 = vmatprep.subr.mxu0 0.0
    %2112 = vmatpush1.msra.mxu0 0.0
    %2113 = vmatprep.subr.mxu0 0.0
    %2114 = vmatpush1.msra.mxu0 0.0
    %2115 = vmatprep.subr.mxu0 0.0
    %2116 = vmatpush1.msra.mxu0 0.0
    %2117 = vmatprep.subr.mxu0 0.0
    %2118 = vmatpush1.msra.mxu0 0.0
    %2119 = vmatprep.subr.mxu0 0.0
    %2120 = vmatpush1.msra.mxu0 0.0
    %2121 = vmatprep.subr.mxu0 0.0
    %2122 = vmatpush1.msra.mxu0 0.0
    %2123 = vmatprep.subr.mxu0 0.0
    %2124 = vmatpush1.msra.mxu0 0.0
    %2125 = vmatprep.subr.mxu0 0.0
    %2126 = vmatpush1.msra.mxu0 0.0
    %2127 = vmatprep.subr.mxu0 0.0
    %2128 = vmatpush1.msra.mxu0 0.0
    %2129 = vmatprep.subr.mxu0 0.0
    %2130 = vmatpush1.msra.mxu0 0.0
    %2131 = vmatprep.subr.mxu0 0.0
    %2132 = vmatpush1.msra.mxu0 0.0
    %2133 = vmatprep.subr.mxu0 0.0
    %2134 = vmatpush1.msra.mxu0 0.0
    %2135 = vmatprep.subr.mxu0 0.0
    %2136 = vmatpush1.msra.mxu0 0.0
    %2137 = vmatprep.subr.mxu0 0.0
    %2138 = vmatpush1.msra.mxu0 0.0
    %2139 = vmatprep.subr.mxu0 0.0
    %2140 = vmatpush1.msra.mxu0 0.0
    %2141 = vmatprep.subr.mxu0 0.0
    %2142 = vmatpush1.msra.mxu0 0.0
    %2143 = vmatprep.subr.mxu0 0.0
    %2144 = vmatpush1.msra.mxu0 0.0
    %2145 = vmatprep.subr.mxu0 0.0
    %2146 = vmatpush1.msra.mxu0 0.0
    %2147 = vmatprep.subr.mxu0 0.0
    %2148 = vmatpush1.msra.mxu0 0.0
    %2149 = vmatprep.mubr.f32.mxu0 0.0
    %2150 = vmatmul.mubr.f32.gmra.mrb[0].mxu0 %v2083
    %v2151 = vpop.f32.mrb[0].mxu0
    %v2152 = vadd.f32 %v447, %v2151
    %v2153 = vpop.f32.mrb[0].mxu0
    %2154 = vdwg.mxu0
    %v2155 = vld [vmem:[%s18] sm:$0xff]
    %v2156 = vld [vmem:[%s18 + $0x8] sm:$0xff]
    %v2157 = vld [vmem:[%s18 + $0x10] sm:$0xff]
    %v2158 = vld [vmem:[%s18 + $0x18] sm:$0xff]
    %v2159 = vsel %vm465, %v1645, 0
    %2161 = vmatprep.subr.mxu0 0.0
    %2162 = vmatpush1.msra.mxu0 %v2155
    %2163 = vmatprep.subr.mxu0 0.0
    %2164 = vmatpush1.msra.mxu0 %v2156
    %2165 = vmatprep.subr.mxu0 0.0
    %2166 = vmatpush1.msra.mxu0 %v2157
    %2167 = vmatprep.subr.mxu0 0.0
    %2168 = vmatpush1.msra.mxu0 %v2158
    %2169 = vmatprep.subr.mxu0 0.0
    %2170 = vmatpush1.msra.mxu0 0.0
    %2171 = vmatprep.subr.mxu0 0.0
    %2172 = vmatpush1.msra.mxu0 0.0
    %2173 = vmatprep.subr.mxu0 0.0
    %2174 = vmatpush1.msra.mxu0 0.0
    %2175 = vmatprep.subr.mxu0 0.0
    %2176 = vmatpush1.msra.mxu0 0.0
    %2177 = vmatprep.subr.mxu0 0.0
    %2178 = vmatpush1.msra.mxu0 0.0
    %2179 = vmatprep.subr.mxu0 0.0
    %2180 = vmatpush1.msra.mxu0 0.0
    %2181 = vmatprep.subr.mxu0 0.0
    %2182 = vmatpush1.msra.mxu0 0.0
    %2183 = vmatprep.subr.mxu0 0.0
    %2184 = vmatpush1.msra.mxu0 0.0
    %2185 = vmatprep.subr.mxu0 0.0
    %2186 = vmatpush1.msra.mxu0 0.0
    %2187 = vmatprep.subr.mxu0 0.0
    %2188 = vmatpush1.msra.mxu0 0.0
    %2189 = vmatprep.subr.mxu0 0.0
    %2190 = vmatpush1.msra.mxu0 0.0
    %2191 = vmatprep.subr.mxu0 0.0
    %2192 = vmatpush1.msra.mxu0 0.0
    %2193 = vmatprep.subr.mxu0 0.0
    %2194 = vmatpush1.msra.mxu0 0.0
    %2195 = vmatprep.subr.mxu0 0.0
    %2196 = vmatpush1.msra.mxu0 0.0
    %2197 = vmatprep.subr.mxu0 0.0
    %2198 = vmatpush1.msra.mxu0 0.0
    %2199 = vmatprep.subr.mxu0 0.0
    %2200 = vmatpush1.msra.mxu0 0.0
    %2201 = vmatprep.subr.mxu0 0.0
    %2202 = vmatpush1.msra.mxu0 0.0
    %2203 = vmatprep.subr.mxu0 0.0
    %2204 = vmatpush1.msra.mxu0 0.0
    %2205 = vmatprep.subr.mxu0 0.0
    %2206 = vmatpush1.msra.mxu0 0.0
    %2207 = vmatprep.subr.mxu0 0.0
    %2208 = vmatpush1.msra.mxu0 0.0
    %2209 = vmatprep.subr.mxu0 0.0
    %2210 = vmatpush1.msra.mxu0 0.0
    %2211 = vmatprep.subr.mxu0 0.0
    %2212 = vmatpush1.msra.mxu0 0.0
    %2213 = vmatprep.subr.mxu0 0.0
    %2214 = vmatpush1.msra.mxu0 0.0
    %2215 = vmatprep.subr.mxu0 0.0
    %2216 = vmatpush1.msra.mxu0 0.0
    %2217 = vmatprep.subr.mxu0 0.0
    %2218 = vmatpush1.msra.mxu0 0.0
    %2219 = vmatprep.subr.mxu0 0.0
    %2220 = vmatpush1.msra.mxu0 0.0
    %2221 = vmatprep.subr.mxu0 0.0
    %2222 = vmatpush1.msra.mxu0 0.0
    %2223 = vmatprep.subr.mxu0 0.0
    %2224 = vmatpush1.msra.mxu0 0.0
    %2225 = vmatprep.mubr.f32.mxu0 0.0
    %2226 = vmatmul.mubr.f32.gmra.mrb[0].mxu0 %v2159
    %v2227 = vpop.f32.mrb[0].mxu0
    %v2228 = vadd.f32 %v454, %v2227
    %v2229 = vpop.f32.mrb[0].mxu0
    %2230 = vdwg.mxu0
    %v2231 = vmul.f32 %v1993, %v2228
    %v2232 = vadd.f32 %v2152, %v2231
    %v2233 = vtanh.pop %v2232
    %v2234 = vsub.f32 1.0, %v2077
    %v2235 = vmul.f32 %v2234, %v2233
    %v2236 = vmul.f32 %v2077, %v1645
    %v2237 = vadd.f32 %v2235, %v2236
    %v2238 = vsel %vm1900, %v2237, %v1645
    %v2239 = vsel %vm1900, %v2237, 0.0
    %s2240 = scalar_lea.vmem [#allocation5], 8
    %2241 = vst.msk [vmem:[%s2240] sm:$0xf] %vm373, %v2239
    %vm2242 = vcmp.gt.s32.totalorder %v420, 3
    %v2243 = vld [vmem:[%s390] sm:$0xf]
    %v2244 = vld [vmem:[%s9] sm:$0xff]
    %v2245 = vld [vmem:[%s9 + $0x8] sm:$0xff]
    %v2246 = vld [vmem:[%s9 + $0x10] sm:$0xff]
    %v2247 = vld [vmem:[%s9 + $0x18] sm:$0xff]
    %2248 = vmatprep.subr.mxu0 0.0
    %2249 = vmatpush1.msra.mxu0 %v2244
    %2250 = vmatprep.subr.mxu0 0.0
    %2251 = vmatpush1.msra.mxu0 %v2245
    %2252 = vmatprep.subr.mxu0 0.0
    %2253 = vmatpush1.msra.mxu0 %v2246
    %2254 = vmatprep.subr.mxu0 0.0
    %2255 = vmatpush1.msra.mxu0 %v2247
    %2256 = vmatprep.subr.mxu0 0.0
    %2257 = vmatpush1.msra.mxu0 0.0
    %2258 = vmatprep.subr.mxu0 0.0
    %2259 = vmatpush1.msra.mxu0 0.0
    %2260 = vmatprep.subr.mxu0 0.0
    %2261 = vmatpush1.msra.mxu0 0.0
    %2262 = vmatprep.subr.mxu0 0.0
    %2263 = vmatpush1.msra.mxu0 0.0
    %2264 = vmatprep.subr.mxu0 0.0
    %2265 = vmatpush1.msra.mxu0 0.0
    %2266 = vmatprep.subr.mxu0 0.0
    %2267 = vmatpush1.msra.mxu0 0.0
    %2268 = vmatprep.subr.mxu0 0.0
    %2269 = vmatpush1.msra.mxu0 0.0
    %2270 = vmatprep.subr.mxu0 0.0
    %2271 = vmatpush1.msra.mxu0 0.0
    %2272 = vmatprep.subr.mxu0 0.0
    %2273 = vmatpush1.msra.mxu0 0.0
    %2274 = vmatprep.subr.mxu0 0.0
    %2275 = vmatpush1.msra.mxu0 0.0
    %2276 = vmatprep.subr.mxu0 0.0
    %2277 = vmatpush1.msra.mxu0 0.0
    %2278 = vmatprep.subr.mxu0 0.0
    %2279 = vmatpush1.msra.mxu0 0.0
    %2280 = vmatprep.subr.mxu0 0.0
    %2281 = vmatpush1.msra.mxu0 0.0
    %2282 = vmatprep.subr.mxu0 0.0
    %2283 = vmatpush1.msra.mxu0 0.0
    %2284 = vmatprep.subr.mxu0 0.0
    %2285 = vmatpush1.msra.mxu0 0.0
    %2286 = vmatprep.subr.mxu0 0.0
    %2287 = vmatpush1.msra.mxu0 0.0
    %2288 = vmatprep.subr.mxu0 0.0
    %2289 = vmatpush1.msra.mxu0 0.0
    %2290 = vmatprep.subr.mxu0 0.0
    %2291 = vmatpush1.msra.mxu0 0.0
    %2292 = vmatprep.subr.mxu0 0.0
    %2293 = vmatpush1.msra.mxu0 0.0
    %2294 = vmatprep.subr.mxu0 0.0
    %2295 = vmatpush1.msra.mxu0 0.0
    %2296 = vmatprep.subr.mxu0 0.0
    %2297 = vmatpush1.msra.mxu0 0.0
    %2298 = vmatprep.subr.mxu0 0.0
    %2299 = vmatpush1.msra.mxu0 0.0
    %2300 = vmatprep.subr.mxu0 0.0
    %2301 = vmatpush1.msra.mxu0 0.0
    %2302 = vmatprep.subr.mxu0 0.0
    %2303 = vmatpush1.msra.mxu0 0.0
    %2304 = vmatprep.subr.mxu0 0.0
    %2305 = vmatpush1.msra.mxu0 0.0
    %2306 = vmatprep.subr.mxu0 0.0
    %2307 = vmatpush1.msra.mxu0 0.0
    %2308 = vmatprep.subr.mxu0 0.0
    %2309 = vmatpush1.msra.mxu0 0.0
    %2310 = vmatprep.subr.mxu0 0.0
    %2311 = vmatpush1.msra.mxu0 0.0
    %2312 = vmatprep.mubr.f32.mxu0 0.0
    %2313 = vmatmul.mubr.f32.gmra.mrb[0].mxu0 %v2083
    %v2314 = vpop.f32.mrb[0].mxu0
    %v2315 = vadd.f32 0.0, %v2314
    %v2316 = vpop.f32.mrb[0].mxu0
    %2317 = vdwg.mxu0
    %v2318 = vadd.f32 %v2243, %v2315
    %v2319 = vxor.u32 %v2318, 2147483648
    %v2320 = vmul.f32 %v2319, 1.442695
    %v2321 = vpow.pop %v2320
    %v2322 = vadd.f32 %v2321, 1.0
    %v2323 = vrcp.pop %v2322
    %v2324 = vmul.f32 1.0, %v2323
    %v2325 = vld [vmem:[%s392] sm:$0xf]
    %v2326 = vld [vmem:[%s10] sm:$0xff]
    %v2327 = vld [vmem:[%s10 + $0x8] sm:$0xff]
    %v2328 = vld [vmem:[%s10 + $0x10] sm:$0xff]
    %v2329 = vld [vmem:[%s10 + $0x18] sm:$0xff]
    %2330 = vmatprep.subr.mxu0 0.0
    %2331 = vmatpush1.msra.mxu0 %v2326
    %2332 = vmatprep.subr.mxu0 0.0
    %2333 = vmatpush1.msra.mxu0 %v2327
    %2334 = vmatprep.subr.mxu0 0.0
    %2335 = vmatpush1.msra.mxu0 %v2328
    %2336 = vmatprep.subr.mxu0 0.0
    %2337 = vmatpush1.msra.mxu0 %v2329
    %2338 = vmatprep.subr.mxu0 0.0
    %2339 = vmatpush1.msra.mxu0 0.0
    %2340 = vmatprep.subr.mxu0 0.0
    %2341 = vmatpush1.msra.mxu0 0.0
    %2342 = vmatprep.subr.mxu0 0.0
    %2343 = vmatpush1.msra.mxu0 0.0
    %2344 = vmatprep.subr.mxu0 0.0
    %2345 = vmatpush1.msra.mxu0 0.0
    %2346 = vmatprep.subr.mxu0 0.0
    %2347 = vmatpush1.msra.mxu0 0.0
    %2348 = vmatprep.subr.mxu0 0.0
    %2349 = vmatpush1.msra.mxu0 0.0
    %2350 = vmatprep.subr.mxu0 0.0
    %2351 = vmatpush1.msra.mxu0 0.0
    %2352 = vmatprep.subr.mxu0 0.0
    %2353 = vmatpush1.msra.mxu0 0.0
    %2354 = vmatprep.subr.mxu0 0.0
    %2355 = vmatpush1.msra.mxu0 0.0
    %2356 = vmatprep.subr.mxu0 0.0
    %2357 = vmatpush1.msra.mxu0 0.0
    %2358 = vmatprep.subr.mxu0 0.0
    %2359 = vmatpush1.msra.mxu0 0.0
    %2360 = vmatprep.subr.mxu0 0.0
    %2361 = vmatpush1.msra.mxu0 0.0
    %2362 = vmatprep.subr.mxu0 0.0
    %2363 = vmatpush1.msra.mxu0 0.0
    %2364 = vmatprep.subr.mxu0 0.0
    %2365 = vmatpush1.msra.mxu0 0.0
    %2366 = vmatprep.subr.mxu0 0.0
    %2367 = vmatpush1.msra.mxu0 0.0
    %2368 = vmatprep.subr.mxu0 0.0
    %2369 = vmatpush1.msra.mxu0 0.0
    %2370 = vmatprep.subr.mxu0 0.0
    %2371 = vmatpush1.msra.mxu0 0.0
    %2372 = vmatprep.subr.mxu0 0.0
    %2373 = vmatpush1.msra.mxu0 0.0
    %2374 = vmatprep.subr.mxu0 0.0
    %2375 = vmatpush1.msra.mxu0 0.0
    %2376 = vmatprep.subr.mxu0 0.0
    %2377 = vmatpush1.msra.mxu0 0.0
    %2378 = vmatprep.subr.mxu0 0.0
    %2379 = vmatpush1.msra.mxu0 0.0
    %2380 = vmatprep.subr.mxu0 0.0
    %2381 = vmatpush1.msra.mxu0 0.0
    %2382 = vmatprep.subr.mxu0 0.0
    %2383 = vmatpush1.msra.mxu0 0.0
    %2384 = vmatprep.subr.mxu0 0.0
    %2385 = vmatpush1.msra.mxu0 0.0
    %2386 = vmatprep.subr.mxu0 0.0
    %2387 = vmatpush1.msra.mxu0 0.0
    %2388 = vmatprep.subr.mxu0 0.0
    %2389 = vmatpush1.msra.mxu0 0.0
    %2390 = vmatprep.subr.mxu0 0.0
    %2391 = vmatpush1.msra.mxu0 0.0
    %2392 = vmatprep.subr.mxu0 0.0
    %2393 = vmatpush1.msra.mxu0 0.0
    %2394 = vmatprep.mubr.f32.mxu0 0.0
    %2395 = vmatmul.mubr.f32.gmra.mrb[0].mxu0 %v2083
    %v2396 = vpop.f32.mrb[0].mxu0
    %v2397 = vadd.f32 0.0, %v2396
    %v2398 = vpop.f32.mrb[0].mxu0
    %2399 = vdwg.mxu0
    %v2400 = vadd.f32 %v2325, %v2397
    %v2401 = vxor.u32 %v2400, 2147483648
    %v2402 = vmul.f32 %v2401, 1.442695
    %v2403 = vpow.pop %v2402
    %v2404 = vadd.f32 %v2403, 1.0
    %v2405 = vrcp.pop %v2404
    %v2406 = vmul.f32 1.0, %v2405
    %v2407 = vld [vmem:[%s394] sm:$0xf]
    %v2408 = vld [vmem:[%s11] sm:$0xff]
    %v2409 = vld [vmem:[%s11 + $0x8] sm:$0xff]
    %v2410 = vld [vmem:[%s11 + $0x10] sm:$0xff]
    %v2411 = vld [vmem:[%s11 + $0x18] sm:$0xff]
    %2412 = vmatprep.subr.mxu0 0.0
    %2413 = vmatpush1.msra.mxu0 %v2408
    %2414 = vmatprep.subr.mxu0 0.0
    %2415 = vmatpush1.msra.mxu0 %v2409
    %2416 = vmatprep.subr.mxu0 0.0
    %2417 = vmatpush1.msra.mxu0 %v2410
    %2418 = vmatprep.subr.mxu0 0.0
    %2419 = vmatpush1.msra.mxu0 %v2411
    %2420 = vmatprep.subr.mxu0 0.0
    %2421 = vmatpush1.msra.mxu0 0.0
    %2422 = vmatprep.subr.mxu0 0.0
    %2423 = vmatpush1.msra.mxu0 0.0
    %2424 = vmatprep.subr.mxu0 0.0
    %2425 = vmatpush1.msra.mxu0 0.0
    %2426 = vmatprep.subr.mxu0 0.0
    %2427 = vmatpush1.msra.mxu0 0.0
    %2428 = vmatprep.subr.mxu0 0.0
    %2429 = vmatpush1.msra.mxu0 0.0
    %2430 = vmatprep.subr.mxu0 0.0
    %2431 = vmatpush1.msra.mxu0 0.0
    %2432 = vmatprep.subr.mxu0 0.0
    %2433 = vmatpush1.msra.mxu0 0.0
    %2434 = vmatprep.subr.mxu0 0.0
    %2435 = vmatpush1.msra.mxu0 0.0
    %2436 = vmatprep.subr.mxu0 0.0
    %2437 = vmatpush1.msra.mxu0 0.0
    %2438 = vmatprep.subr.mxu0 0.0
    %2439 = vmatpush1.msra.mxu0 0.0
    %2440 = vmatprep.subr.mxu0 0.0
    %2441 = vmatpush1.msra.mxu0 0.0
    %2442 = vmatprep.subr.mxu0 0.0
    %2443 = vmatpush1.msra.mxu0 0.0
    %2444 = vmatprep.subr.mxu0 0.0
    %2445 = vmatpush1.msra.mxu0 0.0
    %2446 = vmatprep.subr.mxu0 0.0
    %2447 = vmatpush1.msra.mxu0 0.0
    %2448 = vmatprep.subr.mxu0 0.0
    %2449 = vmatpush1.msra.mxu0 0.0
    %2450 = vmatprep.subr.mxu0 0.0
    %2451 = vmatpush1.msra.mxu0 0.0
    %2452 = vmatprep.subr.mxu0 0.0
    %2453 = vmatpush1.msra.mxu0 0.0
    %2454 = vmatprep.subr.mxu0 0.0
    %2455 = vmatpush1.msra.mxu0 0.0
    %2456 = vmatprep.subr.mxu0 0.0
    %2457 = vmatpush1.msra.mxu0 0.0
    %2458 = vmatprep.subr.mxu0 0.0
    %2459 = vmatpush1.msra.mxu0 0.0
    %2460 = vmatprep.subr.mxu0 0.0
    %2461 = vmatpush1.msra.mxu0 0.0
    %2462 = vmatprep.subr.mxu0 0.0
    %2463 = vmatpush1.msra.mxu0 0.0
    %2464 = vmatprep.subr.mxu0 0.0
    %2465 = vmatpush1.msra.mxu0 0.0
    %2466 = vmatprep.subr.mxu0 0.0
    %2467 = vmatpush1.msra.mxu0 0.0
    %2468 = vmatprep.subr.mxu0 0.0
    %2469 = vmatpush1.msra.mxu0 0.0
    %2470 = vmatprep.subr.mxu0 0.0
    %2471 = vmatpush1.msra.mxu0 0.0
    %2472 = vmatprep.subr.mxu0 0.0
    %2473 = vmatpush1.msra.mxu0 0.0
    %2474 = vmatprep.subr.mxu0 0.0
    %2475 = vmatpush1.msra.mxu0 0.0
    %2476 = vmatprep.mubr.f32.mxu0 0.0
    %2477 = vmatmul.mubr.f32.gmra.mrb[0].mxu0 %v2083
    %v2478 = vpop.f32.mrb[0].mxu0
    %v2479 = vadd.f32 %v426, %v2478
    %v2480 = vpop.f32.mrb[0].mxu0
    %2481 = vdwg.mxu0
    %v2482 = vmul.f32 %v2324, %v2479
    %v2483 = vadd.f32 %v2407, %v2482
    %v2484 = vtanh.pop %v2483
    %v2485 = vsub.f32 1.0, %v2406
    %v2486 = vmul.f32 %v2485, %v2484
    %v2487 = vmul.f32 %v2406, %v1901
    %v2488 = vadd.f32 %v2486, %v2487
    %v2489 = vsel %vm2242, 1, 0
    %2490 = vset.pattern.permute.xlu0 0
    %2491 = vperm.xlu0 %2490, %v2489
    %v2492 = vpop.permute.xlu0 %2491
    %vm2493 = vcmp.eq.s32.totalorder %v2492, 1
    %v2494 = vsel %vm2493, %v2488, %v1901
    %2496 = vrot.lane.b32.xlu0 %v2238, 32
    %v2497 = vpop.permute.xlu0 %2496
    %v2499 = vsel %vm465, %v2494, %v2497
    %v2500 = vld [vmem:[%s13] sm:$0xff]
    %v2501 = vld [vmem:[%s13 + $0x8] sm:$0xff]
    %v2502 = vld [vmem:[%s13 + $0x10] sm:$0xff]
    %v2503 = vld [vmem:[%s13 + $0x18] sm:$0xff]
    %v2504 = vld [vmem:[%s13 + $0x20] sm:$0xff]
    %v2505 = vld [vmem:[%s13 + $0x28] sm:$0xff]
    %v2506 = vld [vmem:[%s13 + $0x30] sm:$0xff]
    %v2507 = vld [vmem:[%s13 + $0x38] sm:$0xff]
    %v2509 = vsel %vm729, %v2499, 0
    %2511 = vmatprep.subr.mxu0 0.0
    %2512 = vmatpush1.msra.mxu0 %v2500
    %2513 = vmatprep.subr.mxu0 0.0
    %2514 = vmatpush1.msra.mxu0 %v2501
    %2515 = vmatprep.subr.mxu0 0.0
    %2516 = vmatpush1.msra.mxu0 %v2502
    %2517 = vmatprep.subr.mxu0 0.0
    %2518 = vmatpush1.msra.mxu0 %v2503
    %2519 = vmatprep.subr.mxu0 0.0
    %2520 = vmatpush1.msra.mxu0 %v2504
    %2521 = vmatprep.subr.mxu0 0.0
    %2522 = vmatpush1.msra.mxu0 %v2505
    %2523 = vmatprep.subr.mxu0 0.0
    %2524 = vmatpush1.msra.mxu0 %v2506
    %2525 = vmatprep.subr.mxu0 0.0
    %2526 = vmatpush1.msra.mxu0 %v2507
    %2527 = vmatprep.subr.mxu0 0.0
    %2528 = vmatpush1.msra.mxu0 0.0
    %2529 = vmatprep.subr.mxu0 0.0
    %2530 = vmatpush1.msra.mxu0 0.0
    %2531 = vmatprep.subr.mxu0 0.0
    %2532 = vmatpush1.msra.mxu0 0.0
    %2533 = vmatprep.subr.mxu0 0.0
    %2534 = vmatpush1.msra.mxu0 0.0
    %2535 = vmatprep.subr.mxu0 0.0
    %2536 = vmatpush1.msra.mxu0 0.0
    %2537 = vmatprep.subr.mxu0 0.0
    %2538 = vmatpush1.msra.mxu0 0.0
    %2539 = vmatprep.subr.mxu0 0.0
    %2540 = vmatpush1.msra.mxu0 0.0
    %2541 = vmatprep.subr.mxu0 0.0
    %2542 = vmatpush1.msra.mxu0 0.0
    %2543 = vmatprep.subr.mxu0 0.0
    %2544 = vmatpush1.msra.mxu0 0.0
    %2545 = vmatprep.subr.mxu0 0.0
    %2546 = vmatpush1.msra.mxu0 0.0
    %2547 = vmatprep.subr.mxu0 0.0
    %2548 = vmatpush1.msra.mxu0 0.0
    %2549 = vmatprep.subr.mxu0 0.0
    %2550 = vmatpush1.msra.mxu0 0.0
    %2551 = vmatprep.subr.mxu0 0.0
    %2552 = vmatpush1.msra.mxu0 0.0
    %2553 = vmatprep.subr.mxu0 0.0
    %2554 = vmatpush1.msra.mxu0 0.0
    %2555 = vmatprep.subr.mxu0 0.0
    %2556 = vmatpush1.msra.mxu0 0.0
    %2557 = vmatprep.subr.mxu0 0.0
    %2558 = vmatpush1.msra.mxu0 0.0
    %2559 = vmatprep.subr.mxu0 0.0
    %2560 = vmatpush1.msra.mxu0 0.0
    %2561 = vmatprep.subr.mxu0 0.0
    %2562 = vmatpush1.msra.mxu0 0.0
    %2563 = vmatprep.subr.mxu0 0.0
    %2564 = vmatpush1.msra.mxu0 0.0
    %2565 = vmatprep.subr.mxu0 0.0
    %2566 = vmatpush1.msra.mxu0 0.0
    %2567 = vmatprep.subr.mxu0 0.0
    %2568 = vmatpush1.msra.mxu0 0.0
    %2569 = vmatprep.subr.mxu0 0.0
    %2570 = vmatpush1.msra.mxu0 0.0
    %2571 = vmatprep.subr.mxu0 0.0
    %2572 = vmatpush1.msra.mxu0 0.0
    %2573 = vmatprep.subr.mxu0 0.0
    %2574 = vmatpush1.msra.mxu0 0.0
    %2575 = vmatprep.mubr.f32.mxu0 0.0
    %2576 = vmatmul.mubr.f32.gmra.mrb[0].mxu0 %v2509
    %v2577 = vpop.f32.mrb[0].mxu0
    %v2578 = vadd.f32 %v433, %v2577
    %v2579 = vpop.f32.mrb[0].mxu0
    %2580 = vdwg.mxu0
    %v2581 = vxor.u32 %v2578, 2147483648
    %v2582 = vmul.f32 %v2581, 1.442695
    %v2583 = vpow.pop %v2582
    %v2584 = vadd.f32 %v2583, 1.0
    %v2585 = vrcp.pop %v2584
    %v2586 = vmul.f32 1.0, %v2585
    %v2587 = vld [vmem:[%s14] sm:$0xff]
    %v2588 = vld [vmem:[%s14 + $0x8] sm:$0xff]
    %v2589 = vld [vmem:[%s14 + $0x10] sm:$0xff]
    %v2590 = vld [vmem:[%s14 + $0x18] sm:$0xff]
    %v2591 = vld [vmem:[%s14 + $0x20] sm:$0xff]
    %v2592 = vld [vmem:[%s14 + $0x28] sm:$0xff]
    %v2593 = vld [vmem:[%s14 + $0x30] sm:$0xff]
    %v2594 = vld [vmem:[%s14 + $0x38] sm:$0xff]
    %2595 = vmatprep.subr.mxu0 0.0
    %2596 = vmatpush1.msra.mxu0 %v2587
    %2597 = vmatprep.subr.mxu0 0.0
    %2598 = vmatpush1.msra.mxu0 %v2588
    %2599 = vmatprep.subr.mxu0 0.0
    %2600 = vmatpush1.msra.mxu0 %v2589
    %2601 = vmatprep.subr.mxu0 0.0
    %2602 = vmatpush1.msra.mxu0 %v2590
    %2603 = vmatprep.subr.mxu0 0.0
    %2604 = vmatpush1.msra.mxu0 %v2591
    %2605 = vmatprep.subr.mxu0 0.0
    %2606 = vmatpush1.msra.mxu0 %v2592
    %2607 = vmatprep.subr.mxu0 0.0
    %2608 = vmatpush1.msra.mxu0 %v2593
    %2609 = vmatprep.subr.mxu0 0.0
    %2610 = vmatpush1.msra.mxu0 %v2594
    %2611 = vmatprep.subr.mxu0 0.0
    %2612 = vmatpush1.msra.mxu0 0.0
    %2613 = vmatprep.subr.mxu0 0.0
    %2614 = vmatpush1.msra.mxu0 0.0
    %2615 = vmatprep.subr.mxu0 0.0
    %2616 = vmatpush1.msra.mxu0 0.0
    %2617 = vmatprep.subr.mxu0 0.0
    %2618 = vmatpush1.msra.mxu0 0.0
    %2619 = vmatprep.subr.mxu0 0.0
    %2620 = vmatpush1.msra.mxu0 0.0
    %2621 = vmatprep.subr.mxu0 0.0
    %2622 = vmatpush1.msra.mxu0 0.0
    %2623 = vmatprep.subr.mxu0 0.0
    %2624 = vmatpush1.msra.mxu0 0.0
    %2625 = vmatprep.subr.mxu0 0.0
    %2626 = vmatpush1.msra.mxu0 0.0
    %2627 = vmatprep.subr.mxu0 0.0
    %2628 = vmatpush1.msra.mxu0 0.0
    %2629 = vmatprep.subr.mxu0 0.0
    %2630 = vmatpush1.msra.mxu0 0.0
    %2631 = vmatprep.subr.mxu0 0.0
    %2632 = vmatpush1.msra.mxu0 0.0
    %2633 = vmatprep.subr.mxu0 0.0
    %2634 = vmatpush1.msra.mxu0 0.0
    %2635 = vmatprep.subr.mxu0 0.0
    %2636 = vmatpush1.msra.mxu0 0.0
    %2637 = vmatprep.subr.mxu0 0.0
    %2638 = vmatpush1.msra.mxu0 0.0
    %2639 = vmatprep.subr.mxu0 0.0
    %2640 = vmatpush1.msra.mxu0 0.0
    %2641 = vmatprep.subr.mxu0 0.0
    %2642 = vmatpush1.msra.mxu0 0.0
    %2643 = vmatprep.subr.mxu0 0.0
    %2644 = vmatpush1.msra.mxu0 0.0
    %2645 = vmatprep.subr.mxu0 0.0
    %2646 = vmatpush1.msra.mxu0 0.0
    %2647 = vmatprep.subr.mxu0 0.0
    %2648 = vmatpush1.msra.mxu0 0.0
    %2649 = vmatprep.subr.mxu0 0.0
    %2650 = vmatpush1.msra.mxu0 0.0
    %2651 = vmatprep.subr.mxu0 0.0
    %2652 = vmatpush1.msra.mxu0 0.0
    %2653 = vmatprep.subr.mxu0 0.0
    %2654 = vmatpush1.msra.mxu0 0.0
    %2655 = vmatprep.subr.mxu0 0.0
    %2656 = vmatpush1.msra.mxu0 0.0
    %2657 = vmatprep.subr.mxu0 0.0
    %2658 = vmatpush1.msra.mxu0 0.0
    %2659 = vmatprep.mubr.f32.mxu0 0.0
    %2660 = vmatmul.mubr.f32.gmra.mrb[0].mxu0 %v2509
    %v2661 = vpop.f32.mrb[0].mxu0
    %v2662 = vadd.f32 %v440, %v2661
    %v2663 = vpop.f32.mrb[0].mxu0
    %2664 = vdwg.mxu0
    %v2665 = vxor.u32 %v2662, 2147483648
    %v2666 = vmul.f32 %v2665, 1.442695
    %v2667 = vpow.pop %v2666
    %v2668 = vadd.f32 %v2667, 1.0
    %v2669 = vrcp.pop %v2668
    %v2670 = vmul.f32 1.0, %v2669
    %v2671 = vld [vmem:[%s17] sm:$0xff]
    %v2672 = vld [vmem:[%s17 + $0x8] sm:$0xff]
    %v2673 = vld [vmem:[%s17 + $0x10] sm:$0xff]
    %v2674 = vld [vmem:[%s17 + $0x18] sm:$0xff]
    %v2676 = vsel %vm465, %v2494, 0
    %2678 = vmatprep.subr.mxu0 0.0
    %2679 = vmatpush1.msra.mxu0 %v2671
    %2680 = vmatprep.subr.mxu0 0.0
    %2681 = vmatpush1.msra.mxu0 %v2672
    %2682 = vmatprep.subr.mxu0 0.0
    %2683 = vmatpush1.msra.mxu0 %v2673
    %2684 = vmatprep.subr.mxu0 0.0
    %2685 = vmatpush1.msra.mxu0 %v2674
    %2686 = vmatprep.subr.mxu0 0.0
    %2687 = vmatpush1.msra.mxu0 0.0
    %2688 = vmatprep.subr.mxu0 0.0
    %2689 = vmatpush1.msra.mxu0 0.0
    %2690 = vmatprep.subr.mxu0 0.0
    %2691 = vmatpush1.msra.mxu0 0.0
    %2692 = vmatprep.subr.mxu0 0.0
    %2693 = vmatpush1.msra.mxu0 0.0
    %2694 = vmatprep.subr.mxu0 0.0
    %2695 = vmatpush1.msra.mxu0 0.0
    %2696 = vmatprep.subr.mxu0 0.0
    %2697 = vmatpush1.msra.mxu0 0.0
    %2698 = vmatprep.subr.mxu0 0.0
    %2699 = vmatpush1.msra.mxu0 0.0
    %2700 = vmatprep.subr.mxu0 0.0
    %2701 = vmatpush1.msra.mxu0 0.0
    %2702 = vmatprep.subr.mxu0 0.0
    %2703 = vmatpush1.msra.mxu0 0.0
    %2704 = vmatprep.subr.mxu0 0.0
    %2705 = vmatpush1.msra.mxu0 0.0
    %2706 = vmatprep.subr.mxu0 0.0
    %2707 = vmatpush1.msra.mxu0 0.0
    %2708 = vmatprep.subr.mxu0 0.0
    %2709 = vmatpush1.msra.mxu0 0.0
    %2710 = vmatprep.subr.mxu0 0.0
    %2711 = vmatpush1.msra.mxu0 0.0
    %2712 = vmatprep.subr.mxu0 0.0
    %2713 = vmatpush1.msra.mxu0 0.0
    %2714 = vmatprep.subr.mxu0 0.0
    %2715 = vmatpush1.msra.mxu0 0.0
    %2716 = vmatprep.subr.mxu0 0.0
    %2717 = vmatpush1.msra.mxu0 0.0
    %2718 = vmatprep.subr.mxu0 0.0
    %2719 = vmatpush1.msra.mxu0 0.0
    %2720 = vmatprep.subr.mxu0 0.0
    %2721 = vmatpush1.msra.mxu0 0.0
    %2722 = vmatprep.subr.mxu0 0.0
    %2723 = vmatpush1.msra.mxu0 0.0
    %2724 = vmatprep.subr.mxu0 0.0
    %2725 = vmatpush1.msra.mxu0 0.0
    %2726 = vmatprep.subr.mxu0 0.0
    %2727 = vmatpush1.msra.mxu0 0.0
    %2728 = vmatprep.subr.mxu0 0.0
    %2729 = vmatpush1.msra.mxu0 0.0
    %2730 = vmatprep.subr.mxu0 0.0
    %2731 = vmatpush1.msra.mxu0 0.0
    %2732 = vmatprep.subr.mxu0 0.0
    %2733 = vmatpush1.msra.mxu0 0.0
    %2734 = vmatprep.subr.mxu0 0.0
    %2735 = vmatpush1.msra.mxu0 0.0
    %2736 = vmatprep.subr.mxu0 0.0
    %2737 = vmatpush1.msra.mxu0 0.0
    %2738 = vmatprep.subr.mxu0 0.0
    %2739 = vmatpush1.msra.mxu0 0.0
    %2740 = vmatprep.subr.mxu0 0.0
    %2741 = vmatpush1.msra.mxu0 0.0
    %2742 = vmatprep.mubr.f32.mxu0 0.0
    %2743 = vmatmul.mubr.f32.gmra.mrb[0].mxu0 %v2676
    %v2744 = vpop.f32.mrb[0].mxu0
    %v2745 = vadd.f32 %v447, %v2744
    %v2746 = vpop.f32.mrb[0].mxu0
    %2747 = vdwg.mxu0
    %v2748 = vld [vmem:[%s18] sm:$0xff]
    %v2749 = vld [vmem:[%s18 + $0x8] sm:$0xff]
    %v2750 = vld [vmem:[%s18 + $0x10] sm:$0xff]
    %v2751 = vld [vmem:[%s18 + $0x18] sm:$0xff]
    %v2752 = vsel %vm465, %v2238, 0
    %2754 = vmatprep.subr.mxu0 0.0
    %2755 = vmatpush1.msra.mxu0 %v2748
    %2756 = vmatprep.subr.mxu0 0.0
    %2757 = vmatpush1.msra.mxu0 %v2749
    %2758 = vmatprep.subr.mxu0 0.0
    %2759 = vmatpush1.msra.mxu0 %v2750
    %2760 = vmatprep.subr.mxu0 0.0
    %2761 = vmatpush1.msra.mxu0 %v2751
    %2762 = vmatprep.subr.mxu0 0.0
    %2763 = vmatpush1.msra.mxu0 0.0
    %2764 = vmatprep.subr.mxu0 0.0
    %2765 = vmatpush1.msra.mxu0 0.0
    %2766 = vmatprep.subr.mxu0 0.0
    %2767 = vmatpush1.msra.mxu0 0.0
    %2768 = vmatprep.subr.mxu0 0.0
    %2769 = vmatpush1.msra.mxu0 0.0
    %2770 = vmatprep.subr.mxu0 0.0
    %2771 = vmatpush1.msra.mxu0 0.0
    %2772 = vmatprep.subr.mxu0 0.0
    %2773 = vmatpush1.msra.mxu0 0.0
    %2774 = vmatprep.subr.mxu0 0.0
    %2775 = vmatpush1.msra.mxu0 0.0
    %2776 = vmatprep.subr.mxu0 0.0
    %2777 = vmatpush1.msra.mxu0 0.0
    %2778 = vmatprep.subr.mxu0 0.0
    %2779 = vmatpush1.msra.mxu0 0.0
    %2780 = vmatprep.subr.mxu0 0.0
    %2781 = vmatpush1.msra.mxu0 0.0
    %2782 = vmatprep.subr.mxu0 0.0
    %2783 = vmatpush1.msra.mxu0 0.0
    %2784 = vmatprep.subr.mxu0 0.0
    %2785 = vmatpush1.msra.mxu0 0.0
    %2786 = vmatprep.subr.mxu0 0.0
    %2787 = vmatpush1.msra.mxu0 0.0
    %2788 = vmatprep.subr.mxu0 0.0
    %2789 = vmatpush1.msra.mxu0 0.0
    %2790 = vmatprep.subr.mxu0 0.0
    %2791 = vmatpush1.msra.mxu0 0.0
    %2792 = vmatprep.subr.mxu0 0.0
    %2793 = vmatpush1.msra.mxu0 0.0
    %2794 = vmatprep.subr.mxu0 0.0
    %2795 = vmatpush1.msra.mxu0 0.0
    %2796 = vmatprep.subr.mxu0 0.0
    %2797 = vmatpush1.msra.mxu0 0.0
    %2798 = vmatprep.subr.mxu0 0.0
    %2799 = vmatpush1.msra.mxu0 0.0
    %2800 = vmatprep.subr.mxu0 0.0
    %2801 = vmatpush1.msra.mxu0 0.0
    %2802 = vmatprep.subr.mxu0 0.0
    %2803 = vmatpush1.msra.mxu0 0.0
    %2804 = vmatprep.subr.mxu0 0.0
    %2805 = vmatpush1.msra.mxu0 0.0
    %2806 = vmatprep.subr.mxu0 0.0
    %2807 = vmatpush1.msra.mxu0 0.0
    %2808 = vmatprep.subr.mxu0 0.0
    %2809 = vmatpush1.msra.mxu0 0.0
    %2810 = vmatprep.subr.mxu0 0.0
    %2811 = vmatpush1.msra.mxu0 0.0
    %2812 = vmatprep.subr.mxu0 0.0
    %2813 = vmatpush1.msra.mxu0 0.0
    %2814 = vmatprep.subr.mxu0 0.0
    %2815 = vmatpush1.msra.mxu0 0.0
    %2816 = vmatprep.subr.mxu0 0.0
    %2817 = vmatpush1.msra.mxu0 0.0
    %2818 = vmatprep.mubr.f32.mxu0 0.0
    %2819 = vmatmul.mubr.f32.gmra.mrb[0].mxu0 %v2752
    %v2820 = vpop.f32.mrb[0].mxu0
    %v2821 = vadd.f32 %v454, %v2820
    %v2822 = vpop.f32.mrb[0].mxu0
    %2823 = vdwg.mxu0
    %v2824 = vmul.f32 %v2586, %v2821
    %v2825 = vadd.f32 %v2745, %v2824
    %v2826 = vtanh.pop %v2825
    %v2827 = vsub.f32 1.0, %v2670
    %v2828 = vmul.f32 %v2827, %v2826
    %v2829 = vmul.f32 %v2670, %v2238
    %v2830 = vadd.f32 %v2828, %v2829
    %v2831 = vsel %vm2493, %v2830, %v2238
    %v2832 = vsel %vm2493, %v2830, 0.0
    %s2833 = scalar_lea.vmem [#allocation5], 12
    %2834 = vst.msk [vmem:[%s2833] sm:$0xf] %vm373, %v2832
    %vm2835 = vcmp.gt.s32.totalorder %v420, 4
    %v2836 = vld [vmem:[%s396] sm:$0xf]
    %v2837 = vld [vmem:[%s9] sm:$0xff]
    %v2838 = vld [vmem:[%s9 + $0x8] sm:$0xff]
    %v2839 = vld [vmem:[%s9 + $0x10] sm:$0xff]
    %v2840 = vld [vmem:[%s9 + $0x18] sm:$0xff]
    %2841 = vmatprep.subr.mxu0 0.0
    %2842 = vmatpush1.msra.mxu0 %v2837
    %2843 = vmatprep.subr.mxu0 0.0
    %2844 = vmatpush1.msra.mxu0 %v2838
    %2845 = vmatprep.subr.mxu0 0.0
    %2846 = vmatpush1.msra.mxu0 %v2839
    %2847 = vmatprep.subr.mxu0 0.0
    %2848 = vmatpush1.msra.mxu0 %v2840
    %2849 = vmatprep.subr.mxu0 0.0
    %2850 = vmatpush1.msra.mxu0 0.0
    %2851 = vmatprep.subr.mxu0 0.0
    %2852 = vmatpush1.msra.mxu0 0.0
    %2853 = vmatprep.subr.mxu0 0.0
    %2854 = vmatpush1.msra.mxu0 0.0
    %2855 = vmatprep.subr.mxu0 0.0
    %2856 = vmatpush1.msra.mxu0 0.0
    %2857 = vmatprep.subr.mxu0 0.0
    %2858 = vmatpush1.msra.mxu0 0.0
    %2859 = vmatprep.subr.mxu0 0.0
    %2860 = vmatpush1.msra.mxu0 0.0
    %2861 = vmatprep.subr.mxu0 0.0
    %2862 = vmatpush1.msra.mxu0 0.0
    %2863 = vmatprep.subr.mxu0 0.0
    %2864 = vmatpush1.msra.mxu0 0.0
    %2865 = vmatprep.subr.mxu0 0.0
    %2866 = vmatpush1.msra.mxu0 0.0
    %2867 = vmatprep.subr.mxu0 0.0
    %2868 = vmatpush1.msra.mxu0 0.0
    %2869 = vmatprep.subr.mxu0 0.0
    %2870 = vmatpush1.msra.mxu0 0.0
    %2871 = vmatprep.subr.mxu0 0.0
    %2872 = vmatpush1.msra.mxu0 0.0
    %2873 = vmatprep.subr.mxu0 0.0
    %2874 = vmatpush1.msra.mxu0 0.0
    %2875 = vmatprep.subr.mxu0 0.0
    %2876 = vmatpush1.msra.mxu0 0.0
    %2877 = vmatprep.subr.mxu0 0.0
    %2878 = vmatpush1.msra.mxu0 0.0
    %2879 = vmatprep.subr.mxu0 0.0
    %2880 = vmatpush1.msra.mxu0 0.0
    %2881 = vmatprep.subr.mxu0 0.0
    %2882 = vmatpush1.msra.mxu0 0.0
    %2883 = vmatprep.subr.mxu0 0.0
    %2884 = vmatpush1.msra.mxu0 0.0
    %2885 = vmatprep.subr.mxu0 0.0
    %2886 = vmatpush1.msra.mxu0 0.0
    %2887 = vmatprep.subr.mxu0 0.0
    %2888 = vmatpush1.msra.mxu0 0.0
    %2889 = vmatprep.subr.mxu0 0.0
    %2890 = vmatpush1.msra.mxu0 0.0
    %2891 = vmatprep.subr.mxu0 0.0
    %2892 = vmatpush1.msra.mxu0 0.0
    %2893 = vmatprep.subr.mxu0 0.0
    %2894 = vmatpush1.msra.mxu0 0.0
    %2895 = vmatprep.subr.mxu0 0.0
    %2896 = vmatpush1.msra.mxu0 0.0
    %2897 = vmatprep.subr.mxu0 0.0
    %2898 = vmatpush1.msra.mxu0 0.0
    %2899 = vmatprep.subr.mxu0 0.0
    %2900 = vmatpush1.msra.mxu0 0.0
    %2901 = vmatprep.subr.mxu0 0.0
    %2902 = vmatpush1.msra.mxu0 0.0
    %2903 = vmatprep.subr.mxu0 0.0
    %2904 = vmatpush1.msra.mxu0 0.0
    %2905 = vmatprep.mubr.f32.mxu0 0.0
    %2906 = vmatmul.mubr.f32.gmra.mrb[0].mxu0 %v2676
    %v2907 = vpop.f32.mrb[0].mxu0
    %v2908 = vadd.f32 0.0, %v2907
    %v2909 = vpop.f32.mrb[0].mxu0
    %2910 = vdwg.mxu0
    %v2911 = vadd.f32 %v2836, %v2908
    %v2912 = vxor.u32 %v2911, 2147483648
    %v2913 = vmul.f32 %v2912, 1.442695
    %v2914 = vpow.pop %v2913
    %v2915 = vadd.f32 %v2914, 1.0
    %v2916 = vrcp.pop %v2915
    %v2917 = vmul.f32 1.0, %v2916
    %v2918 = vld [vmem:[%s398] sm:$0xf]
    %v2919 = vld [vmem:[%s10] sm:$0xff]
    %v2920 = vld [vmem:[%s10 + $0x8] sm:$0xff]
    %v2921 = vld [vmem:[%s10 + $0x10] sm:$0xff]
    %v2922 = vld [vmem:[%s10 + $0x18] sm:$0xff]
    %2923 = vmatprep.subr.mxu0 0.0
    %2924 = vmatpush1.msra.mxu0 %v2919
    %2925 = vmatprep.subr.mxu0 0.0
    %2926 = vmatpush1.msra.mxu0 %v2920
    %2927 = vmatprep.subr.mxu0 0.0
    %2928 = vmatpush1.msra.mxu0 %v2921
    %2929 = vmatprep.subr.mxu0 0.0
    %2930 = vmatpush1.msra.mxu0 %v2922
    %2931 = vmatprep.subr.mxu0 0.0
    %2932 = vmatpush1.msra.mxu0 0.0
    %2933 = vmatprep.subr.mxu0 0.0
    %2934 = vmatpush1.msra.mxu0 0.0
    %2935 = vmatprep.subr.mxu0 0.0
    %2936 = vmatpush1.msra.mxu0 0.0
    %2937 = vmatprep.subr.mxu0 0.0
    %2938 = vmatpush1.msra.mxu0 0.0
    %2939 = vmatprep.subr.mxu0 0.0
    %2940 = vmatpush1.msra.mxu0 0.0
    %2941 = vmatprep.subr.mxu0 0.0
    %2942 = vmatpush1.msra.mxu0 0.0
    %2943 = vmatprep.subr.mxu0 0.0
    %2944 = vmatpush1.msra.mxu0 0.0
    %2945 = vmatprep.subr.mxu0 0.0
    %2946 = vmatpush1.msra.mxu0 0.0
    %2947 = vmatprep.subr.mxu0 0.0
    %2948 = vmatpush1.msra.mxu0 0.0
    %2949 = vmatprep.subr.mxu0 0.0
    %2950 = vmatpush1.msra.mxu0 0.0
    %2951 = vmatprep.subr.mxu0 0.0
    %2952 = vmatpush1.msra.mxu0 0.0
    %2953 = vmatprep.subr.mxu0 0.0
    %2954 = vmatpush1.msra.mxu0 0.0
    %2955 = vmatprep.subr.mxu0 0.0
    %2956 = vmatpush1.msra.mxu0 0.0
    %2957 = vmatprep.subr.mxu0 0.0
    %2958 = vmatpush1.msra.mxu0 0.0
    %2959 = vmatprep.subr.mxu0 0.0
    %2960 = vmatpush1.msra.mxu0 0.0
    %2961 = vmatprep.subr.mxu0 0.0
    %2962 = vmatpush1.msra.mxu0 0.0
    %2963 = vmatprep.subr.mxu0 0.0
    %2964 = vmatpush1.msra.mxu0 0.0
    %2965 = vmatprep.subr.mxu0 0.0
    %2966 = vmatpush1.msra.mxu0 0.0
    %2967 = vmatprep.subr.mxu0 0.0
    %2968 = vmatpush1.msra.mxu0 0.0
    %2969 = vmatprep.subr.mxu0 0.0
    %2970 = vmatpush1.msra.mxu0 0.0
    %2971 = vmatprep.subr.mxu0 0.0
    %2972 = vmatpush1.msra.mxu0 0.0
    %2973 = vmatprep.subr.mxu0 0.0
    %2974 = vmatpush1.msra.mxu0 0.0
    %2975 = vmatprep.subr.mxu0 0.0
    %2976 = vmatpush1.msra.mxu0 0.0
    %2977 = vmatprep.subr.mxu0 0.0
    %2978 = vmatpush1.msra.mxu0 0.0
    %2979 = vmatprep.subr.mxu0 0.0
    %2980 = vmatpush1.msra.mxu0 0.0
    %2981 = vmatprep.subr.mxu0 0.0
    %2982 = vmatpush1.msra.mxu0 0.0
    %2983 = vmatprep.subr.mxu0 0.0
    %2984 = vmatpush1.msra.mxu0 0.0
    %2985 = vmatprep.subr.mxu0 0.0
    %2986 = vmatpush1.msra.mxu0 0.0
    %2987 = vmatprep.mubr.f32.mxu0 0.0
    %2988 = vmatmul.mubr.f32.gmra.mrb[0].mxu0 %v2676
    %v2989 = vpop.f32.mrb[0].mxu0
    %v2990 = vadd.f32 0.0, %v2989
    %v2991 = vpop.f32.mrb[0].mxu0
    %2992 = vdwg.mxu0
    %v2993 = vadd.f32 %v2918, %v2990
    %v2994 = vxor.u32 %v2993, 2147483648
    %v2995 = vmul.f32 %v2994, 1.442695
    %v2996 = vpow.pop %v2995
    %v2997 = vadd.f32 %v2996, 1.0
    %v2998 = vrcp.pop %v2997
    %v2999 = vmul.f32 1.0, %v2998
    %v3000 = vld [vmem:[%s400] sm:$0xf]
    %v3001 = vld [vmem:[%s11] sm:$0xff]
    %v3002 = vld [vmem:[%s11 + $0x8] sm:$0xff]
    %v3003 = vld [vmem:[%s11 + $0x10] sm:$0xff]
    %v3004 = vld [vmem:[%s11 + $0x18] sm:$0xff]
    %3005 = vmatprep.subr.mxu0 0.0
    %3006 = vmatpush1.msra.mxu0 %v3001
    %3007 = vmatprep.subr.mxu0 0.0
    %3008 = vmatpush1.msra.mxu0 %v3002
    %3009 = vmatprep.subr.mxu0 0.0
    %3010 = vmatpush1.msra.mxu0 %v3003
    %3011 = vmatprep.subr.mxu0 0.0
    %3012 = vmatpush1.msra.mxu0 %v3004
    %3013 = vmatprep.subr.mxu0 0.0
    %3014 = vmatpush1.msra.mxu0 0.0
    %3015 = vmatprep.subr.mxu0 0.0
    %3016 = vmatpush1.msra.mxu0 0.0
    %3017 = vmatprep.subr.mxu0 0.0
    %3018 = vmatpush1.msra.mxu0 0.0
    %3019 = vmatprep.subr.mxu0 0.0
    %3020 = vmatpush1.msra.mxu0 0.0
    %3021 = vmatprep.subr.mxu0 0.0
    %3022 = vmatpush1.msra.mxu0 0.0
    %3023 = vmatprep.subr.mxu0 0.0
    %3024 = vmatpush1.msra.mxu0 0.0
    %3025 = vmatprep.subr.mxu0 0.0
    %3026 = vmatpush1.msra.mxu0 0.0
    %3027 = vmatprep.subr.mxu0 0.0
    %3028 = vmatpush1.msra.mxu0 0.0
    %3029 = vmatprep.subr.mxu0 0.0
    %3030 = vmatpush1.msra.mxu0 0.0
    %3031 = vmatprep.subr.mxu0 0.0
    %3032 = vmatpush1.msra.mxu0 0.0
    %3033 = vmatprep.subr.mxu0 0.0
    %3034 = vmatpush1.msra.mxu0 0.0
    %3035 = vmatprep.subr.mxu0 0.0
    %3036 = vmatpush1.msra.mxu0 0.0
    %3037 = vmatprep.subr.mxu0 0.0
    %3038 = vmatpush1.msra.mxu0 0.0
    %3039 = vmatprep.subr.mxu0 0.0
    %3040 = vmatpush1.msra.mxu0 0.0
    %3041 = vmatprep.subr.mxu0 0.0
    %3042 = vmatpush1.msra.mxu0 0.0
    %3043 = vmatprep.subr.mxu0 0.0
    %3044 = vmatpush1.msra.mxu0 0.0
    %3045 = vmatprep.subr.mxu0 0.0
    %3046 = vmatpush1.msra.mxu0 0.0
    %3047 = vmatprep.subr.mxu0 0.0
    %3048 = vmatpush1.msra.mxu0 0.0
    %3049 = vmatprep.subr.mxu0 0.0
    %3050 = vmatpush1.msra.mxu0 0.0
    %3051 = vmatprep.subr.mxu0 0.0
    %3052 = vmatpush1.msra.mxu0 0.0
    %3053 = vmatprep.subr.mxu0 0.0
    %3054 = vmatpush1.msra.mxu0 0.0
    %3055 = vmatprep.subr.mxu0 0.0
    %3056 = vmatpush1.msra.mxu0 0.0
    %3057 = vmatprep.subr.mxu0 0.0
    %3058 = vmatpush1.msra.mxu0 0.0
    %3059 = vmatprep.subr.mxu0 0.0
    %3060 = vmatpush1.msra.mxu0 0.0
    %3061 = vmatprep.subr.mxu0 0.0
    %3062 = vmatpush1.msra.mxu0 0.0
    %3063 = vmatprep.subr.mxu0 0.0
    %3064 = vmatpush1.msra.mxu0 0.0
    %3065 = vmatprep.subr.mxu0 0.0
    %3066 = vmatpush1.msra.mxu0 0.0
    %3067 = vmatprep.subr.mxu0 0.0
    %3068 = vmatpush1.msra.mxu0 0.0
    %3069 = vmatprep.mubr.f32.mxu0 0.0
    %3070 = vmatmul.mubr.f32.gmra.mrb[0].mxu0 %v2676
    %v3071 = vpop.f32.mrb[0].mxu0
    %v3072 = vadd.f32 %v426, %v3071
    %v3073 = vpop.f32.mrb[0].mxu0
    %3074 = vdwg.mxu0
    %v3075 = vmul.f32 %v2917, %v3072
    %v3076 = vadd.f32 %v3000, %v3075
    %v3077 = vtanh.pop %v3076
    %v3078 = vsub.f32 1.0, %v2999
    %v3079 = vmul.f32 %v3078, %v3077
    %v3080 = vmul.f32 %v2999, %v2494
    %v3081 = vadd.f32 %v3079, %v3080
    %v3082 = vsel %vm2835, 1, 0
    %3083 = vset.pattern.permute.xlu0 0
    %3084 = vperm.xlu0 %3083, %v3082
    %v3085 = vpop.permute.xlu0 %3084
    %vm3086 = vcmp.eq.s32.totalorder %v3085, 1
    %v3087 = vsel %vm3086, %v3081, %v2494
    %3089 = vrot.lane.b32.xlu0 %v2831, 32
    %v3090 = vpop.permute.xlu0 %3089
    %v3092 = vsel %vm465, %v3087, %v3090
    %v3093 = vld [vmem:[%s13] sm:$0xff]
    %v3094 = vld [vmem:[%s13 + $0x8] sm:$0xff]
    %v3095 = vld [vmem:[%s13 + $0x10] sm:$0xff]
    %v3096 = vld [vmem:[%s13 + $0x18] sm:$0xff]
    %v3097 = vld [vmem:[%s13 + $0x20] sm:$0xff]
    %v3098 = vld [vmem:[%s13 + $0x28] sm:$0xff]
    %v3099 = vld [vmem:[%s13 + $0x30] sm:$0xff]
    %v3100 = vld [vmem:[%s13 + $0x38] sm:$0xff]
    %v3102 = vsel %vm729, %v3092, 0
    %3104 = vmatprep.subr.mxu0 0.0
    %3105 = vmatpush1.msra.mxu0 %v3093
    %3106 = vmatprep.subr.mxu0 0.0
    %3107 = vmatpush1.msra.mxu0 %v3094
    %3108 = vmatprep.subr.mxu0 0.0
    %3109 = vmatpush1.msra.mxu0 %v3095
    %3110 = vmatprep.subr.mxu0 0.0
    %3111 = vmatpush1.msra.mxu0 %v3096
    %3112 = vmatprep.subr.mxu0 0.0
    %3113 = vmatpush1.msra.mxu0 %v3097
    %3114 = vmatprep.subr.mxu0 0.0
    %3115 = vmatpush1.msra.mxu0 %v3098
    %3116 = vmatprep.subr.mxu0 0.0
    %3117 = vmatpush1.msra.mxu0 %v3099
    %3118 = vmatprep.subr.mxu0 0.0
    %3119 = vmatpush1.msra.mxu0 %v3100
    %3120 = vmatprep.subr.mxu0 0.0
    %3121 = vmatpush1.msra.mxu0 0.0
    %3122 = vmatprep.subr.mxu0 0.0
    %3123 = vmatpush1.msra.mxu0 0.0
    %3124 = vmatprep.subr.mxu0 0.0
    %3125 = vmatpush1.msra.mxu0 0.0
    %3126 = vmatprep.subr.mxu0 0.0
    %3127 = vmatpush1.msra.mxu0 0.0
    %3128 = vmatprep.subr.mxu0 0.0
    %3129 = vmatpush1.msra.mxu0 0.0
    %3130 = vmatprep.subr.mxu0 0.0
    %3131 = vmatpush1.msra.mxu0 0.0
    %3132 = vmatprep.subr.mxu0 0.0
    %3133 = vmatpush1.msra.mxu0 0.0
    %3134 = vmatprep.subr.mxu0 0.0
    %3135 = vmatpush1.msra.mxu0 0.0
    %3136 = vmatprep.subr.mxu0 0.0
    %3137 = vmatpush1.msra.mxu0 0.0
    %3138 = vmatprep.subr.mxu0 0.0
    %3139 = vmatpush1.msra.mxu0 0.0
    %3140 = vmatprep.subr.mxu0 0.0
    %3141 = vmatpush1.msra.mxu0 0.0
    %3142 = vmatprep.subr.mxu0 0.0
    %3143 = vmatpush1.msra.mxu0 0.0
    %3144 = vmatprep.subr.mxu0 0.0
    %3145 = vmatpush1.msra.mxu0 0.0
    %3146 = vmatprep.subr.mxu0 0.0
    %3147 = vmatpush1.msra.mxu0 0.0
    %3148 = vmatprep.subr.mxu0 0.0
    %3149 = vmatpush1.msra.mxu0 0.0
    %3150 = vmatprep.subr.mxu0 0.0
    %3151 = vmatpush1.msra.mxu0 0.0
    %3152 = vmatprep.subr.mxu0 0.0
    %3153 = vmatpush1.msra.mxu0 0.0
    %3154 = vmatprep.subr.mxu0 0.0
    %3155 = vmatpush1.msra.mxu0 0.0
    %3156 = vmatprep.subr.mxu0 0.0
    %3157 = vmatpush1.msra.mxu0 0.0
    %3158 = vmatprep.subr.mxu0 0.0
    %3159 = vmatpush1.msra.mxu0 0.0
    %3160 = vmatprep.subr.mxu0 0.0
    %3161 = vmatpush1.msra.mxu0 0.0
    %3162 = vmatprep.subr.mxu0 0.0
    %3163 = vmatpush1.msra.mxu0 0.0
    %3164 = vmatprep.subr.mxu0 0.0
    %3165 = vmatpush1.msra.mxu0 0.0
    %3166 = vmatprep.subr.mxu0 0.0
    %3167 = vmatpush1.msra.mxu0 0.0
    %3168 = vmatprep.mubr.f32.mxu0 0.0
    %3169 = vmatmul.mubr.f32.gmra.mrb[0].mxu0 %v3102
    %v3170 = vpop.f32.mrb[0].mxu0
    %v3171 = vadd.f32 %v433, %v3170
    %v3172 = vpop.f32.mrb[0].mxu0
    %3173 = vdwg.mxu0
    %v3174 = vxor.u32 %v3171, 2147483648
    %v3175 = vmul.f32 %v3174, 1.442695
    %v3176 = vpow.pop %v3175
    %v3177 = vadd.f32 %v3176, 1.0
    %v3178 = vrcp.pop %v3177
    %v3179 = vmul.f32 1.0, %v3178
    %v3180 = vld [vmem:[%s14] sm:$0xff]
    %v3181 = vld [vmem:[%s14 + $0x8] sm:$0xff]
    %v3182 = vld [vmem:[%s14 + $0x10] sm:$0xff]
    %v3183 = vld [vmem:[%s14 + $0x18] sm:$0xff]
    %v3184 = vld [vmem:[%s14 + $0x20] sm:$0xff]
    %v3185 = vld [vmem:[%s14 + $0x28] sm:$0xff]
    %v3186 = vld [vmem:[%s14 + $0x30] sm:$0xff]
    %v3187 = vld [vmem:[%s14 + $0x38] sm:$0xff]
    %3188 = vmatprep.subr.mxu0 0.0
    %3189 = vmatpush1.msra.mxu0 %v3180
    %3190 = vmatprep.subr.mxu0 0.0
    %3191 = vmatpush1.msra.mxu0 %v3181
    %3192 = vmatprep.subr.mxu0 0.0
    %3193 = vmatpush1.msra.mxu0 %v3182
    %3194 = vmatprep.subr.mxu0 0.0
    %3195 = vmatpush1.msra.mxu0 %v3183
    %3196 = vmatprep.subr.mxu0 0.0
    %3197 = vmatpush1.msra.mxu0 %v3184
    %3198 = vmatprep.subr.mxu0 0.0
    %3199 = vmatpush1.msra.mxu0 %v3185
    %3200 = vmatprep.subr.mxu0 0.0
    %3201 = vmatpush1.msra.mxu0 %v3186
    %3202 = vmatprep.subr.mxu0 0.0
    %3203 = vmatpush1.msra.mxu0 %v3187
    %3204 = vmatprep.subr.mxu0 0.0
    %3205 = vmatpush1.msra.mxu0 0.0
    %3206 = vmatprep.subr.mxu0 0.0
    %3207 = vmatpush1.msra.mxu0 0.0
    %3208 = vmatprep.subr.mxu0 0.0
    %3209 = vmatpush1.msra.mxu0 0.0
    %3210 = vmatprep.subr.mxu0 0.0
    %3211 = vmatpush1.msra.mxu0 0.0
    %3212 = vmatprep.subr.mxu0 0.0
    %3213 = vmatpush1.msra.mxu0 0.0
    %3214 = vmatprep.subr.mxu0 0.0
    %3215 = vmatpush1.msra.mxu0 0.0
    %3216 = vmatprep.subr.mxu0 0.0
    %3217 = vmatpush1.msra.mxu0 0.0
    %3218 = vmatprep.subr.mxu0 0.0
    %3219 = vmatpush1.msra.mxu0 0.0
    %3220 = vmatprep.subr.mxu0 0.0
    %3221 = vmatpush1.msra.mxu0 0.0
    %3222 = vmatprep.subr.mxu0 0.0
    %3223 = vmatpush1.msra.mxu0 0.0
    %3224 = vmatprep.subr.mxu0 0.0
    %3225 = vmatpush1.msra.mxu0 0.0
    %3226 = vmatprep.subr.mxu0 0.0
    %3227 = vmatpush1.msra.mxu0 0.0
    %3228 = vmatprep.subr.mxu0 0.0
    %3229 = vmatpush1.msra.mxu0 0.0
    %3230 = vmatprep.subr.mxu0 0.0
    %3231 = vmatpush1.msra.mxu0 0.0
    %3232 = vmatprep.subr.mxu0 0.0
    %3233 = vmatpush1.msra.mxu0 0.0
    %3234 = vmatprep.subr.mxu0 0.0
    %3235 = vmatpush1.msra.mxu0 0.0
    %3236 = vmatprep.subr.mxu0 0.0
    %3237 = vmatpush1.msra.mxu0 0.0
    %3238 = vmatprep.subr.mxu0 0.0
    %3239 = vmatpush1.msra.mxu0 0.0
    %3240 = vmatprep.subr.mxu0 0.0
    %3241 = vmatpush1.msra.mxu0 0.0
    %3242 = vmatprep.subr.mxu0 0.0
    %3243 = vmatpush1.msra.mxu0 0.0
    %3244 = vmatprep.subr.mxu0 0.0
    %3245 = vmatpush1.msra.mxu0 0.0
    %3246 = vmatprep.subr.mxu0 0.0
    %3247 = vmatpush1.msra.mxu0 0.0
    %3248 = vmatprep.subr.mxu0 0.0
    %3249 = vmatpush1.msra.mxu0 0.0
    %3250 = vmatprep.subr.mxu0 0.0
    %3251 = vmatpush1.msra.mxu0 0.0
    %3252 = vmatprep.mubr.f32.mxu0 0.0
    %3253 = vmatmul.mubr.f32.gmra.mrb[0].mxu0 %v3102
    %v3254 = vpop.f32.mrb[0].mxu0
    %v3255 = vadd.f32 %v440, %v3254
    %v3256 = vpop.f32.mrb[0].mxu0
    %3257 = vdwg.mxu0
    %v3258 = vxor.u32 %v3255, 2147483648
    %v3259 = vmul.f32 %v3258, 1.442695
    %v3260 = vpow.pop %v3259
    %v3261 = vadd.f32 %v3260, 1.0
    %v3262 = vrcp.pop %v3261
    %v3263 = vmul.f32 1.0, %v3262
    %v3264 = vld [vmem:[%s17] sm:$0xff]
    %v3265 = vld [vmem:[%s17 + $0x8] sm:$0xff]
    %v3266 = vld [vmem:[%s17 + $0x10] sm:$0xff]
    %v3267 = vld [vmem:[%s17 + $0x18] sm:$0xff]
    %v3269 = vsel %vm465, %v3087, 0
    %3271 = vmatprep.subr.mxu0 0.0
    %3272 = vmatpush1.msra.mxu0 %v3264
    %3273 = vmatprep.subr.mxu0 0.0
    %3274 = vmatpush1.msra.mxu0 %v3265
    %3275 = vmatprep.subr.mxu0 0.0
    %3276 = vmatpush1.msra.mxu0 %v3266
    %3277 = vmatprep.subr.mxu0 0.0
    %3278 = vmatpush1.msra.mxu0 %v3267
    %3279 = vmatprep.subr.mxu0 0.0
    %3280 = vmatpush1.msra.mxu0 0.0
    %3281 = vmatprep.subr.mxu0 0.0
    %3282 = vmatpush1.msra.mxu0 0.0
    %3283 = vmatprep.subr.mxu0 0.0
    %3284 = vmatpush1.msra.mxu0 0.0
    %3285 = vmatprep.subr.mxu0 0.0
    %3286 = vmatpush1.msra.mxu0 0.0
    %3287 = vmatprep.subr.mxu0 0.0
    %3288 = vmatpush1.msra.mxu0 0.0
    %3289 = vmatprep.subr.mxu0 0.0
    %3290 = vmatpush1.msra.mxu0 0.0
    %3291 = vmatprep.subr.mxu0 0.0
    %3292 = vmatpush1.msra.mxu0 0.0
    %3293 = vmatprep.subr.mxu0 0.0
    %3294 = vmatpush1.msra.mxu0 0.0
    %3295 = vmatprep.subr.mxu0 0.0
    %3296 = vmatpush1.msra.mxu0 0.0
    %3297 = vmatprep.subr.mxu0 0.0
    %3298 = vmatpush1.msra.mxu0 0.0
    %3299 = vmatprep.subr.mxu0 0.0
    %3300 = vmatpush1.msra.mxu0 0.0
    %3301 = vmatprep.subr.mxu0 0.0
    %3302 = vmatpush1.msra.mxu0 0.0
    %3303 = vmatprep.subr.mxu0 0.0
    %3304 = vmatpush1.msra.mxu0 0.0
    %3305 = vmatprep.subr.mxu0 0.0
    %3306 = vmatpush1.msra.mxu0 0.0
    %3307 = vmatprep.subr.mxu0 0.0
    %3308 = vmatpush1.msra.mxu0 0.0
    %3309 = vmatprep.subr.mxu0 0.0
    %3310 = vmatpush1.msra.mxu0 0.0
    %3311 = vmatprep.subr.mxu0 0.0
    %3312 = vmatpush1.msra.mxu0 0.0
    %3313 = vmatprep.subr.mxu0 0.0
    %3314 = vmatpush1.msra.mxu0 0.0
    %3315 = vmatprep.subr.mxu0 0.0
    %3316 = vmatpush1.msra.mxu0 0.0
    %3317 = vmatprep.subr.mxu0 0.0
    %3318 = vmatpush1.msra.mxu0 0.0
    %3319 = vmatprep.subr.mxu0 0.0
    %3320 = vmatpush1.msra.mxu0 0.0
    %3321 = vmatprep.subr.mxu0 0.0
    %3322 = vmatpush1.msra.mxu0 0.0
    %3323 = vmatprep.subr.mxu0 0.0
    %3324 = vmatpush1.msra.mxu0 0.0
    %3325 = vmatprep.subr.mxu0 0.0
    %3326 = vmatpush1.msra.mxu0 0.0
    %3327 = vmatprep.subr.mxu0 0.0
    %3328 = vmatpush1.msra.mxu0 0.0
    %3329 = vmatprep.subr.mxu0 0.0
    %3330 = vmatpush1.msra.mxu0 0.0
    %3331 = vmatprep.subr.mxu0 0.0
    %3332 = vmatpush1.msra.mxu0 0.0
    %3333 = vmatprep.subr.mxu0 0.0
    %3334 = vmatpush1.msra.mxu0 0.0
    %3335 = vmatprep.mubr.f32.mxu0 0.0
    %3336 = vmatmul.mubr.f32.gmra.mrb[0].mxu0 %v3269
    %v3337 = vpop.f32.mrb[0].mxu0
    %v3338 = vadd.f32 %v447, %v3337
    %v3339 = vpop.f32.mrb[0].mxu0
    %3340 = vdwg.mxu0
    %v3341 = vld [vmem:[%s18] sm:$0xff]
    %v3342 = vld [vmem:[%s18 + $0x8] sm:$0xff]
    %v3343 = vld [vmem:[%s18 + $0x10] sm:$0xff]
    %v3344 = vld [vmem:[%s18 + $0x18] sm:$0xff]
    %v3345 = vsel %vm465, %v2831, 0
    %3347 = vmatprep.subr.mxu0 0.0
    %3348 = vmatpush1.msra.mxu0 %v3341
    %3349 = vmatprep.subr.mxu0 0.0
    %3350 = vmatpush1.msra.mxu0 %v3342
    %3351 = vmatprep.subr.mxu0 0.0
    %3352 = vmatpush1.msra.mxu0 %v3343
    %3353 = vmatprep.subr.mxu0 0.0
    %3354 = vmatpush1.msra.mxu0 %v3344
    %3355 = vmatprep.subr.mxu0 0.0
    %3356 = vmatpush1.msra.mxu0 0.0
    %3357 = vmatprep.subr.mxu0 0.0
    %3358 = vmatpush1.msra.mxu0 0.0
    %3359 = vmatprep.subr.mxu0 0.0
    %3360 = vmatpush1.msra.mxu0 0.0
    %3361 = vmatprep.subr.mxu0 0.0
    %3362 = vmatpush1.msra.mxu0 0.0
    %3363 = vmatprep.subr.mxu0 0.0
    %3364 = vmatpush1.msra.mxu0 0.0
    %3365 = vmatprep.subr.mxu0 0.0
    %3366 = vmatpush1.msra.mxu0 0.0
    %3367 = vmatprep.subr.mxu0 0.0
    %3368 = vmatpush1.msra.mxu0 0.0
    %3369 = vmatprep.subr.mxu0 0.0
    %3370 = vmatpush1.msra.mxu0 0.0
    %3371 = vmatprep.subr.mxu0 0.0
    %3372 = vmatpush1.msra.mxu0 0.0
    %3373 = vmatprep.subr.mxu0 0.0
    %3374 = vmatpush1.msra.mxu0 0.0
    %3375 = vmatprep.subr.mxu0 0.0
    %3376 = vmatpush1.msra.mxu0 0.0
    %3377 = vmatprep.subr.mxu0 0.0
    %3378 = vmatpush1.msra.mxu0 0.0
    %3379 = vmatprep.subr.mxu0 0.0
    %3380 = vmatpush1.msra.mxu0 0.0
    %3381 = vmatprep.subr.mxu0 0.0
    %3382 = vmatpush1.msra.mxu0 0.0
    %3383 = vmatprep.subr.mxu0 0.0
    %3384 = vmatpush1.msra.mxu0 0.0
    %3385 = vmatprep.subr.mxu0 0.0
    %3386 = vmatpush1.msra.mxu0 0.0
    %3387 = vmatprep.subr.mxu0 0.0
    %3388 = vmatpush1.msra.mxu0 0.0
    %3389 = vmatprep.subr.mxu0 0.0
    %3390 = vmatpush1.msra.mxu0 0.0
    %3391 = vmatprep.subr.mxu0 0.0
    %3392 = vmatpush1.msra.mxu0 0.0
    %3393 = vmatprep.subr.mxu0 0.0
    %3394 = vmatpush1.msra.mxu0 0.0
    %3395 = vmatprep.subr.mxu0 0.0
    %3396 = vmatpush1.msra.mxu0 0.0
    %3397 = vmatprep.subr.mxu0 0.0
    %3398 = vmatpush1.msra.mxu0 0.0
    %3399 = vmatprep.subr.mxu0 0.0
    %3400 = vmatpush1.msra.mxu0 0.0
    %3401 = vmatprep.subr.mxu0 0.0
    %3402 = vmatpush1.msra.mxu0 0.0
    %3403 = vmatprep.subr.mxu0 0.0
    %3404 = vmatpush1.msra.mxu0 0.0
    %3405 = vmatprep.subr.mxu0 0.0
    %3406 = vmatpush1.msra.mxu0 0.0
    %3407 = vmatprep.subr.mxu0 0.0
    %3408 = vmatpush1.msra.mxu0 0.0
    %3409 = vmatprep.subr.mxu0 0.0
    %3410 = vmatpush1.msra.mxu0 0.0
    %3411 = vmatprep.mubr.f32.mxu0 0.0
    %3412 = vmatmul.mubr.f32.gmra.mrb[0].mxu0 %v3345
    %v3413 = vpop.f32.mrb[0].mxu0
    %v3414 = vadd.f32 %v454, %v3413
    %v3415 = vpop.f32.mrb[0].mxu0
    %3416 = vdwg.mxu0
    %v3417 = vmul.f32 %v3179, %v3414
    %v3418 = vadd.f32 %v3338, %v3417
    %v3419 = vtanh.pop %v3418
    %v3420 = vsub.f32 1.0, %v3263
    %v3421 = vmul.f32 %v3420, %v3419
    %v3422 = vmul.f32 %v3263, %v2831
    %v3423 = vadd.f32 %v3421, %v3422
    %v3424 = vsel %vm3086, %v3423, %v2831
    %v3425 = vsel %vm3086, %v3423, 0.0
    %s3426 = scalar_lea.vmem [#allocation5], 16
    %3427 = vst.msk [vmem:[%s3426] sm:$0xf] %vm373, %v3425
    %vm3428 = vcmp.gt.s32.totalorder %v420, 5
    %v3429 = vld [vmem:[%s402] sm:$0xf]
    %v3430 = vld [vmem:[%s9] sm:$0xff]
    %v3431 = vld [vmem:[%s9 + $0x8] sm:$0xff]
    %v3432 = vld [vmem:[%s9 + $0x10] sm:$0xff]
    %v3433 = vld [vmem:[%s9 + $0x18] sm:$0xff]
    %3434 = vmatprep.subr.mxu0 0.0
    %3435 = vmatpush1.msra.mxu0 %v3430
    %3436 = vmatprep.subr.mxu0 0.0
    %3437 = vmatpush1.msra.mxu0 %v3431
    %3438 = vmatprep.subr.mxu0 0.0
    %3439 = vmatpush1.msra.mxu0 %v3432
    %3440 = vmatprep.subr.mxu0 0.0
    %3441 = vmatpush1.msra.mxu0 %v3433
    %3442 = vmatprep.subr.mxu0 0.0
    %3443 = vmatpush1.msra.mxu0 0.0
    %3444 = vmatprep.subr.mxu0 0.0
    %3445 = vmatpush1.msra.mxu0 0.0
    %3446 = vmatprep.subr.mxu0 0.0
    %3447 = vmatpush1.msra.mxu0 0.0
    %3448 = vmatprep.subr.mxu0 0.0
    %3449 = vmatpush1.msra.mxu0 0.0
    %3450 = vmatprep.subr.mxu0 0.0
    %3451 = vmatpush1.msra.mxu0 0.0
    %3452 = vmatprep.subr.mxu0 0.0
    %3453 = vmatpush1.msra.mxu0 0.0
    %3454 = vmatprep.subr.mxu0 0.0
    %3455 = vmatpush1.msra.mxu0 0.0
    %3456 = vmatprep.subr.mxu0 0.0
    %3457 = vmatpush1.msra.mxu0 0.0
    %3458 = vmatprep.subr.mxu0 0.0
    %3459 = vmatpush1.msra.mxu0 0.0
    %3460 = vmatprep.subr.mxu0 0.0
    %3461 = vmatpush1.msra.mxu0 0.0
    %3462 = vmatprep.subr.mxu0 0.0
    %3463 = vmatpush1.msra.mxu0 0.0
    %3464 = vmatprep.subr.mxu0 0.0
    %3465 = vmatpush1.msra.mxu0 0.0
    %3466 = vmatprep.subr.mxu0 0.0
    %3467 = vmatpush1.msra.mxu0 0.0
    %3468 = vmatprep.subr.mxu0 0.0
    %3469 = vmatpush1.msra.mxu0 0.0
    %3470 = vmatprep.subr.mxu0 0.0
    %3471 = vmatpush1.msra.mxu0 0.0
    %3472 = vmatprep.subr.mxu0 0.0
    %3473 = vmatpush1.msra.mxu0 0.0
    %3474 = vmatprep.subr.mxu0 0.0
    %3475 = vmatpush1.msra.mxu0 0.0
    %3476 = vmatprep.subr.mxu0 0.0
    %3477 = vmatpush1.msra.mxu0 0.0
    %3478 = vmatprep.subr.mxu0 0.0
    %3479 = vmatpush1.msra.mxu0 0.0
    %3480 = vmatprep.subr.mxu0 0.0
    %3481 = vmatpush1.msra.mxu0 0.0
    %3482 = vmatprep.subr.mxu0 0.0
    %3483 = vmatpush1.msra.mxu0 0.0
    %3484 = vmatprep.subr.mxu0 0.0
    %3485 = vmatpush1.msra.mxu0 0.0
    %3486 = vmatprep.subr.mxu0 0.0
    %3487 = vmatpush1.msra.mxu0 0.0
    %3488 = vmatprep.subr.mxu0 0.0
    %3489 = vmatpush1.msra.mxu0 0.0
    %3490 = vmatprep.subr.mxu0 0.0
    %3491 = vmatpush1.msra.mxu0 0.0
    %3492 = vmatprep.subr.mxu0 0.0
    %3493 = vmatpush1.msra.mxu0 0.0
    %3494 = vmatprep.subr.mxu0 0.0
    %3495 = vmatpush1.msra.mxu0 0.0
    %3496 = vmatprep.subr.mxu0 0.0
    %3497 = vmatpush1.msra.mxu0 0.0
    %3498 = vmatprep.mubr.f32.mxu0 0.0
    %3499 = vmatmul.mubr.f32.gmra.mrb[0].mxu0 %v3269
    %v3500 = vpop.f32.mrb[0].mxu0
    %v3501 = vadd.f32 0.0, %v3500
    %v3502 = vpop.f32.mrb[0].mxu0
    %3503 = vdwg.mxu0
    %v3504 = vadd.f32 %v3429, %v3501
    %v3505 = vxor.u32 %v3504, 2147483648
    %v3506 = vmul.f32 %v3505, 1.442695
    %v3507 = vpow.pop %v3506
    %v3508 = vadd.f32 %v3507, 1.0
    %v3509 = vrcp.pop %v3508
    %v3510 = vmul.f32 1.0, %v3509
    %v3511 = vld [vmem:[%s404] sm:$0xf]
    %v3512 = vld [vmem:[%s10] sm:$0xff]
    %v3513 = vld [vmem:[%s10 + $0x8] sm:$0xff]
    %v3514 = vld [vmem:[%s10 + $0x10] sm:$0xff]
    %v3515 = vld [vmem:[%s10 + $0x18] sm:$0xff]
    %3516 = vmatprep.subr.mxu0 0.0
    %3517 = vmatpush1.msra.mxu0 %v3512
    %3518 = vmatprep.subr.mxu0 0.0
    %3519 = vmatpush1.msra.mxu0 %v3513
    %3520 = vmatprep.subr.mxu0 0.0
    %3521 = vmatpush1.msra.mxu0 %v3514
    %3522 = vmatprep.subr.mxu0 0.0
    %3523 = vmatpush1.msra.mxu0 %v3515
    %3524 = vmatprep.subr.mxu0 0.0
    %3525 = vmatpush1.msra.mxu0 0.0
    %3526 = vmatprep.subr.mxu0 0.0
    %3527 = vmatpush1.msra.mxu0 0.0
    %3528 = vmatprep.subr.mxu0 0.0
    %3529 = vmatpush1.msra.mxu0 0.0
    %3530 = vmatprep.subr.mxu0 0.0
    %3531 = vmatpush1.msra.mxu0 0.0
    %3532 = vmatprep.subr.mxu0 0.0
    %3533 = vmatpush1.msra.mxu0 0.0
    %3534 = vmatprep.subr.mxu0 0.0
    %3535 = vmatpush1.msra.mxu0 0.0
    %3536 = vmatprep.subr.mxu0 0.0
    %3537 = vmatpush1.msra.mxu0 0.0
    %3538 = vmatprep.subr.mxu0 0.0
    %3539 = vmatpush1.msra.mxu0 0.0
    %3540 = vmatprep.subr.mxu0 0.0
    %3541 = vmatpush1.msra.mxu0 0.0
    %3542 = vmatprep.subr.mxu0 0.0
    %3543 = vmatpush1.msra.mxu0 0.0
    %3544 = vmatprep.subr.mxu0 0.0
    %3545 = vmatpush1.msra.mxu0 0.0
    %3546 = vmatprep.subr.mxu0 0.0
    %3547 = vmatpush1.msra.mxu0 0.0
    %3548 = vmatprep.subr.mxu0 0.0
    %3549 = vmatpush1.msra.mxu0 0.0
    %3550 = vmatprep.subr.mxu0 0.0
    %3551 = vmatpush1.msra.mxu0 0.0
    %3552 = vmatprep.subr.mxu0 0.0
    %3553 = vmatpush1.msra.mxu0 0.0
    %3554 = vmatprep.subr.mxu0 0.0
    %3555 = vmatpush1.msra.mxu0 0.0
    %3556 = vmatprep.subr.mxu0 0.0
    %3557 = vmatpush1.msra.mxu0 0.0
    %3558 = vmatprep.subr.mxu0 0.0
    %3559 = vmatpush1.msra.mxu0 0.0
    %3560 = vmatprep.subr.mxu0 0.0
    %3561 = vmatpush1.msra.mxu0 0.0
    %3562 = vmatprep.subr.mxu0 0.0
    %3563 = vmatpush1.msra.mxu0 0.0
    %3564 = vmatprep.subr.mxu0 0.0
    %3565 = vmatpush1.msra.mxu0 0.0
    %3566 = vmatprep.subr.mxu0 0.0
    %3567 = vmatpush1.msra.mxu0 0.0
    %3568 = vmatprep.subr.mxu0 0.0
    %3569 = vmatpush1.msra.mxu0 0.0
    %3570 = vmatprep.subr.mxu0 0.0
    %3571 = vmatpush1.msra.mxu0 0.0
    %3572 = vmatprep.subr.mxu0 0.0
    %3573 = vmatpush1.msra.mxu0 0.0
    %3574 = vmatprep.subr.mxu0 0.0
    %3575 = vmatpush1.msra.mxu0 0.0
    %3576 = vmatprep.subr.mxu0 0.0
    %3577 = vmatpush1.msra.mxu0 0.0
    %3578 = vmatprep.subr.mxu0 0.0
    %3579 = vmatpush1.msra.mxu0 0.0
    %3580 = vmatprep.mubr.f32.mxu0 0.0
    %3581 = vmatmul.mubr.f32.gmra.mrb[0].mxu0 %v3269
    %v3582 = vpop.f32.mrb[0].mxu0
    %v3583 = vadd.f32 0.0, %v3582
    %v3584 = vpop.f32.mrb[0].mxu0
    %3585 = vdwg.mxu0
    %v3586 = vadd.f32 %v3511, %v3583
    %v3587 = vxor.u32 %v3586, 2147483648
    %v3588 = vmul.f32 %v3587, 1.442695
    %v3589 = vpow.pop %v3588
    %v3590 = vadd.f32 %v3589, 1.0
    %v3591 = vrcp.pop %v3590
    %v3592 = vmul.f32 1.0, %v3591
    %v3593 = vld [vmem:[%s406] sm:$0xf]
    %v3594 = vld [vmem:[%s11] sm:$0xff]
    %v3595 = vld [vmem:[%s11 + $0x8] sm:$0xff]
    %v3596 = vld [vmem:[%s11 + $0x10] sm:$0xff]
    %v3597 = vld [vmem:[%s11 + $0x18] sm:$0xff]
    %3598 = vmatprep.subr.mxu0 0.0
    %3599 = vmatpush1.msra.mxu0 %v3594
    %3600 = vmatprep.subr.mxu0 0.0
    %3601 = vmatpush1.msra.mxu0 %v3595
    %3602 = vmatprep.subr.mxu0 0.0
    %3603 = vmatpush1.msra.mxu0 %v3596
    %3604 = vmatprep.subr.mxu0 0.0
    %3605 = vmatpush1.msra.mxu0 %v3597
    %3606 = vmatprep.subr.mxu0 0.0
    %3607 = vmatpush1.msra.mxu0 0.0
    %3608 = vmatprep.subr.mxu0 0.0
    %3609 = vmatpush1.msra.mxu0 0.0
    %3610 = vmatprep.subr.mxu0 0.0
    %3611 = vmatpush1.msra.mxu0 0.0
    %3612 = vmatprep.subr.mxu0 0.0
    %3613 = vmatpush1.msra.mxu0 0.0
    %3614 = vmatprep.subr.mxu0 0.0
    %3615 = vmatpush1.msra.mxu0 0.0
    %3616 = vmatprep.subr.mxu0 0.0
    %3617 = vmatpush1.msra.mxu0 0.0
    %3618 = vmatprep.subr.mxu0 0.0
    %3619 = vmatpush1.msra.mxu0 0.0
    %3620 = vmatprep.subr.mxu0 0.0
    %3621 = vmatpush1.msra.mxu0 0.0
    %3622 = vmatprep.subr.mxu0 0.0
    %3623 = vmatpush1.msra.mxu0 0.0
    %3624 = vmatprep.subr.mxu0 0.0
    %3625 = vmatpush1.msra.mxu0 0.0
    %3626 = vmatprep.subr.mxu0 0.0
    %3627 = vmatpush1.msra.mxu0 0.0
    %3628 = vmatprep.subr.mxu0 0.0
    %3629 = vmatpush1.msra.mxu0 0.0
    %3630 = vmatprep.subr.mxu0 0.0
    %3631 = vmatpush1.msra.mxu0 0.0
    %3632 = vmatprep.subr.mxu0 0.0
    %3633 = vmatpush1.msra.mxu0 0.0
    %3634 = vmatprep.subr.mxu0 0.0
    %3635 = vmatpush1.msra.mxu0 0.0
    %3636 = vmatprep.subr.mxu0 0.0
    %3637 = vmatpush1.msra.mxu0 0.0
    %3638 = vmatprep.subr.mxu0 0.0
    %3639 = vmatpush1.msra.mxu0 0.0
    %3640 = vmatprep.subr.mxu0 0.0
    %3641 = vmatpush1.msra.mxu0 0.0
    %3642 = vmatprep.subr.mxu0 0.0
    %3643 = vmatpush1.msra.mxu0 0.0
    %3644 = vmatprep.subr.mxu0 0.0
    %3645 = vmatpush1.msra.mxu0 0.0
    %3646 = vmatprep.subr.mxu0 0.0
    %3647 = vmatpush1.msra.mxu0 0.0
    %3648 = vmatprep.subr.mxu0 0.0
    %3649 = vmatpush1.msra.mxu0 0.0
    %3650 = vmatprep.subr.mxu0 0.0
    %3651 = vmatpush1.msra.mxu0 0.0
    %3652 = vmatprep.subr.mxu0 0.0
    %3653 = vmatpush1.msra.mxu0 0.0
    %3654 = vmatprep.subr.mxu0 0.0
    %3655 = vmatpush1.msra.mxu0 0.0
    %3656 = vmatprep.subr.mxu0 0.0
    %3657 = vmatpush1.msra.mxu0 0.0
    %3658 = vmatprep.subr.mxu0 0.0
    %3659 = vmatpush1.msra.mxu0 0.0
    %3660 = vmatprep.subr.mxu0 0.0
    %3661 = vmatpush1.msra.mxu0 0.0
    %3662 = vmatprep.mubr.f32.mxu0 0.0
    %3663 = vmatmul.mubr.f32.gmra.mrb[0].mxu0 %v3269
    %v3664 = vpop.f32.mrb[0].mxu0
    %v3665 = vadd.f32 %v426, %v3664
    %v3666 = vpop.f32.mrb[0].mxu0
    %3667 = vdwg.mxu0
    %v3668 = vmul.f32 %v3510, %v3665
    %v3669 = vadd.f32 %v3593, %v3668
    %v3670 = vtanh.pop %v3669
    %v3671 = vsub.f32 1.0, %v3592
    %v3672 = vmul.f32 %v3671, %v3670
    %v3673 = vmul.f32 %v3592, %v3087
    %v3674 = vadd.f32 %v3672, %v3673
    %v3675 = vsel %vm3428, 1, 0
    %3676 = vset.pattern.permute.xlu0 0
    %3677 = vperm.xlu0 %3676, %v3675
    %v3678 = vpop.permute.xlu0 %3677
    %vm3679 = vcmp.eq.s32.totalorder %v3678, 1
    %v3680 = vsel %vm3679, %v3674, %v3087
    %3682 = vrot.lane.b32.xlu0 %v3424, 32
    %v3683 = vpop.permute.xlu0 %3682
    %v3685 = vsel %vm465, %v3680, %v3683
    %v3686 = vld [vmem:[%s13] sm:$0xff]
    %v3687 = vld [vmem:[%s13 + $0x8] sm:$0xff]
    %v3688 = vld [vmem:[%s13 + $0x10] sm:$0xff]
    %v3689 = vld [vmem:[%s13 + $0x18] sm:$0xff]
    %v3690 = vld [vmem:[%s13 + $0x20] sm:$0xff]
    %v3691 = vld [vmem:[%s13 + $0x28] sm:$0xff]
    %v3692 = vld [vmem:[%s13 + $0x30] sm:$0xff]
    %v3693 = vld [vmem:[%s13 + $0x38] sm:$0xff]
    %v3695 = vsel %vm729, %v3685, 0
    %3697 = vmatprep.subr.mxu0 0.0
    %3698 = vmatpush1.msra.mxu0 %v3686
    %3699 = vmatprep.subr.mxu0 0.0
    %3700 = vmatpush1.msra.mxu0 %v3687
    %3701 = vmatprep.subr.mxu0 0.0
    %3702 = vmatpush1.msra.mxu0 %v3688
    %3703 = vmatprep.subr.mxu0 0.0
    %3704 = vmatpush1.msra.mxu0 %v3689
    %3705 = vmatprep.subr.mxu0 0.0
    %3706 = vmatpush1.msra.mxu0 %v3690
    %3707 = vmatprep.subr.mxu0 0.0
    %3708 = vmatpush1.msra.mxu0 %v3691
    %3709 = vmatprep.subr.mxu0 0.0
    %3710 = vmatpush1.msra.mxu0 %v3692
    %3711 = vmatprep.subr.mxu0 0.0
    %3712 = vmatpush1.msra.mxu0 %v3693
    %3713 = vmatprep.subr.mxu0 0.0
    %3714 = vmatpush1.msra.mxu0 0.0
    %3715 = vmatprep.subr.mxu0 0.0
    %3716 = vmatpush1.msra.mxu0 0.0
    %3717 = vmatprep.subr.mxu0 0.0
    %3718 = vmatpush1.msra.mxu0 0.0
    %3719 = vmatprep.subr.mxu0 0.0
    %3720 = vmatpush1.msra.mxu0 0.0
    %3721 = vmatprep.subr.mxu0 0.0
    %3722 = vmatpush1.msra.mxu0 0.0
    %3723 = vmatprep.subr.mxu0 0.0
    %3724 = vmatpush1.msra.mxu0 0.0
    %3725 = vmatprep.subr.mxu0 0.0
    %3726 = vmatpush1.msra.mxu0 0.0
    %3727 = vmatprep.subr.mxu0 0.0
    %3728 = vmatpush1.msra.mxu0 0.0
    %3729 = vmatprep.subr.mxu0 0.0
    %3730 = vmatpush1.msra.mxu0 0.0
    %3731 = vmatprep.subr.mxu0 0.0
    %3732 = vmatpush1.msra.mxu0 0.0
    %3733 = vmatprep.subr.mxu0 0.0
    %3734 = vmatpush1.msra.mxu0 0.0
    %3735 = vmatprep.subr.mxu0 0.0
    %3736 = vmatpush1.msra.mxu0 0.0
    %3737 = vmatprep.subr.mxu0 0.0
    %3738 = vmatpush1.msra.mxu0 0.0
    %3739 = vmatprep.subr.mxu0 0.0
    %3740 = vmatpush1.msra.mxu0 0.0
    %3741 = vmatprep.subr.mxu0 0.0
    %3742 = vmatpush1.msra.mxu0 0.0
    %3743 = vmatprep.subr.mxu0 0.0
    %3744 = vmatpush1.msra.mxu0 0.0
    %3745 = vmatprep.subr.mxu0 0.0
    %3746 = vmatpush1.msra.mxu0 0.0
    %3747 = vmatprep.subr.mxu0 0.0
    %3748 = vmatpush1.msra.mxu0 0.0
    %3749 = vmatprep.subr.mxu0 0.0
    %3750 = vmatpush1.msra.mxu0 0.0
    %3751 = vmatprep.subr.mxu0 0.0
    %3752 = vmatpush1.msra.mxu0 0.0
    %3753 = vmatprep.subr.mxu0 0.0
    %3754 = vmatpush1.msra.mxu0 0.0
    %3755 = vmatprep.subr.mxu0 0.0
    %3756 = vmatpush1.msra.mxu0 0.0
    %3757 = vmatprep.subr.mxu0 0.0
    %3758 = vmatpush1.msra.mxu0 0.0
    %3759 = vmatprep.subr.mxu0 0.0
    %3760 = vmatpush1.msra.mxu0 0.0
    %3761 = vmatprep.mubr.f32.mxu0 0.0
    %3762 = vmatmul.mubr.f32.gmra.mrb[0].mxu0 %v3695
    %v3763 = vpop.f32.mrb[0].mxu0
    %v3764 = vadd.f32 %v433, %v3763
    %v3765 = vpop.f32.mrb[0].mxu0
    %3766 = vdwg.mxu0
    %v3767 = vxor.u32 %v3764, 2147483648
    %v3768 = vmul.f32 %v3767, 1.442695
    %v3769 = vpow.pop %v3768
    %v3770 = vadd.f32 %v3769, 1.0
    %v3771 = vrcp.pop %v3770
    %v3772 = vmul.f32 1.0, %v3771
    %v3773 = vld [vmem:[%s14] sm:$0xff]
    %v3774 = vld [vmem:[%s14 + $0x8] sm:$0xff]
    %v3775 = vld [vmem:[%s14 + $0x10] sm:$0xff]
    %v3776 = vld [vmem:[%s14 + $0x18] sm:$0xff]
    %v3777 = vld [vmem:[%s14 + $0x20] sm:$0xff]
    %v3778 = vld [vmem:[%s14 + $0x28] sm:$0xff]
    %v3779 = vld [vmem:[%s14 + $0x30] sm:$0xff]
    %v3780 = vld [vmem:[%s14 + $0x38] sm:$0xff]
    %3781 = vmatprep.subr.mxu0 0.0
    %3782 = vmatpush1.msra.mxu0 %v3773
    %3783 = vmatprep.subr.mxu0 0.0
    %3784 = vmatpush1.msra.mxu0 %v3774
    %3785 = vmatprep.subr.mxu0 0.0
    %3786 = vmatpush1.msra.mxu0 %v3775
    %3787 = vmatprep.subr.mxu0 0.0
    %3788 = vmatpush1.msra.mxu0 %v3776
    %3789 = vmatprep.subr.mxu0 0.0
    %3790 = vmatpush1.msra.mxu0 %v3777
    %3791 = vmatprep.subr.mxu0 0.0
    %3792 = vmatpush1.msra.mxu0 %v3778
    %3793 = vmatprep.subr.mxu0 0.0
    %3794 = vmatpush1.msra.mxu0 %v3779
    %3795 = vmatprep.subr.mxu0 0.0
    %3796 = vmatpush1.msra.mxu0 %v3780
    %3797 = vmatprep.subr.mxu0 0.0
    %3798 = vmatpush1.msra.mxu0 0.0
    %3799 = vmatprep.subr.mxu0 0.0
    %3800 = vmatpush1.msra.mxu0 0.0
    %3801 = vmatprep.subr.mxu0 0.0
    %3802 = vmatpush1.msra.mxu0 0.0
    %3803 = vmatprep.subr.mxu0 0.0
    %3804 = vmatpush1.msra.mxu0 0.0
    %3805 = vmatprep.subr.mxu0 0.0
    %3806 = vmatpush1.msra.mxu0 0.0
    %3807 = vmatprep.subr.mxu0 0.0
    %3808 = vmatpush1.msra.mxu0 0.0
    %3809 = vmatprep.subr.mxu0 0.0
    %3810 = vmatpush1.msra.mxu0 0.0
    %3811 = vmatprep.subr.mxu0 0.0
    %3812 = vmatpush1.msra.mxu0 0.0
    %3813 = vmatprep.subr.mxu0 0.0
    %3814 = vmatpush1.msra.mxu0 0.0
    %3815 = vmatprep.subr.mxu0 0.0
    %3816 = vmatpush1.msra.mxu0 0.0
    %3817 = vmatprep.subr.mxu0 0.0
    %3818 = vmatpush1.msra.mxu0 0.0
    %3819 = vmatprep.subr.mxu0 0.0
    %3820 = vmatpush1.msra.mxu0 0.0
    %3821 = vmatprep.subr.mxu0 0.0
    %3822 = vmatpush1.msra.mxu0 0.0
    %3823 = vmatprep.subr.mxu0 0.0
    %3824 = vmatpush1.msra.mxu0 0.0
    %3825 = vmatprep.subr.mxu0 0.0
    %3826 = vmatpush1.msra.mxu0 0.0
    %3827 = vmatprep.subr.mxu0 0.0
    %3828 = vmatpush1.msra.mxu0 0.0
    %3829 = vmatprep.subr.mxu0 0.0
    %3830 = vmatpush1.msra.mxu0 0.0
    %3831 = vmatprep.subr.mxu0 0.0
    %3832 = vmatpush1.msra.mxu0 0.0
    %3833 = vmatprep.subr.mxu0 0.0
    %3834 = vmatpush1.msra.mxu0 0.0
    %3835 = vmatprep.subr.mxu0 0.0
    %3836 = vmatpush1.msra.mxu0 0.0
    %3837 = vmatprep.subr.mxu0 0.0
    %3838 = vmatpush1.msra.mxu0 0.0
    %3839 = vmatprep.subr.mxu0 0.0
    %3840 = vmatpush1.msra.mxu0 0.0
    %3841 = vmatprep.subr.mxu0 0.0
    %3842 = vmatpush1.msra.mxu0 0.0
    %3843 = vmatprep.subr.mxu0 0.0
    %3844 = vmatpush1.msra.mxu0 0.0
    %3845 = vmatprep.mubr.f32.mxu0 0.0
    %3846 = vmatmul.mubr.f32.gmra.mrb[0].mxu0 %v3695
    %v3847 = vpop.f32.mrb[0].mxu0
    %v3848 = vadd.f32 %v440, %v3847
    %v3849 = vpop.f32.mrb[0].mxu0
    %3850 = vdwg.mxu0
    %v3851 = vxor.u32 %v3848, 2147483648
    %v3852 = vmul.f32 %v3851, 1.442695
    %v3853 = vpow.pop %v3852
    %v3854 = vadd.f32 %v3853, 1.0
    %v3855 = vrcp.pop %v3854
    %v3856 = vmul.f32 1.0, %v3855
    %v3857 = vld [vmem:[%s17] sm:$0xff]
    %v3858 = vld [vmem:[%s17 + $0x8] sm:$0xff]
    %v3859 = vld [vmem:[%s17 + $0x10] sm:$0xff]
    %v3860 = vld [vmem:[%s17 + $0x18] sm:$0xff]
    %v3862 = vsel %vm465, %v3680, 0
    %3864 = vmatprep.subr.mxu0 0.0
    %3865 = vmatpush1.msra.mxu0 %v3857
    %3866 = vmatprep.subr.mxu0 0.0
    %3867 = vmatpush1.msra.mxu0 %v3858
    %3868 = vmatprep.subr.mxu0 0.0
    %3869 = vmatpush1.msra.mxu0 %v3859
    %3870 = vmatprep.subr.mxu0 0.0
    %3871 = vmatpush1.msra.mxu0 %v3860
    %3872 = vmatprep.subr.mxu0 0.0
    %3873 = vmatpush1.msra.mxu0 0.0
    %3874 = vmatprep.subr.mxu0 0.0
    %3875 = vmatpush1.msra.mxu0 0.0
    %3876 = vmatprep.subr.mxu0 0.0
    %3877 = vmatpush1.msra.mxu0 0.0
    %3878 = vmatprep.subr.mxu0 0.0
    %3879 = vmatpush1.msra.mxu0 0.0
    %3880 = vmatprep.subr.mxu0 0.0
    %3881 = vmatpush1.msra.mxu0 0.0
    %3882 = vmatprep.subr.mxu0 0.0
    %3883 = vmatpush1.msra.mxu0 0.0
    %3884 = vmatprep.subr.mxu0 0.0
    %3885 = vmatpush1.msra.mxu0 0.0
    %3886 = vmatprep.subr.mxu0 0.0
    %3887 = vmatpush1.msra.mxu0 0.0
    %3888 = vmatprep.subr.mxu0 0.0
    %3889 = vmatpush1.msra.mxu0 0.0
    %3890 = vmatprep.subr.mxu0 0.0
    %3891 = vmatpush1.msra.mxu0 0.0
    %3892 = vmatprep.subr.mxu0 0.0
    %3893 = vmatpush1.msra.mxu0 0.0
    %3894 = vmatprep.subr.mxu0 0.0
    %3895 = vmatpush1.msra.mxu0 0.0
    %3896 = vmatprep.subr.mxu0 0.0
    %3897 = vmatpush1.msra.mxu0 0.0
    %3898 = vmatprep.subr.mxu0 0.0
    %3899 = vmatpush1.msra.mxu0 0.0
    %3900 = vmatprep.subr.mxu0 0.0
    %3901 = vmatpush1.msra.mxu0 0.0
    %3902 = vmatprep.subr.mxu0 0.0
    %3903 = vmatpush1.msra.mxu0 0.0
    %3904 = vmatprep.subr.mxu0 0.0
    %3905 = vmatpush1.msra.mxu0 0.0
    %3906 = vmatprep.subr.mxu0 0.0
    %3907 = vmatpush1.msra.mxu0 0.0
    %3908 = vmatprep.subr.mxu0 0.0
    %3909 = vmatpush1.msra.mxu0 0.0
    %3910 = vmatprep.subr.mxu0 0.0
    %3911 = vmatpush1.msra.mxu0 0.0
    %3912 = vmatprep.subr.mxu0 0.0
    %3913 = vmatpush1.msra.mxu0 0.0
    %3914 = vmatprep.subr.mxu0 0.0
    %3915 = vmatpush1.msra.mxu0 0.0
    %3916 = vmatprep.subr.mxu0 0.0
    %3917 = vmatpush1.msra.mxu0 0.0
    %3918 = vmatprep.subr.mxu0 0.0
    %3919 = vmatpush1.msra.mxu0 0.0
    %3920 = vmatprep.subr.mxu0 0.0
    %3921 = vmatpush1.msra.mxu0 0.0
    %3922 = vmatprep.subr.mxu0 0.0
    %3923 = vmatpush1.msra.mxu0 0.0
    %3924 = vmatprep.subr.mxu0 0.0
    %3925 = vmatpush1.msra.mxu0 0.0
    %3926 = vmatprep.subr.mxu0 0.0
    %3927 = vmatpush1.msra.mxu0 0.0
    %3928 = vmatprep.mubr.f32.mxu0 0.0
    %3929 = vmatmul.mubr.f32.gmra.mrb[0].mxu0 %v3862
    %v3930 = vpop.f32.mrb[0].mxu0
    %v3931 = vadd.f32 %v447, %v3930
    %v3932 = vpop.f32.mrb[0].mxu0
    %3933 = vdwg.mxu0
    %v3934 = vld [vmem:[%s18] sm:$0xff]
    %v3935 = vld [vmem:[%s18 + $0x8] sm:$0xff]
    %v3936 = vld [vmem:[%s18 + $0x10] sm:$0xff]
    %v3937 = vld [vmem:[%s18 + $0x18] sm:$0xff]
    %v3938 = vsel %vm465, %v3424, 0
    %3940 = vmatprep.subr.mxu0 0.0
    %3941 = vmatpush1.msra.mxu0 %v3934
    %3942 = vmatprep.subr.mxu0 0.0
    %3943 = vmatpush1.msra.mxu0 %v3935
    %3944 = vmatprep.subr.mxu0 0.0
    %3945 = vmatpush1.msra.mxu0 %v3936
    %3946 = vmatprep.subr.mxu0 0.0
    %3947 = vmatpush1.msra.mxu0 %v3937
    %3948 = vmatprep.subr.mxu0 0.0
    %3949 = vmatpush1.msra.mxu0 0.0
    %3950 = vmatprep.subr.mxu0 0.0
    %3951 = vmatpush1.msra.mxu0 0.0
    %3952 = vmatprep.subr.mxu0 0.0
    %3953 = vmatpush1.msra.mxu0 0.0
    %3954 = vmatprep.subr.mxu0 0.0
    %3955 = vmatpush1.msra.mxu0 0.0
    %3956 = vmatprep.subr.mxu0 0.0
    %3957 = vmatpush1.msra.mxu0 0.0
    %3958 = vmatprep.subr.mxu0 0.0
    %3959 = vmatpush1.msra.mxu0 0.0
    %3960 = vmatprep.subr.mxu0 0.0
    %3961 = vmatpush1.msra.mxu0 0.0
    %3962 = vmatprep.subr.mxu0 0.0
    %3963 = vmatpush1.msra.mxu0 0.0
    %3964 = vmatprep.subr.mxu0 0.0
    %3965 = vmatpush1.msra.mxu0 0.0
    %3966 = vmatprep.subr.mxu0 0.0
    %3967 = vmatpush1.msra.mxu0 0.0
    %3968 = vmatprep.subr.mxu0 0.0
    %3969 = vmatpush1.msra.mxu0 0.0
    %3970 = vmatprep.subr.mxu0 0.0
    %3971 = vmatpush1.msra.mxu0 0.0
    %3972 = vmatprep.subr.mxu0 0.0
    %3973 = vmatpush1.msra.mxu0 0.0
    %3974 = vmatprep.subr.mxu0 0.0
    %3975 = vmatpush1.msra.mxu0 0.0
    %3976 = vmatprep.subr.mxu0 0.0
    %3977 = vmatpush1.msra.mxu0 0.0
    %3978 = vmatprep.subr.mxu0 0.0
    %3979 = vmatpush1.msra.mxu0 0.0
    %3980 = vmatprep.subr.mxu0 0.0
    %3981 = vmatpush1.msra.mxu0 0.0
    %3982 = vmatprep.subr.mxu0 0.0
    %3983 = vmatpush1.msra.mxu0 0.0
    %3984 = vmatprep.subr.mxu0 0.0
    %3985 = vmatpush1.msra.mxu0 0.0
    %3986 = vmatprep.subr.mxu0 0.0
    %3987 = vmatpush1.msra.mxu0 0.0
    %3988 = vmatprep.subr.mxu0 0.0
    %3989 = vmatpush1.msra.mxu0 0.0
    %3990 = vmatprep.subr.mxu0 0.0
    %3991 = vmatpush1.msra.mxu0 0.0
    %3992 = vmatprep.subr.mxu0 0.0
    %3993 = vmatpush1.msra.mxu0 0.0
    %3994 = vmatprep.subr.mxu0 0.0
    %3995 = vmatpush1.msra.mxu0 0.0
    %3996 = vmatprep.subr.mxu0 0.0
    %3997 = vmatpush1.msra.mxu0 0.0
    %3998 = vmatprep.subr.mxu0 0.0
    %3999 = vmatpush1.msra.mxu0 0.0
    %4000 = vmatprep.subr.mxu0 0.0
    %4001 = vmatpush1.msra.mxu0 0.0
    %4002 = vmatprep.subr.mxu0 0.0
    %4003 = vmatpush1.msra.mxu0 0.0
    %4004 = vmatprep.mubr.f32.mxu0 0.0
    %4005 = vmatmul.mubr.f32.gmra.mrb[0].mxu0 %v3938
    %v4006 = vpop.f32.mrb[0].mxu0
    %v4007 = vadd.f32 %v454, %v4006
    %v4008 = vpop.f32.mrb[0].mxu0
    %4009 = vdwg.mxu0
    %v4010 = vmul.f32 %v3772, %v4007
    %v4011 = vadd.f32 %v3931, %v4010
    %v4012 = vtanh.pop %v4011
    %v4013 = vsub.f32 1.0, %v3856
    %v4014 = vmul.f32 %v4013, %v4012
    %v4015 = vmul.f32 %v3856, %v3424
    %v4016 = vadd.f32 %v4014, %v4015
    %v4017 = vsel %vm3679, %v4016, %v3424
    %v4018 = vsel %vm3679, %v4016, 0.0
    %s4019 = scalar_lea.vmem [#allocation5], 20
    %4020 = vst.msk [vmem:[%s4019] sm:$0xf] %vm373, %v4018
    %vm4021 = vcmp.gt.s32.totalorder %v420, 6
    %v4022 = vld [vmem:[%s408] sm:$0xf]
    %v4023 = vld [vmem:[%s9] sm:$0xff]
    %v4024 = vld [vmem:[%s9 + $0x8] sm:$0xff]
    %v4025 = vld [vmem:[%s9 + $0x10] sm:$0xff]
    %v4026 = vld [vmem:[%s9 + $0x18] sm:$0xff]
    %4027 = vmatprep.subr.mxu0 0.0
    %4028 = vmatpush1.msra.mxu0 %v4023
    %4029 = vmatprep.subr.mxu0 0.0
    %4030 = vmatpush1.msra.mxu0 %v4024
    %4031 = vmatprep.subr.mxu0 0.0
    %4032 = vmatpush1.msra.mxu0 %v4025
    %4033 = vmatprep.subr.mxu0 0.0
    %4034 = vmatpush1.msra.mxu0 %v4026
    %4035 = vmatprep.subr.mxu0 0.0
    %4036 = vmatpush1.msra.mxu0 0.0
    %4037 = vmatprep.subr.mxu0 0.0
    %4038 = vmatpush1.msra.mxu0 0.0
    %4039 = vmatprep.subr.mxu0 0.0
    %4040 = vmatpush1.msra.mxu0 0.0
    %4041 = vmatprep.subr.mxu0 0.0
    %4042 = vmatpush1.msra.mxu0 0.0
    %4043 = vmatprep.subr.mxu0 0.0
    %4044 = vmatpush1.msra.mxu0 0.0
    %4045 = vmatprep.subr.mxu0 0.0
    %4046 = vmatpush1.msra.mxu0 0.0
    %4047 = vmatprep.subr.mxu0 0.0
    %4048 = vmatpush1.msra.mxu0 0.0
    %4049 = vmatprep.subr.mxu0 0.0
    %4050 = vmatpush1.msra.mxu0 0.0
    %4051 = vmatprep.subr.mxu0 0.0
    %4052 = vmatpush1.msra.mxu0 0.0
    %4053 = vmatprep.subr.mxu0 0.0
    %4054 = vmatpush1.msra.mxu0 0.0
    %4055 = vmatprep.subr.mxu0 0.0
    %4056 = vmatpush1.msra.mxu0 0.0
    %4057 = vmatprep.subr.mxu0 0.0
    %4058 = vmatpush1.msra.mxu0 0.0
    %4059 = vmatprep.subr.mxu0 0.0
    %4060 = vmatpush1.msra.mxu0 0.0
    %4061 = vmatprep.subr.mxu0 0.0
    %4062 = vmatpush1.msra.mxu0 0.0
    %4063 = vmatprep.subr.mxu0 0.0
    %4064 = vmatpush1.msra.mxu0 0.0
    %4065 = vmatprep.subr.mxu0 0.0
    %4066 = vmatpush1.msra.mxu0 0.0
    %4067 = vmatprep.subr.mxu0 0.0
    %4068 = vmatpush1.msra.mxu0 0.0
    %4069 = vmatprep.subr.mxu0 0.0
    %4070 = vmatpush1.msra.mxu0 0.0
    %4071 = vmatprep.subr.mxu0 0.0
    %4072 = vmatpush1.msra.mxu0 0.0
    %4073 = vmatprep.subr.mxu0 0.0
    %4074 = vmatpush1.msra.mxu0 0.0
    %4075 = vmatprep.subr.mxu0 0.0
    %4076 = vmatpush1.msra.mxu0 0.0
    %4077 = vmatprep.subr.mxu0 0.0
    %4078 = vmatpush1.msra.mxu0 0.0
    %4079 = vmatprep.subr.mxu0 0.0
    %4080 = vmatpush1.msra.mxu0 0.0
    %4081 = vmatprep.subr.mxu0 0.0
    %4082 = vmatpush1.msra.mxu0 0.0
    %4083 = vmatprep.subr.mxu0 0.0
    %4084 = vmatpush1.msra.mxu0 0.0
    %4085 = vmatprep.subr.mxu0 0.0
    %4086 = vmatpush1.msra.mxu0 0.0
    %4087 = vmatprep.subr.mxu0 0.0
    %4088 = vmatpush1.msra.mxu0 0.0
    %4089 = vmatprep.subr.mxu0 0.0
    %4090 = vmatpush1.msra.mxu0 0.0
    %4091 = vmatprep.mubr.f32.mxu0 0.0
    %4092 = vmatmul.mubr.f32.gmra.mrb[0].mxu0 %v3862
    %v4093 = vpop.f32.mrb[0].mxu0
    %v4094 = vadd.f32 0.0, %v4093
    %v4095 = vpop.f32.mrb[0].mxu0
    %4096 = vdwg.mxu0
    %v4097 = vadd.f32 %v4022, %v4094
    %v4098 = vxor.u32 %v4097, 2147483648
    %v4099 = vmul.f32 %v4098, 1.442695
    %v4100 = vpow.pop %v4099
    %v4101 = vadd.f32 %v4100, 1.0
    %v4102 = vrcp.pop %v4101
    %v4103 = vmul.f32 1.0, %v4102
    %v4104 = vld [vmem:[%s410] sm:$0xf]
    %v4105 = vld [vmem:[%s10] sm:$0xff]
    %v4106 = vld [vmem:[%s10 + $0x8] sm:$0xff]
    %v4107 = vld [vmem:[%s10 + $0x10] sm:$0xff]
    %v4108 = vld [vmem:[%s10 + $0x18] sm:$0xff]
    %4109 = vmatprep.subr.mxu0 0.0
    %4110 = vmatpush1.msra.mxu0 %v4105
    %4111 = vmatprep.subr.mxu0 0.0
    %4112 = vmatpush1.msra.mxu0 %v4106
    %4113 = vmatprep.subr.mxu0 0.0
    %4114 = vmatpush1.msra.mxu0 %v4107
    %4115 = vmatprep.subr.mxu0 0.0
    %4116 = vmatpush1.msra.mxu0 %v4108
    %4117 = vmatprep.subr.mxu0 0.0
    %4118 = vmatpush1.msra.mxu0 0.0
    %4119 = vmatprep.subr.mxu0 0.0
    %4120 = vmatpush1.msra.mxu0 0.0
    %4121 = vmatprep.subr.mxu0 0.0
    %4122 = vmatpush1.msra.mxu0 0.0
    %4123 = vmatprep.subr.mxu0 0.0
    %4124 = vmatpush1.msra.mxu0 0.0
    %4125 = vmatprep.subr.mxu0 0.0
    %4126 = vmatpush1.msra.mxu0 0.0
    %4127 = vmatprep.subr.mxu0 0.0
    %4128 = vmatpush1.msra.mxu0 0.0
    %4129 = vmatprep.subr.mxu0 0.0
    %4130 = vmatpush1.msra.mxu0 0.0
    %4131 = vmatprep.subr.mxu0 0.0
    %4132 = vmatpush1.msra.mxu0 0.0
    %4133 = vmatprep.subr.mxu0 0.0
    %4134 = vmatpush1.msra.mxu0 0.0
    %4135 = vmatprep.subr.mxu0 0.0
    %4136 = vmatpush1.msra.mxu0 0.0
    %4137 = vmatprep.subr.mxu0 0.0
    %4138 = vmatpush1.msra.mxu0 0.0
    %4139 = vmatprep.subr.mxu0 0.0
    %4140 = vmatpush1.msra.mxu0 0.0
    %4141 = vmatprep.subr.mxu0 0.0
    %4142 = vmatpush1.msra.mxu0 0.0
    %4143 = vmatprep.subr.mxu0 0.0
    %4144 = vmatpush1.msra.mxu0 0.0
    %4145 = vmatprep.subr.mxu0 0.0
    %4146 = vmatpush1.msra.mxu0 0.0
    %4147 = vmatprep.subr.mxu0 0.0
    %4148 = vmatpush1.msra.mxu0 0.0
    %4149 = vmatprep.subr.mxu0 0.0
    %4150 = vmatpush1.msra.mxu0 0.0
    %4151 = vmatprep.subr.mxu0 0.0
    %4152 = vmatpush1.msra.mxu0 0.0
    %4153 = vmatprep.subr.mxu0 0.0
    %4154 = vmatpush1.msra.mxu0 0.0
    %4155 = vmatprep.subr.mxu0 0.0
    %4156 = vmatpush1.msra.mxu0 0.0
    %4157 = vmatprep.subr.mxu0 0.0
    %4158 = vmatpush1.msra.mxu0 0.0
    %4159 = vmatprep.subr.mxu0 0.0
    %4160 = vmatpush1.msra.mxu0 0.0
    %4161 = vmatprep.subr.mxu0 0.0
    %4162 = vmatpush1.msra.mxu0 0.0
    %4163 = vmatprep.subr.mxu0 0.0
    %4164 = vmatpush1.msra.mxu0 0.0
    %4165 = vmatprep.subr.mxu0 0.0
    %4166 = vmatpush1.msra.mxu0 0.0
    %4167 = vmatprep.subr.mxu0 0.0
    %4168 = vmatpush1.msra.mxu0 0.0
    %4169 = vmatprep.subr.mxu0 0.0
    %4170 = vmatpush1.msra.mxu0 0.0
    %4171 = vmatprep.subr.mxu0 0.0
    %4172 = vmatpush1.msra.mxu0 0.0
    %4173 = vmatprep.mubr.f32.mxu0 0.0
    %4174 = vmatmul.mubr.f32.gmra.mrb[0].mxu0 %v3862
    %v4175 = vpop.f32.mrb[0].mxu0
    %v4176 = vadd.f32 0.0, %v4175
    %v4177 = vpop.f32.mrb[0].mxu0
    %4178 = vdwg.mxu0
    %v4179 = vadd.f32 %v4104, %v4176
    %v4180 = vxor.u32 %v4179, 2147483648
    %v4181 = vmul.f32 %v4180, 1.442695
    %v4182 = vpow.pop %v4181
    %v4183 = vadd.f32 %v4182, 1.0
    %v4184 = vrcp.pop %v4183
    %v4185 = vmul.f32 1.0, %v4184
    %v4186 = vld [vmem:[%s412] sm:$0xf]
    %v4187 = vld [vmem:[%s11] sm:$0xff]
    %v4188 = vld [vmem:[%s11 + $0x8] sm:$0xff]
    %v4189 = vld [vmem:[%s11 + $0x10] sm:$0xff]
    %v4190 = vld [vmem:[%s11 + $0x18] sm:$0xff]
    %4191 = vmatprep.subr.mxu0 0.0
    %4192 = vmatpush1.msra.mxu0 %v4187
    %4193 = vmatprep.subr.mxu0 0.0
    %4194 = vmatpush1.msra.mxu0 %v4188
    %4195 = vmatprep.subr.mxu0 0.0
    %4196 = vmatpush1.msra.mxu0 %v4189
    %4197 = vmatprep.subr.mxu0 0.0
    %4198 = vmatpush1.msra.mxu0 %v4190
    %4199 = vmatprep.subr.mxu0 0.0
    %4200 = vmatpush1.msra.mxu0 0.0
    %4201 = vmatprep.subr.mxu0 0.0
    %4202 = vmatpush1.msra.mxu0 0.0
    %4203 = vmatprep.subr.mxu0 0.0
    %4204 = vmatpush1.msra.mxu0 0.0
    %4205 = vmatprep.subr.mxu0 0.0
    %4206 = vmatpush1.msra.mxu0 0.0
    %4207 = vmatprep.subr.mxu0 0.0
    %4208 = vmatpush1.msra.mxu0 0.0
    %4209 = vmatprep.subr.mxu0 0.0
    %4210 = vmatpush1.msra.mxu0 0.0
    %4211 = vmatprep.subr.mxu0 0.0
    %4212 = vmatpush1.msra.mxu0 0.0
    %4213 = vmatprep.subr.mxu0 0.0
    %4214 = vmatpush1.msra.mxu0 0.0
    %4215 = vmatprep.subr.mxu0 0.0
    %4216 = vmatpush1.msra.mxu0 0.0
    %4217 = vmatprep.subr.mxu0 0.0
    %4218 = vmatpush1.msra.mxu0 0.0
    %4219 = vmatprep.subr.mxu0 0.0
    %4220 = vmatpush1.msra.mxu0 0.0
    %4221 = vmatprep.subr.mxu0 0.0
    %4222 = vmatpush1.msra.mxu0 0.0
    %4223 = vmatprep.subr.mxu0 0.0
    %4224 = vmatpush1.msra.mxu0 0.0
    %4225 = vmatprep.subr.mxu0 0.0
    %4226 = vmatpush1.msra.mxu0 0.0
    %4227 = vmatprep.subr.mxu0 0.0
    %4228 = vmatpush1.msra.mxu0 0.0
    %4229 = vmatprep.subr.mxu0 0.0
    %4230 = vmatpush1.msra.mxu0 0.0
    %4231 = vmatprep.subr.mxu0 0.0
    %4232 = vmatpush1.msra.mxu0 0.0
    %4233 = vmatprep.subr.mxu0 0.0
    %4234 = vmatpush1.msra.mxu0 0.0
    %4235 = vmatprep.subr.mxu0 0.0
    %4236 = vmatpush1.msra.mxu0 0.0
    %4237 = vmatprep.subr.mxu0 0.0
    %4238 = vmatpush1.msra.mxu0 0.0
    %4239 = vmatprep.subr.mxu0 0.0
    %4240 = vmatpush1.msra.mxu0 0.0
    %4241 = vmatprep.subr.mxu0 0.0
    %4242 = vmatpush1.msra.mxu0 0.0
    %4243 = vmatprep.subr.mxu0 0.0
    %4244 = vmatpush1.msra.mxu0 0.0
    %4245 = vmatprep.subr.mxu0 0.0
    %4246 = vmatpush1.msra.mxu0 0.0
    %4247 = vmatprep.subr.mxu0 0.0
    %4248 = vmatpush1.msra.mxu0 0.0
    %4249 = vmatprep.subr.mxu0 0.0
    %4250 = vmatpush1.msra.mxu0 0.0
    %4251 = vmatprep.subr.mxu0 0.0
    %4252 = vmatpush1.msra.mxu0 0.0
    %4253 = vmatprep.subr.mxu0 0.0
    %4254 = vmatpush1.msra.mxu0 0.0
    %4255 = vmatprep.mubr.f32.mxu0 0.0
    %4256 = vmatmul.mubr.f32.gmra.mrb[0].mxu0 %v3862
    %v4257 = vpop.f32.mrb[0].mxu0
    %v4258 = vadd.f32 %v426, %v4257
    %v4259 = vpop.f32.mrb[0].mxu0
    %4260 = vdwg.mxu0
    %v4261 = vmul.f32 %v4103, %v4258
    %v4262 = vadd.f32 %v4186, %v4261
    %v4263 = vtanh.pop %v4262
    %v4264 = vsub.f32 1.0, %v4185
    %v4265 = vmul.f32 %v4264, %v4263
    %v4266 = vmul.f32 %v4185, %v3680
    %v4267 = vadd.f32 %v4265, %v4266
    %v4268 = vsel %vm4021, 1, 0
    %4269 = vset.pattern.permute.xlu0 0
    %4270 = vperm.xlu0 %4269, %v4268
    %v4271 = vpop.permute.xlu0 %4270
    %vm4272 = vcmp.eq.s32.totalorder %v4271, 1
    %v4273 = vsel %vm4272, %v4267, %v3680
    %4275 = vrot.lane.b32.xlu0 %v4017, 32
    %v4276 = vpop.permute.xlu0 %4275
    %v4278 = vsel %vm465, %v4273, %v4276
    %v4279 = vld [vmem:[%s13] sm:$0xff]
    %v4280 = vld [vmem:[%s13 + $0x8] sm:$0xff]
    %v4281 = vld [vmem:[%s13 + $0x10] sm:$0xff]
    %v4282 = vld [vmem:[%s13 + $0x18] sm:$0xff]
    %v4283 = vld [vmem:[%s13 + $0x20] sm:$0xff]
    %v4284 = vld [vmem:[%s13 + $0x28] sm:$0xff]
    %v4285 = vld [vmem:[%s13 + $0x30] sm:$0xff]
    %v4286 = vld [vmem:[%s13 + $0x38] sm:$0xff]
    %v4288 = vsel %vm729, %v4278, 0
    %4290 = vmatprep.subr.mxu0 0.0
    %4291 = vmatpush1.msra.mxu0 %v4279
    %4292 = vmatprep.subr.mxu0 0.0
    %4293 = vmatpush1.msra.mxu0 %v4280
    %4294 = vmatprep.subr.mxu0 0.0
    %4295 = vmatpush1.msra.mxu0 %v4281
    %4296 = vmatprep.subr.mxu0 0.0
    %4297 = vmatpush1.msra.mxu0 %v4282
    %4298 = vmatprep.subr.mxu0 0.0
    %4299 = vmatpush1.msra.mxu0 %v4283
    %4300 = vmatprep.subr.mxu0 0.0
    %4301 = vmatpush1.msra.mxu0 %v4284
    %4302 = vmatprep.subr.mxu0 0.0
    %4303 = vmatpush1.msra.mxu0 %v4285
    %4304 = vmatprep.subr.mxu0 0.0
    %4305 = vmatpush1.msra.mxu0 %v4286
    %4306 = vmatprep.subr.mxu0 0.0
    %4307 = vmatpush1.msra.mxu0 0.0
    %4308 = vmatprep.subr.mxu0 0.0
    %4309 = vmatpush1.msra.mxu0 0.0
    %4310 = vmatprep.subr.mxu0 0.0
    %4311 = vmatpush1.msra.mxu0 0.0
    %4312 = vmatprep.subr.mxu0 0.0
    %4313 = vmatpush1.msra.mxu0 0.0
    %4314 = vmatprep.subr.mxu0 0.0
    %4315 = vmatpush1.msra.mxu0 0.0
    %4316 = vmatprep.subr.mxu0 0.0
    %4317 = vmatpush1.msra.mxu0 0.0
    %4318 = vmatprep.subr.mxu0 0.0
    %4319 = vmatpush1.msra.mxu0 0.0
    %4320 = vmatprep.subr.mxu0 0.0
    %4321 = vmatpush1.msra.mxu0 0.0
    %4322 = vmatprep.subr.mxu0 0.0
    %4323 = vmatpush1.msra.mxu0 0.0
    %4324 = vmatprep.subr.mxu0 0.0
    %4325 = vmatpush1.msra.mxu0 0.0
    %4326 = vmatprep.subr.mxu0 0.0
    %4327 = vmatpush1.msra.mxu0 0.0
    %4328 = vmatprep.subr.mxu0 0.0
    %4329 = vmatpush1.msra.mxu0 0.0
    %4330 = vmatprep.subr.mxu0 0.0
    %4331 = vmatpush1.msra.mxu0 0.0
    %4332 = vmatprep.subr.mxu0 0.0
    %4333 = vmatpush1.msra.mxu0 0.0
    %4334 = vmatprep.subr.mxu0 0.0
    %4335 = vmatpush1.msra.mxu0 0.0
    %4336 = vmatprep.subr.mxu0 0.0
    %4337 = vmatpush1.msra.mxu0 0.0
    %4338 = vmatprep.subr.mxu0 0.0
    %4339 = vmatpush1.msra.mxu0 0.0
    %4340 = vmatprep.subr.mxu0 0.0
    %4341 = vmatpush1.msra.mxu0 0.0
    %4342 = vmatprep.subr.mxu0 0.0
    %4343 = vmatpush1.msra.mxu0 0.0
    %4344 = vmatprep.subr.mxu0 0.0
    %4345 = vmatpush1.msra.mxu0 0.0
    %4346 = vmatprep.subr.mxu0 0.0
    %4347 = vmatpush1.msra.mxu0 0.0
    %4348 = vmatprep.subr.mxu0 0.0
    %4349 = vmatpush1.msra.mxu0 0.0
    %4350 = vmatprep.subr.mxu0 0.0
    %4351 = vmatpush1.msra.mxu0 0.0
    %4352 = vmatprep.subr.mxu0 0.0
    %4353 = vmatpush1.msra.mxu0 0.0
    %4354 = vmatprep.mubr.f32.mxu0 0.0
    %4355 = vmatmul.mubr.f32.gmra.mrb[0].mxu0 %v4288
    %v4356 = vpop.f32.mrb[0].mxu0
    %v4357 = vadd.f32 %v433, %v4356
    %v4358 = vpop.f32.mrb[0].mxu0
    %4359 = vdwg.mxu0
    %v4360 = vxor.u32 %v4357, 2147483648
    %v4361 = vmul.f32 %v4360, 1.442695
    %v4362 = vpow.pop %v4361
    %v4363 = vadd.f32 %v4362, 1.0
    %v4364 = vrcp.pop %v4363
    %v4365 = vmul.f32 1.0, %v4364
    %v4366 = vld [vmem:[%s14] sm:$0xff]
    %v4367 = vld [vmem:[%s14 + $0x8] sm:$0xff]
    %v4368 = vld [vmem:[%s14 + $0x10] sm:$0xff]
    %v4369 = vld [vmem:[%s14 + $0x18] sm:$0xff]
    %v4370 = vld [vmem:[%s14 + $0x20] sm:$0xff]
    %v4371 = vld [vmem:[%s14 + $0x28] sm:$0xff]
    %v4372 = vld [vmem:[%s14 + $0x30] sm:$0xff]
    %v4373 = vld [vmem:[%s14 + $0x38] sm:$0xff]
    %4374 = vmatprep.subr.mxu0 0.0
    %4375 = vmatpush1.msra.mxu0 %v4366
    %4376 = vmatprep.subr.mxu0 0.0
    %4377 = vmatpush1.msra.mxu0 %v4367
    %4378 = vmatprep.subr.mxu0 0.0
    %4379 = vmatpush1.msra.mxu0 %v4368
    %4380 = vmatprep.subr.mxu0 0.0
    %4381 = vmatpush1.msra.mxu0 %v4369
    %4382 = vmatprep.subr.mxu0 0.0
    %4383 = vmatpush1.msra.mxu0 %v4370
    %4384 = vmatprep.subr.mxu0 0.0
    %4385 = vmatpush1.msra.mxu0 %v4371
    %4386 = vmatprep.subr.mxu0 0.0
    %4387 = vmatpush1.msra.mxu0 %v4372
    %4388 = vmatprep.subr.mxu0 0.0
    %4389 = vmatpush1.msra.mxu0 %v4373
    %4390 = vmatprep.subr.mxu0 0.0
    %4391 = vmatpush1.msra.mxu0 0.0
    %4392 = vmatprep.subr.mxu0 0.0
    %4393 = vmatpush1.msra.mxu0 0.0
    %4394 = vmatprep.subr.mxu0 0.0
    %4395 = vmatpush1.msra.mxu0 0.0
    %4396 = vmatprep.subr.mxu0 0.0
    %4397 = vmatpush1.msra.mxu0 0.0
    %4398 = vmatprep.subr.mxu0 0.0
    %4399 = vmatpush1.msra.mxu0 0.0
    %4400 = vmatprep.subr.mxu0 0.0
    %4401 = vmatpush1.msra.mxu0 0.0
    %4402 = vmatprep.subr.mxu0 0.0
    %4403 = vmatpush1.msra.mxu0 0.0
    %4404 = vmatprep.subr.mxu0 0.0
    %4405 = vmatpush1.msra.mxu0 0.0
    %4406 = vmatprep.subr.mxu0 0.0
    %4407 = vmatpush1.msra.mxu0 0.0
    %4408 = vmatprep.subr.mxu0 0.0
    %4409 = vmatpush1.msra.mxu0 0.0
    %4410 = vmatprep.subr.mxu0 0.0
    %4411 = vmatpush1.msra.mxu0 0.0
    %4412 = vmatprep.subr.mxu0 0.0
    %4413 = vmatpush1.msra.mxu0 0.0
    %4414 = vmatprep.subr.mxu0 0.0
    %4415 = vmatpush1.msra.mxu0 0.0
    %4416 = vmatprep.subr.mxu0 0.0
    %4417 = vmatpush1.msra.mxu0 0.0
    %4418 = vmatprep.subr.mxu0 0.0
    %4419 = vmatpush1.msra.mxu0 0.0
    %4420 = vmatprep.subr.mxu0 0.0
    %4421 = vmatpush1.msra.mxu0 0.0
    %4422 = vmatprep.subr.mxu0 0.0
    %4423 = vmatpush1.msra.mxu0 0.0
    %4424 = vmatprep.subr.mxu0 0.0
    %4425 = vmatpush1.msra.mxu0 0.0
    %4426 = vmatprep.subr.mxu0 0.0
    %4427 = vmatpush1.msra.mxu0 0.0
    %4428 = vmatprep.subr.mxu0 0.0
    %4429 = vmatpush1.msra.mxu0 0.0
    %4430 = vmatprep.subr.mxu0 0.0
    %4431 = vmatpush1.msra.mxu0 0.0
    %4432 = vmatprep.subr.mxu0 0.0
    %4433 = vmatpush1.msra.mxu0 0.0
    %4434 = vmatprep.subr.mxu0 0.0
    %4435 = vmatpush1.msra.mxu0 0.0
    %4436 = vmatprep.subr.mxu0 0.0
    %4437 = vmatpush1.msra.mxu0 0.0
    %4438 = vmatprep.mubr.f32.mxu0 0.0
    %4439 = vmatmul.mubr.f32.gmra.mrb[0].mxu0 %v4288
    %v4440 = vpop.f32.mrb[0].mxu0
    %v4441 = vadd.f32 %v440, %v4440
    %v4442 = vpop.f32.mrb[0].mxu0
    %4443 = vdwg.mxu0
    %v4444 = vxor.u32 %v4441, 2147483648
    %v4445 = vmul.f32 %v4444, 1.442695
    %v4446 = vpow.pop %v4445
    %v4447 = vadd.f32 %v4446, 1.0
    %v4448 = vrcp.pop %v4447
    %v4449 = vmul.f32 1.0, %v4448
    %v4450 = vld [vmem:[%s17] sm:$0xff]
    %v4451 = vld [vmem:[%s17 + $0x8] sm:$0xff]
    %v4452 = vld [vmem:[%s17 + $0x10] sm:$0xff]
    %v4453 = vld [vmem:[%s17 + $0x18] sm:$0xff]
    %v4455 = vsel %vm465, %v4273, 0
    %4457 = vmatprep.subr.mxu0 0.0
    %4458 = vmatpush1.msra.mxu0 %v4450
    %4459 = vmatprep.subr.mxu0 0.0
    %4460 = vmatpush1.msra.mxu0 %v4451
    %4461 = vmatprep.subr.mxu0 0.0
    %4462 = vmatpush1.msra.mxu0 %v4452
    %4463 = vmatprep.subr.mxu0 0.0
    %4464 = vmatpush1.msra.mxu0 %v4453
    %4465 = vmatprep.subr.mxu0 0.0
    %4466 = vmatpush1.msra.mxu0 0.0
    %4467 = vmatprep.subr.mxu0 0.0
    %4468 = vmatpush1.msra.mxu0 0.0
    %4469 = vmatprep.subr.mxu0 0.0
    %4470 = vmatpush1.msra.mxu0 0.0
    %4471 = vmatprep.subr.mxu0 0.0
    %4472 = vmatpush1.msra.mxu0 0.0
    %4473 = vmatprep.subr.mxu0 0.0
    %4474 = vmatpush1.msra.mxu0 0.0
    %4475 = vmatprep.subr.mxu0 0.0
    %4476 = vmatpush1.msra.mxu0 0.0
    %4477 = vmatprep.subr.mxu0 0.0
    %4478 = vmatpush1.msra.mxu0 0.0
    %4479 = vmatprep.subr.mxu0 0.0
    %4480 = vmatpush1.msra.mxu0 0.0
    %4481 = vmatprep.subr.mxu0 0.0
    %4482 = vmatpush1.msra.mxu0 0.0
    %4483 = vmatprep.subr.mxu0 0.0
    %4484 = vmatpush1.msra.mxu0 0.0
    %4485 = vmatprep.subr.mxu0 0.0
    %4486 = vmatpush1.msra.mxu0 0.0
    %4487 = vmatprep.subr.mxu0 0.0
    %4488 = vmatpush1.msra.mxu0 0.0
    %4489 = vmatprep.subr.mxu0 0.0
    %4490 = vmatpush1.msra.mxu0 0.0
    %4491 = vmatprep.subr.mxu0 0.0
    %4492 = vmatpush1.msra.mxu0 0.0
    %4493 = vmatprep.subr.mxu0 0.0
    %4494 = vmatpush1.msra.mxu0 0.0
    %4495 = vmatprep.subr.mxu0 0.0
    %4496 = vmatpush1.msra.mxu0 0.0
    %4497 = vmatprep.subr.mxu0 0.0
    %4498 = vmatpush1.msra.mxu0 0.0
    %4499 = vmatprep.subr.mxu0 0.0
    %4500 = vmatpush1.msra.mxu0 0.0
    %4501 = vmatprep.subr.mxu0 0.0
    %4502 = vmatpush1.msra.mxu0 0.0
    %4503 = vmatprep.subr.mxu0 0.0
    %4504 = vmatpush1.msra.mxu0 0.0
    %4505 = vmatprep.subr.mxu0 0.0
    %4506 = vmatpush1.msra.mxu0 0.0
    %4507 = vmatprep.subr.mxu0 0.0
    %4508 = vmatpush1.msra.mxu0 0.0
    %4509 = vmatprep.subr.mxu0 0.0
    %4510 = vmatpush1.msra.mxu0 0.0
    %4511 = vmatprep.subr.mxu0 0.0
    %4512 = vmatpush1.msra.mxu0 0.0
    %4513 = vmatprep.subr.mxu0 0.0
    %4514 = vmatpush1.msra.mxu0 0.0
    %4515 = vmatprep.subr.mxu0 0.0
    %4516 = vmatpush1.msra.mxu0 0.0
    %4517 = vmatprep.subr.mxu0 0.0
    %4518 = vmatpush1.msra.mxu0 0.0
    %4519 = vmatprep.subr.mxu0 0.0
    %4520 = vmatpush1.msra.mxu0 0.0
    %4521 = vmatprep.mubr.f32.mxu0 0.0
    %4522 = vmatmul.mubr.f32.gmra.mrb[0].mxu0 %v4455
    %v4523 = vpop.f32.mrb[0].mxu0
    %v4524 = vadd.f32 %v447, %v4523
    %v4525 = vpop.f32.mrb[0].mxu0
    %4526 = vdwg.mxu0
    %v4527 = vld [vmem:[%s18] sm:$0xff]
    %v4528 = vld [vmem:[%s18 + $0x8] sm:$0xff]
    %v4529 = vld [vmem:[%s18 + $0x10] sm:$0xff]
    %v4530 = vld [vmem:[%s18 + $0x18] sm:$0xff]
    %v4531 = vsel %vm465, %v4017, 0
    %4533 = vmatprep.subr.mxu0 0.0
    %4534 = vmatpush1.msra.mxu0 %v4527
    %4535 = vmatprep.subr.mxu0 0.0
    %4536 = vmatpush1.msra.mxu0 %v4528
    %4537 = vmatprep.subr.mxu0 0.0
    %4538 = vmatpush1.msra.mxu0 %v4529
    %4539 = vmatprep.subr.mxu0 0.0
    %4540 = vmatpush1.msra.mxu0 %v4530
    %4541 = vmatprep.subr.mxu0 0.0
    %4542 = vmatpush1.msra.mxu0 0.0
    %4543 = vmatprep.subr.mxu0 0.0
    %4544 = vmatpush1.msra.mxu0 0.0
    %4545 = vmatprep.subr.mxu0 0.0
    %4546 = vmatpush1.msra.mxu0 0.0
    %4547 = vmatprep.subr.mxu0 0.0
    %4548 = vmatpush1.msra.mxu0 0.0
    %4549 = vmatprep.subr.mxu0 0.0
    %4550 = vmatpush1.msra.mxu0 0.0
    %4551 = vmatprep.subr.mxu0 0.0
    %4552 = vmatpush1.msra.mxu0 0.0
    %4553 = vmatprep.subr.mxu0 0.0
    %4554 = vmatpush1.msra.mxu0 0.0
    %4555 = vmatprep.subr.mxu0 0.0
    %4556 = vmatpush1.msra.mxu0 0.0
    %4557 = vmatprep.subr.mxu0 0.0
    %4558 = vmatpush1.msra.mxu0 0.0
    %4559 = vmatprep.subr.mxu0 0.0
    %4560 = vmatpush1.msra.mxu0 0.0
    %4561 = vmatprep.subr.mxu0 0.0
    %4562 = vmatpush1.msra.mxu0 0.0
    %4563 = vmatprep.subr.mxu0 0.0
    %4564 = vmatpush1.msra.mxu0 0.0
    %4565 = vmatprep.subr.mxu0 0.0
    %4566 = vmatpush1.msra.mxu0 0.0
    %4567 = vmatprep.subr.mxu0 0.0
    %4568 = vmatpush1.msra.mxu0 0.0
    %4569 = vmatprep.subr.mxu0 0.0
    %4570 = vmatpush1.msra.mxu0 0.0
    %4571 = vmatprep.subr.mxu0 0.0
    %4572 = vmatpush1.msra.mxu0 0.0
    %4573 = vmatprep.subr.mxu0 0.0
    %4574 = vmatpush1.msra.mxu0 0.0
    %4575 = vmatprep.subr.mxu0 0.0
    %4576 = vmatpush1.msra.mxu0 0.0
    %4577 = vmatprep.subr.mxu0 0.0
    %4578 = vmatpush1.msra.mxu0 0.0
    %4579 = vmatprep.subr.mxu0 0.0
    %4580 = vmatpush1.msra.mxu0 0.0
    %4581 = vmatprep.subr.mxu0 0.0
    %4582 = vmatpush1.msra.mxu0 0.0
    %4583 = vmatprep.subr.mxu0 0.0
    %4584 = vmatpush1.msra.mxu0 0.0
    %4585 = vmatprep.subr.mxu0 0.0
    %4586 = vmatpush1.msra.mxu0 0.0
    %4587 = vmatprep.subr.mxu0 0.0
    %4588 = vmatpush1.msra.mxu0 0.0
    %4589 = vmatprep.subr.mxu0 0.0
    %4590 = vmatpush1.msra.mxu0 0.0
    %4591 = vmatprep.subr.mxu0 0.0
    %4592 = vmatpush1.msra.mxu0 0.0
    %4593 = vmatprep.subr.mxu0 0.0
    %4594 = vmatpush1.msra.mxu0 0.0
    %4595 = vmatprep.subr.mxu0 0.0
    %4596 = vmatpush1.msra.mxu0 0.0
    %4597 = vmatprep.mubr.f32.mxu0 0.0
    %4598 = vmatmul.mubr.f32.gmra.mrb[0].mxu0 %v4531
    %v4599 = vpop.f32.mrb[0].mxu0
    %v4600 = vadd.f32 %v454, %v4599
    %v4601 = vpop.f32.mrb[0].mxu0
    %4602 = vdwg.mxu0
    %v4603 = vmul.f32 %v4365, %v4600
    %v4604 = vadd.f32 %v4524, %v4603
    %v4605 = vtanh.pop %v4604
    %v4606 = vsub.f32 1.0, %v4449
    %v4607 = vmul.f32 %v4606, %v4605
    %v4608 = vmul.f32 %v4449, %v4017
    %v4609 = vadd.f32 %v4607, %v4608
    %v4610 = vsel %vm4272, %v4609, %v4017
    %v4611 = vsel %vm4272, %v4609, 0.0
    %s4612 = scalar_lea.vmem [#allocation5], 24
    %4613 = vst.msk [vmem:[%s4612] sm:$0xf] %vm373, %v4611
    %vm4614 = vcmp.gt.s32.totalorder %v420, 7
    %v4615 = vld [vmem:[%s414] sm:$0xf]
    %v4616 = vld [vmem:[%s9] sm:$0xff]
    %v4617 = vld [vmem:[%s9 + $0x8] sm:$0xff]
    %v4618 = vld [vmem:[%s9 + $0x10] sm:$0xff]
    %v4619 = vld [vmem:[%s9 + $0x18] sm:$0xff]
    %4620 = vmatprep.subr.mxu0 0.0
    %4621 = vmatpush1.msra.mxu0 %v4616
    %4622 = vmatprep.subr.mxu0 0.0
    %4623 = vmatpush1.msra.mxu0 %v4617
    %4624 = vmatprep.subr.mxu0 0.0
    %4625 = vmatpush1.msra.mxu0 %v4618
    %4626 = vmatprep.subr.mxu0 0.0
    %4627 = vmatpush1.msra.mxu0 %v4619
    %4628 = vmatprep.subr.mxu0 0.0
    %4629 = vmatpush1.msra.mxu0 0.0
    %4630 = vmatprep.subr.mxu0 0.0
    %4631 = vmatpush1.msra.mxu0 0.0
    %4632 = vmatprep.subr.mxu0 0.0
    %4633 = vmatpush1.msra.mxu0 0.0
    %4634 = vmatprep.subr.mxu0 0.0
    %4635 = vmatpush1.msra.mxu0 0.0
    %4636 = vmatprep.subr.mxu0 0.0
    %4637 = vmatpush1.msra.mxu0 0.0
    %4638 = vmatprep.subr.mxu0 0.0
    %4639 = vmatpush1.msra.mxu0 0.0
    %4640 = vmatprep.subr.mxu0 0.0
    %4641 = vmatpush1.msra.mxu0 0.0
    %4642 = vmatprep.subr.mxu0 0.0
    %4643 = vmatpush1.msra.mxu0 0.0
    %4644 = vmatprep.subr.mxu0 0.0
    %4645 = vmatpush1.msra.mxu0 0.0
    %4646 = vmatprep.subr.mxu0 0.0
    %4647 = vmatpush1.msra.mxu0 0.0
    %4648 = vmatprep.subr.mxu0 0.0
    %4649 = vmatpush1.msra.mxu0 0.0
    %4650 = vmatprep.subr.mxu0 0.0
    %4651 = vmatpush1.msra.mxu0 0.0
    %4652 = vmatprep.subr.mxu0 0.0
    %4653 = vmatpush1.msra.mxu0 0.0
    %4654 = vmatprep.subr.mxu0 0.0
    %4655 = vmatpush1.msra.mxu0 0.0
    %4656 = vmatprep.subr.mxu0 0.0
    %4657 = vmatpush1.msra.mxu0 0.0
    %4658 = vmatprep.subr.mxu0 0.0
    %4659 = vmatpush1.msra.mxu0 0.0
    %4660 = vmatprep.subr.mxu0 0.0
    %4661 = vmatpush1.msra.mxu0 0.0
    %4662 = vmatprep.subr.mxu0 0.0
    %4663 = vmatpush1.msra.mxu0 0.0
    %4664 = vmatprep.subr.mxu0 0.0
    %4665 = vmatpush1.msra.mxu0 0.0
    %4666 = vmatprep.subr.mxu0 0.0
    %4667 = vmatpush1.msra.mxu0 0.0
    %4668 = vmatprep.subr.mxu0 0.0
    %4669 = vmatpush1.msra.mxu0 0.0
    %4670 = vmatprep.subr.mxu0 0.0
    %4671 = vmatpush1.msra.mxu0 0.0
    %4672 = vmatprep.subr.mxu0 0.0
    %4673 = vmatpush1.msra.mxu0 0.0
    %4674 = vmatprep.subr.mxu0 0.0
    %4675 = vmatpush1.msra.mxu0 0.0
    %4676 = vmatprep.subr.mxu0 0.0
    %4677 = vmatpush1.msra.mxu0 0.0
    %4678 = vmatprep.subr.mxu0 0.0
    %4679 = vmatpush1.msra.mxu0 0.0
    %4680 = vmatprep.subr.mxu0 0.0
    %4681 = vmatpush1.msra.mxu0 0.0
    %4682 = vmatprep.subr.mxu0 0.0
    %4683 = vmatpush1.msra.mxu0 0.0
    %4684 = vmatprep.mubr.f32.mxu0 0.0
    %4685 = vmatmul.mubr.f32.gmra.mrb[0].mxu0 %v4455
    %v4686 = vpop.f32.mrb[0].mxu0
    %v4687 = vadd.f32 0.0, %v4686
    %v4688 = vpop.f32.mrb[0].mxu0
    %4689 = vdwg.mxu0
    %v4690 = vadd.f32 %v4615, %v4687
    %v4691 = vxor.u32 %v4690, 2147483648
    %v4692 = vmul.f32 %v4691, 1.442695
    %v4693 = vpow.pop %v4692
    %v4694 = vadd.f32 %v4693, 1.0
    %v4695 = vrcp.pop %v4694
    %v4696 = vmul.f32 1.0, %v4695
    %v4697 = vld [vmem:[%s416] sm:$0xf]
    %v4698 = vld [vmem:[%s10] sm:$0xff]
    %v4699 = vld [vmem:[%s10 + $0x8] sm:$0xff]
    %v4700 = vld [vmem:[%s10 + $0x10] sm:$0xff]
    %v4701 = vld [vmem:[%s10 + $0x18] sm:$0xff]
    %4702 = vmatprep.subr.mxu0 0.0
    %4703 = vmatpush1.msra.mxu0 %v4698
    %4704 = vmatprep.subr.mxu0 0.0
    %4705 = vmatpush1.msra.mxu0 %v4699
    %4706 = vmatprep.subr.mxu0 0.0
    %4707 = vmatpush1.msra.mxu0 %v4700
    %4708 = vmatprep.subr.mxu0 0.0
    %4709 = vmatpush1.msra.mxu0 %v4701
    %4710 = vmatprep.subr.mxu0 0.0
    %4711 = vmatpush1.msra.mxu0 0.0
    %4712 = vmatprep.subr.mxu0 0.0
    %4713 = vmatpush1.msra.mxu0 0.0
    %4714 = vmatprep.subr.mxu0 0.0
    %4715 = vmatpush1.msra.mxu0 0.0
    %4716 = vmatprep.subr.mxu0 0.0
    %4717 = vmatpush1.msra.mxu0 0.0
    %4718 = vmatprep.subr.mxu0 0.0
    %4719 = vmatpush1.msra.mxu0 0.0
    %4720 = vmatprep.subr.mxu0 0.0
    %4721 = vmatpush1.msra.mxu0 0.0
    %4722 = vmatprep.subr.mxu0 0.0
    %4723 = vmatpush1.msra.mxu0 0.0
    %4724 = vmatprep.subr.mxu0 0.0
    %4725 = vmatpush1.msra.mxu0 0.0
    %4726 = vmatprep.subr.mxu0 0.0
    %4727 = vmatpush1.msra.mxu0 0.0
    %4728 = vmatprep.subr.mxu0 0.0
    %4729 = vmatpush1.msra.mxu0 0.0
    %4730 = vmatprep.subr.mxu0 0.0
    %4731 = vmatpush1.msra.mxu0 0.0
    %4732 = vmatprep.subr.mxu0 0.0
    %4733 = vmatpush1.msra.mxu0 0.0
    %4734 = vmatprep.subr.mxu0 0.0
    %4735 = vmatpush1.msra.mxu0 0.0
    %4736 = vmatprep.subr.mxu0 0.0
    %4737 = vmatpush1.msra.mxu0 0.0
    %4738 = vmatprep.subr.mxu0 0.0
    %4739 = vmatpush1.msra.mxu0 0.0
    %4740 = vmatprep.subr.mxu0 0.0
    %4741 = vmatpush1.msra.mxu0 0.0
    %4742 = vmatprep.subr.mxu0 0.0
    %4743 = vmatpush1.msra.mxu0 0.0
    %4744 = vmatprep.subr.mxu0 0.0
    %4745 = vmatpush1.msra.mxu0 0.0
    %4746 = vmatprep.subr.mxu0 0.0
    %4747 = vmatpush1.msra.mxu0 0.0
    %4748 = vmatprep.subr.mxu0 0.0
    %4749 = vmatpush1.msra.mxu0 0.0
    %4750 = vmatprep.subr.mxu0 0.0
    %4751 = vmatpush1.msra.mxu0 0.0
    %4752 = vmatprep.subr.mxu0 0.0
    %4753 = vmatpush1.msra.mxu0 0.0
    %4754 = vmatprep.subr.mxu0 0.0
    %4755 = vmatpush1.msra.mxu0 0.0
    %4756 = vmatprep.subr.mxu0 0.0
    %4757 = vmatpush1.msra.mxu0 0.0
    %4758 = vmatprep.subr.mxu0 0.0
    %4759 = vmatpush1.msra.mxu0 0.0
    %4760 = vmatprep.subr.mxu0 0.0
    %4761 = vmatpush1.msra.mxu0 0.0
    %4762 = vmatprep.subr.mxu0 0.0
    %4763 = vmatpush1.msra.mxu0 0.0
    %4764 = vmatprep.subr.mxu0 0.0
    %4765 = vmatpush1.msra.mxu0 0.0
    %4766 = vmatprep.mubr.f32.mxu0 0.0
    %4767 = vmatmul.mubr.f32.gmra.mrb[0].mxu0 %v4455
    %v4768 = vpop.f32.mrb[0].mxu0
    %v4769 = vadd.f32 0.0, %v4768
    %v4770 = vpop.f32.mrb[0].mxu0
    %4771 = vdwg.mxu0
    %v4772 = vadd.f32 %v4697, %v4769
    %v4773 = vxor.u32 %v4772, 2147483648
    %v4774 = vmul.f32 %v4773, 1.442695
    %v4775 = vpow.pop %v4774
    %v4776 = vadd.f32 %v4775, 1.0
    %v4777 = vrcp.pop %v4776
    %v4778 = vmul.f32 1.0, %v4777
    %v4779 = vld [vmem:[%s418] sm:$0xf]
    %v4780 = vld [vmem:[%s11] sm:$0xff]
    %v4781 = vld [vmem:[%s11 + $0x8] sm:$0xff]
    %v4782 = vld [vmem:[%s11 + $0x10] sm:$0xff]
    %v4783 = vld [vmem:[%s11 + $0x18] sm:$0xff]
    %4784 = vmatprep.subr.mxu0 0.0
    %4785 = vmatpush1.msra.mxu0 %v4780
    %4786 = vmatprep.subr.mxu0 0.0
    %4787 = vmatpush1.msra.mxu0 %v4781
    %4788 = vmatprep.subr.mxu0 0.0
    %4789 = vmatpush1.msra.mxu0 %v4782
    %4790 = vmatprep.subr.mxu0 0.0
    %4791 = vmatpush1.msra.mxu0 %v4783
    %4792 = vmatprep.subr.mxu0 0.0
    %4793 = vmatpush1.msra.mxu0 0.0
    %4794 = vmatprep.subr.mxu0 0.0
    %4795 = vmatpush1.msra.mxu0 0.0
    %4796 = vmatprep.subr.mxu0 0.0
    %4797 = vmatpush1.msra.mxu0 0.0
    %4798 = vmatprep.subr.mxu0 0.0
    %4799 = vmatpush1.msra.mxu0 0.0
    %4800 = vmatprep.subr.mxu0 0.0
    %4801 = vmatpush1.msra.mxu0 0.0
    %4802 = vmatprep.subr.mxu0 0.0
    %4803 = vmatpush1.msra.mxu0 0.0
    %4804 = vmatprep.subr.mxu0 0.0
    %4805 = vmatpush1.msra.mxu0 0.0
    %4806 = vmatprep.subr.mxu0 0.0
    %4807 = vmatpush1.msra.mxu0 0.0
    %4808 = vmatprep.subr.mxu0 0.0
    %4809 = vmatpush1.msra.mxu0 0.0
    %4810 = vmatprep.subr.mxu0 0.0
    %4811 = vmatpush1.msra.mxu0 0.0
    %4812 = vmatprep.subr.mxu0 0.0
    %4813 = vmatpush1.msra.mxu0 0.0
    %4814 = vmatprep.subr.mxu0 0.0
    %4815 = vmatpush1.msra.mxu0 0.0
    %4816 = vmatprep.subr.mxu0 0.0
    %4817 = vmatpush1.msra.mxu0 0.0
    %4818 = vmatprep.subr.mxu0 0.0
    %4819 = vmatpush1.msra.mxu0 0.0
    %4820 = vmatprep.subr.mxu0 0.0
    %4821 = vmatpush1.msra.mxu0 0.0
    %4822 = vmatprep.subr.mxu0 0.0
    %4823 = vmatpush1.msra.mxu0 0.0
    %4824 = vmatprep.subr.mxu0 0.0
    %4825 = vmatpush1.msra.mxu0 0.0
    %4826 = vmatprep.subr.mxu0 0.0
    %4827 = vmatpush1.msra.mxu0 0.0
    %4828 = vmatprep.subr.mxu0 0.0
    %4829 = vmatpush1.msra.mxu0 0.0
    %4830 = vmatprep.subr.mxu0 0.0
    %4831 = vmatpush1.msra.mxu0 0.0
    %4832 = vmatprep.subr.mxu0 0.0
    %4833 = vmatpush1.msra.mxu0 0.0
    %4834 = vmatprep.subr.mxu0 0.0
    %4835 = vmatpush1.msra.mxu0 0.0
    %4836 = vmatprep.subr.mxu0 0.0
    %4837 = vmatpush1.msra.mxu0 0.0
    %4838 = vmatprep.subr.mxu0 0.0
    %4839 = vmatpush1.msra.mxu0 0.0
    %4840 = vmatprep.subr.mxu0 0.0
    %4841 = vmatpush1.msra.mxu0 0.0
    %4842 = vmatprep.subr.mxu0 0.0
    %4843 = vmatpush1.msra.mxu0 0.0
    %4844 = vmatprep.subr.mxu0 0.0
    %4845 = vmatpush1.msra.mxu0 0.0
    %4846 = vmatprep.subr.mxu0 0.0
    %4847 = vmatpush1.msra.mxu0 0.0
    %4848 = vmatprep.mubr.f32.mxu0 0.0
    %4849 = vmatmul.mubr.f32.gmra.mrb[0].mxu0 %v4455
    %v4850 = vpop.f32.mrb[0].mxu0
    %v4851 = vadd.f32 %v426, %v4850
    %v4852 = vpop.f32.mrb[0].mxu0
    %4853 = vdwg.mxu0
    %v4854 = vmul.f32 %v4696, %v4851
    %v4855 = vadd.f32 %v4779, %v4854
    %v4856 = vtanh.pop %v4855
    %v4857 = vsub.f32 1.0, %v4778
    %v4858 = vmul.f32 %v4857, %v4856
    %v4859 = vmul.f32 %v4778, %v4273
    %v4860 = vadd.f32 %v4858, %v4859
    %v4861 = vsel %vm4614, 1, 0
    %4862 = vset.pattern.permute.xlu0 0
    %4863 = vperm.xlu0 %4862, %v4861
    %v4864 = vpop.permute.xlu0 %4863
    %vm4865 = vcmp.eq.s32.totalorder %v4864, 1
    %v4866 = vsel %vm4865, %v4860, %v4273
    %4868 = vrot.lane.b32.xlu0 %v4610, 32
    %v4869 = vpop.permute.xlu0 %4868
    %v4871 = vsel %vm465, %v4866, %v4869
    %v4872 = vld [vmem:[%s13] sm:$0xff]
    %v4873 = vld [vmem:[%s13 + $0x8] sm:$0xff]
    %v4874 = vld [vmem:[%s13 + $0x10] sm:$0xff]
    %v4875 = vld [vmem:[%s13 + $0x18] sm:$0xff]
    %v4876 = vld [vmem:[%s13 + $0x20] sm:$0xff]
    %v4877 = vld [vmem:[%s13 + $0x28] sm:$0xff]
    %v4878 = vld [vmem:[%s13 + $0x30] sm:$0xff]
    %v4879 = vld [vmem:[%s13 + $0x38] sm:$0xff]
    %v4881 = vsel %vm729, %v4871, 0
    %4883 = vmatprep.subr.mxu0 0.0
    %4884 = vmatpush1.msra.mxu0 %v4872
    %4885 = vmatprep.subr.mxu0 0.0
    %4886 = vmatpush1.msra.mxu0 %v4873
    %4887 = vmatprep.subr.mxu0 0.0
    %4888 = vmatpush1.msra.mxu0 %v4874
    %4889 = vmatprep.subr.mxu0 0.0
    %4890 = vmatpush1.msra.mxu0 %v4875
    %4891 = vmatprep.subr.mxu0 0.0
    %4892 = vmatpush1.msra.mxu0 %v4876
    %4893 = vmatprep.subr.mxu0 0.0
    %4894 = vmatpush1.msra.mxu0 %v4877
    %4895 = vmatprep.subr.mxu0 0.0
    %4896 = vmatpush1.msra.mxu0 %v4878
    %4897 = vmatprep.subr.mxu0 0.0
    %4898 = vmatpush1.msra.mxu0 %v4879
    %4899 = vmatprep.subr.mxu0 0.0
    %4900 = vmatpush1.msra.mxu0 0.0
    %4901 = vmatprep.subr.mxu0 0.0
    %4902 = vmatpush1.msra.mxu0 0.0
    %4903 = vmatprep.subr.mxu0 0.0
    %4904 = vmatpush1.msra.mxu0 0.0
    %4905 = vmatprep.subr.mxu0 0.0
    %4906 = vmatpush1.msra.mxu0 0.0
    %4907 = vmatprep.subr.mxu0 0.0
    %4908 = vmatpush1.msra.mxu0 0.0
    %4909 = vmatprep.subr.mxu0 0.0
    %4910 = vmatpush1.msra.mxu0 0.0
    %4911 = vmatprep.subr.mxu0 0.0
    %4912 = vmatpush1.msra.mxu0 0.0
    %4913 = vmatprep.subr.mxu0 0.0
    %4914 = vmatpush1.msra.mxu0 0.0
    %4915 = vmatprep.subr.mxu0 0.0
    %4916 = vmatpush1.msra.mxu0 0.0
    %4917 = vmatprep.subr.mxu0 0.0
    %4918 = vmatpush1.msra.mxu0 0.0
    %4919 = vmatprep.subr.mxu0 0.0
    %4920 = vmatpush1.msra.mxu0 0.0
    %4921 = vmatprep.subr.mxu0 0.0
    %4922 = vmatpush1.msra.mxu0 0.0
    %4923 = vmatprep.subr.mxu0 0.0
    %4924 = vmatpush1.msra.mxu0 0.0
    %4925 = vmatprep.subr.mxu0 0.0
    %4926 = vmatpush1.msra.mxu0 0.0
    %4927 = vmatprep.subr.mxu0 0.0
    %4928 = vmatpush1.msra.mxu0 0.0
    %4929 = vmatprep.subr.mxu0 0.0
    %4930 = vmatpush1.msra.mxu0 0.0
    %4931 = vmatprep.subr.mxu0 0.0
    %4932 = vmatpush1.msra.mxu0 0.0
    %4933 = vmatprep.subr.mxu0 0.0
    %4934 = vmatpush1.msra.mxu0 0.0
    %4935 = vmatprep.subr.mxu0 0.0
    %4936 = vmatpush1.msra.mxu0 0.0
    %4937 = vmatprep.subr.mxu0 0.0
    %4938 = vmatpush1.msra.mxu0 0.0
    %4939 = vmatprep.subr.mxu0 0.0
    %4940 = vmatpush1.msra.mxu0 0.0
    %4941 = vmatprep.subr.mxu0 0.0
    %4942 = vmatpush1.msra.mxu0 0.0
    %4943 = vmatprep.subr.mxu0 0.0
    %4944 = vmatpush1.msra.mxu0 0.0
    %4945 = vmatprep.subr.mxu0 0.0
    %4946 = vmatpush1.msra.mxu0 0.0
    %4947 = vmatprep.mubr.f32.mxu0 0.0
    %4948 = vmatmul.mubr.f32.gmra.mrb[0].mxu0 %v4881
    %v4949 = vpop.f32.mrb[0].mxu0
    %v4950 = vadd.f32 %v433, %v4949
    %v4951 = vpop.f32.mrb[0].mxu0
    %4952 = vdwg.mxu0
    %v4953 = vxor.u32 %v4950, 2147483648
    %v4954 = vmul.f32 %v4953, 1.442695
    %v4955 = vpow.pop %v4954
    %v4956 = vadd.f32 %v4955, 1.0
    %v4957 = vrcp.pop %v4956
    %v4958 = vmul.f32 1.0, %v4957
    %v4959 = vld [vmem:[%s14] sm:$0xff]
    %v4960 = vld [vmem:[%s14 + $0x8] sm:$0xff]
    %v4961 = vld [vmem:[%s14 + $0x10] sm:$0xff]
    %v4962 = vld [vmem:[%s14 + $0x18] sm:$0xff]
    %v4963 = vld [vmem:[%s14 + $0x20] sm:$0xff]
    %v4964 = vld [vmem:[%s14 + $0x28] sm:$0xff]
    %v4965 = vld [vmem:[%s14 + $0x30] sm:$0xff]
    %v4966 = vld [vmem:[%s14 + $0x38] sm:$0xff]
    %4967 = vmatprep.subr.mxu0 0.0
    %4968 = vmatpush1.msra.mxu0 %v4959
    %4969 = vmatprep.subr.mxu0 0.0
    %4970 = vmatpush1.msra.mxu0 %v4960
    %4971 = vmatprep.subr.mxu0 0.0
    %4972 = vmatpush1.msra.mxu0 %v4961
    %4973 = vmatprep.subr.mxu0 0.0
    %4974 = vmatpush1.msra.mxu0 %v4962
    %4975 = vmatprep.subr.mxu0 0.0
    %4976 = vmatpush1.msra.mxu0 %v4963
    %4977 = vmatprep.subr.mxu0 0.0
    %4978 = vmatpush1.msra.mxu0 %v4964
    %4979 = vmatprep.subr.mxu0 0.0
    %4980 = vmatpush1.msra.mxu0 %v4965
    %4981 = vmatprep.subr.mxu0 0.0
    %4982 = vmatpush1.msra.mxu0 %v4966
    %4983 = vmatprep.subr.mxu0 0.0
    %4984 = vmatpush1.msra.mxu0 0.0
    %4985 = vmatprep.subr.mxu0 0.0
    %4986 = vmatpush1.msra.mxu0 0.0
    %4987 = vmatprep.subr.mxu0 0.0
    %4988 = vmatpush1.msra.mxu0 0.0
    %4989 = vmatprep.subr.mxu0 0.0
    %4990 = vmatpush1.msra.mxu0 0.0
    %4991 = vmatprep.subr.mxu0 0.0
    %4992 = vmatpush1.msra.mxu0 0.0
    %4993 = vmatprep.subr.mxu0 0.0
    %4994 = vmatpush1.msra.mxu0 0.0
    %4995 = vmatprep.subr.mxu0 0.0
    %4996 = vmatpush1.msra.mxu0 0.0
    %4997 = vmatprep.subr.mxu0 0.0
    %4998 = vmatpush1.msra.mxu0 0.0
    %4999 = vmatprep.subr.mxu0 0.0
    %5000 = vmatpush1.msra.mxu0 0.0
    %5001 = vmatprep.subr.mxu0 0.0
    %5002 = vmatpush1.msra.mxu0 0.0
    %5003 = vmatprep.subr.mxu0 0.0
    %5004 = vmatpush1.msra.mxu0 0.0
    %5005 = vmatprep.subr.mxu0 0.0
    %5006 = vmatpush1.msra.mxu0 0.0
    %5007 = vmatprep.subr.mxu0 0.0
    %5008 = vmatpush1.msra.mxu0 0.0
    %5009 = vmatprep.subr.mxu0 0.0
    %5010 = vmatpush1.msra.mxu0 0.0
    %5011 = vmatprep.subr.mxu0 0.0
    %5012 = vmatpush1.msra.mxu0 0.0
    %5013 = vmatprep.subr.mxu0 0.0
    %5014 = vmatpush1.msra.mxu0 0.0
    %5015 = vmatprep.subr.mxu0 0.0
    %5016 = vmatpush1.msra.mxu0 0.0
    %5017 = vmatprep.subr.mxu0 0.0
    %5018 = vmatpush1.msra.mxu0 0.0
    %5019 = vmatprep.subr.mxu0 0.0
    %5020 = vmatpush1.msra.mxu0 0.0
    %5021 = vmatprep.subr.mxu0 0.0
    %5022 = vmatpush1.msra.mxu0 0.0
    %5023 = vmatprep.subr.mxu0 0.0
    %5024 = vmatpush1.msra.mxu0 0.0
    %5025 = vmatprep.subr.mxu0 0.0
    %5026 = vmatpush1.msra.mxu0 0.0
    %5027 = vmatprep.subr.mxu0 0.0
    %5028 = vmatpush1.msra.mxu0 0.0
    %5029 = vmatprep.subr.mxu0 0.0
    %5030 = vmatpush1.msra.mxu0 0.0
    %5031 = vmatprep.mubr.f32.mxu0 0.0
    %5032 = vmatmul.mubr.f32.gmra.mrb[0].mxu0 %v4881
    %v5033 = vpop.f32.mrb[0].mxu0
    %v5034 = vadd.f32 %v440, %v5033
    %v5035 = vpop.f32.mrb[0].mxu0
    %5036 = vdwg.mxu0
    %v5037 = vxor.u32 %v5034, 2147483648
    %v5038 = vmul.f32 %v5037, 1.442695
    %v5039 = vpow.pop %v5038
    %v5040 = vadd.f32 %v5039, 1.0
    %v5041 = vrcp.pop %v5040
    %v5042 = vmul.f32 1.0, %v5041
    %v5043 = vld [vmem:[%s17] sm:$0xff]
    %v5044 = vld [vmem:[%s17 + $0x8] sm:$0xff]
    %v5045 = vld [vmem:[%s17 + $0x10] sm:$0xff]
    %v5046 = vld [vmem:[%s17 + $0x18] sm:$0xff]
    %v5048 = vsel %vm465, %v4866, 0
    %5050 = vmatprep.subr.mxu0 0.0
    %5051 = vmatpush1.msra.mxu0 %v5043
    %5052 = vmatprep.subr.mxu0 0.0
    %5053 = vmatpush1.msra.mxu0 %v5044
    %5054 = vmatprep.subr.mxu0 0.0
    %5055 = vmatpush1.msra.mxu0 %v5045
    %5056 = vmatprep.subr.mxu0 0.0
    %5057 = vmatpush1.msra.mxu0 %v5046
    %5058 = vmatprep.subr.mxu0 0.0
    %5059 = vmatpush1.msra.mxu0 0.0
    %5060 = vmatprep.subr.mxu0 0.0
    %5061 = vmatpush1.msra.mxu0 0.0
    %5062 = vmatprep.subr.mxu0 0.0
    %5063 = vmatpush1.msra.mxu0 0.0
    %5064 = vmatprep.subr.mxu0 0.0
    %5065 = vmatpush1.msra.mxu0 0.0
    %5066 = vmatprep.subr.mxu0 0.0
    %5067 = vmatpush1.msra.mxu0 0.0
    %5068 = vmatprep.subr.mxu0 0.0
    %5069 = vmatpush1.msra.mxu0 0.0
    %5070 = vmatprep.subr.mxu0 0.0
    %5071 = vmatpush1.msra.mxu0 0.0
    %5072 = vmatprep.subr.mxu0 0.0
    %5073 = vmatpush1.msra.mxu0 0.0
    %5074 = vmatprep.subr.mxu0 0.0
    %5075 = vmatpush1.msra.mxu0 0.0
    %5076 = vmatprep.subr.mxu0 0.0
    %5077 = vmatpush1.msra.mxu0 0.0
    %5078 = vmatprep.subr.mxu0 0.0
    %5079 = vmatpush1.msra.mxu0 0.0
    %5080 = vmatprep.subr.mxu0 0.0
    %5081 = vmatpush1.msra.mxu0 0.0
    %5082 = vmatprep.subr.mxu0 0.0
    %5083 = vmatpush1.msra.mxu0 0.0
    %5084 = vmatprep.subr.mxu0 0.0
    %5085 = vmatpush1.msra.mxu0 0.0
    %5086 = vmatprep.subr.mxu0 0.0
    %5087 = vmatpush1.msra.mxu0 0.0
    %5088 = vmatprep.subr.mxu0 0.0
    %5089 = vmatpush1.msra.mxu0 0.0
    %5090 = vmatprep.subr.mxu0 0.0
    %5091 = vmatpush1.msra.mxu0 0.0
    %5092 = vmatprep.subr.mxu0 0.0
    %5093 = vmatpush1.msra.mxu0 0.0
    %5094 = vmatprep.subr.mxu0 0.0
    %5095 = vmatpush1.msra.mxu0 0.0
    %5096 = vmatprep.subr.mxu0 0.0
    %5097 = vmatpush1.msra.mxu0 0.0
    %5098 = vmatprep.subr.mxu0 0.0
    %5099 = vmatpush1.msra.mxu0 0.0
    %5100 = vmatprep.subr.mxu0 0.0
    %5101 = vmatpush1.msra.mxu0 0.0
    %5102 = vmatprep.subr.mxu0 0.0
    %5103 = vmatpush1.msra.mxu0 0.0
    %5104 = vmatprep.subr.mxu0 0.0
    %5105 = vmatpush1.msra.mxu0 0.0
    %5106 = vmatprep.subr.mxu0 0.0
    %5107 = vmatpush1.msra.mxu0 0.0
    %5108 = vmatprep.subr.mxu0 0.0
    %5109 = vmatpush1.msra.mxu0 0.0
    %5110 = vmatprep.subr.mxu0 0.0
    %5111 = vmatpush1.msra.mxu0 0.0
    %5112 = vmatprep.subr.mxu0 0.0
    %5113 = vmatpush1.msra.mxu0 0.0
    %5114 = vmatprep.mubr.f32.mxu0 0.0
    %5115 = vmatmul.mubr.f32.gmra.mrb[0].mxu0 %v5048
    %v5116 = vpop.f32.mrb[0].mxu0
    %v5117 = vadd.f32 %v447, %v5116
    %v5118 = vpop.f32.mrb[0].mxu0
    %5119 = vdwg.mxu0
    %v5120 = vld [vmem:[%s18] sm:$0xff]
    %v5121 = vld [vmem:[%s18 + $0x8] sm:$0xff]
    %v5122 = vld [vmem:[%s18 + $0x10] sm:$0xff]
    %v5123 = vld [vmem:[%s18 + $0x18] sm:$0xff]
    %v5124 = vsel %vm465, %v4610, 0
    %5126 = vmatprep.subr.mxu0 0.0
    %5127 = vmatpush1.msra.mxu0 %v5120
    %5128 = vmatprep.subr.mxu0 0.0
    %5129 = vmatpush1.msra.mxu0 %v5121
    %5130 = vmatprep.subr.mxu0 0.0
    %5131 = vmatpush1.msra.mxu0 %v5122
    %5132 = vmatprep.subr.mxu0 0.0
    %5133 = vmatpush1.msra.mxu0 %v5123
    %5134 = vmatprep.subr.mxu0 0.0
    %5135 = vmatpush1.msra.mxu0 0.0
    %5136 = vmatprep.subr.mxu0 0.0
    %5137 = vmatpush1.msra.mxu0 0.0
    %5138 = vmatprep.subr.mxu0 0.0
    %5139 = vmatpush1.msra.mxu0 0.0
    %5140 = vmatprep.subr.mxu0 0.0
    %5141 = vmatpush1.msra.mxu0 0.0
    %5142 = vmatprep.subr.mxu0 0.0
    %5143 = vmatpush1.msra.mxu0 0.0
    %5144 = vmatprep.subr.mxu0 0.0
    %5145 = vmatpush1.msra.mxu0 0.0
    %5146 = vmatprep.subr.mxu0 0.0
    %5147 = vmatpush1.msra.mxu0 0.0
    %5148 = vmatprep.subr.mxu0 0.0
    %5149 = vmatpush1.msra.mxu0 0.0
    %5150 = vmatprep.subr.mxu0 0.0
    %5151 = vmatpush1.msra.mxu0 0.0
    %5152 = vmatprep.subr.mxu0 0.0
    %5153 = vmatpush1.msra.mxu0 0.0
    %5154 = vmatprep.subr.mxu0 0.0
    %5155 = vmatpush1.msra.mxu0 0.0
    %5156 = vmatprep.subr.mxu0 0.0
    %5157 = vmatpush1.msra.mxu0 0.0
    %5158 = vmatprep.subr.mxu0 0.0
    %5159 = vmatpush1.msra.mxu0 0.0
    %5160 = vmatprep.subr.mxu0 0.0
    %5161 = vmatpush1.msra.mxu0 0.0
    %5162 = vmatprep.subr.mxu0 0.0
    %5163 = vmatpush1.msra.mxu0 0.0
    %5164 = vmatprep.subr.mxu0 0.0
    %5165 = vmatpush1.msra.mxu0 0.0
    %5166 = vmatprep.subr.mxu0 0.0
    %5167 = vmatpush1.msra.mxu0 0.0
    %5168 = vmatprep.subr.mxu0 0.0
    %5169 = vmatpush1.msra.mxu0 0.0
    %5170 = vmatprep.subr.mxu0 0.0
    %5171 = vmatpush1.msra.mxu0 0.0
    %5172 = vmatprep.subr.mxu0 0.0
    %5173 = vmatpush1.msra.mxu0 0.0
    %5174 = vmatprep.subr.mxu0 0.0
    %5175 = vmatpush1.msra.mxu0 0.0
    %5176 = vmatprep.subr.mxu0 0.0
    %5177 = vmatpush1.msra.mxu0 0.0
    %5178 = vmatprep.subr.mxu0 0.0
    %5179 = vmatpush1.msra.mxu0 0.0
    %5180 = vmatprep.subr.mxu0 0.0
    %5181 = vmatpush1.msra.mxu0 0.0
    %5182 = vmatprep.subr.mxu0 0.0
    %5183 = vmatpush1.msra.mxu0 0.0
    %5184 = vmatprep.subr.mxu0 0.0
    %5185 = vmatpush1.msra.mxu0 0.0
    %5186 = vmatprep.subr.mxu0 0.0
    %5187 = vmatpush1.msra.mxu0 0.0
    %5188 = vmatprep.subr.mxu0 0.0
    %5189 = vmatpush1.msra.mxu0 0.0
    %5190 = vmatprep.mubr.f32.mxu0 0.0
    %5191 = vmatmul.mubr.f32.gmra.mrb[0].mxu0 %v5124
    %v5192 = vpop.f32.mrb[0].mxu0
    %v5193 = vadd.f32 %v454, %v5192
    %v5194 = vpop.f32.mrb[0].mxu0
    %5195 = vdwg.mxu0
    %v5196 = vmul.f32 %v4958, %v5193
    %v5197 = vadd.f32 %v5117, %v5196
    %v5198 = vtanh.pop %v5197
    %v5199 = vsub.f32 1.0, %v5042
    %v5200 = vmul.f32 %v5199, %v5198
    %v5201 = vmul.f32 %v5042, %v4610
    %v5202 = vadd.f32 %v5200, %v5201
    %v5203 = vsel %vm4865, %v5202, %v4610
    %v5204 = vsel %vm4865, %v5202, 0.0
    %s5205 = scalar_lea.vmem [#allocation5], 28
    %5206 = vst.msk [vmem:[%s5205] sm:$0xf] %vm373, %v5204
    %5207 = vst.msk [vmem:[#allocation6] sm:$0xf] %vm373, %v4866
    %s5208 = scalar_lea.vmem [#allocation6], 4
    %5209 = vst.msk [vmem:[%s5208] sm:$0xf] %vm373, %v5203
    %v5210 = vld [vmem:[%s21] sm:$0xff]
    %v5211 = vld [vmem:[%s21 + $0x8] sm:$0xff]
    %v5212 = vld [vmem:[%s21 + $0x10] sm:$0xff]
    %v5213 = vld [vmem:[%s21 + $0x18] sm:$0xff]
    %v5214 = vld [vmem:[%s22] sm:$0x1]
    %v5215 = vld [vmem:[#allocation5] sm:$0xf]
    %v5217 = vlaneseq
    %v5218 = vshrl.u32 %v5217, 7
    %v5219 = vsub.s32 0, %v5218
    %v5220 = vrot.slane %v5214, %v5219
    %v5223 = vsel %vm465, %v5215, 0
    %5225 = vmatprep.subr.mxu0 0.0
    %5226 = vmatpush1.msra.mxu0 %v5210
    %5227 = vmatprep.subr.mxu0 0.0
    %5228 = vmatpush1.msra.mxu0 %v5211
    %5229 = vmatprep.subr.mxu0 0.0
    %5230 = vmatpush1.msra.mxu0 %v5212
    %5231 = vmatprep.subr.mxu0 0.0
    %5232 = vmatpush1.msra.mxu0 %v5213
    %5233 = vmatprep.subr.mxu0 0.0
    %5234 = vmatpush1.msra.mxu0 0.0
    %5235 = vmatprep.subr.mxu0 0.0
    %5236 = vmatpush1.msra.mxu0 0.0
    %5237 = vmatprep.subr.mxu0 0.0
    %5238 = vmatpush1.msra.mxu0 0.0
    %5239 = vmatprep.subr.mxu0 0.0
    %5240 = vmatpush1.msra.mxu0 0.0
    %5241 = vmatprep.subr.mxu0 0.0
    %5242 = vmatpush1.msra.mxu0 0.0
    %5243 = vmatprep.subr.mxu0 0.0
    %5244 = vmatpush1.msra.mxu0 0.0
    %5245 = vmatprep.subr.mxu0 0.0
    %5246 = vmatpush1.msra.mxu0 0.0
    %5247 = vmatprep.subr.mxu0 0.0
    %5248 = vmatpush1.msra.mxu0 0.0
    %5249 = vmatprep.subr.mxu0 0.0
    %5250 = vmatpush1.msra.mxu0 0.0
    %5251 = vmatprep.subr.mxu0 0.0
    %5252 = vmatpush1.msra.mxu0 0.0
    %5253 = vmatprep.subr.mxu0 0.0
    %5254 = vmatpush1.msra.mxu0 0.0
    %5255 = vmatprep.subr.mxu0 0.0
    %5256 = vmatpush1.msra.mxu0 0.0
    %5257 = vmatprep.subr.mxu0 0.0
    %5258 = vmatpush1.msra.mxu0 0.0
    %5259 = vmatprep.subr.mxu0 0.0
    %5260 = vmatpush1.msra.mxu0 0.0
    %5261 = vmatprep.subr.mxu0 0.0
    %5262 = vmatpush1.msra.mxu0 0.0
    %5263 = vmatprep.subr.mxu0 0.0
    %5264 = vmatpush1.msra.mxu0 0.0
    %5265 = vmatprep.subr.mxu0 0.0
    %5266 = vmatpush1.msra.mxu0 0.0
    %5267 = vmatprep.subr.mxu0 0.0
    %5268 = vmatpush1.msra.mxu0 0.0
    %5269 = vmatprep.subr.mxu0 0.0
    %5270 = vmatpush1.msra.mxu0 0.0
    %5271 = vmatprep.subr.mxu0 0.0
    %5272 = vmatpush1.msra.mxu0 0.0
    %5273 = vmatprep.subr.mxu0 0.0
    %5274 = vmatpush1.msra.mxu0 0.0
    %5275 = vmatprep.subr.mxu0 0.0
    %5276 = vmatpush1.msra.mxu0 0.0
    %5277 = vmatprep.subr.mxu0 0.0
    %5278 = vmatpush1.msra.mxu0 0.0
    %5279 = vmatprep.subr.mxu0 0.0
    %5280 = vmatpush1.msra.mxu0 0.0
    %5281 = vmatprep.subr.mxu0 0.0
    %5282 = vmatpush1.msra.mxu0 0.0
    %5283 = vmatprep.subr.mxu0 0.0
    %5284 = vmatpush1.msra.mxu0 0.0
    %5285 = vmatprep.subr.mxu0 0.0
    %5286 = vmatpush1.msra.mxu0 0.0
    %5287 = vmatprep.subr.mxu0 0.0
    %5288 = vmatpush1.msra.mxu0 0.0
    %5289 = vmatprep.mubr.f32.mxu0 0.0
    %5290 = vmatmul.mubr.f32.gmra.mrb[0].mxu0 %v5223
    %v5291 = vpop.f32.mrb[0].mxu0
    %v5292 = vadd.f32 %v5220, %v5291
    %v5293 = vpop.f32.mrb[0].mxu0
    %5294 = vdwg.mxu0
    %v5295 = vxor.u32 %v5292, 2147483648
    %v5296 = vmul.f32 %v5295, 1.442695
    %v5297 = vpow.pop %v5296
    %v5298 = vadd.f32 %v5297, 1.0
    %v5299 = vrcp.pop %v5298
    %v5300 = vmul.f32 1.0, %v5299
    %vm5301 = vcmask 35840
    %5302 = vst.msk [vmem:[%s23] sm:$0xf] %vm5301, %v5300
    %v5303 = vld [vmem:[%s1647] sm:$0xf]
    %v5305 = vsel %vm465, %v5303, 0
    %5307 = vmatprep.subr.mxu0 0.0
    %5308 = vmatpush1.msra.mxu0 %v5210
    %5309 = vmatprep.subr.mxu0 0.0
    %5310 = vmatpush1.msra.mxu0 %v5211
    %5311 = vmatprep.subr.mxu0 0.0
    %5312 = vmatpush1.msra.mxu0 %v5212
    %5313 = vmatprep.subr.mxu0 0.0
    %5314 = vmatpush1.msra.mxu0 %v5213
    %5315 = vmatprep.subr.mxu0 0.0
    %5316 = vmatpush1.msra.mxu0 0.0
    %5317 = vmatprep.subr.mxu0 0.0
    %5318 = vmatpush1.msra.mxu0 0.0
    %5319 = vmatprep.subr.mxu0 0.0
    %5320 = vmatpush1.msra.mxu0 0.0
    %5321 = vmatprep.subr.mxu0 0.0
    %5322 = vmatpush1.msra.mxu0 0.0
    %5323 = vmatprep.subr.mxu0 0.0
    %5324 = vmatpush1.msra.mxu0 0.0
    %5325 = vmatprep.subr.mxu0 0.0
    %5326 = vmatpush1.msra.mxu0 0.0
    %5327 = vmatprep.subr.mxu0 0.0
    %5328 = vmatpush1.msra.mxu0 0.0
    %5329 = vmatprep.subr.mxu0 0.0
    %5330 = vmatpush1.msra.mxu0 0.0
    %5331 = vmatprep.subr.mxu0 0.0
    %5332 = vmatpush1.msra.mxu0 0.0
    %5333 = vmatprep.subr.mxu0 0.0
    %5334 = vmatpush1.msra.mxu0 0.0
    %5335 = vmatprep.subr.mxu0 0.0
    %5336 = vmatpush1.msra.mxu0 0.0
    %5337 = vmatprep.subr.mxu0 0.0
    %5338 = vmatpush1.msra.mxu0 0.0
    %5339 = vmatprep.subr.mxu0 0.0
    %5340 = vmatpush1.msra.mxu0 0.0
    %5341 = vmatprep.subr.mxu0 0.0
    %5342 = vmatpush1.msra.mxu0 0.0
    %5343 = vmatprep.subr.mxu0 0.0
    %5344 = vmatpush1.msra.mxu0 0.0
    %5345 = vmatprep.subr.mxu0 0.0
    %5346 = vmatpush1.msra.mxu0 0.0
    %5347 = vmatprep.subr.mxu0 0.0
    %5348 = vmatpush1.msra.mxu0 0.0
    %5349 = vmatprep.subr.mxu0 0.0
    %5350 = vmatpush1.msra.mxu0 0.0
    %5351 = vmatprep.subr.mxu0 0.0
    %5352 = vmatpush1.msra.mxu0 0.0
    %5353 = vmatprep.subr.mxu0 0.0
    %5354 = vmatpush1.msra.mxu0 0.0
    %5355 = vmatprep.subr.mxu0 0.0
    %5356 = vmatpush1.msra.mxu0 0.0
    %5357 = vmatprep.subr.mxu0 0.0
    %5358 = vmatpush1.msra.mxu0 0.0
    %5359 = vmatprep.subr.mxu0 0.0
    %5360 = vmatpush1.msra.mxu0 0.0
    %5361 = vmatprep.subr.mxu0 0.0
    %5362 = vmatpush1.msra.mxu0 0.0
    %5363 = vmatprep.subr.mxu0 0.0
    %5364 = vmatpush1.msra.mxu0 0.0
    %5365 = vmatprep.subr.mxu0 0.0
    %5366 = vmatpush1.msra.mxu0 0.0
    %5367 = vmatprep.subr.mxu0 0.0
    %5368 = vmatpush1.msra.mxu0 0.0
    %5369 = vmatprep.subr.mxu0 0.0
    %5370 = vmatpush1.msra.mxu0 0.0
    %5371 = vmatprep.mubr.f32.mxu0 0.0
    %5372 = vmatmul.mubr.f32.gmra.mrb[0].mxu0 %v5305
    %v5373 = vpop.f32.mrb[0].mxu0
    %v5374 = vadd.f32 %v5220, %v5373
    %v5375 = vpop.f32.mrb[0].mxu0
    %5376 = vdwg.mxu0
    %v5377 = vxor.u32 %v5374, 2147483648
    %v5378 = vmul.f32 %v5377, 1.442695
    %v5379 = vpow.pop %v5378
    %v5380 = vadd.f32 %v5379, 1.0
    %v5381 = vrcp.pop %v5380
    %v5382 = vmul.f32 1.0, %v5381
    %s5383 = scalar_lea.vmem %s23, 4
    %5384 = vst.msk [vmem:[%s5383] sm:$0xf] %vm5301, %v5382
    %v5385 = vld [vmem:[%s2240] sm:$0xf]
    %v5387 = vsel %vm465, %v5385, 0
    %5389 = vmatprep.subr.mxu0 0.0
    %5390 = vmatpush1.msra.mxu0 %v5210
    %5391 = vmatprep.subr.mxu0 0.0
    %5392 = vmatpush1.msra.mxu0 %v5211
    %5393 = vmatprep.subr.mxu0 0.0
    %5394 = vmatpush1.msra.mxu0 %v5212
    %5395 = vmatprep.subr.mxu0 0.0
    %5396 = vmatpush1.msra.mxu0 %v5213
    %5397 = vmatprep.subr.mxu0 0.0
    %5398 = vmatpush1.msra.mxu0 0.0
    %5399 = vmatprep.subr.mxu0 0.0
    %5400 = vmatpush1.msra.mxu0 0.0
    %5401 = vmatprep.subr.mxu0 0.0
    %5402 = vmatpush1.msra.mxu0 0.0
    %5403 = vmatprep.subr.mxu0 0.0
    %5404 = vmatpush1.msra.mxu0 0.0
    %5405 = vmatprep.subr.mxu0 0.0
    %5406 = vmatpush1.msra.mxu0 0.0
    %5407 = vmatprep.subr.mxu0 0.0
    %5408 = vmatpush1.msra.mxu0 0.0
    %5409 = vmatprep.subr.mxu0 0.0
    %5410 = vmatpush1.msra.mxu0 0.0
    %5411 = vmatprep.subr.mxu0 0.0
    %5412 = vmatpush1.msra.mxu0 0.0
    %5413 = vmatprep.subr.mxu0 0.0
    %5414 = vmatpush1.msra.mxu0 0.0
    %5415 = vmatprep.subr.mxu0 0.0
    %5416 = vmatpush1.msra.mxu0 0.0
    %5417 = vmatprep.subr.mxu0 0.0
    %5418 = vmatpush1.msra.mxu0 0.0
    %5419 = vmatprep.subr.mxu0 0.0
    %5420 = vmatpush1.msra.mxu0 0.0
    %5421 = vmatprep.subr.mxu0 0.0
    %5422 = vmatpush1.msra.mxu0 0.0
    %5423 = vmatprep.subr.mxu0 0.0
    %5424 = vmatpush1.msra.mxu0 0.0
    %5425 = vmatprep.subr.mxu0 0.0
    %5426 = vmatpush1.msra.mxu0 0.0
    %5427 = vmatprep.subr.mxu0 0.0
    %5428 = vmatpush1.msra.mxu0 0.0
    %5429 = vmatprep.subr.mxu0 0.0
    %5430 = vmatpush1.msra.mxu0 0.0
    %5431 = vmatprep.subr.mxu0 0.0
    %5432 = vmatpush1.msra.mxu0 0.0
    %5433 = vmatprep.subr.mxu0 0.0
    %5434 = vmatpush1.msra.mxu0 0.0
    %5435 = vmatprep.subr.mxu0 0.0
    %5436 = vmatpush1.msra.mxu0 0.0
    %5437 = vmatprep.subr.mxu0 0.0
    %5438 = vmatpush1.msra.mxu0 0.0
    %5439 = vmatprep.subr.mxu0 0.0
    %5440 = vmatpush1.msra.mxu0 0.0
    %5441 = vmatprep.subr.mxu0 0.0
    %5442 = vmatpush1.msra.mxu0 0.0
    %5443 = vmatprep.subr.mxu0 0.0
    %5444 = vmatpush1.msra.mxu0 0.0
    %5445 = vmatprep.subr.mxu0 0.0
    %5446 = vmatpush1.msra.mxu0 0.0
    %5447 = vmatprep.subr.mxu0 0.0
    %5448 = vmatpush1.msra.mxu0 0.0
    %5449 = vmatprep.subr.mxu0 0.0
    %5450 = vmatpush1.msra.mxu0 0.0
    %5451 = vmatprep.subr.mxu0 0.0
    %5452 = vmatpush1.msra.mxu0 0.0
    %5453 = vmatprep.mubr.f32.mxu0 0.0
    %5454 = vmatmul.mubr.f32.gmra.mrb[0].mxu0 %v5387
    %v5455 = vpop.f32.mrb[0].mxu0
    %v5456 = vadd.f32 %v5220, %v5455
    %v5457 = vpop.f32.mrb[0].mxu0
    %5458 = vdwg.mxu0
    %v5459 = vxor.u32 %v5456, 2147483648
    %v5460 = vmul.f32 %v5459, 1.442695
    %v5461 = vpow.pop %v5460
    %v5462 = vadd.f32 %v5461, 1.0
    %v5463 = vrcp.pop %v5462
    %v5464 = vmul.f32 1.0, %v5463
    %s5465 = scalar_lea.vmem %s23, 8
    %5466 = vst.msk [vmem:[%s5465] sm:$0xf] %vm5301, %v5464
    %v5467 = vld [vmem:[%s2833] sm:$0xf]
    %v5469 = vsel %vm465, %v5467, 0
    %5471 = vmatprep.subr.mxu0 0.0
    %5472 = vmatpush1.msra.mxu0 %v5210
    %5473 = vmatprep.subr.mxu0 0.0
    %5474 = vmatpush1.msra.mxu0 %v5211
    %5475 = vmatprep.subr.mxu0 0.0
    %5476 = vmatpush1.msra.mxu0 %v5212
    %5477 = vmatprep.subr.mxu0 0.0
    %5478 = vmatpush1.msra.mxu0 %v5213
    %5479 = vmatprep.subr.mxu0 0.0
    %5480 = vmatpush1.msra.mxu0 0.0
    %5481 = vmatprep.subr.mxu0 0.0
    %5482 = vmatpush1.msra.mxu0 0.0
    %5483 = vmatprep.subr.mxu0 0.0
    %5484 = vmatpush1.msra.mxu0 0.0
    %5485 = vmatprep.subr.mxu0 0.0
    %5486 = vmatpush1.msra.mxu0 0.0
    %5487 = vmatprep.subr.mxu0 0.0
    %5488 = vmatpush1.msra.mxu0 0.0
    %5489 = vmatprep.subr.mxu0 0.0
    %5490 = vmatpush1.msra.mxu0 0.0
    %5491 = vmatprep.subr.mxu0 0.0
    %5492 = vmatpush1.msra.mxu0 0.0
    %5493 = vmatprep.subr.mxu0 0.0
    %5494 = vmatpush1.msra.mxu0 0.0
    %5495 = vmatprep.subr.mxu0 0.0
    %5496 = vmatpush1.msra.mxu0 0.0
    %5497 = vmatprep.subr.mxu0 0.0
    %5498 = vmatpush1.msra.mxu0 0.0
    %5499 = vmatprep.subr.mxu0 0.0
    %5500 = vmatpush1.msra.mxu0 0.0
    %5501 = vmatprep.subr.mxu0 0.0
    %5502 = vmatpush1.msra.mxu0 0.0
    %5503 = vmatprep.subr.mxu0 0.0
    %5504 = vmatpush1.msra.mxu0 0.0
    %5505 = vmatprep.subr.mxu0 0.0
    %5506 = vmatpush1.msra.mxu0 0.0
    %5507 = vmatprep.subr.mxu0 0.0
    %5508 = vmatpush1.msra.mxu0 0.0
    %5509 = vmatprep.subr.mxu0 0.0
    %5510 = vmatpush1.msra.mxu0 0.0
    %5511 = vmatprep.subr.mxu0 0.0
    %5512 = vmatpush1.msra.mxu0 0.0
    %5513 = vmatprep.subr.mxu0 0.0
    %5514 = vmatpush1.msra.mxu0 0.0
    %5515 = vmatprep.subr.mxu0 0.0
    %5516 = vmatpush1.msra.mxu0 0.0
    %5517 = vmatprep.subr.mxu0 0.0
    %5518 = vmatpush1.msra.mxu0 0.0
    %5519 = vmatprep.subr.mxu0 0.0
    %5520 = vmatpush1.msra.mxu0 0.0
    %5521 = vmatprep.subr.mxu0 0.0
    %5522 = vmatpush1.msra.mxu0 0.0
    %5523 = vmatprep.subr.mxu0 0.0
    %5524 = vmatpush1.msra.mxu0 0.0
    %5525 = vmatprep.subr.mxu0 0.0
    %5526 = vmatpush1.msra.mxu0 0.0
    %5527 = vmatprep.subr.mxu0 0.0
    %5528 = vmatpush1.msra.mxu0 0.0
    %5529 = vmatprep.subr.mxu0 0.0
    %5530 = vmatpush1.msra.mxu0 0.0
    %5531 = vmatprep.subr.mxu0 0.0
    %5532 = vmatpush1.msra.mxu0 0.0
    %5533 = vmatprep.subr.mxu0 0.0
    %5534 = vmatpush1.msra.mxu0 0.0
    %5535 = vmatprep.mubr.f32.mxu0 0.0
    %5536 = vmatmul.mubr.f32.gmra.mrb[0].mxu0 %v5469
    %v5537 = vpop.f32.mrb[0].mxu0
    %v5538 = vadd.f32 %v5220, %v5537
    %v5539 = vpop.f32.mrb[0].mxu0
    %5540 = vdwg.mxu0
    %v5541 = vxor.u32 %v5538, 2147483648
    %v5542 = vmul.f32 %v5541, 1.442695
    %v5543 = vpow.pop %v5542
    %v5544 = vadd.f32 %v5543, 1.0
    %v5545 = vrcp.pop %v5544
    %v5546 = vmul.f32 1.0, %v5545
    %s5547 = scalar_lea.vmem %s23, 12
    %5548 = vst.msk [vmem:[%s5547] sm:$0xf] %vm5301, %v5546
    %v5549 = vld [vmem:[%s3426] sm:$0xf]
    %v5551 = vsel %vm465, %v5549, 0
    %5553 = vmatprep.subr.mxu0 0.0
    %5554 = vmatpush1.msra.mxu0 %v5210
    %5555 = vmatprep.subr.mxu0 0.0
    %5556 = vmatpush1.msra.mxu0 %v5211
    %5557 = vmatprep.subr.mxu0 0.0
    %5558 = vmatpush1.msra.mxu0 %v5212
    %5559 = vmatprep.subr.mxu0 0.0
    %5560 = vmatpush1.msra.mxu0 %v5213
    %5561 = vmatprep.subr.mxu0 0.0
    %5562 = vmatpush1.msra.mxu0 0.0
    %5563 = vmatprep.subr.mxu0 0.0
    %5564 = vmatpush1.msra.mxu0 0.0
    %5565 = vmatprep.subr.mxu0 0.0
    %5566 = vmatpush1.msra.mxu0 0.0
    %5567 = vmatprep.subr.mxu0 0.0
    %5568 = vmatpush1.msra.mxu0 0.0
    %5569 = vmatprep.subr.mxu0 0.0
    %5570 = vmatpush1.msra.mxu0 0.0
    %5571 = vmatprep.subr.mxu0 0.0
    %5572 = vmatpush1.msra.mxu0 0.0
    %5573 = vmatprep.subr.mxu0 0.0
    %5574 = vmatpush1.msra.mxu0 0.0
    %5575 = vmatprep.subr.mxu0 0.0
    %5576 = vmatpush1.msra.mxu0 0.0
    %5577 = vmatprep.subr.mxu0 0.0
    %5578 = vmatpush1.msra.mxu0 0.0
    %5579 = vmatprep.subr.mxu0 0.0
    %5580 = vmatpush1.msra.mxu0 0.0
    %5581 = vmatprep.subr.mxu0 0.0
    %5582 = vmatpush1.msra.mxu0 0.0
    %5583 = vmatprep.subr.mxu0 0.0
    %5584 = vmatpush1.msra.mxu0 0.0
    %5585 = vmatprep.subr.mxu0 0.0
    %5586 = vmatpush1.msra.mxu0 0.0
    %5587 = vmatprep.subr.mxu0 0.0
    %5588 = vmatpush1.msra.mxu0 0.0
    %5589 = vmatprep.subr.mxu0 0.0
    %5590 = vmatpush1.msra.mxu0 0.0
    %5591 = vmatprep.subr.mxu0 0.0
    %5592 = vmatpush1.msra.mxu0 0.0
    %5593 = vmatprep.subr.mxu0 0.0
    %5594 = vmatpush1.msra.mxu0 0.0
    %5595 = vmatprep.subr.mxu0 0.0
    %5596 = vmatpush1.msra.mxu0 0.0
    %5597 = vmatprep.subr.mxu0 0.0
    %5598 = vmatpush1.msra.mxu0 0.0
    %5599 = vmatprep.subr.mxu0 0.0
    %5600 = vmatpush1.msra.mxu0 0.0
    %5601 = vmatprep.subr.mxu0 0.0
    %5602 = vmatpush1.msra.mxu0 0.0
    %5603 = vmatprep.subr.mxu0 0.0
    %5604 = vmatpush1.msra.mxu0 0.0
    %5605 = vmatprep.subr.mxu0 0.0
    %5606 = vmatpush1.msra.mxu0 0.0
    %5607 = vmatprep.subr.mxu0 0.0
    %5608 = vmatpush1.msra.mxu0 0.0
    %5609 = vmatprep.subr.mxu0 0.0
    %5610 = vmatpush1.msra.mxu0 0.0
    %5611 = vmatprep.subr.mxu0 0.0
    %5612 = vmatpush1.msra.mxu0 0.0
    %5613 = vmatprep.subr.mxu0 0.0
    %5614 = vmatpush1.msra.mxu0 0.0
    %5615 = vmatprep.subr.mxu0 0.0
    %5616 = vmatpush1.msra.mxu0 0.0
    %5617 = vmatprep.mubr.f32.mxu0 0.0
    %5618 = vmatmul.mubr.f32.gmra.mrb[0].mxu0 %v5551
    %v5619 = vpop.f32.mrb[0].mxu0
    %v5620 = vadd.f32 %v5220, %v5619
    %v5621 = vpop.f32.mrb[0].mxu0
    %5622 = vdwg.mxu0
    %v5623 = vxor.u32 %v5620, 2147483648
    %v5624 = vmul.f32 %v5623, 1.442695
    %v5625 = vpow.pop %v5624
    %v5626 = vadd.f32 %v5625, 1.0
    %v5627 = vrcp.pop %v5626
    %v5628 = vmul.f32 1.0, %v5627
    %s5629 = scalar_lea.vmem %s23, 16
    %5630 = vst.msk [vmem:[%s5629] sm:$0xf] %vm5301, %v5628
    %v5631 = vld [vmem:[%s4019] sm:$0xf]
    %v5633 = vsel %vm465, %v5631, 0
    %5635 = vmatprep.subr.mxu0 0.0
    %5636 = vmatpush1.msra.mxu0 %v5210
    %5637 = vmatprep.subr.mxu0 0.0
    %5638 = vmatpush1.msra.mxu0 %v5211
    %5639 = vmatprep.subr.mxu0 0.0
    %5640 = vmatpush1.msra.mxu0 %v5212
    %5641 = vmatprep.subr.mxu0 0.0
    %5642 = vmatpush1.msra.mxu0 %v5213
    %5643 = vmatprep.subr.mxu0 0.0
    %5644 = vmatpush1.msra.mxu0 0.0
    %5645 = vmatprep.subr.mxu0 0.0
    %5646 = vmatpush1.msra.mxu0 0.0
    %5647 = vmatprep.subr.mxu0 0.0
    %5648 = vmatpush1.msra.mxu0 0.0
    %5649 = vmatprep.subr.mxu0 0.0
    %5650 = vmatpush1.msra.mxu0 0.0
    %5651 = vmatprep.subr.mxu0 0.0
    %5652 = vmatpush1.msra.mxu0 0.0
    %5653 = vmatprep.subr.mxu0 0.0
    %5654 = vmatpush1.msra.mxu0 0.0
    %5655 = vmatprep.subr.mxu0 0.0
    %5656 = vmatpush1.msra.mxu0 0.0
    %5657 = vmatprep.subr.mxu0 0.0
    %5658 = vmatpush1.msra.mxu0 0.0
    %5659 = vmatprep.subr.mxu0 0.0
    %5660 = vmatpush1.msra.mxu0 0.0
    %5661 = vmatprep.subr.mxu0 0.0
    %5662 = vmatpush1.msra.mxu0 0.0
    %5663 = vmatprep.subr.mxu0 0.0
    %5664 = vmatpush1.msra.mxu0 0.0
    %5665 = vmatprep.subr.mxu0 0.0
    %5666 = vmatpush1.msra.mxu0 0.0
    %5667 = vmatprep.subr.mxu0 0.0
    %5668 = vmatpush1.msra.mxu0 0.0
    %5669 = vmatprep.subr.mxu0 0.0
    %5670 = vmatpush1.msra.mxu0 0.0
    %5671 = vmatprep.subr.mxu0 0.0
    %5672 = vmatpush1.msra.mxu0 0.0
    %5673 = vmatprep.subr.mxu0 0.0
    %5674 = vmatpush1.msra.mxu0 0.0
    %5675 = vmatprep.subr.mxu0 0.0
    %5676 = vmatpush1.msra.mxu0 0.0
    %5677 = vmatprep.subr.mxu0 0.0
    %5678 = vmatpush1.msra.mxu0 0.0
    %5679 = vmatprep.subr.mxu0 0.0
    %5680 = vmatpush1.msra.mxu0 0.0
    %5681 = vmatprep.subr.mxu0 0.0
    %5682 = vmatpush1.msra.mxu0 0.0
    %5683 = vmatprep.subr.mxu0 0.0
    %5684 = vmatpush1.msra.mxu0 0.0
    %5685 = vmatprep.subr.mxu0 0.0
    %5686 = vmatpush1.msra.mxu0 0.0
    %5687 = vmatprep.subr.mxu0 0.0
    %5688 = vmatpush1.msra.mxu0 0.0
    %5689 = vmatprep.subr.mxu0 0.0
    %5690 = vmatpush1.msra.mxu0 0.0
    %5691 = vmatprep.subr.mxu0 0.0
    %5692 = vmatpush1.msra.mxu0 0.0
    %5693 = vmatprep.subr.mxu0 0.0
    %5694 = vmatpush1.msra.mxu0 0.0
    %5695 = vmatprep.subr.mxu0 0.0
    %5696 = vmatpush1.msra.mxu0 0.0
    %5697 = vmatprep.subr.mxu0 0.0
    %5698 = vmatpush1.msra.mxu0 0.0
    %5699 = vmatprep.mubr.f32.mxu0 0.0
    %5700 = vmatmul.mubr.f32.gmra.mrb[0].mxu0 %v5633
    %v5701 = vpop.f32.mrb[0].mxu0
    %v5702 = vadd.f32 %v5220, %v5701
    %v5703 = vpop.f32.mrb[0].mxu0
    %5704 = vdwg.mxu0
    %v5705 = vxor.u32 %v5702, 2147483648
    %v5706 = vmul.f32 %v5705, 1.442695
    %v5707 = vpow.pop %v5706
    %v5708 = vadd.f32 %v5707, 1.0
    %v5709 = vrcp.pop %v5708
    %v5710 = vmul.f32 1.0, %v5709
    %s5711 = scalar_lea.vmem %s23, 20
    %5712 = vst.msk [vmem:[%s5711] sm:$0xf] %vm5301, %v5710
    %v5713 = vld [vmem:[%s4612] sm:$0xf]
    %v5715 = vsel %vm465, %v5713, 0
    %5717 = vmatprep.subr.mxu0 0.0
    %5718 = vmatpush1.msra.mxu0 %v5210
    %5719 = vmatprep.subr.mxu0 0.0
    %5720 = vmatpush1.msra.mxu0 %v5211
    %5721 = vmatprep.subr.mxu0 0.0
    %5722 = vmatpush1.msra.mxu0 %v5212
    %5723 = vmatprep.subr.mxu0 0.0
    %5724 = vmatpush1.msra.mxu0 %v5213
    %5725 = vmatprep.subr.mxu0 0.0
    %5726 = vmatpush1.msra.mxu0 0.0
    %5727 = vmatprep.subr.mxu0 0.0
    %5728 = vmatpush1.msra.mxu0 0.0
    %5729 = vmatprep.subr.mxu0 0.0
    %5730 = vmatpush1.msra.mxu0 0.0
    %5731 = vmatprep.subr.mxu0 0.0
    %5732 = vmatpush1.msra.mxu0 0.0
    %5733 = vmatprep.subr.mxu0 0.0
    %5734 = vmatpush1.msra.mxu0 0.0
    %5735 = vmatprep.subr.mxu0 0.0
    %5736 = vmatpush1.msra.mxu0 0.0
    %5737 = vmatprep.subr.mxu0 0.0
    %5738 = vmatpush1.msra.mxu0 0.0
    %5739 = vmatprep.subr.mxu0 0.0
    %5740 = vmatpush1.msra.mxu0 0.0
    %5741 = vmatprep.subr.mxu0 0.0
    %5742 = vmatpush1.msra.mxu0 0.0
    %5743 = vmatprep.subr.mxu0 0.0
    %5744 = vmatpush1.msra.mxu0 0.0
    %5745 = vmatprep.subr.mxu0 0.0
    %5746 = vmatpush1.msra.mxu0 0.0
    %5747 = vmatprep.subr.mxu0 0.0
    %5748 = vmatpush1.msra.mxu0 0.0
    %5749 = vmatprep.subr.mxu0 0.0
    %5750 = vmatpush1.msra.mxu0 0.0
    %5751 = vmatprep.subr.mxu0 0.0
    %5752 = vmatpush1.msra.mxu0 0.0
    %5753 = vmatprep.subr.mxu0 0.0
    %5754 = vmatpush1.msra.mxu0 0.0
    %5755 = vmatprep.subr.mxu0 0.0
    %5756 = vmatpush1.msra.mxu0 0.0
    %5757 = vmatprep.subr.mxu0 0.0
    %5758 = vmatpush1.msra.mxu0 0.0
    %5759 = vmatprep.subr.mxu0 0.0
    %5760 = vmatpush1.msra.mxu0 0.0
    %5761 = vmatprep.subr.mxu0 0.0
    %5762 = vmatpush1.msra.mxu0 0.0
    %5763 = vmatprep.subr.mxu0 0.0
    %5764 = vmatpush1.msra.mxu0 0.0
    %5765 = vmatprep.subr.mxu0 0.0
    %5766 = vmatpush1.msra.mxu0 0.0
    %5767 = vmatprep.subr.mxu0 0.0
    %5768 = vmatpush1.msra.mxu0 0.0
    %5769 = vmatprep.subr.mxu0 0.0
    %5770 = vmatpush1.msra.mxu0 0.0
    %5771 = vmatprep.subr.mxu0 0.0
    %5772 = vmatpush1.msra.mxu0 0.0
    %5773 = vmatprep.subr.mxu0 0.0
    %5774 = vmatpush1.msra.mxu0 0.0
    %5775 = vmatprep.subr.mxu0 0.0
    %5776 = vmatpush1.msra.mxu0 0.0
    %5777 = vmatprep.subr.mxu0 0.0
    %5778 = vmatpush1.msra.mxu0 0.0
    %5779 = vmatprep.subr.mxu0 0.0
    %5780 = vmatpush1.msra.mxu0 0.0
    %5781 = vmatprep.mubr.f32.mxu0 0.0
    %5782 = vmatmul.mubr.f32.gmra.mrb[0].mxu0 %v5715
    %v5783 = vpop.f32.mrb[0].mxu0
    %v5784 = vadd.f32 %v5220, %v5783
    %v5785 = vpop.f32.mrb[0].mxu0
    %5786 = vdwg.mxu0
    %v5787 = vxor.u32 %v5784, 2147483648
    %v5788 = vmul.f32 %v5787, 1.442695
    %v5789 = vpow.pop %v5788
    %v5790 = vadd.f32 %v5789, 1.0
    %v5791 = vrcp.pop %v5790
    %v5792 = vmul.f32 1.0, %v5791
    %s5793 = scalar_lea.vmem %s23, 24
    %5794 = vst.msk [vmem:[%s5793] sm:$0xf] %vm5301, %v5792
    %v5795 = vld [vmem:[%s5205] sm:$0xf]
    %v5797 = vsel %vm465, %v5795, 0
    %5799 = vmatprep.subr.mxu0 0.0
    %5800 = vmatpush1.msra.mxu0 %v5210
    %5801 = vmatprep.subr.mxu0 0.0
    %5802 = vmatpush1.msra.mxu0 %v5211
    %5803 = vmatprep.subr.mxu0 0.0
    %5804 = vmatpush1.msra.mxu0 %v5212
    %5805 = vmatprep.subr.mxu0 0.0
    %5806 = vmatpush1.msra.mxu0 %v5213
    %5807 = vmatprep.subr.mxu0 0.0
    %5808 = vmatpush1.msra.mxu0 0.0
    %5809 = vmatprep.subr.mxu0 0.0
    %5810 = vmatpush1.msra.mxu0 0.0
    %5811 = vmatprep.subr.mxu0 0.0
    %5812 = vmatpush1.msra.mxu0 0.0
    %5813 = vmatprep.subr.mxu0 0.0
    %5814 = vmatpush1.msra.mxu0 0.0
    %5815 = vmatprep.subr.mxu0 0.0
    %5816 = vmatpush1.msra.mxu0 0.0
    %5817 = vmatprep.subr.mxu0 0.0
    %5818 = vmatpush1.msra.mxu0 0.0
    %5819 = vmatprep.subr.mxu0 0.0
    %5820 = vmatpush1.msra.mxu0 0.0
    %5821 = vmatprep.subr.mxu0 0.0
    %5822 = vmatpush1.msra.mxu0 0.0
    %5823 = vmatprep.subr.mxu0 0.0
    %5824 = vmatpush1.msra.mxu0 0.0
    %5825 = vmatprep.subr.mxu0 0.0
    %5826 = vmatpush1.msra.mxu0 0.0
    %5827 = vmatprep.subr.mxu0 0.0
    %5828 = vmatpush1.msra.mxu0 0.0
    %5829 = vmatprep.subr.mxu0 0.0
    %5830 = vmatpush1.msra.mxu0 0.0
    %5831 = vmatprep.subr.mxu0 0.0
    %5832 = vmatpush1.msra.mxu0 0.0
    %5833 = vmatprep.subr.mxu0 0.0
    %5834 = vmatpush1.msra.mxu0 0.0
    %5835 = vmatprep.subr.mxu0 0.0
    %5836 = vmatpush1.msra.mxu0 0.0
    %5837 = vmatprep.subr.mxu0 0.0
    %5838 = vmatpush1.msra.mxu0 0.0
    %5839 = vmatprep.subr.mxu0 0.0
    %5840 = vmatpush1.msra.mxu0 0.0
    %5841 = vmatprep.subr.mxu0 0.0
    %5842 = vmatpush1.msra.mxu0 0.0
    %5843 = vmatprep.subr.mxu0 0.0
    %5844 = vmatpush1.msra.mxu0 0.0
    %5845 = vmatprep.subr.mxu0 0.0
    %5846 = vmatpush1.msra.mxu0 0.0
    %5847 = vmatprep.subr.mxu0 0.0
    %5848 = vmatpush1.msra.mxu0 0.0
    %5849 = vmatprep.subr.mxu0 0.0
    %5850 = vmatpush1.msra.mxu0 0.0
    %5851 = vmatprep.subr.mxu0 0.0
    %5852 = vmatpush1.msra.mxu0 0.0
    %5853 = vmatprep.subr.mxu0 0.0
    %5854 = vmatpush1.msra.mxu0 0.0
    %5855 = vmatprep.subr.mxu0 0.0
    %5856 = vmatpush1.msra.mxu0 0.0
    %5857 = vmatprep.subr.mxu0 0.0
    %5858 = vmatpush1.msra.mxu0 0.0
    %5859 = vmatprep.subr.mxu0 0.0
    %5860 = vmatpush1.msra.mxu0 0.0
    %5861 = vmatprep.subr.mxu0 0.0
    %5862 = vmatpush1.msra.mxu0 0.0
    %5863 = vmatprep.mubr.f32.mxu0 0.0
    %5864 = vmatmul.mubr.f32.gmra.mrb[0].mxu0 %v5797
    %v5865 = vpop.f32.mrb[0].mxu0
    %v5866 = vadd.f32 %v5220, %v5865
    %v5867 = vpop.f32.mrb[0].mxu0
    %5868 = vdwg.mxu0
    %v5869 = vxor.u32 %v5866, 2147483648
    %v5870 = vmul.f32 %v5869, 1.442695
    %v5871 = vpow.pop %v5870
    %v5872 = vadd.f32 %v5871, 1.0
    %v5873 = vrcp.pop %v5872
    %v5874 = vmul.f32 1.0, %v5873
    %s5875 = scalar_lea.vmem %s23, 28
    %5876 = vst.msk [vmem:[%s5875] sm:$0xf] %vm5301, %v5874
    // Predicated region
    $region94: #{tpu_custom_call.1} parent=1 // pred_check
      _
    $region95: #{tpu_custom_call.1} parent=1 // pred_check_branch
      %5878 = sbr.rel (0) target = $region97
    $region96: #{tpu_custom_call.1} parent=1 // pred_region
      _
    $region97: #{tpu_custom_call.1} parent=1 // pred_fallthru
      _
    // Predicated region
    $region98: #{tpu_custom_call.1} parent=1 // pred_check
      _
    $region99: #{tpu_custom_call.1} parent=1 // pred_check_branch
      %5880 = sbr.rel (0) target = $region101
    $region100: #{tpu_custom_call.1} parent=1 // pred_region
      %s5882 = ssub.s32 128, 128
      %5883 = vsyncadd [#allocation7], %s5882
      %s5884 = sshll.u32 [#allocation6], 4
      %s5885 = int_to_ptr.vmem [resolvable:$true] %s5884
      %5890 = dma.vmem_to_hbm [thread:$0]  %s5885, 128, %s24, [#allocation7], 64, 64, 4
    $region101: #{tpu_custom_call.1} parent=1 // pred_fallthru
      _
    // Predicated region
    $region102: #{tpu_custom_call.1} parent=1 // pred_check
      _
    $region103: #{tpu_custom_call.1} parent=1 // pred_check_branch
      %5892 = sbr.rel (0) target = $region105
    $region104: #{tpu_custom_call.1} parent=1 // pred_region
      _
    $region105: #{tpu_custom_call.1} parent=1 // pred_fallthru
      _
    // Predicated region
    $region106: #{tpu_custom_call.1} parent=1 // pred_check
      _
    $region107: #{tpu_custom_call.1} parent=1 // pred_check_branch
      %5894 = sbr.rel (0) target = $region109
    $region108: #{tpu_custom_call.1} parent=1 // pred_region
      %5895 = dma.done [#allocation7], 128
    $region109: #{tpu_custom_call.1} parent=1 // pred_fallthru
      _
    %5896 = vsyncpa [#allocation7], 1

</llo_original>
